<compile_context>
chip_gen: v7x
topology: tpu7x:2x2x1
jax: 0.10.0
libtpu: 0.0.40
codegen_flags: <defaults>
</compile_context>

<pallas_src>
import functools
import math

import jax
import jax.numpy as jnp
from jax import lax
from jax.experimental import pallas as pl
from jax.experimental.pallas import tpu as pltpu

_LN_EPS = 1e-5
_HIGHEST = jax.lax.Precision.HIGHEST


def _layer_norm(h, gamma, beta, eps=_LN_EPS):
    """LayerNorm over the last axis (matches torch.nn.LayerNorm defaults)."""
    mu = jnp.mean(h, axis=-1, keepdims=True)
    xc = h - mu
    var = jnp.mean(xc * xc, axis=-1, keepdims=True)
    return xc * lax.rsqrt(var + eps) * gamma + beta


# ---------------------------------------------------------------------------
# Kernels
# ---------------------------------------------------------------------------
def _mlp_critic_kernel(x_ref, w1_ref, b1_ref, g1_ref, be1_ref,
                       w2_ref, b2_ref, g2_ref, be2_ref, o_ref):
    """Fused fc1 -> LN -> ReLU -> fc2 -> LN -> ReLU for one batch tile."""
    x = x_ref[...]                                               # (TB, D)
    h = jnp.dot(x, w1_ref[...], precision=_HIGHEST,
                preferred_element_type=jnp.float32) + b1_ref[...]
    h = _layer_norm(h, g1_ref[...], be1_ref[...])
    h = jnp.maximum(h, 0.0)
    h = jnp.dot(h, w2_ref[...], precision=_HIGHEST,
                preferred_element_type=jnp.float32) + b2_ref[...]
    h = _layer_norm(h, g2_ref[...], be2_ref[...])
    o_ref[...] = jnp.maximum(h, 0.0).astype(o_ref.dtype)


def _residual_encoder_kernel(x_ref, w_in_ref, b_in_ref,
                             ln_g_ref, ln_b_ref, w1_ref, b1_ref,
                             w2_ref, b2_ref, o_ref, *, num_blocks):
    """Fused input Linear + num_blocks residual blocks for one batch tile."""
    h = jnp.dot(x_ref[...], w_in_ref[...], precision=_HIGHEST,
                preferred_element_type=jnp.float32) + b_in_ref[...]   # (TB, H)
    for blk in range(num_blocks):        # static unroll over blocks
        residual = h
        y = _layer_norm(h, ln_g_ref[blk], ln_b_ref[blk])
        y = jnp.dot(y, w1_ref[blk], precision=_HIGHEST,
                    preferred_element_type=jnp.float32) + b1_ref[blk]
        y = jnp.maximum(y, 0.0)
        y = jnp.dot(y, w2_ref[blk], precision=_HIGHEST,
                    preferred_element_type=jnp.float32) + b2_ref[blk]
        h = residual + y
    # NOTE: PyTorch defines `self.norm` in the residual branch but never applies
    # it in forward(); we faithfully skip it.
    o_ref[...] = h.astype(o_ref.dtype)


# ---------------------------------------------------------------------------
# pallas_call wrappers
# ---------------------------------------------------------------------------
def _pick_batch_tile(batch):
    """Biggest sublane-aligned tile that divides the batch.

    When the batch is big enough, prefer >=2 grid steps (with >=128-row tiles)
    so the "parallel" grid axis can shard across both v7x TensorCores.
    """
    if batch >= 256:
        for tb in (512, 256, 128):
            if batch % tb == 0 and batch // tb >= 2:
                return tb
    for tb in (1024, 512, 256, 128, 64, 32, 16, 8):
        if batch % tb == 0:
            return tb
    return batch  # full-extent block is always legal


def _full_spec(arr):
    """BlockSpec that keeps the whole (small) parameter array VMEM-resident."""
    nd = arr.ndim
    return pl.BlockSpec(arr.shape, lambda i, _nd=nd: (0,) * _nd)


def mlp_critic_forward(x, params):
    batch, dim = x.shape
    hidden = params["w1"].shape[1]
    tb = _pick_batch_tile(batch)
    weights = (params["w1"], params["b1"], params["g1"], params["be1"],
               params["w2"], params["b2"], params["g2"], params["be2"])
    return pl.pallas_call(
        _mlp_critic_kernel,
        out_shape=jax.ShapeDtypeStruct((batch, hidden), x.dtype),
        grid=(batch // tb,),
        in_specs=[pl.BlockSpec((tb, dim), lambda i: (i, 0))]
                 + [_full_spec(w) for w in weights],
        out_specs=pl.BlockSpec((tb, hidden), lambda i: (i, 0)),
        compiler_params=pltpu.CompilerParams(
            dimension_semantics=("parallel",)),
    )(x, *weights)


def residual_encoder_forward(x, params, num_blocks):
    batch, dim = x.shape
    hidden = params["w_in"].shape[1]
    tb = _pick_batch_tile(batch)
    weights = (params["w_in"], params["b_in"], params["ln_g"], params["ln_b"],
               params["w1"], params["b1"], params["w2"], params["b2"])
    kernel = functools.partial(_residual_encoder_kernel, num_blocks=num_blocks)
    return pl.pallas_call(
        kernel,
        out_shape=jax.ShapeDtypeStruct((batch, hidden), x.dtype),
        grid=(batch // tb,),
        in_specs=[pl.BlockSpec((tb, dim), lambda i: (i, 0))]
                 + [_full_spec(w) for w in weights],
        out_specs=pl.BlockSpec((tb, hidden), lambda i: (i, 0)),
        compiler_params=pltpu.CompilerParams(
            dimension_semantics=("parallel",)),
    )(x, *weights)


# ---------------------------------------------------------------------------
# Module wrapper (parameters + dispatch + pure-JAX reference)
# ---------------------------------------------------------------------------
def _xavier_uniform(key, shape):
    fan_in, fan_out = shape
    limit = math.sqrt(6.0 / (fan_in + fan_out))
    return jax.random.uniform(key, shape, jnp.float32, -limit, limit)


class SACEncoderCritic:
    """JAX/Pallas port of the PyTorch SACEncoderCritic module."""

    def __init__(self, dim, block_type, num_blocks, hidden_dim, *, key,
                 randomize_affine=False, dtype=jnp.float32):
        self.dim = dim
        self.block_type = block_type
        self.num_blocks = num_blocks
        self.hidden_dim = hidden_dim

        if block_type == "mlp":
            k1, k2, ka = jax.random.split(key, 3)
            p = {
                "w1": _xavier_uniform(k1, (dim, hidden_dim)),
                "w2": _xavier_uniform(k2, (hidden_dim, hidden_dim)),
                "b1": jnp.zeros((1, hidden_dim), dtype),
                "b2": jnp.zeros((1, hidden_dim), dtype),
                "g1": jnp.ones((1, hidden_dim), dtype),
                "be1": jnp.zeros((1, hidden_dim), dtype),
                "g2": jnp.ones((1, hidden_dim), dtype),
                "be2": jnp.zeros((1, hidden_dim), dtype),
            }
            if randomize_affine:
                # Faithful PyTorch init zeroes biases / LN shift; perturb them so
                # the test exercises every term in the kernel numerically.
                ks = jax.random.split(ka, 6)
                p["b1"] = 0.1 * jax.random.normal(ks[0], (1, hidden_dim), dtype)
                p["b2"] = 0.1 * jax.random.normal(ks[1], (1, hidden_dim), dtype)
                p["g1"] = 1.0 + 0.1 * jax.random.normal(ks[2], (1, hidden_dim), dtype)
                p["g2"] = 1.0 + 0.1 * jax.random.normal(ks[3], (1, hidden_dim), dtype)
                p["be1"] = 0.1 * jax.random.normal(ks[4], (1, hidden_dim), dtype)
                p["be2"] = 0.1 * jax.random.normal(ks[5], (1, hidden_dim), dtype)
            self.params = p

        elif block_type == "residual":
            kin, kblocks, ka = jax.random.split(key, 3)
            bkeys = jax.random.split(kblocks, 2 * num_blocks)
            w1 = jnp.stack([_xavier_uniform(bkeys[2 * i], (hidden_dim, hidden_dim))
                            for i in range(num_blocks)])
            w2 = jnp.stack([_xavier_uniform(bkeys[2 * i + 1], (hidden_dim, hidden_dim))
                            for i in range(num_blocks)])
            p = {
                "w_in": _xavier_uniform(kin, (dim, hidden_dim)),
                "b_in": jnp.zeros((1, hidden_dim), dtype),
                "ln_g": jnp.ones((num_blocks, 1, hidden_dim), dtype),
                "ln_b": jnp.zeros((num_blocks, 1, hidden_dim), dtype),
                "w1": w1,
                "b1": jnp.zeros((num_blocks, 1, hidden_dim), dtype),
                "w2": w2,
                "b2": jnp.zeros((num_blocks, 1, hidden_dim), dtype),
            }
            if randomize_affine:
                ks = jax.random.split(ka, 5)
                p["b_in"] = 0.1 * jax.random.normal(ks[0], (1, hidden_dim), dtype)
                p["ln_g"] = 1.0 + 0.1 * jax.random.normal(ks[1], (num_blocks, 1, hidden_dim), dtype)
                p["ln_b"] = 0.1 * jax.random.normal(ks[2], (num_blocks, 1, hidden_dim), dtype)
                p["b1"] = 0.1 * jax.random.normal(ks[3], (num_blocks, 1, hidden_dim), dtype)
                p["b2"] = 0.1 * jax.random.normal(ks[4], (num_blocks, 1, hidden_dim), dtype)
            self.params = p
        else:
            raise ValueError(f"unknown block_type: {block_type}")

    def __call__(self, x):
        if self.block_type == "mlp":
            return mlp_critic_forward(x, self.params)
        return residual_encoder_forward(x, self.params, self.num_blocks)

    # Pure-JAX reference (same math, same params) for correctness checking.
    def reference(self, x):
        p = self.params
        if self.block_type == "mlp":
            h = jnp.dot(x, p["w1"], precision=_HIGHEST) + p["b1"]
            h = _layer_norm(h, p["g1"], p["be1"])
            h = jnp.maximum(h, 0.0)
            h = jnp.dot(h, p["w2"], precision=_HIGHEST) + p["b2"]
            h = _layer_norm(h, p["g2"], p["be2"])
            return jnp.maximum(h, 0.0)
        h = jnp.dot(x, p["w_in"], precision=_HIGHEST) + p["b_in"]
        for blk in range(self.num_blocks):
            residual = h
            y = _layer_norm(h, p["ln_g"][blk], p["ln_b"][blk])
            y = jnp.dot(y, p["w1"][blk], precision=_HIGHEST) + p["b1"][blk]
            y = jnp.maximum(y, 0.0)
            y = jnp.dot(y, p["w2"][blk], precision=_HIGHEST) + p["b2"][blk]
            h = residual + y
        return h


if __name__ == "__main__":
    key = jax.random.PRNGKey(0)
    kx, kres, kmlp = jax.random.split(key, 3)

    # Small, module-consistent shapes: (obs+action) dim 24, hidden 128,
    # 2 residual blocks, batch 256 (-> two 128-row batch tiles in the grid).
    batch, dim, hidden_dim, num_blocks = 256, 24, 128, 2
    x = jax.random.normal(kx, (batch, dim), dtype=jnp.float32)

    # --- 'residual' (SimBa-style) encoder ---
    res_enc = SACEncoderCritic(dim, "residual", num_blocks, hidden_dim,
                               key=kres, randomize_affine=True)
    out_res = jax.block_until_ready(res_enc(x))
    ref_res = res_enc.reference(x)
    assert out_res.shape == (batch, hidden_dim), out_res.shape
    assert jnp.allclose(out_res, ref_res, rtol=1e-4, atol=1e-4), (
        float(jnp.max(jnp.abs(out_res - ref_res))))

    # --- 'mlp' encoder ---
    mlp_enc = SACEncoderCritic(dim, "mlp", num_blocks, hidden_dim,
                               key=kmlp, randomize_affine=True)
    out_mlp = jax.block_until_ready(mlp_enc(x))
    ref_mlp = mlp_enc.reference(x)
    assert out_mlp.shape == (batch, hidden_dim), out_mlp.shape
    assert jnp.allclose(out_mlp, ref_mlp, rtol=1e-4, atol=1e-4), (
        float(jnp.max(jnp.abs(out_mlp - ref_mlp))))

    print("KERNEL_OK")
</pallas_src>

<mosaic_0001>
module attributes {stable_mosaic.version = 11 : i64} {
  func.func @_residual_encoder_kernel(%arg0: i32, %arg1: memref<128x24xf32, #tpu.memory_space<vmem>>, %arg2: memref<24x128xf32, #tpu.memory_space<vmem>>, %arg3: memref<1x128xf32, #tpu.memory_space<vmem>>, %arg4: memref<2x1x128xf32, #tpu.memory_space<vmem>>, %arg5: memref<2x1x128xf32, #tpu.memory_space<vmem>>, %arg6: memref<2x128x128xf32, #tpu.memory_space<vmem>>, %arg7: memref<2x1x128xf32, #tpu.memory_space<vmem>>, %arg8: memref<2x128x128xf32, #tpu.memory_space<vmem>>, %arg9: memref<2x1x128xf32, #tpu.memory_space<vmem>>, %arg10: memref<128x128xf32, #tpu.memory_space<vmem>>) attributes {dimension_semantics = [#tpu.dimension_semantics<parallel>], iteration_bounds = array<i64: 2>, scalar_prefetch = 0 : i64, scratch_operands = 0 : i64, tpu.core_type = #tpu.core_type<tc>, window_params = [{transform_indices = @transform_0, window_bounds = array<i64: 128, 24>}, {pipeline_mode = #tpu.pipeline_mode<synchronous>, transform_indices = @transform_1, window_bounds = array<i64: 24, 128>}, {pipeline_mode = #tpu.pipeline_mode<synchronous>, transform_indices = @transform_2, window_bounds = array<i64: 1, 128>}, {pipeline_mode = #tpu.pipeline_mode<synchronous>, transform_indices = @transform_3, window_bounds = array<i64: 2, 1, 128>}, {pipeline_mode = #tpu.pipeline_mode<synchronous>, transform_indices = @transform_4, window_bounds = array<i64: 2, 1, 128>}, {pipeline_mode = #tpu.pipeline_mode<synchronous>, transform_indices = @transform_5, window_bounds = array<i64: 2, 128, 128>}, {pipeline_mode = #tpu.pipeline_mode<synchronous>, transform_indices = @transform_6, window_bounds = array<i64: 2, 1, 128>}, {pipeline_mode = #tpu.pipeline_mode<synchronous>, transform_indices = @transform_7, window_bounds = array<i64: 2, 128, 128>}, {pipeline_mode = #tpu.pipeline_mode<synchronous>, transform_indices = @transform_8, window_bounds = array<i64: 2, 1, 128>}, {transform_indices = @transform_9, window_bounds = array<i64: 128, 128>}]} {
    %c0 = arith.constant 0 : index
    %c0_0 = arith.constant 0 : index
    %0 = vector.load %arg1[%c0, %c0_0] : memref<128x24xf32, #tpu.memory_space<vmem>>, vector<128x24xf32>
    %c0_1 = arith.constant 0 : index
    %c0_2 = arith.constant 0 : index
    %1 = vector.load %arg2[%c0_1, %c0_2] : memref<24x128xf32, #tpu.memory_space<vmem>>, vector<24x128xf32>
    %cst = arith.constant dense<0.000000e+00> : vector<128x128xf32>
    %2 = tpu.matmul %0, %1, %cst {dimension_numbers = #tpu.dot_dimension_numbers<[1], [0], [0], [1], [0, 0, 1, 1], [], []>, precision = #tpu.contract_precision<fp32>} : vector<128x24xf32>, vector<24x128xf32>, vector<128x128xf32> -> vector<128x128xf32>
    %c0_3 = arith.constant 0 : index
    %c0_4 = arith.constant 0 : index
    %3 = vector.load %arg3[%c0_3, %c0_4] : memref<1x128xf32, #tpu.memory_space<vmem>>, vector<1x128xf32>
    %4 = vector.broadcast %3 : vector<1x128xf32> to vector<128x128xf32>
    %5 = arith.addf %2, %4 : vector<128x128xf32>
    %c0_5 = arith.constant 0 : index
    %c0_6 = arith.constant 0 : index
    %c0_7 = arith.constant 0 : index
    %6 = vector.load %arg4[%c0_5, %c0_6, %c0_7] : memref<2x1x128xf32, #tpu.memory_space<vmem>>, vector<1x1x128xf32>
    %7 = vector.shape_cast %6 : vector<1x1x128xf32> to vector<1x128xf32>
    %c0_8 = arith.constant 0 : index
    %c0_9 = arith.constant 0 : index
    %c0_10 = arith.constant 0 : index
    %8 = vector.load %arg5[%c0_8, %c0_9, %c0_10] : memref<2x1x128xf32, #tpu.memory_space<vmem>>, vector<1x1x128xf32>
    %9 = vector.shape_cast %8 : vector<1x1x128xf32> to vector<1x128xf32>
    %cst_11 = arith.constant dense<0.000000e+00> : vector<128xf32>
    %10 = vector.multi_reduction <add>, %5, %cst_11 [1] : vector<128x128xf32> to vector<128xf32>
    %11 = vector.shape_cast %10 : vector<128xf32> to vector<128x1xf32>
    %cst_12 = arith.constant 1.280000e+02 : f32
    %12 = vector.broadcast %cst_12 : f32 to vector<128x1xf32>
    %13 = arith.divf %11, %12 : vector<128x1xf32>
    %14 = vector.broadcast %13 : vector<128x1xf32> to vector<128x128xf32>
    %15 = arith.subf %5, %14 : vector<128x128xf32>
    %16 = arith.mulf %15, %15 : vector<128x128xf32>
    %cst_13 = arith.constant dense<0.000000e+00> : vector<128xf32>
    %17 = vector.multi_reduction <add>, %16, %cst_13 [1] : vector<128x128xf32> to vector<128xf32>
    %18 = vector.shape_cast %17 : vector<128xf32> to vector<128x1xf32>
    %cst_14 = arith.constant 1.280000e+02 : f32
    %19 = vector.broadcast %cst_14 : f32 to vector<128x1xf32>
    %20 = arith.divf %18, %19 : vector<128x1xf32>
    %cst_15 = arith.constant 9.99999974E-6 : f32
    %21 = vector.broadcast %cst_15 : f32 to vector<128x1xf32>
    %22 = arith.addf %20, %21 : vector<128x1xf32>
    %23 = math.rsqrt %22 : vector<128x1xf32>
    %24 = vector.broadcast %23 : vector<128x1xf32> to vector<128x128xf32>
    %25 = arith.mulf %15, %24 : vector<128x128xf32>
    %26 = vector.broadcast %7 : vector<1x128xf32> to vector<128x128xf32>
    %27 = arith.mulf %25, %26 : vector<128x128xf32>
    %28 = vector.broadcast %9 : vector<1x128xf32> to vector<128x128xf32>
    %29 = arith.addf %27, %28 : vector<128x128xf32>
    %c0_16 = arith.constant 0 : index
    %c0_17 = arith.constant 0 : index
    %c0_18 = arith.constant 0 : index
    %30 = vector.load %arg6[%c0_16, %c0_17, %c0_18] : memref<2x128x128xf32, #tpu.memory_space<vmem>>, vector<1x128x128xf32>
    %31 = vector.shape_cast %30 : vector<1x128x128xf32> to vector<128x128xf32>
    %cst_19 = arith.constant dense<0.000000e+00> : vector<128x128xf32>
    %32 = tpu.matmul %29, %31, %cst_19 {dimension_numbers = #tpu.dot_dimension_numbers<[1], [0], [0], [1], [0, 0, 1, 1], [], []>, precision = #tpu.contract_precision<fp32>} : vector<128x128xf32>, vector<128x128xf32>, vector<128x128xf32> -> vector<128x128xf32>
    %c0_20 = arith.constant 0 : index
    %c0_21 = arith.constant 0 : index
    %c0_22 = arith.constant 0 : index
    %33 = vector.load %arg7[%c0_20, %c0_21, %c0_22] : memref<2x1x128xf32, #tpu.memory_space<vmem>>, vector<1x1x128xf32>
    %34 = vector.shape_cast %33 : vector<1x1x128xf32> to vector<1x128xf32>
    %35 = vector.broadcast %34 : vector<1x128xf32> to vector<128x128xf32>
    %36 = arith.addf %32, %35 : vector<128x128xf32>
    %cst_23 = arith.constant 0.000000e+00 : f32
    %37 = vector.broadcast %cst_23 : f32 to vector<128x128xf32>
    %38 = arith.maximumf %36, %37 : vector<128x128xf32>
    %c0_24 = arith.constant 0 : index
    %c0_25 = arith.constant 0 : index
    %c0_26 = arith.constant 0 : index
    %39 = vector.load %arg8[%c0_24, %c0_25, %c0_26] : memref<2x128x128xf32, #tpu.memory_space<vmem>>, vector<1x128x128xf32>
    %40 = vector.shape_cast %39 : vector<1x128x128xf32> to vector<128x128xf32>
    %cst_27 = arith.constant dense<0.000000e+00> : vector<128x128xf32>
    %41 = tpu.matmul %38, %40, %cst_27 {dimension_numbers = #tpu.dot_dimension_numbers<[1], [0], [0], [1], [0, 0, 1, 1], [], []>, precision = #tpu.contract_precision<fp32>} : vector<128x128xf32>, vector<128x128xf32>, vector<128x128xf32> -> vector<128x128xf32>
    %c0_28 = arith.constant 0 : index
    %c0_29 = arith.constant 0 : index
    %c0_30 = arith.constant 0 : index
    %42 = vector.load %arg9[%c0_28, %c0_29, %c0_30] : memref<2x1x128xf32, #tpu.memory_space<vmem>>, vector<1x1x128xf32>
    %43 = vector.shape_cast %42 : vector<1x1x128xf32> to vector<1x128xf32>
    %44 = vector.broadcast %43 : vector<1x128xf32> to vector<128x128xf32>
    %45 = arith.addf %41, %44 : vector<128x128xf32>
    %46 = arith.addf %5, %45 : vector<128x128xf32>
    %c1 = arith.constant 1 : index
    %c0_31 = arith.constant 0 : index
    %c0_32 = arith.constant 0 : index
    %47 = vector.load %arg4[%c1, %c0_31, %c0_32] : memref<2x1x128xf32, #tpu.memory_space<vmem>>, vector<1x1x128xf32>
    %48 = vector.shape_cast %47 : vector<1x1x128xf32> to vector<1x128xf32>
    %c1_33 = arith.constant 1 : index
    %c0_34 = arith.constant 0 : index
    %c0_35 = arith.constant 0 : index
    %49 = vector.load %arg5[%c1_33, %c0_34, %c0_35] : memref<2x1x128xf32, #tpu.memory_space<vmem>>, vector<1x1x128xf32>
    %50 = vector.shape_cast %49 : vector<1x1x128xf32> to vector<1x128xf32>
    %cst_36 = arith.constant dense<0.000000e+00> : vector<128xf32>
    %51 = vector.multi_reduction <add>, %46, %cst_36 [1] : vector<128x128xf32> to vector<128xf32>
    %52 = vector.shape_cast %51 : vector<128xf32> to vector<128x1xf32>
    %cst_37 = arith.constant 1.280000e+02 : f32
    %53 = vector.broadcast %cst_37 : f32 to vector<128x1xf32>
    %54 = arith.divf %52, %53 : vector<128x1xf32>
    %55 = vector.broadcast %54 : vector<128x1xf32> to vector<128x128xf32>
    %56 = arith.subf %46, %55 : vector<128x128xf32>
    %57 = arith.mulf %56, %56 : vector<128x128xf32>
    %cst_38 = arith.constant dense<0.000000e+00> : vector<128xf32>
    %58 = vector.multi_reduction <add>, %57, %cst_38 [1] : vector<128x128xf32> to vector<128xf32>
    %59 = vector.shape_cast %58 : vector<128xf32> to vector<128x1xf32>
    %cst_39 = arith.constant 1.280000e+02 : f32
    %60 = vector.broadcast %cst_39 : f32 to vector<128x1xf32>
    %61 = arith.divf %59, %60 : vector<128x1xf32>
    %cst_40 = arith.constant 9.99999974E-6 : f32
    %62 = vector.broadcast %cst_40 : f32 to vector<128x1xf32>
    %63 = arith.addf %61, %62 : vector<128x1xf32>
    %64 = math.rsqrt %63 : vector<128x1xf32>
    %65 = vector.broadcast %64 : vector<128x1xf32> to vector<128x128xf32>
    %66 = arith.mulf %56, %65 : vector<128x128xf32>
    %67 = vector.broadcast %48 : vector<1x128xf32> to vector<128x128xf32>
    %68 = arith.mulf %66, %67 : vector<128x128xf32>
    %69 = vector.broadcast %50 : vector<1x128xf32> to vector<128x128xf32>
    %70 = arith.addf %68, %69 : vector<128x128xf32>
    %c1_41 = arith.constant 1 : index
    %c0_42 = arith.constant 0 : index
    %c0_43 = arith.constant 0 : index
    %71 = vector.load %arg6[%c1_41, %c0_42, %c0_43] : memref<2x128x128xf32, #tpu.memory_space<vmem>>, vector<1x128x128xf32>
    %72 = vector.shape_cast %71 : vector<1x128x128xf32> to vector<128x128xf32>
    %cst_44 = arith.constant dense<0.000000e+00> : vector<128x128xf32>
    %73 = tpu.matmul %70, %72, %cst_44 {dimension_numbers = #tpu.dot_dimension_numbers<[1], [0], [0], [1], [0, 0, 1, 1], [], []>, precision = #tpu.contract_precision<fp32>} : vector<128x128xf32>, vector<128x128xf32>, vector<128x128xf32> -> vector<128x128xf32>
    %c1_45 = arith.constant 1 : index
    %c0_46 = arith.constant 0 : index
    %c0_47 = arith.constant 0 : index
    %74 = vector.load %arg7[%c1_45, %c0_46, %c0_47] : memref<2x1x128xf32, #tpu.memory_space<vmem>>, vector<1x1x128xf32>
    %75 = vector.shape_cast %74 : vector<1x1x128xf32> to vector<1x128xf32>
    %76 = vector.broadcast %75 : vector<1x128xf32> to vector<128x128xf32>
    %77 = arith.addf %73, %76 : vector<128x128xf32>
    %cst_48 = arith.constant 0.000000e+00 : f32
    %78 = vector.broadcast %cst_48 : f32 to vector<128x128xf32>
    %79 = arith.maximumf %77, %78 : vector<128x128xf32>
    %c1_49 = arith.constant 1 : index
    %c0_50 = arith.constant 0 : index
    %c0_51 = arith.constant 0 : index
    %80 = vector.load %arg8[%c1_49, %c0_50, %c0_51] : memref<2x128x128xf32, #tpu.memory_space<vmem>>, vector<1x128x128xf32>
    %81 = vector.shape_cast %80 : vector<1x128x128xf32> to vector<128x128xf32>
    %cst_52 = arith.constant dense<0.000000e+00> : vector<128x128xf32>
    %82 = tpu.matmul %79, %81, %cst_52 {dimension_numbers = #tpu.dot_dimension_numbers<[1], [0], [0], [1], [0, 0, 1, 1], [], []>, precision = #tpu.contract_precision<fp32>} : vector<128x128xf32>, vector<128x128xf32>, vector<128x128xf32> -> vector<128x128xf32>
    %c1_53 = arith.constant 1 : index
    %c0_54 = arith.constant 0 : index
    %c0_55 = arith.constant 0 : index
    %83 = vector.load %arg9[%c1_53, %c0_54, %c0_55] : memref<2x1x128xf32, #tpu.memory_space<vmem>>, vector<1x1x128xf32>
    %84 = vector.shape_cast %83 : vector<1x1x128xf32> to vector<1x128xf32>
    %85 = vector.broadcast %84 : vector<1x128xf32> to vector<128x128xf32>
    %86 = arith.addf %82, %85 : vector<128x128xf32>
    %87 = arith.addf %46, %86 : vector<128x128xf32>
    %c0_56 = arith.constant 0 : index
    %c0_57 = arith.constant 0 : index
    %88 = vector.load %arg10[%c0_56, %c0_57] : memref<128x128xf32, #tpu.memory_space<vmem>>, vector<128x128xf32>
    tpu.vector_store %arg10[%c0_56, %c0_57], %87 {strides = array<i32>} : memref<128x128xf32, #tpu.memory_space<vmem>>, vector<128x128xf32>,
    return
  }
  func.func @transform_0(%arg0: i32) -> (i32, i32) {
    %c0_i32 = arith.constant 0 : i32
    %c0_i32_0 = arith.constant 0 : i32
    return %arg0, %c0_i32 : i32, i32
  }
  func.func @transform_1(%arg0: i32) -> (i32, i32) {
    %c0_i32 = arith.constant 0 : i32
    %c0_i32_0 = arith.constant 0 : i32
    %c0_i32_1 = arith.constant 0 : i32
    return %c0_i32, %c0_i32_0 : i32, i32
  }
  func.func @transform_2(%arg0: i32) -> (i32, i32) {
    %c0_i32 = arith.constant 0 : i32
    %c0_i32_0 = arith.constant 0 : i32
    %c0_i32_1 = arith.constant 0 : i32
    return %c0_i32, %c0_i32_0 : i32, i32
  }
  func.func @transform_3(%arg0: i32) -> (i32, i32, i32) {
    %c0_i32 = arith.constant 0 : i32
    %c0_i32_0 = arith.constant 0 : i32
    %c0_i32_1 = arith.constant 0 : i32
    %c0_i32_2 = arith.constant 0 : i32
    return %c0_i32, %c0_i32_0, %c0_i32_1 : i32, i32, i32
  }
  func.func @transform_4(%arg0: i32) -> (i32, i32, i32) {
    %c0_i32 = arith.constant 0 : i32
    %c0_i32_0 = arith.constant 0 : i32
    %c0_i32_1 = arith.constant 0 : i32
    %c0_i32_2 = arith.constant 0 : i32
    return %c0_i32, %c0_i32_0, %c0_i32_1 : i32, i32, i32
  }
  func.func @transform_5(%arg0: i32) -> (i32, i32, i32) {
    %c0_i32 = arith.constant 0 : i32
    %c0_i32_0 = arith.constant 0 : i32
    %c0_i32_1 = arith.constant 0 : i32
    %c0_i32_2 = arith.constant 0 : i32
    return %c0_i32, %c0_i32_0, %c0_i32_1 : i32, i32, i32
  }
  func.func @transform_6(%arg0: i32) -> (i32, i32, i32) {
    %c0_i32 = arith.constant 0 : i32
    %c0_i32_0 = arith.constant 0 : i32
    %c0_i32_1 = arith.constant 0 : i32
    %c0_i32_2 = arith.constant 0 : i32
    return %c0_i32, %c0_i32_0, %c0_i32_1 : i32, i32, i32
  }
  func.func @transform_7(%arg0: i32) -> (i32, i32, i32) {
    %c0_i32 = arith.constant 0 : i32
    %c0_i32_0 = arith.constant 0 : i32
    %c0_i32_1 = arith.constant 0 : i32
    %c0_i32_2 = arith.constant 0 : i32
    return %c0_i32, %c0_i32_0, %c0_i32_1 : i32, i32, i32
  }
  func.func @transform_8(%arg0: i32) -> (i32, i32, i32) {
    %c0_i32 = arith.constant 0 : i32
    %c0_i32_0 = arith.constant 0 : i32
    %c0_i32_1 = arith.constant 0 : i32
    %c0_i32_2 = arith.constant 0 : i32
    return %c0_i32, %c0_i32_0, %c0_i32_1 : i32, i32, i32
  }
  func.func @transform_9(%arg0: i32) -> (i32, i32) {
    %c0_i32 = arith.constant 0 : i32
    %c0_i32_0 = arith.constant 0 : i32
    return %arg0, %c0_i32 : i32, i32
  }
}

</mosaic_0001>

<llo_original>
// kernel: tpu_custom_call.1
$region0: #{tpu_custom_call.1}
  #allocation0 [shape = 'u32[]', space=smem, size = 0x4, offset = 0x4, fixed_abs, tag = 'smem constant byte address 0x4 - core index']
  #allocation1 [shape = 'u32[144,128]{1,0:T(1,128)}', space=vmem, size = 0x12000, scoped, tag = 'internal scratch']
  %s0 = inlined_call_operand.vmem [shape: f32[256,24], index: 0, kind: input, shape index: {}]
  %s1 = inlined_call_operand.vmem [shape: f32[24,128], index: 1, kind: input, shape index: {}]
  %s2 = inlined_call_operand.vmem [shape: f32[1,128], index: 2, kind: input, shape index: {}]
  %s3 = inlined_call_operand.vmem [shape: f32[2,1,128], index: 3, kind: input, shape index: {}]
  %s4 = inlined_call_operand.vmem [shape: f32[2,1,128], index: 4, kind: input, shape index: {}]
  %s5 = inlined_call_operand.vmem [shape: f32[2,128,128], index: 5, kind: input, shape index: {}]
  %s6 = inlined_call_operand.vmem [shape: f32[2,1,128], index: 6, kind: input, shape index: {}]
  %s7 = inlined_call_operand.hbm [shape: f32[2,128,128], index: 7, kind: input, shape index: {}]
  %s8 = inlined_call_operand.vmem [shape: f32[2,1,128], index: 8, kind: input, shape index: {}]
  %s9 = inlined_call_operand.hbm [shape: f32[256,128], index: 9, kind: output, shape index: {}]
  %s10 = sld [smem:[#allocation0]]
  $region73: #{tpu_custom_call.1} parent=0
    _
  %s12 = ssub.s32 1, %s10
  %s13 = scalar_select 0, %s12, %s10
  $region1: #{tpu_custom_call.1} parent=0
    #allocation2 [shape = 'u8[131072]{0}', space=vmem, size = 0x20000, scoped, tag = 'input window, operand 7, single buffered']
    #allocation3 [shape = 's32[2]{0}', space=sflag, size = 0x8, scoped, tag = 'scoped memory for tpu_custom_call.1']
    #allocation4 [shape = 's32[2]{0}', space=sflag, size = 0x8, scoped, tag = 'scoped memory for tpu_custom_call.1']
    #allocation5 [shape = 'u8[131072]{0}', space=vmem, size = 0x20000, scoped, tag = 'output window, operand 0']
    %14 = vsyncpa [#allocation3], 0
    %15 = vsyncpa [#allocation4], 0
    %s16 = scalar_lea.sflag [#allocation4], 1
    %17 = vsyncpa %s16, 0
    loop: start=0, step=1, limit=4
    $region2: #{tpu_custom_call.1} parent=1 // loop_pre_header
      _
    $region3: #{tpu_custom_call.1} parent=1 // loop_header
      %s19 = sphi 0, %s23
      %p20 = scmp.ge.s32.totalorder %s19, 4
      %s29 = sphi 0, %s31
      %s32 = sphi 0, %s29
      %s33 = sphi 0, %s32
      %s49 = sphi 0, %s33
      %s53 = sphi 0, %s53
      %s55 = sphi 0, %s53
      %s56 = sphi 0, %s55
      %s70 = sphi 0, %s56
      %s74 = sphi 0, %s74
      %s76 = sphi 0, %s74
      %s77 = sphi 0, %s76
      %s91 = sphi 0, %s77
      %s95 = sphi 0, %s95
      %s97 = sphi 0, %s95
      %s98 = sphi 0, %s97
      %s112 = sphi 0, %s98
      %s116 = sphi 0, %s116
      %s118 = sphi 0, %s116
      %s119 = sphi 0, %s118
      %s133 = sphi 0, %s119
      %s137 = sphi 0, %s137
      %s139 = sphi 0, %s137
      %s140 = sphi 0, %s139
      %s154 = sphi 0, %s140
      %s158 = sphi 0, %s158
      %s160 = sphi 0, %s158
      %s161 = sphi 0, %s160
      %s175 = sphi 0, %s161
      %s179 = sphi 0, %s179
      %s181 = sphi 0, %s179
      %s182 = sphi 0, %s181
      %s196 = sphi 0, %s182
      %s200 = sphi 0, %s200
      %s202 = sphi 0, %s200
      %s203 = sphi 0, %s202
      %s217 = sphi 0, %s203
      %s223 = sphi 0, %s225
      %s226 = sphi 0, %s223
      %s227 = sphi 0, %s226
      %s243 = sphi 0, %s227
    $region4: #{tpu_custom_call.1} parent=1 // loop_header_branch
      %22 = sbr.rel (%p20) target = $region8
    $region5: #{tpu_custom_call.1} parent=1 // loop_body
      %s24 = ssub.s32 %s19, 1
      %s25 = ssub.s32 %s19, 2
      %s26 = sadd.s32 %s19, 1
      %s27 = ssub.s32 %s19, %s26
      %p28 = scmp.eq.s32.totalorder %s27, 0
      %s30 = sadd.s32 %s29, 1
      %s31 = scalar_select %p28, %s29, %s30
      %p34 = pneg %p28
      %p35 = scmp.eq.s32.totalorder %s19, 1
      %p36 = por %p34, %p35
      %p37 = scmp.ne.s32.totalorder %s29, %s32
      %p38 = scmp.eq.s32.totalorder %s19, 0
      %p39 = por %p37, %p38
      %p40 = scmp.ne.s32.totalorder %s29, %s32
      %p41 = scmp.eq.s32.totalorder %s24, 1
      %p42 = por %p40, %p41
      %p43 = scmp.ne.s32.totalorder %s32, %s33
      %p44 = scmp.eq.s32.totalorder %s24, 0
      %p45 = por %p43, %p44
      %p46 = scmp.ne.s32.totalorder %s32, %s33
      %p47 = scmp.eq.s32.totalorder %s25, 1
      %p48 = por %p46, %p47
      %p50 = scmp.ne.s32.totalorder %s33, %s49
      %p51 = scmp.eq.s32.totalorder %s25, 0
      %p52 = por %p50, %p51
      %s54 = sadd.s32 %s53, 1
      %p57 = scmp.eq.s32.totalorder %s19, 1
      %p58 = scmp.ne.s32.totalorder %s53, %s55
      %p59 = scmp.eq.s32.totalorder %s19, 0
      %p60 = por %p58, %p59
      %p61 = scmp.ne.s32.totalorder %s53, %s55
      %p62 = scmp.eq.s32.totalorder %s24, 1
      %p63 = por %p61, %p62
      %p64 = scmp.ne.s32.totalorder %s55, %s56
      %p65 = scmp.eq.s32.totalorder %s24, 0
      %p66 = por %p64, %p65
      %p67 = scmp.ne.s32.totalorder %s55, %s56
      %p68 = scmp.eq.s32.totalorder %s25, 1
      %p69 = por %p67, %p68
      %p71 = scmp.ne.s32.totalorder %s56, %s70
      %p72 = scmp.eq.s32.totalorder %s25, 0
      %p73 = por %p71, %p72
      %s75 = sadd.s32 %s74, 1
      %p78 = scmp.eq.s32.totalorder %s19, 1
      %p79 = scmp.ne.s32.totalorder %s74, %s76
      %p80 = scmp.eq.s32.totalorder %s19, 0
      %p81 = por %p79, %p80
      %p82 = scmp.ne.s32.totalorder %s74, %s76
      %p83 = scmp.eq.s32.totalorder %s24, 1
      %p84 = por %p82, %p83
      %p85 = scmp.ne.s32.totalorder %s76, %s77
      %p86 = scmp.eq.s32.totalorder %s24, 0
      %p87 = por %p85, %p86
      %p88 = scmp.ne.s32.totalorder %s76, %s77
      %p89 = scmp.eq.s32.totalorder %s25, 1
      %p90 = por %p88, %p89
      %p92 = scmp.ne.s32.totalorder %s77, %s91
      %p93 = scmp.eq.s32.totalorder %s25, 0
      %p94 = por %p92, %p93
      %s96 = sadd.s32 %s95, 1
      %p99 = scmp.eq.s32.totalorder %s19, 1
      %p100 = scmp.ne.s32.totalorder %s95, %s97
      %p101 = scmp.eq.s32.totalorder %s19, 0
      %p102 = por %p100, %p101
      %p103 = scmp.ne.s32.totalorder %s95, %s97
      %p104 = scmp.eq.s32.totalorder %s24, 1
      %p105 = por %p103, %p104
      %p106 = scmp.ne.s32.totalorder %s97, %s98
      %p107 = scmp.eq.s32.totalorder %s24, 0
      %p108 = por %p106, %p107
      %p109 = scmp.ne.s32.totalorder %s97, %s98
      %p110 = scmp.eq.s32.totalorder %s25, 1
      %p111 = por %p109, %p110
      %p113 = scmp.ne.s32.totalorder %s98, %s112
      %p114 = scmp.eq.s32.totalorder %s25, 0
      %p115 = por %p113, %p114
      %s117 = sadd.s32 %s116, 1
      %p120 = scmp.eq.s32.totalorder %s19, 1
      %p121 = scmp.ne.s32.totalorder %s116, %s118
      %p122 = scmp.eq.s32.totalorder %s19, 0
      %p123 = por %p121, %p122
      %p124 = scmp.ne.s32.totalorder %s116, %s118
      %p125 = scmp.eq.s32.totalorder %s24, 1
      %p126 = por %p124, %p125
      %p127 = scmp.ne.s32.totalorder %s118, %s119
      %p128 = scmp.eq.s32.totalorder %s24, 0
      %p129 = por %p127, %p128
      %p130 = scmp.ne.s32.totalorder %s118, %s119
      %p131 = scmp.eq.s32.totalorder %s25, 1
      %p132 = por %p130, %p131
      %p134 = scmp.ne.s32.totalorder %s119, %s133
      %p135 = scmp.eq.s32.totalorder %s25, 0
      %p136 = por %p134, %p135
      %s138 = sadd.s32 %s137, 1
      %p141 = scmp.eq.s32.totalorder %s19, 1
      %p142 = scmp.ne.s32.totalorder %s137, %s139
      %p143 = scmp.eq.s32.totalorder %s19, 0
      %p144 = por %p142, %p143
      %p145 = scmp.ne.s32.totalorder %s137, %s139
      %p146 = scmp.eq.s32.totalorder %s24, 1
      %p147 = por %p145, %p146
      %p148 = scmp.ne.s32.totalorder %s139, %s140
      %p149 = scmp.eq.s32.totalorder %s24, 0
      %p150 = por %p148, %p149
      %p151 = scmp.ne.s32.totalorder %s139, %s140
      %p152 = scmp.eq.s32.totalorder %s25, 1
      %p153 = por %p151, %p152
      %p155 = scmp.ne.s32.totalorder %s140, %s154
      %p156 = scmp.eq.s32.totalorder %s25, 0
      %p157 = por %p155, %p156
      %s159 = sadd.s32 %s158, 1
      %p162 = scmp.eq.s32.totalorder %s19, 1
      %p163 = scmp.ne.s32.totalorder %s158, %s160
      %p164 = scmp.eq.s32.totalorder %s19, 0
      %p165 = por %p163, %p164
      %p166 = scmp.ne.s32.totalorder %s158, %s160
      %p167 = scmp.eq.s32.totalorder %s24, 1
      %p168 = por %p166, %p167
      %p169 = scmp.ne.s32.totalorder %s160, %s161
      %p170 = scmp.eq.s32.totalorder %s24, 0
      %p171 = por %p169, %p170
      %p172 = scmp.ne.s32.totalorder %s160, %s161
      %p173 = scmp.eq.s32.totalorder %s25, 1
      %p174 = por %p172, %p173
      %p176 = scmp.ne.s32.totalorder %s161, %s175
      %p177 = scmp.eq.s32.totalorder %s25, 0
      %p178 = por %p176, %p177
      %s180 = sadd.s32 %s179, 1
      %p183 = scmp.eq.s32.totalorder %s19, 1
      %p184 = scmp.ne.s32.totalorder %s179, %s181
      %p185 = scmp.eq.s32.totalorder %s19, 0
      %p186 = por %p184, %p185
      %p187 = scmp.ne.s32.totalorder %s179, %s181
      %p188 = scmp.eq.s32.totalorder %s24, 1
      %p189 = por %p187, %p188
      %p190 = scmp.ne.s32.totalorder %s181, %s182
      %p191 = scmp.eq.s32.totalorder %s24, 0
      %p192 = por %p190, %p191
      %p193 = scmp.ne.s32.totalorder %s181, %s182
      %p194 = scmp.eq.s32.totalorder %s25, 1
      %p195 = por %p193, %p194
      %p197 = scmp.ne.s32.totalorder %s182, %s196
      %p198 = scmp.eq.s32.totalorder %s25, 0
      %p199 = por %p197, %p198
      %s201 = sadd.s32 %s200, 1
      %p204 = scmp.eq.s32.totalorder %s19, 1
      %p205 = scmp.ne.s32.totalorder %s200, %s202
      %p206 = scmp.eq.s32.totalorder %s19, 0
      %p207 = por %p205, %p206
      %p208 = scmp.ne.s32.totalorder %s200, %s202
      %p209 = scmp.eq.s32.totalorder %s24, 1
      %p210 = por %p208, %p209
      %p211 = scmp.ne.s32.totalorder %s202, %s203
      %p212 = scmp.eq.s32.totalorder %s24, 0
      %p213 = por %p211, %p212
      %p214 = scmp.ne.s32.totalorder %s202, %s203
      %p215 = scmp.eq.s32.totalorder %s25, 1
      %p216 = por %p214, %p215
      %p218 = scmp.ne.s32.totalorder %s203, %s217
      %p219 = scmp.eq.s32.totalorder %s25, 0
      %p220 = por %p218, %p219
      %s221 = ssub.s32 %s19, %s26
      %p222 = scmp.eq.s32.totalorder %s221, 0
      %s224 = sadd.s32 %s223, 1
      %s225 = scalar_select %p222, %s223, %s224
      %p228 = pneg %p222
      %p229 = scmp.eq.s32.totalorder %s19, 1
      %p230 = por %p228, %p229
      %p231 = scmp.ne.s32.totalorder %s223, %s226
      %p232 = scmp.eq.s32.totalorder %s19, 0
      %p233 = por %p231, %p232
      %p234 = scmp.ne.s32.totalorder %s223, %s226
      %p235 = scmp.eq.s32.totalorder %s24, 1
      %p236 = por %p234, %p235
      %p237 = scmp.ne.s32.totalorder %s226, %s227
      %p238 = scmp.eq.s32.totalorder %s24, 0
      %p239 = por %p237, %p238
      %p240 = scmp.ne.s32.totalorder %s226, %s227
      %p241 = scmp.eq.s32.totalorder %s25, 1
      %p242 = por %p240, %p241
      %p244 = scmp.ne.s32.totalorder %s227, %s243
      %p245 = scmp.eq.s32.totalorder %s25, 0
      %p246 = por %p244, %p245
      %p247 = scmp.le.s32.totalorder 1, %s19
      %p248 = scmp.lt.s32.totalorder %s19, 3
      %p249 = pnand %p247, %p248
      %p250 = pneg %p249
      // Predicated region
      $region9: #{tpu_custom_call.1} parent=5 // pred_check
        _
      $region10: #{tpu_custom_call.1} parent=5 // pred_check_branch
        %252 = sbr.rel (%p249) target = $region12
      $region11: #{tpu_custom_call.1} parent=5 // pred_region
        %s253 = ssub.s32 %s19, 1
        // Predicated region
        $region13: #{tpu_custom_call.1} parent=11 // pred_check
          %p254 = pneg %p66
        $region14: #{tpu_custom_call.1} parent=11 // pred_check_branch
          %256 = sbr.rel (%p254) target = $region16
        $region15: #{tpu_custom_call.1} parent=11 // pred_region
          _
        $region16: #{tpu_custom_call.1} parent=11 // pred_fallthru
          _
        // Predicated region
        $region17: #{tpu_custom_call.1} parent=11 // pred_check
          %p257 = pneg %p87
        $region18: #{tpu_custom_call.1} parent=11 // pred_check_branch
          %259 = sbr.rel (%p257) target = $region20
        $region19: #{tpu_custom_call.1} parent=11 // pred_region
          _
        $region20: #{tpu_custom_call.1} parent=11 // pred_fallthru
          _
        // Predicated region
        $region21: #{tpu_custom_call.1} parent=11 // pred_check
          %p260 = pneg %p108
        $region22: #{tpu_custom_call.1} parent=11 // pred_check_branch
          %262 = sbr.rel (%p260) target = $region24
        $region23: #{tpu_custom_call.1} parent=11 // pred_region
          _
        $region24: #{tpu_custom_call.1} parent=11 // pred_fallthru
          _
        // Predicated region
        $region25: #{tpu_custom_call.1} parent=11 // pred_check
          %p263 = pneg %p129
        $region26: #{tpu_custom_call.1} parent=11 // pred_check_branch
          %265 = sbr.rel (%p263) target = $region28
        $region27: #{tpu_custom_call.1} parent=11 // pred_region
          _
        $region28: #{tpu_custom_call.1} parent=11 // pred_fallthru
          _
        // Predicated region
        $region29: #{tpu_custom_call.1} parent=11 // pred_check
          %p266 = pneg %p150
        $region30: #{tpu_custom_call.1} parent=11 // pred_check_branch
          %268 = sbr.rel (%p266) target = $region32
        $region31: #{tpu_custom_call.1} parent=11 // pred_region
          _
        $region32: #{tpu_custom_call.1} parent=11 // pred_fallthru
          _
        // Predicated region
        $region33: #{tpu_custom_call.1} parent=11 // pred_check
          %p269 = pneg %p171
        $region34: #{tpu_custom_call.1} parent=11 // pred_check_branch
          %271 = sbr.rel (%p269) target = $region36
        $region35: #{tpu_custom_call.1} parent=11 // pred_region
          _
        $region36: #{tpu_custom_call.1} parent=11 // pred_fallthru
          _
        // Predicated region
        $region37: #{tpu_custom_call.1} parent=11 // pred_check
          %p272 = pneg %p192
        $region38: #{tpu_custom_call.1} parent=11 // pred_check_branch
          %274 = sbr.rel (%p272) target = $region40
        $region39: #{tpu_custom_call.1} parent=11 // pred_region
          %s276 = ssub.s32 4096, 4096
          %277 = vsyncadd [#allocation3], %s276
          %s278 = sshll.u32 [#allocation2], 4
          %s279 = int_to_ptr.vmem [resolvable:$true] %s278
          %284 = dma.hbm_to_vmem [thread:$0]  %s7, 4096, %s279, [#allocation3], 128, 128, 8
        $region40: #{tpu_custom_call.1} parent=11 // pred_fallthru
          _
        // Predicated region
        $region41: #{tpu_custom_call.1} parent=11 // pred_check
          %p285 = pneg %p213
        $region42: #{tpu_custom_call.1} parent=11 // pred_check_branch
          %287 = sbr.rel (%p285) target = $region44
        $region43: #{tpu_custom_call.1} parent=11 // pred_region
          _
        $region44: #{tpu_custom_call.1} parent=11 // pred_fallthru
          _
      $region12: #{tpu_custom_call.1} parent=5 // pred_fallthru
        _
      %p288 = scmp.lt.s32.totalorder %s19, 2
      // Predicated region
      $region45: #{tpu_custom_call.1} parent=5 // pred_check
        %p289 = pneg %p288
      $region46: #{tpu_custom_call.1} parent=5 // pred_check_branch
        %291 = sbr.rel (%p289) target = $region48
      $region47: #{tpu_custom_call.1} parent=5 // pred_region
        // Predicated region
        $region49: #{tpu_custom_call.1} parent=47 // pred_check
          %p292 = pneg %p39
        $region50: #{tpu_custom_call.1} parent=47 // pred_check_branch
          %294 = sbr.rel (%p292) target = $region52
        $region51: #{tpu_custom_call.1} parent=47 // pred_region
          %s295 = smul.u32 16, %s19
          %p296 = scmp.lt.s32.totalorder %s295, 31
          %s297 = scalar_select %p296, %s295, 31
          %s298 = smul.addr %s297, 8
          %s299 = scalar_lea.vmem %s0, %s298
          %s300 = smul.u32 16, %s19
        $region52: #{tpu_custom_call.1} parent=47 // pred_fallthru
          _
      $region48: #{tpu_custom_call.1} parent=5 // pred_fallthru
        _
      %p301 = scmp.le.s32.totalorder 1, %s19
      %p302 = scmp.lt.s32.totalorder %s19, 3
      %p303 = pnand %p301, %p302
      %p304 = pneg %p303
      // Predicated region
      $region53: #{tpu_custom_call.1} parent=5 // pred_check
        _
      $region54: #{tpu_custom_call.1} parent=5 // pred_check_branch
        %306 = sbr.rel (%p303) target = $region56
      $region55: #{tpu_custom_call.1} parent=5 // pred_region
        %s307 = ssub.s32 %s19, 1
        // Predicated region
        $region57: #{tpu_custom_call.1} parent=55 // pred_check
          %p308 = pneg %p192
        $region58: #{tpu_custom_call.1} parent=55 // pred_check_branch
          %310 = sbr.rel (%p308) target = $region60
        $region59: #{tpu_custom_call.1} parent=55 // pred_region
          %311 = dma.done [#allocation3], 4096
        $region60: #{tpu_custom_call.1} parent=55 // pred_fallthru
          _
        %s312 = smul.u32 16, %s24
        %p313 = scmp.lt.s32.totalorder %s312, 31
        %s314 = scalar_select %p313, %s312, 31
        %s315 = smul.addr %s314, 8
        %s316 = scalar_lea.vmem %s0, %s315
        %p317 = pneg %p45
        %p318 = pneg %p42
        %p319 = pneg %p66
        %p320 = pneg %p63
        %p321 = pneg %p87
        %p322 = pneg %p84
        %p323 = pneg %p108
        %p324 = pneg %p105
        %p325 = pneg %p129
        %p326 = pneg %p126
        %p327 = pneg %p150
        %p328 = pneg %p147
        %p329 = pneg %p171
        %p330 = pneg %p168
        %p331 = pneg %p192
        %p332 = pneg %p189
        %p333 = pneg %p213
        %p334 = pneg %p210
        %p335 = pneg %p239
        %p336 = pneg %p236
        %s337 = sand.u32 %s226, 1
        %s338 = scalar_lea.sflag [#allocation4], %s337
        %s339 = sand.u32 %s226, 1
        %s340 = smul.addr %s339, 128
        %s341 = scalar_lea.vmem [#allocation5], %s340
        %s342 = smul.u32 16, %s24
        %p343 = scmp.lt.s32.totalorder %s342, 31
        %s344 = scalar_select %p343, %s342, 31
        %s345 = smul.addr %s344, 8
        %s346 = scalar_lea.vmem %s0, %s345
        %s347 = smul.u32 16, %s24
        %s348 = smul.u32 16, %s24
        %v349 = vld [vmem:[%s346] sm:$0xff]
        %v350 = vld [vmem:[%s346 + $0x8] sm:$0xff]
        %v351 = vld [vmem:[%s346 + $0x10] sm:$0xff]
        %v352 = vld [vmem:[%s346 + $0x18] sm:$0xff]
        %v353 = vld [vmem:[%s346 + $0x20] sm:$0xff]
        %v354 = vld [vmem:[%s346 + $0x28] sm:$0xff]
        %v355 = vld [vmem:[%s346 + $0x30] sm:$0xff]
        %v356 = vld [vmem:[%s346 + $0x38] sm:$0xff]
        %v357 = vld [vmem:[%s346 + $0x40] sm:$0xff]
        %v358 = vld [vmem:[%s346 + $0x48] sm:$0xff]
        %v359 = vld [vmem:[%s346 + $0x50] sm:$0xff]
        %v360 = vld [vmem:[%s346 + $0x58] sm:$0xff]
        %v361 = vld [vmem:[%s346 + $0x60] sm:$0xff]
        %v362 = vld [vmem:[%s346 + $0x68] sm:$0xff]
        %v363 = vld [vmem:[%s346 + $0x70] sm:$0xff]
        %v364 = vld [vmem:[%s346 + $0x78] sm:$0xff]
        %v365 = vld [vmem:[%s1] sm:$0xff]
        %v366 = vld [vmem:[%s1 + $0x8] sm:$0xff]
        %v367 = vld [vmem:[%s1 + $0x10] sm:$0xff]
        %v368 = vld [vmem:[%s2] sm:$0x1]
        %v370 = vlaneseq
        %v371 = vshrl.u32 %v370, 7
        %v372 = vsub.s32 0, %v371
        %v373 = vrot.slane %v368, %v372
        %vm375 = vcmask 195584
        %v377 = vsel %vm375, %v349, 0
        %v380 = vsel %vm375, %v350, 0
        %v383 = vsel %vm375, %v351, 0
        %v386 = vsel %vm375, %v352, 0
        %v389 = vsel %vm375, %v353, 0
        %v392 = vsel %vm375, %v354, 0
        %v395 = vsel %vm375, %v355, 0
        %v398 = vsel %vm375, %v356, 0
        %v401 = vsel %vm375, %v357, 0
        %v404 = vsel %vm375, %v358, 0
        %v407 = vsel %vm375, %v359, 0
        %v410 = vsel %vm375, %v360, 0
        %v413 = vsel %vm375, %v361, 0
        %v416 = vsel %vm375, %v362, 0
        %v419 = vsel %vm375, %v363, 0
        %v422 = vsel %vm375, %v364, 0
        %424 = vmatprep.subr.mxu0 0.0
        %v425 = vand.u32 %v365, 4294901760
        %426 = vmatpush1.msra.mxu0 %v425
        %427 = vmatprep.subr.mxu0 0.0
        %v428 = vand.u32 %v366, 4294901760
        %429 = vmatpush1.msra.mxu0 %v428
        %430 = vmatprep.subr.mxu0 0.0
        %v431 = vand.u32 %v367, 4294901760
        %432 = vmatpush1.msra.mxu0 %v431
        %433 = vmatprep.subr.mxu0 0.0
        %434 = vmatpush1.msra.mxu0 0.0
        %435 = vmatprep.subr.mxu0 0.0
        %436 = vmatpush1.msra.mxu0 0.0
        %437 = vmatprep.subr.mxu0 0.0
        %438 = vmatpush1.msra.mxu0 0.0
        %439 = vmatprep.subr.mxu0 0.0
        %440 = vmatpush1.msra.mxu0 0.0
        %441 = vmatprep.subr.mxu0 0.0
        %442 = vmatpush1.msra.mxu0 0.0
        %443 = vmatprep.subr.mxu0 0.0
        %444 = vmatpush1.msra.mxu0 0.0
        %445 = vmatprep.subr.mxu0 0.0
        %446 = vmatpush1.msra.mxu0 0.0
        %447 = vmatprep.subr.mxu0 0.0
        %448 = vmatpush1.msra.mxu0 0.0
        %449 = vmatprep.subr.mxu0 0.0
        %450 = vmatpush1.msra.mxu0 0.0
        %451 = vmatprep.subr.mxu0 0.0
        %452 = vmatpush1.msra.mxu0 0.0
        %453 = vmatprep.subr.mxu0 0.0
        %454 = vmatpush1.msra.mxu0 0.0
        %455 = vmatprep.subr.mxu0 0.0
        %456 = vmatpush1.msra.mxu0 0.0
        %457 = vmatprep.subr.mxu0 0.0
        %458 = vmatpush1.msra.mxu0 0.0
        %459 = vmatprep.subr.mxu0 0.0
        %460 = vmatpush1.msra.mxu0 0.0
        %461 = vmatprep.subr.mxu0 0.0
        %462 = vmatpush1.msra.mxu0 0.0
        %463 = vmatprep.subr.mxu0 0.0
        %464 = vmatpush1.msra.mxu0 0.0
        %465 = vmatprep.subr.mxu0 0.0
        %466 = vmatpush1.msra.mxu0 0.0
        %467 = vmatprep.subr.mxu0 0.0
        %468 = vmatpush1.msra.mxu0 0.0
        %469 = vmatprep.subr.mxu0 0.0
        %470 = vmatpush1.msra.mxu0 0.0
        %471 = vmatprep.subr.mxu0 0.0
        %472 = vmatpush1.msra.mxu0 0.0
        %473 = vmatprep.subr.mxu0 0.0
        %474 = vmatpush1.msra.mxu0 0.0
        %475 = vmatprep.subr.mxu0 0.0
        %476 = vmatpush1.msra.mxu0 0.0
        %477 = vmatprep.subr.mxu0 0.0
        %478 = vmatpush1.msra.mxu0 0.0
        %479 = vmatprep.subr.mxu0 0.0
        %480 = vmatpush1.msra.mxu0 0.0
        %481 = vmatprep.subr.mxu0 0.0
        %482 = vmatpush1.msra.mxu0 0.0
        %483 = vmatprep.subr.mxu0 0.0
        %484 = vmatpush1.msra.mxu0 0.0
        %485 = vmatprep.subr.mxu0 0.0
        %486 = vmatpush1.msra.mxu0 0.0
        %487 = vmatprep.subr.mxu0 0.0
        %488 = vmatpush1.msra.mxu0 0.0
        %489 = vmatprep.subr.mxu0 0.0
        %490 = vmatpush1.msra.mxu0 0.0
        %491 = vmatprep.mubr.f32.mxu0 0.0
        %v492 = vand.u32 %v377, 4294901760
        %v493 = vsub.f32 %v377, %v492
        %v494 = vand.u32 %v493, 4294901760
        %v495 = vsub.f32 %v493, %v494
        %v496 = vand.u32 %v495, 4294901760
        %497 = vmatmul.mubr.f32.gmra.mrb[0].mxu0 %v496
        %v498 = vpop.f32.mrb[0].mxu0
        %v499 = vadd.f32 %v373, %v498
        %v500 = vpop.f32.mrb[0].mxu0
        %501 = vmatprep.mubr.f32.mxu0 0.0
        %v502 = vand.u32 %v380, 4294901760
        %v503 = vsub.f32 %v380, %v502
        %v504 = vand.u32 %v503, 4294901760
        %v505 = vsub.f32 %v503, %v504
        %v506 = vand.u32 %v505, 4294901760
        %507 = vmatmul.mubr.f32.gmra.mrb[0].mxu0 %v506
        %v508 = vpop.f32.mrb[0].mxu0
        %v509 = vadd.f32 %v373, %v508
        %v510 = vpop.f32.mrb[0].mxu0
        %511 = vmatprep.mubr.f32.mxu0 0.0
        %v512 = vand.u32 %v383, 4294901760
        %v513 = vsub.f32 %v383, %v512
        %v514 = vand.u32 %v513, 4294901760
        %v515 = vsub.f32 %v513, %v514
        %v516 = vand.u32 %v515, 4294901760
        %517 = vmatmul.mubr.f32.gmra.mrb[0].mxu0 %v516
        %v518 = vpop.f32.mrb[0].mxu0
        %v519 = vadd.f32 %v373, %v518
        %v520 = vpop.f32.mrb[0].mxu0
        %521 = vmatprep.mubr.f32.mxu0 0.0
        %v522 = vand.u32 %v386, 4294901760
        %v523 = vsub.f32 %v386, %v522
        %v524 = vand.u32 %v523, 4294901760
        %v525 = vsub.f32 %v523, %v524
        %v526 = vand.u32 %v525, 4294901760
        %527 = vmatmul.mubr.f32.gmra.mrb[0].mxu0 %v526
        %v528 = vpop.f32.mrb[0].mxu0
        %v529 = vadd.f32 %v373, %v528
        %v530 = vpop.f32.mrb[0].mxu0
        %531 = vmatprep.mubr.f32.mxu0 0.0
        %v532 = vand.u32 %v389, 4294901760
        %v533 = vsub.f32 %v389, %v532
        %v534 = vand.u32 %v533, 4294901760
        %v535 = vsub.f32 %v533, %v534
        %v536 = vand.u32 %v535, 4294901760
        %537 = vmatmul.mubr.f32.gmra.mrb[0].mxu0 %v536
        %v538 = vpop.f32.mrb[0].mxu0
        %v539 = vadd.f32 %v373, %v538
        %v540 = vpop.f32.mrb[0].mxu0
        %541 = vmatprep.mubr.f32.mxu0 0.0
        %v542 = vand.u32 %v392, 4294901760
        %v543 = vsub.f32 %v392, %v542
        %v544 = vand.u32 %v543, 4294901760
        %v545 = vsub.f32 %v543, %v544
        %v546 = vand.u32 %v545, 4294901760
        %547 = vmatmul.mubr.f32.gmra.mrb[0].mxu0 %v546
        %v548 = vpop.f32.mrb[0].mxu0
        %v549 = vadd.f32 %v373, %v548
        %v550 = vpop.f32.mrb[0].mxu0
        %551 = vmatprep.mubr.f32.mxu0 0.0
        %v552 = vand.u32 %v395, 4294901760
        %v553 = vsub.f32 %v395, %v552
        %v554 = vand.u32 %v553, 4294901760
        %v555 = vsub.f32 %v553, %v554
        %v556 = vand.u32 %v555, 4294901760
        %557 = vmatmul.mubr.f32.gmra.mrb[0].mxu0 %v556
        %v558 = vpop.f32.mrb[0].mxu0
        %v559 = vadd.f32 %v373, %v558
        %v560 = vpop.f32.mrb[0].mxu0
        %561 = vmatprep.mubr.f32.mxu0 0.0
        %v562 = vand.u32 %v398, 4294901760
        %v563 = vsub.f32 %v398, %v562
        %v564 = vand.u32 %v563, 4294901760
        %v565 = vsub.f32 %v563, %v564
        %v566 = vand.u32 %v565, 4294901760
        %567 = vmatmul.mubr.f32.gmra.mrb[0].mxu0 %v566
        %v568 = vpop.f32.mrb[0].mxu0
        %v569 = vadd.f32 %v373, %v568
        %v570 = vpop.f32.mrb[0].mxu0
        %571 = vmatprep.mubr.f32.mxu0 0.0
        %v572 = vand.u32 %v401, 4294901760
        %v573 = vsub.f32 %v401, %v572
        %v574 = vand.u32 %v573, 4294901760
        %v575 = vsub.f32 %v573, %v574
        %v576 = vand.u32 %v575, 4294901760
        %577 = vmatmul.mubr.f32.gmra.mrb[0].mxu0 %v576
        %v578 = vpop.f32.mrb[0].mxu0
        %v579 = vadd.f32 %v373, %v578
        %v580 = vpop.f32.mrb[0].mxu0
        %581 = vmatprep.mubr.f32.mxu0 0.0
        %v582 = vand.u32 %v404, 4294901760
        %v583 = vsub.f32 %v404, %v582
        %v584 = vand.u32 %v583, 4294901760
        %v585 = vsub.f32 %v583, %v584
        %v586 = vand.u32 %v585, 4294901760
        %587 = vmatmul.mubr.f32.gmra.mrb[0].mxu0 %v586
        %v588 = vpop.f32.mrb[0].mxu0
        %v589 = vadd.f32 %v373, %v588
        %v590 = vpop.f32.mrb[0].mxu0
        %591 = vmatprep.mubr.f32.mxu0 0.0
        %v592 = vand.u32 %v407, 4294901760
        %v593 = vsub.f32 %v407, %v592
        %v594 = vand.u32 %v593, 4294901760
        %v595 = vsub.f32 %v593, %v594
        %v596 = vand.u32 %v595, 4294901760
        %597 = vmatmul.mubr.f32.gmra.mrb[0].mxu0 %v596
        %v598 = vpop.f32.mrb[0].mxu0
        %v599 = vadd.f32 %v373, %v598
        %v600 = vpop.f32.mrb[0].mxu0
        %601 = vmatprep.mubr.f32.mxu0 0.0
        %v602 = vand.u32 %v410, 4294901760
        %v603 = vsub.f32 %v410, %v602
        %v604 = vand.u32 %v603, 4294901760
        %v605 = vsub.f32 %v603, %v604
        %v606 = vand.u32 %v605, 4294901760
        %607 = vmatmul.mubr.f32.gmra.mrb[0].mxu0 %v606
        %v608 = vpop.f32.mrb[0].mxu0
        %v609 = vadd.f32 %v373, %v608
        %v610 = vpop.f32.mrb[0].mxu0
        %611 = vmatprep.mubr.f32.mxu0 0.0
        %v612 = vand.u32 %v413, 4294901760
        %v613 = vsub.f32 %v413, %v612
        %v614 = vand.u32 %v613, 4294901760
        %v615 = vsub.f32 %v613, %v614
        %v616 = vand.u32 %v615, 4294901760
        %617 = vmatmul.mubr.f32.gmra.mrb[0].mxu0 %v616
        %v618 = vpop.f32.mrb[0].mxu0
        %v619 = vadd.f32 %v373, %v618
        %v620 = vpop.f32.mrb[0].mxu0
        %621 = vmatprep.mubr.f32.mxu0 0.0
        %v622 = vand.u32 %v416, 4294901760
        %v623 = vsub.f32 %v416, %v622
        %v624 = vand.u32 %v623, 4294901760
        %v625 = vsub.f32 %v623, %v624
        %v626 = vand.u32 %v625, 4294901760
        %627 = vmatmul.mubr.f32.gmra.mrb[0].mxu0 %v626
        %v628 = vpop.f32.mrb[0].mxu0
        %v629 = vadd.f32 %v373, %v628
        %v630 = vpop.f32.mrb[0].mxu0
        %631 = vmatprep.mubr.f32.mxu0 0.0
        %v632 = vand.u32 %v419, 4294901760
        %v633 = vsub.f32 %v419, %v632
        %v634 = vand.u32 %v633, 4294901760
        %v635 = vsub.f32 %v633, %v634
        %v636 = vand.u32 %v635, 4294901760
        %637 = vmatmul.mubr.f32.gmra.mrb[0].mxu0 %v636
        %v638 = vpop.f32.mrb[0].mxu0
        %v639 = vadd.f32 %v373, %v638
        %v640 = vpop.f32.mrb[0].mxu0
        %641 = vmatprep.mubr.f32.mxu0 0.0
        %v642 = vand.u32 %v422, 4294901760
        %v643 = vsub.f32 %v422, %v642
        %v644 = vand.u32 %v643, 4294901760
        %v645 = vsub.f32 %v643, %v644
        %v646 = vand.u32 %v645, 4294901760
        %647 = vmatmul.mubr.f32.gmra.mrb[0].mxu0 %v646
        %v648 = vpop.f32.mrb[0].mxu0
        %v649 = vadd.f32 %v373, %v648
        %v650 = vpop.f32.mrb[0].mxu0
        %651 = vdwg.mxu0
        %652 = vmatprep.subr.mxu0 0.0
        %v653 = vand.u32 %v365, 4294901760
        %v654 = vsub.f32 %v365, %v653
        %v655 = vand.u32 %v654, 4294901760
        %v656 = vsub.f32 %v654, %v655
        %v657 = vand.u32 %v656, 4294901760
        %658 = vmatpush1.msra.mxu0 %v657
        %659 = vmatprep.subr.mxu0 0.0
        %v660 = vand.u32 %v366, 4294901760
        %v661 = vsub.f32 %v366, %v660
        %v662 = vand.u32 %v661, 4294901760
        %v663 = vsub.f32 %v661, %v662
        %v664 = vand.u32 %v663, 4294901760
        %665 = vmatpush1.msra.mxu0 %v664
        %666 = vmatprep.subr.mxu0 0.0
        %v667 = vand.u32 %v367, 4294901760
        %v668 = vsub.f32 %v367, %v667
        %v669 = vand.u32 %v668, 4294901760
        %v670 = vsub.f32 %v668, %v669
        %v671 = vand.u32 %v670, 4294901760
        %672 = vmatpush1.msra.mxu0 %v671
        %673 = vmatprep.subr.mxu0 0.0
        %674 = vmatpush1.msra.mxu0 0.0
        %675 = vmatprep.subr.mxu0 0.0
        %676 = vmatpush1.msra.mxu0 0.0
        %677 = vmatprep.subr.mxu0 0.0
        %678 = vmatpush1.msra.mxu0 0.0
        %679 = vmatprep.subr.mxu0 0.0
        %680 = vmatpush1.msra.mxu0 0.0
        %681 = vmatprep.subr.mxu0 0.0
        %682 = vmatpush1.msra.mxu0 0.0
        %683 = vmatprep.subr.mxu0 0.0
        %684 = vmatpush1.msra.mxu0 0.0
        %685 = vmatprep.subr.mxu0 0.0
        %686 = vmatpush1.msra.mxu0 0.0
        %687 = vmatprep.subr.mxu0 0.0
        %688 = vmatpush1.msra.mxu0 0.0
        %689 = vmatprep.subr.mxu0 0.0
        %690 = vmatpush1.msra.mxu0 0.0
        %691 = vmatprep.subr.mxu0 0.0
        %692 = vmatpush1.msra.mxu0 0.0
        %693 = vmatprep.subr.mxu0 0.0
        %694 = vmatpush1.msra.mxu0 0.0
        %695 = vmatprep.subr.mxu0 0.0
        %696 = vmatpush1.msra.mxu0 0.0
        %697 = vmatprep.subr.mxu0 0.0
        %698 = vmatpush1.msra.mxu0 0.0
        %699 = vmatprep.subr.mxu0 0.0
        %700 = vmatpush1.msra.mxu0 0.0
        %701 = vmatprep.subr.mxu0 0.0
        %702 = vmatpush1.msra.mxu0 0.0
        %703 = vmatprep.subr.mxu0 0.0
        %704 = vmatpush1.msra.mxu0 0.0
        %705 = vmatprep.subr.mxu0 0.0
        %706 = vmatpush1.msra.mxu0 0.0
        %707 = vmatprep.subr.mxu0 0.0
        %708 = vmatpush1.msra.mxu0 0.0
        %709 = vmatprep.subr.mxu0 0.0
        %710 = vmatpush1.msra.mxu0 0.0
        %711 = vmatprep.subr.mxu0 0.0
        %712 = vmatpush1.msra.mxu0 0.0
        %713 = vmatprep.subr.mxu0 0.0
        %714 = vmatpush1.msra.mxu0 0.0
        %715 = vmatprep.subr.mxu0 0.0
        %716 = vmatpush1.msra.mxu0 0.0
        %717 = vmatprep.subr.mxu0 0.0
        %718 = vmatpush1.msra.mxu0 0.0
        %719 = vmatprep.subr.mxu0 0.0
        %720 = vmatpush1.msra.mxu0 0.0
        %721 = vmatprep.subr.mxu0 0.0
        %722 = vmatpush1.msra.mxu0 0.0
        %723 = vmatprep.subr.mxu0 0.0
        %724 = vmatpush1.msra.mxu0 0.0
        %725 = vmatprep.subr.mxu0 0.0
        %726 = vmatpush1.msra.mxu0 0.0
        %727 = vmatprep.subr.mxu0 0.0
        %728 = vmatpush1.msra.mxu0 0.0
        %729 = vmatprep.subr.mxu0 0.0
        %730 = vmatpush1.msra.mxu0 0.0
        %731 = vmatprep.mubr.f32.mxu0 0.0
        %v732 = vand.u32 %v377, 4294901760
        %733 = vmatmul.mubr.f32.gmra.mrb[0].mxu0 %v732
        %v734 = vpop.f32.mrb[0].mxu0
        %v735 = vadd.f32 %v499, %v734
        %v736 = vpop.f32.mrb[0].mxu0
        %737 = vmatprep.mubr.f32.mxu0 0.0
        %v738 = vand.u32 %v380, 4294901760
        %739 = vmatmul.mubr.f32.gmra.mrb[0].mxu0 %v738
        %v740 = vpop.f32.mrb[0].mxu0
        %v741 = vadd.f32 %v509, %v740
        %v742 = vpop.f32.mrb[0].mxu0
        %743 = vmatprep.mubr.f32.mxu0 0.0
        %v744 = vand.u32 %v383, 4294901760
        %745 = vmatmul.mubr.f32.gmra.mrb[0].mxu0 %v744
        %v746 = vpop.f32.mrb[0].mxu0
        %v747 = vadd.f32 %v519, %v746
        %v748 = vpop.f32.mrb[0].mxu0
        %749 = vmatprep.mubr.f32.mxu0 0.0
        %v750 = vand.u32 %v386, 4294901760
        %751 = vmatmul.mubr.f32.gmra.mrb[0].mxu0 %v750
        %v752 = vpop.f32.mrb[0].mxu0
        %v753 = vadd.f32 %v529, %v752
        %v754 = vpop.f32.mrb[0].mxu0
        %755 = vmatprep.mubr.f32.mxu0 0.0
        %v756 = vand.u32 %v389, 4294901760
        %757 = vmatmul.mubr.f32.gmra.mrb[0].mxu0 %v756
        %v758 = vpop.f32.mrb[0].mxu0
        %v759 = vadd.f32 %v539, %v758
        %v760 = vpop.f32.mrb[0].mxu0
        %761 = vmatprep.mubr.f32.mxu0 0.0
        %v762 = vand.u32 %v392, 4294901760
        %763 = vmatmul.mubr.f32.gmra.mrb[0].mxu0 %v762
        %v764 = vpop.f32.mrb[0].mxu0
        %v765 = vadd.f32 %v549, %v764
        %v766 = vpop.f32.mrb[0].mxu0
        %767 = vmatprep.mubr.f32.mxu0 0.0
        %v768 = vand.u32 %v395, 4294901760
        %769 = vmatmul.mubr.f32.gmra.mrb[0].mxu0 %v768
        %v770 = vpop.f32.mrb[0].mxu0
        %v771 = vadd.f32 %v559, %v770
        %v772 = vpop.f32.mrb[0].mxu0
        %773 = vmatprep.mubr.f32.mxu0 0.0
        %v774 = vand.u32 %v398, 4294901760
        %775 = vmatmul.mubr.f32.gmra.mrb[0].mxu0 %v774
        %v776 = vpop.f32.mrb[0].mxu0
        %v777 = vadd.f32 %v569, %v776
        %v778 = vpop.f32.mrb[0].mxu0
        %779 = vmatprep.mubr.f32.mxu0 0.0
        %v780 = vand.u32 %v401, 4294901760
        %781 = vmatmul.mubr.f32.gmra.mrb[0].mxu0 %v780
        %v782 = vpop.f32.mrb[0].mxu0
        %v783 = vadd.f32 %v579, %v782
        %v784 = vpop.f32.mrb[0].mxu0
        %785 = vmatprep.mubr.f32.mxu0 0.0
        %v786 = vand.u32 %v404, 4294901760
        %787 = vmatmul.mubr.f32.gmra.mrb[0].mxu0 %v786
        %v788 = vpop.f32.mrb[0].mxu0
        %v789 = vadd.f32 %v589, %v788
        %v790 = vpop.f32.mrb[0].mxu0
        %791 = vmatprep.mubr.f32.mxu0 0.0
        %v792 = vand.u32 %v407, 4294901760
        %793 = vmatmul.mubr.f32.gmra.mrb[0].mxu0 %v792
        %v794 = vpop.f32.mrb[0].mxu0
        %v795 = vadd.f32 %v599, %v794
        %v796 = vpop.f32.mrb[0].mxu0
        %797 = vmatprep.mubr.f32.mxu0 0.0
        %v798 = vand.u32 %v410, 4294901760
        %799 = vmatmul.mubr.f32.gmra.mrb[0].mxu0 %v798
        %v800 = vpop.f32.mrb[0].mxu0
        %v801 = vadd.f32 %v609, %v800
        %v802 = vpop.f32.mrb[0].mxu0
        %803 = vmatprep.mubr.f32.mxu0 0.0
        %v804 = vand.u32 %v413, 4294901760
        %805 = vmatmul.mubr.f32.gmra.mrb[0].mxu0 %v804
        %v806 = vpop.f32.mrb[0].mxu0
        %v807 = vadd.f32 %v619, %v806
        %v808 = vpop.f32.mrb[0].mxu0
        %809 = vmatprep.mubr.f32.mxu0 0.0
        %v810 = vand.u32 %v416, 4294901760
        %811 = vmatmul.mubr.f32.gmra.mrb[0].mxu0 %v810
        %v812 = vpop.f32.mrb[0].mxu0
        %v813 = vadd.f32 %v629, %v812
        %v814 = vpop.f32.mrb[0].mxu0
        %815 = vmatprep.mubr.f32.mxu0 0.0
        %v816 = vand.u32 %v419, 4294901760
        %817 = vmatmul.mubr.f32.gmra.mrb[0].mxu0 %v816
        %v818 = vpop.f32.mrb[0].mxu0
        %v819 = vadd.f32 %v639, %v818
        %v820 = vpop.f32.mrb[0].mxu0
        %821 = vmatprep.mubr.f32.mxu0 0.0
        %v822 = vand.u32 %v422, 4294901760
        %823 = vmatmul.mubr.f32.gmra.mrb[0].mxu0 %v822
        %v824 = vpop.f32.mrb[0].mxu0
        %v825 = vadd.f32 %v649, %v824
        %v826 = vpop.f32.mrb[0].mxu0
        %827 = vdwg.mxu0
        %828 = vmatprep.subr.mxu0 0.0
        %v829 = vand.u32 %v365, 4294901760
        %v830 = vsub.f32 %v365, %v829
        %831 = vmatpush1.msra.mxu0 %v830
        %832 = vmatprep.subr.mxu0 0.0
        %v833 = vand.u32 %v366, 4294901760
        %v834 = vsub.f32 %v366, %v833
        %835 = vmatpush1.msra.mxu0 %v834
        %836 = vmatprep.subr.mxu0 0.0
        %v837 = vand.u32 %v367, 4294901760
        %v838 = vsub.f32 %v367, %v837
        %839 = vmatpush1.msra.mxu0 %v838
        %840 = vmatprep.subr.mxu0 0.0
        %841 = vmatpush1.msra.mxu0 0.0
        %842 = vmatprep.subr.mxu0 0.0
        %843 = vmatpush1.msra.mxu0 0.0
        %844 = vmatprep.subr.mxu0 0.0
        %845 = vmatpush1.msra.mxu0 0.0
        %846 = vmatprep.subr.mxu0 0.0
        %847 = vmatpush1.msra.mxu0 0.0
        %848 = vmatprep.subr.mxu0 0.0
        %849 = vmatpush1.msra.mxu0 0.0
        %850 = vmatprep.subr.mxu0 0.0
        %851 = vmatpush1.msra.mxu0 0.0
        %852 = vmatprep.subr.mxu0 0.0
        %853 = vmatpush1.msra.mxu0 0.0
        %854 = vmatprep.subr.mxu0 0.0
        %855 = vmatpush1.msra.mxu0 0.0
        %856 = vmatprep.subr.mxu0 0.0
        %857 = vmatpush1.msra.mxu0 0.0
        %858 = vmatprep.subr.mxu0 0.0
        %859 = vmatpush1.msra.mxu0 0.0
        %860 = vmatprep.subr.mxu0 0.0
        %861 = vmatpush1.msra.mxu0 0.0
        %862 = vmatprep.subr.mxu0 0.0
        %863 = vmatpush1.msra.mxu0 0.0
        %864 = vmatprep.subr.mxu0 0.0
        %865 = vmatpush1.msra.mxu0 0.0
        %866 = vmatprep.subr.mxu0 0.0
        %867 = vmatpush1.msra.mxu0 0.0
        %868 = vmatprep.subr.mxu0 0.0
        %869 = vmatpush1.msra.mxu0 0.0
        %870 = vmatprep.subr.mxu0 0.0
        %871 = vmatpush1.msra.mxu0 0.0
        %872 = vmatprep.subr.mxu0 0.0
        %873 = vmatpush1.msra.mxu0 0.0
        %874 = vmatprep.subr.mxu0 0.0
        %875 = vmatpush1.msra.mxu0 0.0
        %876 = vmatprep.subr.mxu0 0.0
        %877 = vmatpush1.msra.mxu0 0.0
        %878 = vmatprep.subr.mxu0 0.0
        %879 = vmatpush1.msra.mxu0 0.0
        %880 = vmatprep.subr.mxu0 0.0
        %881 = vmatpush1.msra.mxu0 0.0
        %882 = vmatprep.subr.mxu0 0.0
        %883 = vmatpush1.msra.mxu0 0.0
        %884 = vmatprep.subr.mxu0 0.0
        %885 = vmatpush1.msra.mxu0 0.0
        %886 = vmatprep.subr.mxu0 0.0
        %887 = vmatpush1.msra.mxu0 0.0
        %888 = vmatprep.subr.mxu0 0.0
        %889 = vmatpush1.msra.mxu0 0.0
        %890 = vmatprep.subr.mxu0 0.0
        %891 = vmatpush1.msra.mxu0 0.0
        %892 = vmatprep.subr.mxu0 0.0
        %893 = vmatpush1.msra.mxu0 0.0
        %894 = vmatprep.subr.mxu0 0.0
        %895 = vmatpush1.msra.mxu0 0.0
        %896 = vmatprep.subr.mxu0 0.0
        %897 = vmatpush1.msra.mxu0 0.0
        %898 = vmatprep.mubr.f32.mxu0 0.0
        %v899 = vand.u32 %v377, 4294901760
        %v900 = vsub.f32 %v377, %v899
        %901 = vmatmul.mubr.f32.gmra.mrb[0].mxu0 %v900
        %v902 = vpop.f32.mrb[0].mxu0
        %v903 = vadd.f32 %v735, %v902
        %v904 = vpop.f32.mrb[0].mxu0
        %905 = vmatprep.mubr.f32.mxu0 0.0
        %v906 = vand.u32 %v380, 4294901760
        %v907 = vsub.f32 %v380, %v906
        %908 = vmatmul.mubr.f32.gmra.mrb[0].mxu0 %v907
        %v909 = vpop.f32.mrb[0].mxu0
        %v910 = vadd.f32 %v741, %v909
        %v911 = vpop.f32.mrb[0].mxu0
        %912 = vmatprep.mubr.f32.mxu0 0.0
        %v913 = vand.u32 %v383, 4294901760
        %v914 = vsub.f32 %v383, %v913
        %915 = vmatmul.mubr.f32.gmra.mrb[0].mxu0 %v914
        %v916 = vpop.f32.mrb[0].mxu0
        %v917 = vadd.f32 %v747, %v916
        %v918 = vpop.f32.mrb[0].mxu0
        %919 = vmatprep.mubr.f32.mxu0 0.0
        %v920 = vand.u32 %v386, 4294901760
        %v921 = vsub.f32 %v386, %v920
        %922 = vmatmul.mubr.f32.gmra.mrb[0].mxu0 %v921
        %v923 = vpop.f32.mrb[0].mxu0
        %v924 = vadd.f32 %v753, %v923
        %v925 = vpop.f32.mrb[0].mxu0
        %926 = vmatprep.mubr.f32.mxu0 0.0
        %v927 = vand.u32 %v389, 4294901760
        %v928 = vsub.f32 %v389, %v927
        %929 = vmatmul.mubr.f32.gmra.mrb[0].mxu0 %v928
        %v930 = vpop.f32.mrb[0].mxu0
        %v931 = vadd.f32 %v759, %v930
        %v932 = vpop.f32.mrb[0].mxu0
        %933 = vmatprep.mubr.f32.mxu0 0.0
        %v934 = vand.u32 %v392, 4294901760
        %v935 = vsub.f32 %v392, %v934
        %936 = vmatmul.mubr.f32.gmra.mrb[0].mxu0 %v935
        %v937 = vpop.f32.mrb[0].mxu0
        %v938 = vadd.f32 %v765, %v937
        %v939 = vpop.f32.mrb[0].mxu0
        %940 = vmatprep.mubr.f32.mxu0 0.0
        %v941 = vand.u32 %v395, 4294901760
        %v942 = vsub.f32 %v395, %v941
        %943 = vmatmul.mubr.f32.gmra.mrb[0].mxu0 %v942
        %v944 = vpop.f32.mrb[0].mxu0
        %v945 = vadd.f32 %v771, %v944
        %v946 = vpop.f32.mrb[0].mxu0
        %947 = vmatprep.mubr.f32.mxu0 0.0
        %v948 = vand.u32 %v398, 4294901760
        %v949 = vsub.f32 %v398, %v948
        %950 = vmatmul.mubr.f32.gmra.mrb[0].mxu0 %v949
        %v951 = vpop.f32.mrb[0].mxu0
        %v952 = vadd.f32 %v777, %v951
        %v953 = vpop.f32.mrb[0].mxu0
        %954 = vmatprep.mubr.f32.mxu0 0.0
        %v955 = vand.u32 %v401, 4294901760
        %v956 = vsub.f32 %v401, %v955
        %957 = vmatmul.mubr.f32.gmra.mrb[0].mxu0 %v956
        %v958 = vpop.f32.mrb[0].mxu0
        %v959 = vadd.f32 %v783, %v958
        %v960 = vpop.f32.mrb[0].mxu0
        %961 = vmatprep.mubr.f32.mxu0 0.0
        %v962 = vand.u32 %v404, 4294901760
        %v963 = vsub.f32 %v404, %v962
        %964 = vmatmul.mubr.f32.gmra.mrb[0].mxu0 %v963
        %v965 = vpop.f32.mrb[0].mxu0
        %v966 = vadd.f32 %v789, %v965
        %v967 = vpop.f32.mrb[0].mxu0
        %968 = vmatprep.mubr.f32.mxu0 0.0
        %v969 = vand.u32 %v407, 4294901760
        %v970 = vsub.f32 %v407, %v969
        %971 = vmatmul.mubr.f32.gmra.mrb[0].mxu0 %v970
        %v972 = vpop.f32.mrb[0].mxu0
        %v973 = vadd.f32 %v795, %v972
        %v974 = vpop.f32.mrb[0].mxu0
        %975 = vmatprep.mubr.f32.mxu0 0.0
        %v976 = vand.u32 %v410, 4294901760
        %v977 = vsub.f32 %v410, %v976
        %978 = vmatmul.mubr.f32.gmra.mrb[0].mxu0 %v977
        %v979 = vpop.f32.mrb[0].mxu0
        %v980 = vadd.f32 %v801, %v979
        %v981 = vpop.f32.mrb[0].mxu0
        %982 = vmatprep.mubr.f32.mxu0 0.0
        %v983 = vand.u32 %v413, 4294901760
        %v984 = vsub.f32 %v413, %v983
        %985 = vmatmul.mubr.f32.gmra.mrb[0].mxu0 %v984
        %v986 = vpop.f32.mrb[0].mxu0
        %v987 = vadd.f32 %v807, %v986
        %v988 = vpop.f32.mrb[0].mxu0
        %989 = vmatprep.mubr.f32.mxu0 0.0
        %v990 = vand.u32 %v416, 4294901760
        %v991 = vsub.f32 %v416, %v990
        %992 = vmatmul.mubr.f32.gmra.mrb[0].mxu0 %v991
        %v993 = vpop.f32.mrb[0].mxu0
        %v994 = vadd.f32 %v813, %v993
        %v995 = vpop.f32.mrb[0].mxu0
        %996 = vmatprep.mubr.f32.mxu0 0.0
        %v997 = vand.u32 %v419, 4294901760
        %v998 = vsub.f32 %v419, %v997
        %999 = vmatmul.mubr.f32.gmra.mrb[0].mxu0 %v998
        %v1000 = vpop.f32.mrb[0].mxu0
        %v1001 = vadd.f32 %v819, %v1000
        %v1002 = vpop.f32.mrb[0].mxu0
        %1003 = vmatprep.mubr.f32.mxu0 0.0
        %v1004 = vand.u32 %v422, 4294901760
        %v1005 = vsub.f32 %v422, %v1004
        %1006 = vmatmul.mubr.f32.gmra.mrb[0].mxu0 %v1005
        %v1007 = vpop.f32.mrb[0].mxu0
        %v1008 = vadd.f32 %v825, %v1007
        %v1009 = vpop.f32.mrb[0].mxu0
        %1010 = vdwg.mxu0
        %1011 = vmatprep.subr.mxu0 0.0
        %v1012 = vand.u32 %v365, 4294901760
        %1013 = vmatpush1.msra.mxu0 %v1012
        %1014 = vmatprep.subr.mxu0 0.0
        %v1015 = vand.u32 %v366, 4294901760
        %1016 = vmatpush1.msra.mxu0 %v1015
        %1017 = vmatprep.subr.mxu0 0.0
        %v1018 = vand.u32 %v367, 4294901760
        %1019 = vmatpush1.msra.mxu0 %v1018
        %1020 = vmatprep.subr.mxu0 0.0
        %1021 = vmatpush1.msra.mxu0 0.0
        %1022 = vmatprep.subr.mxu0 0.0
        %1023 = vmatpush1.msra.mxu0 0.0
        %1024 = vmatprep.subr.mxu0 0.0
        %1025 = vmatpush1.msra.mxu0 0.0
        %1026 = vmatprep.subr.mxu0 0.0
        %1027 = vmatpush1.msra.mxu0 0.0
        %1028 = vmatprep.subr.mxu0 0.0
        %1029 = vmatpush1.msra.mxu0 0.0
        %1030 = vmatprep.subr.mxu0 0.0
        %1031 = vmatpush1.msra.mxu0 0.0
        %1032 = vmatprep.subr.mxu0 0.0
        %1033 = vmatpush1.msra.mxu0 0.0
        %1034 = vmatprep.subr.mxu0 0.0
        %1035 = vmatpush1.msra.mxu0 0.0
        %1036 = vmatprep.subr.mxu0 0.0
        %1037 = vmatpush1.msra.mxu0 0.0
        %1038 = vmatprep.subr.mxu0 0.0
        %1039 = vmatpush1.msra.mxu0 0.0
        %1040 = vmatprep.subr.mxu0 0.0
        %1041 = vmatpush1.msra.mxu0 0.0
        %1042 = vmatprep.subr.mxu0 0.0
        %1043 = vmatpush1.msra.mxu0 0.0
        %1044 = vmatprep.subr.mxu0 0.0
        %1045 = vmatpush1.msra.mxu0 0.0
        %1046 = vmatprep.subr.mxu0 0.0
        %1047 = vmatpush1.msra.mxu0 0.0
        %1048 = vmatprep.subr.mxu0 0.0
        %1049 = vmatpush1.msra.mxu0 0.0
        %1050 = vmatprep.subr.mxu0 0.0
        %1051 = vmatpush1.msra.mxu0 0.0
        %1052 = vmatprep.subr.mxu0 0.0
        %1053 = vmatpush1.msra.mxu0 0.0
        %1054 = vmatprep.subr.mxu0 0.0
        %1055 = vmatpush1.msra.mxu0 0.0
        %1056 = vmatprep.subr.mxu0 0.0
        %1057 = vmatpush1.msra.mxu0 0.0
        %1058 = vmatprep.subr.mxu0 0.0
        %1059 = vmatpush1.msra.mxu0 0.0
        %1060 = vmatprep.subr.mxu0 0.0
        %1061 = vmatpush1.msra.mxu0 0.0
        %1062 = vmatprep.subr.mxu0 0.0
        %1063 = vmatpush1.msra.mxu0 0.0
        %1064 = vmatprep.subr.mxu0 0.0
        %1065 = vmatpush1.msra.mxu0 0.0
        %1066 = vmatprep.subr.mxu0 0.0
        %1067 = vmatpush1.msra.mxu0 0.0
        %1068 = vmatprep.subr.mxu0 0.0
        %1069 = vmatpush1.msra.mxu0 0.0
        %1070 = vmatprep.subr.mxu0 0.0
        %1071 = vmatpush1.msra.mxu0 0.0
        %1072 = vmatprep.subr.mxu0 0.0
        %1073 = vmatpush1.msra.mxu0 0.0
        %1074 = vmatprep.subr.mxu0 0.0
        %1075 = vmatpush1.msra.mxu0 0.0
        %1076 = vmatprep.subr.mxu0 0.0
        %1077 = vmatpush1.msra.mxu0 0.0
        %1078 = vmatprep.mubr.f32.mxu0 0.0
        %v1079 = vand.u32 %v377, 4294901760
        %v1080 = vsub.f32 %v377, %v1079
        %v1081 = vand.u32 %v1080, 4294901760
        %1082 = vmatmul.mubr.f32.gmra.mrb[0].mxu0 %v1081
        %v1083 = vpop.f32.mrb[0].mxu0
        %v1084 = vadd.f32 %v903, %v1083
        %v1085 = vpop.f32.mrb[0].mxu0
        %1086 = vmatprep.mubr.f32.mxu0 0.0
        %v1087 = vand.u32 %v380, 4294901760
        %v1088 = vsub.f32 %v380, %v1087
        %v1089 = vand.u32 %v1088, 4294901760
        %1090 = vmatmul.mubr.f32.gmra.mrb[0].mxu0 %v1089
        %v1091 = vpop.f32.mrb[0].mxu0
        %v1092 = vadd.f32 %v910, %v1091
        %v1093 = vpop.f32.mrb[0].mxu0
        %1094 = vmatprep.mubr.f32.mxu0 0.0
        %v1095 = vand.u32 %v383, 4294901760
        %v1096 = vsub.f32 %v383, %v1095
        %v1097 = vand.u32 %v1096, 4294901760
        %1098 = vmatmul.mubr.f32.gmra.mrb[0].mxu0 %v1097
        %v1099 = vpop.f32.mrb[0].mxu0
        %v1100 = vadd.f32 %v917, %v1099
        %v1101 = vpop.f32.mrb[0].mxu0
        %1102 = vmatprep.mubr.f32.mxu0 0.0
        %v1103 = vand.u32 %v386, 4294901760
        %v1104 = vsub.f32 %v386, %v1103
        %v1105 = vand.u32 %v1104, 4294901760
        %1106 = vmatmul.mubr.f32.gmra.mrb[0].mxu0 %v1105
        %v1107 = vpop.f32.mrb[0].mxu0
        %v1108 = vadd.f32 %v924, %v1107
        %v1109 = vpop.f32.mrb[0].mxu0
        %1110 = vmatprep.mubr.f32.mxu0 0.0
        %v1111 = vand.u32 %v389, 4294901760
        %v1112 = vsub.f32 %v389, %v1111
        %v1113 = vand.u32 %v1112, 4294901760
        %1114 = vmatmul.mubr.f32.gmra.mrb[0].mxu0 %v1113
        %v1115 = vpop.f32.mrb[0].mxu0
        %v1116 = vadd.f32 %v931, %v1115
        %v1117 = vpop.f32.mrb[0].mxu0
        %1118 = vmatprep.mubr.f32.mxu0 0.0
        %v1119 = vand.u32 %v392, 4294901760
        %v1120 = vsub.f32 %v392, %v1119
        %v1121 = vand.u32 %v1120, 4294901760
        %1122 = vmatmul.mubr.f32.gmra.mrb[0].mxu0 %v1121
        %v1123 = vpop.f32.mrb[0].mxu0
        %v1124 = vadd.f32 %v938, %v1123
        %v1125 = vpop.f32.mrb[0].mxu0
        %1126 = vmatprep.mubr.f32.mxu0 0.0
        %v1127 = vand.u32 %v395, 4294901760
        %v1128 = vsub.f32 %v395, %v1127
        %v1129 = vand.u32 %v1128, 4294901760
        %1130 = vmatmul.mubr.f32.gmra.mrb[0].mxu0 %v1129
        %v1131 = vpop.f32.mrb[0].mxu0
        %v1132 = vadd.f32 %v945, %v1131
        %v1133 = vpop.f32.mrb[0].mxu0
        %1134 = vmatprep.mubr.f32.mxu0 0.0
        %v1135 = vand.u32 %v398, 4294901760
        %v1136 = vsub.f32 %v398, %v1135
        %v1137 = vand.u32 %v1136, 4294901760
        %1138 = vmatmul.mubr.f32.gmra.mrb[0].mxu0 %v1137
        %v1139 = vpop.f32.mrb[0].mxu0
        %v1140 = vadd.f32 %v952, %v1139
        %v1141 = vpop.f32.mrb[0].mxu0
        %1142 = vmatprep.mubr.f32.mxu0 0.0
        %v1143 = vand.u32 %v401, 4294901760
        %v1144 = vsub.f32 %v401, %v1143
        %v1145 = vand.u32 %v1144, 4294901760
        %1146 = vmatmul.mubr.f32.gmra.mrb[0].mxu0 %v1145
        %v1147 = vpop.f32.mrb[0].mxu0
        %v1148 = vadd.f32 %v959, %v1147
        %v1149 = vpop.f32.mrb[0].mxu0
        %1150 = vmatprep.mubr.f32.mxu0 0.0
        %v1151 = vand.u32 %v404, 4294901760
        %v1152 = vsub.f32 %v404, %v1151
        %v1153 = vand.u32 %v1152, 4294901760
        %1154 = vmatmul.mubr.f32.gmra.mrb[0].mxu0 %v1153
        %v1155 = vpop.f32.mrb[0].mxu0
        %v1156 = vadd.f32 %v966, %v1155
        %v1157 = vpop.f32.mrb[0].mxu0
        %1158 = vmatprep.mubr.f32.mxu0 0.0
        %v1159 = vand.u32 %v407, 4294901760
        %v1160 = vsub.f32 %v407, %v1159
        %v1161 = vand.u32 %v1160, 4294901760
        %1162 = vmatmul.mubr.f32.gmra.mrb[0].mxu0 %v1161
        %v1163 = vpop.f32.mrb[0].mxu0
        %v1164 = vadd.f32 %v973, %v1163
        %v1165 = vpop.f32.mrb[0].mxu0
        %1166 = vmatprep.mubr.f32.mxu0 0.0
        %v1167 = vand.u32 %v410, 4294901760
        %v1168 = vsub.f32 %v410, %v1167
        %v1169 = vand.u32 %v1168, 4294901760
        %1170 = vmatmul.mubr.f32.gmra.mrb[0].mxu0 %v1169
        %v1171 = vpop.f32.mrb[0].mxu0
        %v1172 = vadd.f32 %v980, %v1171
        %v1173 = vpop.f32.mrb[0].mxu0
        %1174 = vmatprep.mubr.f32.mxu0 0.0
        %v1175 = vand.u32 %v413, 4294901760
        %v1176 = vsub.f32 %v413, %v1175
        %v1177 = vand.u32 %v1176, 4294901760
        %1178 = vmatmul.mubr.f32.gmra.mrb[0].mxu0 %v1177
        %v1179 = vpop.f32.mrb[0].mxu0
        %v1180 = vadd.f32 %v987, %v1179
        %v1181 = vpop.f32.mrb[0].mxu0
        %1182 = vmatprep.mubr.f32.mxu0 0.0
        %v1183 = vand.u32 %v416, 4294901760
        %v1184 = vsub.f32 %v416, %v1183
        %v1185 = vand.u32 %v1184, 4294901760
        %1186 = vmatmul.mubr.f32.gmra.mrb[0].mxu0 %v1185
        %v1187 = vpop.f32.mrb[0].mxu0
        %v1188 = vadd.f32 %v994, %v1187
        %v1189 = vpop.f32.mrb[0].mxu0
        %1190 = vmatprep.mubr.f32.mxu0 0.0
        %v1191 = vand.u32 %v419, 4294901760
        %v1192 = vsub.f32 %v419, %v1191
        %v1193 = vand.u32 %v1192, 4294901760
        %1194 = vmatmul.mubr.f32.gmra.mrb[0].mxu0 %v1193
        %v1195 = vpop.f32.mrb[0].mxu0
        %v1196 = vadd.f32 %v1001, %v1195
        %v1197 = vpop.f32.mrb[0].mxu0
        %1198 = vmatprep.mubr.f32.mxu0 0.0
        %v1199 = vand.u32 %v422, 4294901760
        %v1200 = vsub.f32 %v422, %v1199
        %v1201 = vand.u32 %v1200, 4294901760
        %1202 = vmatmul.mubr.f32.gmra.mrb[0].mxu0 %v1201
        %v1203 = vpop.f32.mrb[0].mxu0
        %v1204 = vadd.f32 %v1008, %v1203
        %v1205 = vpop.f32.mrb[0].mxu0
        %1206 = vdwg.mxu0
        %1207 = vmatprep.subr.mxu0 0.0
        %v1208 = vand.u32 %v365, 4294901760
        %v1209 = vsub.f32 %v365, %v1208
        %v1210 = vand.u32 %v1209, 4294901760
        %1211 = vmatpush1.msra.mxu0 %v1210
        %1212 = vmatprep.subr.mxu0 0.0
        %v1213 = vand.u32 %v366, 4294901760
        %v1214 = vsub.f32 %v366, %v1213
        %v1215 = vand.u32 %v1214, 4294901760
        %1216 = vmatpush1.msra.mxu0 %v1215
        %1217 = vmatprep.subr.mxu0 0.0
        %v1218 = vand.u32 %v367, 4294901760
        %v1219 = vsub.f32 %v367, %v1218
        %v1220 = vand.u32 %v1219, 4294901760
        %1221 = vmatpush1.msra.mxu0 %v1220
        %1222 = vmatprep.subr.mxu0 0.0
        %1223 = vmatpush1.msra.mxu0 0.0
        %1224 = vmatprep.subr.mxu0 0.0
        %1225 = vmatpush1.msra.mxu0 0.0
        %1226 = vmatprep.subr.mxu0 0.0
        %1227 = vmatpush1.msra.mxu0 0.0
        %1228 = vmatprep.subr.mxu0 0.0
        %1229 = vmatpush1.msra.mxu0 0.0
        %1230 = vmatprep.subr.mxu0 0.0
        %1231 = vmatpush1.msra.mxu0 0.0
        %1232 = vmatprep.subr.mxu0 0.0
        %1233 = vmatpush1.msra.mxu0 0.0
        %1234 = vmatprep.subr.mxu0 0.0
        %1235 = vmatpush1.msra.mxu0 0.0
        %1236 = vmatprep.subr.mxu0 0.0
        %1237 = vmatpush1.msra.mxu0 0.0
        %1238 = vmatprep.subr.mxu0 0.0
        %1239 = vmatpush1.msra.mxu0 0.0
        %1240 = vmatprep.subr.mxu0 0.0
        %1241 = vmatpush1.msra.mxu0 0.0
        %1242 = vmatprep.subr.mxu0 0.0
        %1243 = vmatpush1.msra.mxu0 0.0
        %1244 = vmatprep.subr.mxu0 0.0
        %1245 = vmatpush1.msra.mxu0 0.0
        %1246 = vmatprep.subr.mxu0 0.0
        %1247 = vmatpush1.msra.mxu0 0.0
        %1248 = vmatprep.subr.mxu0 0.0
        %1249 = vmatpush1.msra.mxu0 0.0
        %1250 = vmatprep.subr.mxu0 0.0
        %1251 = vmatpush1.msra.mxu0 0.0
        %1252 = vmatprep.subr.mxu0 0.0
        %1253 = vmatpush1.msra.mxu0 0.0
        %1254 = vmatprep.subr.mxu0 0.0
        %1255 = vmatpush1.msra.mxu0 0.0
        %1256 = vmatprep.subr.mxu0 0.0
        %1257 = vmatpush1.msra.mxu0 0.0
        %1258 = vmatprep.subr.mxu0 0.0
        %1259 = vmatpush1.msra.mxu0 0.0
        %1260 = vmatprep.subr.mxu0 0.0
        %1261 = vmatpush1.msra.mxu0 0.0
        %1262 = vmatprep.subr.mxu0 0.0
        %1263 = vmatpush1.msra.mxu0 0.0
        %1264 = vmatprep.subr.mxu0 0.0
        %1265 = vmatpush1.msra.mxu0 0.0
        %1266 = vmatprep.subr.mxu0 0.0
        %1267 = vmatpush1.msra.mxu0 0.0
        %1268 = vmatprep.subr.mxu0 0.0
        %1269 = vmatpush1.msra.mxu0 0.0
        %1270 = vmatprep.subr.mxu0 0.0
        %1271 = vmatpush1.msra.mxu0 0.0
        %1272 = vmatprep.subr.mxu0 0.0
        %1273 = vmatpush1.msra.mxu0 0.0
        %1274 = vmatprep.subr.mxu0 0.0
        %1275 = vmatpush1.msra.mxu0 0.0
        %1276 = vmatprep.subr.mxu0 0.0
        %1277 = vmatpush1.msra.mxu0 0.0
        %1278 = vmatprep.subr.mxu0 0.0
        %1279 = vmatpush1.msra.mxu0 0.0
        %1280 = vmatprep.mubr.f32.mxu0 0.0
        %v1281 = vand.u32 %v377, 4294901760
        %1282 = vmatmul.mubr.f32.gmra.mrb[0].mxu0 %v1281
        %v1283 = vpop.f32.mrb[0].mxu0
        %v1284 = vadd.f32 %v1084, %v1283
        %v1285 = vpop.f32.mrb[0].mxu0
        %1286 = vmatprep.mubr.f32.mxu0 0.0
        %v1287 = vand.u32 %v380, 4294901760
        %1288 = vmatmul.mubr.f32.gmra.mrb[0].mxu0 %v1287
        %v1289 = vpop.f32.mrb[0].mxu0
        %v1290 = vadd.f32 %v1092, %v1289
        %v1291 = vpop.f32.mrb[0].mxu0
        %1292 = vmatprep.mubr.f32.mxu0 0.0
        %v1293 = vand.u32 %v383, 4294901760
        %1294 = vmatmul.mubr.f32.gmra.mrb[0].mxu0 %v1293
        %v1295 = vpop.f32.mrb[0].mxu0
        %v1296 = vadd.f32 %v1100, %v1295
        %v1297 = vpop.f32.mrb[0].mxu0
        %1298 = vmatprep.mubr.f32.mxu0 0.0
        %v1299 = vand.u32 %v386, 4294901760
        %1300 = vmatmul.mubr.f32.gmra.mrb[0].mxu0 %v1299
        %v1301 = vpop.f32.mrb[0].mxu0
        %v1302 = vadd.f32 %v1108, %v1301
        %v1303 = vpop.f32.mrb[0].mxu0
        %1304 = vmatprep.mubr.f32.mxu0 0.0
        %v1305 = vand.u32 %v389, 4294901760
        %1306 = vmatmul.mubr.f32.gmra.mrb[0].mxu0 %v1305
        %v1307 = vpop.f32.mrb[0].mxu0
        %v1308 = vadd.f32 %v1116, %v1307
        %v1309 = vpop.f32.mrb[0].mxu0
        %1310 = vmatprep.mubr.f32.mxu0 0.0
        %v1311 = vand.u32 %v392, 4294901760
        %1312 = vmatmul.mubr.f32.gmra.mrb[0].mxu0 %v1311
        %v1313 = vpop.f32.mrb[0].mxu0
        %v1314 = vadd.f32 %v1124, %v1313
        %v1315 = vpop.f32.mrb[0].mxu0
        %1316 = vmatprep.mubr.f32.mxu0 0.0
        %v1317 = vand.u32 %v395, 4294901760
        %1318 = vmatmul.mubr.f32.gmra.mrb[0].mxu0 %v1317
        %v1319 = vpop.f32.mrb[0].mxu0
        %v1320 = vadd.f32 %v1132, %v1319
        %v1321 = vpop.f32.mrb[0].mxu0
        %1322 = vmatprep.mubr.f32.mxu0 0.0
        %v1323 = vand.u32 %v398, 4294901760
        %1324 = vmatmul.mubr.f32.gmra.mrb[0].mxu0 %v1323
        %v1325 = vpop.f32.mrb[0].mxu0
        %v1326 = vadd.f32 %v1140, %v1325
        %v1327 = vpop.f32.mrb[0].mxu0
        %1328 = vmatprep.mubr.f32.mxu0 0.0
        %v1329 = vand.u32 %v401, 4294901760
        %1330 = vmatmul.mubr.f32.gmra.mrb[0].mxu0 %v1329
        %v1331 = vpop.f32.mrb[0].mxu0
        %v1332 = vadd.f32 %v1148, %v1331
        %v1333 = vpop.f32.mrb[0].mxu0
        %1334 = vmatprep.mubr.f32.mxu0 0.0
        %v1335 = vand.u32 %v404, 4294901760
        %1336 = vmatmul.mubr.f32.gmra.mrb[0].mxu0 %v1335
        %v1337 = vpop.f32.mrb[0].mxu0
        %v1338 = vadd.f32 %v1156, %v1337
        %v1339 = vpop.f32.mrb[0].mxu0
        %1340 = vmatprep.mubr.f32.mxu0 0.0
        %v1341 = vand.u32 %v407, 4294901760
        %1342 = vmatmul.mubr.f32.gmra.mrb[0].mxu0 %v1341
        %v1343 = vpop.f32.mrb[0].mxu0
        %v1344 = vadd.f32 %v1164, %v1343
        %v1345 = vpop.f32.mrb[0].mxu0
        %1346 = vmatprep.mubr.f32.mxu0 0.0
        %v1347 = vand.u32 %v410, 4294901760
        %1348 = vmatmul.mubr.f32.gmra.mrb[0].mxu0 %v1347
        %v1349 = vpop.f32.mrb[0].mxu0
        %v1350 = vadd.f32 %v1172, %v1349
        %v1351 = vpop.f32.mrb[0].mxu0
        %1352 = vmatprep.mubr.f32.mxu0 0.0
        %v1353 = vand.u32 %v413, 4294901760
        %1354 = vmatmul.mubr.f32.gmra.mrb[0].mxu0 %v1353
        %v1355 = vpop.f32.mrb[0].mxu0
        %v1356 = vadd.f32 %v1180, %v1355
        %v1357 = vpop.f32.mrb[0].mxu0
        %1358 = vmatprep.mubr.f32.mxu0 0.0
        %v1359 = vand.u32 %v416, 4294901760
        %1360 = vmatmul.mubr.f32.gmra.mrb[0].mxu0 %v1359
        %v1361 = vpop.f32.mrb[0].mxu0
        %v1362 = vadd.f32 %v1188, %v1361
        %v1363 = vpop.f32.mrb[0].mxu0
        %1364 = vmatprep.mubr.f32.mxu0 0.0
        %v1365 = vand.u32 %v419, 4294901760
        %1366 = vmatmul.mubr.f32.gmra.mrb[0].mxu0 %v1365
        %v1367 = vpop.f32.mrb[0].mxu0
        %v1368 = vadd.f32 %v1196, %v1367
        %v1369 = vpop.f32.mrb[0].mxu0
        %1370 = vmatprep.mubr.f32.mxu0 0.0
        %v1371 = vand.u32 %v422, 4294901760
        %1372 = vmatmul.mubr.f32.gmra.mrb[0].mxu0 %v1371
        %v1373 = vpop.f32.mrb[0].mxu0
        %v1374 = vadd.f32 %v1204, %v1373
        %v1375 = vpop.f32.mrb[0].mxu0
        %1376 = vdwg.mxu0
        %1377 = vmatprep.subr.mxu0 0.0
        %v1378 = vand.u32 %v365, 4294901760
        %1379 = vmatpush1.msra.mxu0 %v1378
        %1380 = vmatprep.subr.mxu0 0.0
        %v1381 = vand.u32 %v366, 4294901760
        %1382 = vmatpush1.msra.mxu0 %v1381
        %1383 = vmatprep.subr.mxu0 0.0
        %v1384 = vand.u32 %v367, 4294901760
        %1385 = vmatpush1.msra.mxu0 %v1384
        %1386 = vmatprep.subr.mxu0 0.0
        %1387 = vmatpush1.msra.mxu0 0.0
        %1388 = vmatprep.subr.mxu0 0.0
        %1389 = vmatpush1.msra.mxu0 0.0
        %1390 = vmatprep.subr.mxu0 0.0
        %1391 = vmatpush1.msra.mxu0 0.0
        %1392 = vmatprep.subr.mxu0 0.0
        %1393 = vmatpush1.msra.mxu0 0.0
        %1394 = vmatprep.subr.mxu0 0.0
        %1395 = vmatpush1.msra.mxu0 0.0
        %1396 = vmatprep.subr.mxu0 0.0
        %1397 = vmatpush1.msra.mxu0 0.0
        %1398 = vmatprep.subr.mxu0 0.0
        %1399 = vmatpush1.msra.mxu0 0.0
        %1400 = vmatprep.subr.mxu0 0.0
        %1401 = vmatpush1.msra.mxu0 0.0
        %1402 = vmatprep.subr.mxu0 0.0
        %1403 = vmatpush1.msra.mxu0 0.0
        %1404 = vmatprep.subr.mxu0 0.0
        %1405 = vmatpush1.msra.mxu0 0.0
        %1406 = vmatprep.subr.mxu0 0.0
        %1407 = vmatpush1.msra.mxu0 0.0
        %1408 = vmatprep.subr.mxu0 0.0
        %1409 = vmatpush1.msra.mxu0 0.0
        %1410 = vmatprep.subr.mxu0 0.0
        %1411 = vmatpush1.msra.mxu0 0.0
        %1412 = vmatprep.subr.mxu0 0.0
        %1413 = vmatpush1.msra.mxu0 0.0
        %1414 = vmatprep.subr.mxu0 0.0
        %1415 = vmatpush1.msra.mxu0 0.0
        %1416 = vmatprep.subr.mxu0 0.0
        %1417 = vmatpush1.msra.mxu0 0.0
        %1418 = vmatprep.subr.mxu0 0.0
        %1419 = vmatpush1.msra.mxu0 0.0
        %1420 = vmatprep.subr.mxu0 0.0
        %1421 = vmatpush1.msra.mxu0 0.0
        %1422 = vmatprep.subr.mxu0 0.0
        %1423 = vmatpush1.msra.mxu0 0.0
        %1424 = vmatprep.subr.mxu0 0.0
        %1425 = vmatpush1.msra.mxu0 0.0
        %1426 = vmatprep.subr.mxu0 0.0
        %1427 = vmatpush1.msra.mxu0 0.0
        %1428 = vmatprep.subr.mxu0 0.0
        %1429 = vmatpush1.msra.mxu0 0.0
        %1430 = vmatprep.subr.mxu0 0.0
        %1431 = vmatpush1.msra.mxu0 0.0
        %1432 = vmatprep.subr.mxu0 0.0
        %1433 = vmatpush1.msra.mxu0 0.0
        %1434 = vmatprep.subr.mxu0 0.0
        %1435 = vmatpush1.msra.mxu0 0.0
        %1436 = vmatprep.subr.mxu0 0.0
        %1437 = vmatpush1.msra.mxu0 0.0
        %1438 = vmatprep.subr.mxu0 0.0
        %1439 = vmatpush1.msra.mxu0 0.0
        %1440 = vmatprep.subr.mxu0 0.0
        %1441 = vmatpush1.msra.mxu0 0.0
        %1442 = vmatprep.subr.mxu0 0.0
        %1443 = vmatpush1.msra.mxu0 0.0
        %1444 = vmatprep.mubr.f32.mxu0 0.0
        %v1445 = vand.u32 %v377, 4294901760
        %1446 = vmatmul.mubr.f32.gmra.mrb[0].mxu0 %v1445
        %v1447 = vpop.f32.mrb[0].mxu0
        %v1448 = vadd.f32 %v1284, %v1447
        %v1449 = vpop.f32.mrb[0].mxu0
        %1450 = vmatprep.mubr.f32.mxu0 0.0
        %v1451 = vand.u32 %v380, 4294901760
        %1452 = vmatmul.mubr.f32.gmra.mrb[0].mxu0 %v1451
        %v1453 = vpop.f32.mrb[0].mxu0
        %v1454 = vadd.f32 %v1290, %v1453
        %v1455 = vpop.f32.mrb[0].mxu0
        %1456 = vmatprep.mubr.f32.mxu0 0.0
        %v1457 = vand.u32 %v383, 4294901760
        %1458 = vmatmul.mubr.f32.gmra.mrb[0].mxu0 %v1457
        %v1459 = vpop.f32.mrb[0].mxu0
        %v1460 = vadd.f32 %v1296, %v1459
        %v1461 = vpop.f32.mrb[0].mxu0
        %1462 = vmatprep.mubr.f32.mxu0 0.0
        %v1463 = vand.u32 %v386, 4294901760
        %1464 = vmatmul.mubr.f32.gmra.mrb[0].mxu0 %v1463
        %v1465 = vpop.f32.mrb[0].mxu0
        %v1466 = vadd.f32 %v1302, %v1465
        %v1467 = vpop.f32.mrb[0].mxu0
        %1468 = vmatprep.mubr.f32.mxu0 0.0
        %v1469 = vand.u32 %v389, 4294901760
        %1470 = vmatmul.mubr.f32.gmra.mrb[0].mxu0 %v1469
        %v1471 = vpop.f32.mrb[0].mxu0
        %v1472 = vadd.f32 %v1308, %v1471
        %v1473 = vpop.f32.mrb[0].mxu0
        %1474 = vmatprep.mubr.f32.mxu0 0.0
        %v1475 = vand.u32 %v392, 4294901760
        %1476 = vmatmul.mubr.f32.gmra.mrb[0].mxu0 %v1475
        %v1477 = vpop.f32.mrb[0].mxu0
        %v1478 = vadd.f32 %v1314, %v1477
        %v1479 = vpop.f32.mrb[0].mxu0
        %1480 = vmatprep.mubr.f32.mxu0 0.0
        %v1481 = vand.u32 %v395, 4294901760
        %1482 = vmatmul.mubr.f32.gmra.mrb[0].mxu0 %v1481
        %v1483 = vpop.f32.mrb[0].mxu0
        %v1484 = vadd.f32 %v1320, %v1483
        %v1485 = vpop.f32.mrb[0].mxu0
        %1486 = vmatprep.mubr.f32.mxu0 0.0
        %v1487 = vand.u32 %v398, 4294901760
        %1488 = vmatmul.mubr.f32.gmra.mrb[0].mxu0 %v1487
        %v1489 = vpop.f32.mrb[0].mxu0
        %v1490 = vadd.f32 %v1326, %v1489
        %v1491 = vpop.f32.mrb[0].mxu0
        %1492 = vmatprep.mubr.f32.mxu0 0.0
        %v1493 = vand.u32 %v401, 4294901760
        %1494 = vmatmul.mubr.f32.gmra.mrb[0].mxu0 %v1493
        %v1495 = vpop.f32.mrb[0].mxu0
        %v1496 = vadd.f32 %v1332, %v1495
        %v1497 = vpop.f32.mrb[0].mxu0
        %1498 = vmatprep.mubr.f32.mxu0 0.0
        %v1499 = vand.u32 %v404, 4294901760
        %1500 = vmatmul.mubr.f32.gmra.mrb[0].mxu0 %v1499
        %v1501 = vpop.f32.mrb[0].mxu0
        %v1502 = vadd.f32 %v1338, %v1501
        %v1503 = vpop.f32.mrb[0].mxu0
        %1504 = vmatprep.mubr.f32.mxu0 0.0
        %v1505 = vand.u32 %v407, 4294901760
        %1506 = vmatmul.mubr.f32.gmra.mrb[0].mxu0 %v1505
        %v1507 = vpop.f32.mrb[0].mxu0
        %v1508 = vadd.f32 %v1344, %v1507
        %v1509 = vpop.f32.mrb[0].mxu0
        %1510 = vmatprep.mubr.f32.mxu0 0.0
        %v1511 = vand.u32 %v410, 4294901760
        %1512 = vmatmul.mubr.f32.gmra.mrb[0].mxu0 %v1511
        %v1513 = vpop.f32.mrb[0].mxu0
        %v1514 = vadd.f32 %v1350, %v1513
        %v1515 = vpop.f32.mrb[0].mxu0
        %1516 = vmatprep.mubr.f32.mxu0 0.0
        %v1517 = vand.u32 %v413, 4294901760
        %1518 = vmatmul.mubr.f32.gmra.mrb[0].mxu0 %v1517
        %v1519 = vpop.f32.mrb[0].mxu0
        %v1520 = vadd.f32 %v1356, %v1519
        %v1521 = vpop.f32.mrb[0].mxu0
        %1522 = vmatprep.mubr.f32.mxu0 0.0
        %v1523 = vand.u32 %v416, 4294901760
        %1524 = vmatmul.mubr.f32.gmra.mrb[0].mxu0 %v1523
        %v1525 = vpop.f32.mrb[0].mxu0
        %v1526 = vadd.f32 %v1362, %v1525
        %v1527 = vpop.f32.mrb[0].mxu0
        %1528 = vmatprep.mubr.f32.mxu0 0.0
        %v1529 = vand.u32 %v419, 4294901760
        %1530 = vmatmul.mubr.f32.gmra.mrb[0].mxu0 %v1529
        %v1531 = vpop.f32.mrb[0].mxu0
        %v1532 = vadd.f32 %v1368, %v1531
        %v1533 = vpop.f32.mrb[0].mxu0
        %1534 = vmatprep.mubr.f32.mxu0 0.0
        %v1535 = vand.u32 %v422, 4294901760
        %1536 = vmatmul.mubr.f32.gmra.mrb[0].mxu0 %v1535
        %v1537 = vpop.f32.mrb[0].mxu0
        %v1538 = vadd.f32 %v1374, %v1537
        %v1539 = vpop.f32.mrb[0].mxu0
        %1540 = vdwg.mxu0
        %v1541 = vld [vmem:[%s3] sm:$0x1]
        %v1542 = vld [vmem:[%s4] sm:$0x1]
        %1543 = vadd.xlane.f32.xlu0 %v1448
        %v1544 = vpop.xlane.xlu0 %1543
        %1545 = vadd.xlane.f32.xlu0 %v1454
        %v1546 = vpop.xlane.xlu0 %1545
        %1547 = vadd.xlane.f32.xlu0 %v1460
        %v1548 = vpop.xlane.xlu0 %1547
        %1549 = vadd.xlane.f32.xlu0 %v1466
        %v1550 = vpop.xlane.xlu0 %1549
        %1551 = vadd.xlane.f32.xlu0 %v1472
        %v1552 = vpop.xlane.xlu0 %1551
        %1553 = vadd.xlane.f32.xlu0 %v1478
        %v1554 = vpop.xlane.xlu0 %1553
        %1555 = vadd.xlane.f32.xlu0 %v1484
        %v1556 = vpop.xlane.xlu0 %1555
        %1557 = vadd.xlane.f32.xlu0 %v1490
        %v1558 = vpop.xlane.xlu0 %1557
        %1559 = vadd.xlane.f32.xlu0 %v1496
        %v1560 = vpop.xlane.xlu0 %1559
        %1561 = vadd.xlane.f32.xlu0 %v1502
        %v1562 = vpop.xlane.xlu0 %1561
        %1563 = vadd.xlane.f32.xlu0 %v1508
        %v1564 = vpop.xlane.xlu0 %1563
        %1565 = vadd.xlane.f32.xlu0 %v1514
        %v1566 = vpop.xlane.xlu0 %1565
        %1567 = vadd.xlane.f32.xlu0 %v1520
        %v1568 = vpop.xlane.xlu0 %1567
        %1569 = vadd.xlane.f32.xlu0 %v1526
        %v1570 = vpop.xlane.xlu0 %1569
        %1571 = vadd.xlane.f32.xlu0 %v1532
        %v1572 = vpop.xlane.xlu0 %1571
        %1573 = vadd.xlane.f32.xlu0 %v1538
        %v1574 = vpop.xlane.xlu0 %1573
        %v1575 = vrcp.pop 128.0
        %v1576 = vmul.f32 %v1544, %v1575
        %v1577 = vmul.f32 %v1546, %v1575
        %v1578 = vmul.f32 %v1548, %v1575
        %v1579 = vmul.f32 %v1550, %v1575
        %v1580 = vmul.f32 %v1552, %v1575
        %v1581 = vmul.f32 %v1554, %v1575
        %v1582 = vmul.f32 %v1556, %v1575
        %v1583 = vmul.f32 %v1558, %v1575
        %v1584 = vmul.f32 %v1560, %v1575
        %v1585 = vmul.f32 %v1562, %v1575
        %v1586 = vmul.f32 %v1564, %v1575
        %v1587 = vmul.f32 %v1566, %v1575
        %v1588 = vmul.f32 %v1568, %v1575
        %v1589 = vmul.f32 %v1570, %v1575
        %v1590 = vmul.f32 %v1572, %v1575
        %v1591 = vmul.f32 %v1574, %v1575
        %v1592 = vsub.f32 %v1448, %v1576
        %v1593 = vsub.f32 %v1454, %v1577
        %v1594 = vsub.f32 %v1460, %v1578
        %v1595 = vsub.f32 %v1466, %v1579
        %v1596 = vsub.f32 %v1472, %v1580
        %v1597 = vsub.f32 %v1478, %v1581
        %v1598 = vsub.f32 %v1484, %v1582
        %v1599 = vsub.f32 %v1490, %v1583
        %v1600 = vsub.f32 %v1496, %v1584
        %v1601 = vsub.f32 %v1502, %v1585
        %v1602 = vsub.f32 %v1508, %v1586
        %v1603 = vsub.f32 %v1514, %v1587
        %v1604 = vsub.f32 %v1520, %v1588
        %v1605 = vsub.f32 %v1526, %v1589
        %v1606 = vsub.f32 %v1532, %v1590
        %v1607 = vsub.f32 %v1538, %v1591
        %v1608 = vmul.f32 %v1592, %v1592
        %v1609 = vmul.f32 %v1593, %v1593
        %v1610 = vmul.f32 %v1594, %v1594
        %v1611 = vmul.f32 %v1595, %v1595
        %v1612 = vmul.f32 %v1596, %v1596
        %v1613 = vmul.f32 %v1597, %v1597
        %v1614 = vmul.f32 %v1598, %v1598
        %v1615 = vmul.f32 %v1599, %v1599
        %v1616 = vmul.f32 %v1600, %v1600
        %v1617 = vmul.f32 %v1601, %v1601
        %v1618 = vmul.f32 %v1602, %v1602
        %v1619 = vmul.f32 %v1603, %v1603
        %v1620 = vmul.f32 %v1604, %v1604
        %v1621 = vmul.f32 %v1605, %v1605
        %v1622 = vmul.f32 %v1606, %v1606
        %v1623 = vmul.f32 %v1607, %v1607
        %1624 = vadd.xlane.f32.xlu0 %v1608
        %v1625 = vpop.xlane.xlu0 %1624
        %1626 = vadd.xlane.f32.xlu0 %v1609
        %v1627 = vpop.xlane.xlu0 %1626
        %1628 = vadd.xlane.f32.xlu0 %v1610
        %v1629 = vpop.xlane.xlu0 %1628
        %1630 = vadd.xlane.f32.xlu0 %v1611
        %v1631 = vpop.xlane.xlu0 %1630
        %1632 = vadd.xlane.f32.xlu0 %v1612
        %v1633 = vpop.xlane.xlu0 %1632
        %1634 = vadd.xlane.f32.xlu0 %v1613
        %v1635 = vpop.xlane.xlu0 %1634
        %1636 = vadd.xlane.f32.xlu0 %v1614
        %v1637 = vpop.xlane.xlu0 %1636
        %1638 = vadd.xlane.f32.xlu0 %v1615
        %v1639 = vpop.xlane.xlu0 %1638
        %1640 = vadd.xlane.f32.xlu0 %v1616
        %v1641 = vpop.xlane.xlu0 %1640
        %1642 = vadd.xlane.f32.xlu0 %v1617
        %v1643 = vpop.xlane.xlu0 %1642
        %1644 = vadd.xlane.f32.xlu0 %v1618
        %v1645 = vpop.xlane.xlu0 %1644
        %1646 = vadd.xlane.f32.xlu0 %v1619
        %v1647 = vpop.xlane.xlu0 %1646
        %1648 = vadd.xlane.f32.xlu0 %v1620
        %v1649 = vpop.xlane.xlu0 %1648
        %1650 = vadd.xlane.f32.xlu0 %v1621
        %v1651 = vpop.xlane.xlu0 %1650
        %1652 = vadd.xlane.f32.xlu0 %v1622
        %v1653 = vpop.xlane.xlu0 %1652
        %1654 = vadd.xlane.f32.xlu0 %v1623
        %v1655 = vpop.xlane.xlu0 %1654
        %v1656 = vmul.f32 %v1625, %v1575
        %v1657 = vmul.f32 %v1627, %v1575
        %v1658 = vmul.f32 %v1629, %v1575
        %v1659 = vmul.f32 %v1631, %v1575
        %v1660 = vmul.f32 %v1633, %v1575
        %v1661 = vmul.f32 %v1635, %v1575
        %v1662 = vmul.f32 %v1637, %v1575
        %v1663 = vmul.f32 %v1639, %v1575
        %v1664 = vmul.f32 %v1641, %v1575
        %v1665 = vmul.f32 %v1643, %v1575
        %v1666 = vmul.f32 %v1645, %v1575
        %v1667 = vmul.f32 %v1647, %v1575
        %v1668 = vmul.f32 %v1649, %v1575
        %v1669 = vmul.f32 %v1651, %v1575
        %v1670 = vmul.f32 %v1653, %v1575
        %v1671 = vmul.f32 %v1655, %v1575
        %v1672 = vadd.f32 %v1656, 1e-05
        %v1673 = vadd.f32 %v1657, 1e-05
        %v1674 = vadd.f32 %v1658, 1e-05
        %v1675 = vadd.f32 %v1659, 1e-05
        %v1676 = vadd.f32 %v1660, 1e-05
        %v1677 = vadd.f32 %v1661, 1e-05
        %v1678 = vadd.f32 %v1662, 1e-05
        %v1679 = vadd.f32 %v1663, 1e-05
        %v1680 = vadd.f32 %v1664, 1e-05
        %v1681 = vadd.f32 %v1665, 1e-05
        %v1682 = vadd.f32 %v1666, 1e-05
        %v1683 = vadd.f32 %v1667, 1e-05
        %v1684 = vadd.f32 %v1668, 1e-05
        %v1685 = vadd.f32 %v1669, 1e-05
        %v1686 = vadd.f32 %v1670, 1e-05
        %v1687 = vadd.f32 %v1671, 1e-05
        %v1688 = vrsqrt.pop %v1672
        %v1689 = vrsqrt.pop %v1673
        %v1690 = vrsqrt.pop %v1674
        %v1691 = vrsqrt.pop %v1675
        %v1692 = vrsqrt.pop %v1676
        %v1693 = vrsqrt.pop %v1677
        %v1694 = vrsqrt.pop %v1678
        %v1695 = vrsqrt.pop %v1679
        %v1696 = vrsqrt.pop %v1680
        %v1697 = vrsqrt.pop %v1681
        %v1698 = vrsqrt.pop %v1682
        %v1699 = vrsqrt.pop %v1683
        %v1700 = vrsqrt.pop %v1684
        %v1701 = vrsqrt.pop %v1685
        %v1702 = vrsqrt.pop %v1686
        %v1703 = vrsqrt.pop %v1687
        %v1704 = vmul.f32 %v1592, %v1688
        %v1705 = vmul.f32 %v1593, %v1689
        %v1706 = vmul.f32 %v1594, %v1690
        %v1707 = vmul.f32 %v1595, %v1691
        %v1708 = vmul.f32 %v1596, %v1692
        %v1709 = vmul.f32 %v1597, %v1693
        %v1710 = vmul.f32 %v1598, %v1694
        %v1711 = vmul.f32 %v1599, %v1695
        %v1712 = vmul.f32 %v1600, %v1696
        %v1713 = vmul.f32 %v1601, %v1697
        %v1714 = vmul.f32 %v1602, %v1698
        %v1715 = vmul.f32 %v1603, %v1699
        %v1716 = vmul.f32 %v1604, %v1700
        %v1717 = vmul.f32 %v1605, %v1701
        %v1718 = vmul.f32 %v1606, %v1702
        %v1719 = vmul.f32 %v1607, %v1703
        %v1721 = vlaneseq
        %v1722 = vshrl.u32 %v1721, 7
        %v1723 = vsub.s32 0, %v1722
        %v1724 = vrot.slane %v1541, %v1723
        %v1726 = vmul.f32 %v1704, %v1724
        %v1727 = vmul.f32 %v1705, %v1724
        %v1728 = vmul.f32 %v1706, %v1724
        %v1729 = vmul.f32 %v1707, %v1724
        %v1730 = vmul.f32 %v1708, %v1724
        %v1731 = vmul.f32 %v1709, %v1724
        %v1732 = vmul.f32 %v1710, %v1724
        %v1733 = vmul.f32 %v1711, %v1724
        %v1734 = vmul.f32 %v1712, %v1724
        %v1735 = vmul.f32 %v1713, %v1724
        %v1736 = vmul.f32 %v1714, %v1724
        %v1737 = vmul.f32 %v1715, %v1724
        %v1738 = vmul.f32 %v1716, %v1724
        %v1739 = vmul.f32 %v1717, %v1724
        %v1740 = vmul.f32 %v1718, %v1724
        %v1741 = vmul.f32 %v1719, %v1724
        %v1743 = vlaneseq
        %v1744 = vshrl.u32 %v1743, 7
        %v1745 = vsub.s32 0, %v1744
        %v1746 = vrot.slane %v1542, %v1745
        %v1748 = vadd.f32 %v1726, %v1746
        %v1749 = vadd.f32 %v1727, %v1746
        %v1750 = vadd.f32 %v1728, %v1746
        %v1751 = vadd.f32 %v1729, %v1746
        %v1752 = vadd.f32 %v1730, %v1746
        %v1753 = vadd.f32 %v1731, %v1746
        %v1754 = vadd.f32 %v1732, %v1746
        %v1755 = vadd.f32 %v1733, %v1746
        %v1756 = vadd.f32 %v1734, %v1746
        %v1757 = vadd.f32 %v1735, %v1746
        %v1758 = vadd.f32 %v1736, %v1746
        %v1759 = vadd.f32 %v1737, %v1746
        %v1760 = vadd.f32 %v1738, %v1746
        %v1761 = vadd.f32 %v1739, %v1746
        %v1762 = vadd.f32 %v1740, %v1746
        %v1763 = vadd.f32 %v1741, %v1746
        %v1764 = vld [vmem:[%s5] sm:$0xff]
        %v1765 = vld [vmem:[%s5 + $0x8] sm:$0xff]
        %v1766 = vld [vmem:[%s5 + $0x10] sm:$0xff]
        %v1767 = vld [vmem:[%s5 + $0x18] sm:$0xff]
        %v1768 = vld [vmem:[%s5 + $0x20] sm:$0xff]
        %v1769 = vld [vmem:[%s5 + $0x28] sm:$0xff]
        %v1770 = vld [vmem:[%s5 + $0x30] sm:$0xff]
        %v1771 = vld [vmem:[%s5 + $0x38] sm:$0xff]
        %v1772 = vld [vmem:[%s5 + $0x40] sm:$0xff]
        %v1773 = vld [vmem:[%s5 + $0x48] sm:$0xff]
        %v1774 = vld [vmem:[%s5 + $0x50] sm:$0xff]
        %v1775 = vld [vmem:[%s5 + $0x58] sm:$0xff]
        %v1776 = vld [vmem:[%s5 + $0x60] sm:$0xff]
        %v1777 = vld [vmem:[%s5 + $0x68] sm:$0xff]
        %v1778 = vld [vmem:[%s5 + $0x70] sm:$0xff]
        %v1779 = vld [vmem:[%s5 + $0x78] sm:$0xff]
        %v1780 = vld [vmem:[%s6] sm:$0x1]
        %v1782 = vlaneseq
        %v1783 = vshrl.u32 %v1782, 7
        %v1784 = vsub.s32 0, %v1783
        %v1785 = vrot.slane %v1780, %v1784
        %1787 = vmatprep.subr.mxu0 0.0
        %v1788 = vand.u32 %v1764, 4294901760
        %1789 = vmatpush1.msra.mxu0 %v1788
        %1790 = vmatprep.subr.mxu0 0.0
        %v1791 = vand.u32 %v1765, 4294901760
        %1792 = vmatpush1.msra.mxu0 %v1791
        %1793 = vmatprep.subr.mxu0 0.0
        %v1794 = vand.u32 %v1766, 4294901760
        %1795 = vmatpush1.msra.mxu0 %v1794
        %1796 = vmatprep.subr.mxu0 0.0
        %v1797 = vand.u32 %v1767, 4294901760
        %1798 = vmatpush1.msra.mxu0 %v1797
        %1799 = vmatprep.subr.mxu0 0.0
        %v1800 = vand.u32 %v1768, 4294901760
        %1801 = vmatpush1.msra.mxu0 %v1800
        %1802 = vmatprep.subr.mxu0 0.0
        %v1803 = vand.u32 %v1769, 4294901760
        %1804 = vmatpush1.msra.mxu0 %v1803
        %1805 = vmatprep.subr.mxu0 0.0
        %v1806 = vand.u32 %v1770, 4294901760
        %1807 = vmatpush1.msra.mxu0 %v1806
        %1808 = vmatprep.subr.mxu0 0.0
        %v1809 = vand.u32 %v1771, 4294901760
        %1810 = vmatpush1.msra.mxu0 %v1809
        %1811 = vmatprep.subr.mxu0 0.0
        %v1812 = vand.u32 %v1772, 4294901760
        %1813 = vmatpush1.msra.mxu0 %v1812
        %1814 = vmatprep.subr.mxu0 0.0
        %v1815 = vand.u32 %v1773, 4294901760
        %1816 = vmatpush1.msra.mxu0 %v1815
        %1817 = vmatprep.subr.mxu0 0.0
        %v1818 = vand.u32 %v1774, 4294901760
        %1819 = vmatpush1.msra.mxu0 %v1818
        %1820 = vmatprep.subr.mxu0 0.0
        %v1821 = vand.u32 %v1775, 4294901760
        %1822 = vmatpush1.msra.mxu0 %v1821
        %1823 = vmatprep.subr.mxu0 0.0
        %v1824 = vand.u32 %v1776, 4294901760
        %1825 = vmatpush1.msra.mxu0 %v1824
        %1826 = vmatprep.subr.mxu0 0.0
        %v1827 = vand.u32 %v1777, 4294901760
        %1828 = vmatpush1.msra.mxu0 %v1827
        %1829 = vmatprep.subr.mxu0 0.0
        %v1830 = vand.u32 %v1778, 4294901760
        %1831 = vmatpush1.msra.mxu0 %v1830
        %1832 = vmatprep.subr.mxu0 0.0
        %v1833 = vand.u32 %v1779, 4294901760
        %1834 = vmatpush1.msra.mxu0 %v1833
        %1835 = vmatprep.subr.mxu0 0.0
        %1836 = vmatpush1.msra.mxu0 0.0
        %1837 = vmatprep.subr.mxu0 0.0
        %1838 = vmatpush1.msra.mxu0 0.0
        %1839 = vmatprep.subr.mxu0 0.0
        %1840 = vmatpush1.msra.mxu0 0.0
        %1841 = vmatprep.subr.mxu0 0.0
        %1842 = vmatpush1.msra.mxu0 0.0
        %1843 = vmatprep.subr.mxu0 0.0
        %1844 = vmatpush1.msra.mxu0 0.0
        %1845 = vmatprep.subr.mxu0 0.0
        %1846 = vmatpush1.msra.mxu0 0.0
        %1847 = vmatprep.subr.mxu0 0.0
        %1848 = vmatpush1.msra.mxu0 0.0
        %1849 = vmatprep.subr.mxu0 0.0
        %1850 = vmatpush1.msra.mxu0 0.0
        %1851 = vmatprep.subr.mxu0 0.0
        %1852 = vmatpush1.msra.mxu0 0.0
        %1853 = vmatprep.subr.mxu0 0.0
        %1854 = vmatpush1.msra.mxu0 0.0
        %1855 = vmatprep.subr.mxu0 0.0
        %1856 = vmatpush1.msra.mxu0 0.0
        %1857 = vmatprep.subr.mxu0 0.0
        %1858 = vmatpush1.msra.mxu0 0.0
        %1859 = vmatprep.subr.mxu0 0.0
        %1860 = vmatpush1.msra.mxu0 0.0
        %1861 = vmatprep.subr.mxu0 0.0
        %1862 = vmatpush1.msra.mxu0 0.0
        %1863 = vmatprep.subr.mxu0 0.0
        %1864 = vmatpush1.msra.mxu0 0.0
        %1865 = vmatprep.subr.mxu0 0.0
        %1866 = vmatpush1.msra.mxu0 0.0
        %1867 = vmatprep.mubr.f32.mxu0 0.0
        %v1868 = vand.u32 %v1748, 4294901760
        %v1869 = vsub.f32 %v1748, %v1868
        %v1870 = vand.u32 %v1869, 4294901760
        %v1871 = vsub.f32 %v1869, %v1870
        %v1872 = vand.u32 %v1871, 4294901760
        %1873 = vmatmul.mubr.f32.gmra.mrb[0].mxu0 %v1872
        %v1874 = vpop.f32.mrb[0].mxu0
        %v1875 = vadd.f32 %v1785, %v1874
        %v1876 = vpop.f32.mrb[0].mxu0
        %1877 = vmatprep.mubr.f32.mxu0 0.0
        %v1878 = vand.u32 %v1749, 4294901760
        %v1879 = vsub.f32 %v1749, %v1878
        %v1880 = vand.u32 %v1879, 4294901760
        %v1881 = vsub.f32 %v1879, %v1880
        %v1882 = vand.u32 %v1881, 4294901760
        %1883 = vmatmul.mubr.f32.gmra.mrb[0].mxu0 %v1882
        %v1884 = vpop.f32.mrb[0].mxu0
        %v1885 = vadd.f32 %v1785, %v1884
        %v1886 = vpop.f32.mrb[0].mxu0
        %1887 = vmatprep.mubr.f32.mxu0 0.0
        %v1888 = vand.u32 %v1750, 4294901760
        %v1889 = vsub.f32 %v1750, %v1888
        %v1890 = vand.u32 %v1889, 4294901760
        %v1891 = vsub.f32 %v1889, %v1890
        %v1892 = vand.u32 %v1891, 4294901760
        %1893 = vmatmul.mubr.f32.gmra.mrb[0].mxu0 %v1892
        %v1894 = vpop.f32.mrb[0].mxu0
        %v1895 = vadd.f32 %v1785, %v1894
        %v1896 = vpop.f32.mrb[0].mxu0
        %1897 = vmatprep.mubr.f32.mxu0 0.0
        %v1898 = vand.u32 %v1751, 4294901760
        %v1899 = vsub.f32 %v1751, %v1898
        %v1900 = vand.u32 %v1899, 4294901760
        %v1901 = vsub.f32 %v1899, %v1900
        %v1902 = vand.u32 %v1901, 4294901760
        %1903 = vmatmul.mubr.f32.gmra.mrb[0].mxu0 %v1902
        %v1904 = vpop.f32.mrb[0].mxu0
        %v1905 = vadd.f32 %v1785, %v1904
        %v1906 = vpop.f32.mrb[0].mxu0
        %1907 = vmatprep.mubr.f32.mxu0 0.0
        %v1908 = vand.u32 %v1752, 4294901760
        %v1909 = vsub.f32 %v1752, %v1908
        %v1910 = vand.u32 %v1909, 4294901760
        %v1911 = vsub.f32 %v1909, %v1910
        %v1912 = vand.u32 %v1911, 4294901760
        %1913 = vmatmul.mubr.f32.gmra.mrb[0].mxu0 %v1912
        %v1914 = vpop.f32.mrb[0].mxu0
        %v1915 = vadd.f32 %v1785, %v1914
        %v1916 = vpop.f32.mrb[0].mxu0
        %1917 = vmatprep.mubr.f32.mxu0 0.0
        %v1918 = vand.u32 %v1753, 4294901760
        %v1919 = vsub.f32 %v1753, %v1918
        %v1920 = vand.u32 %v1919, 4294901760
        %v1921 = vsub.f32 %v1919, %v1920
        %v1922 = vand.u32 %v1921, 4294901760
        %1923 = vmatmul.mubr.f32.gmra.mrb[0].mxu0 %v1922
        %v1924 = vpop.f32.mrb[0].mxu0
        %v1925 = vadd.f32 %v1785, %v1924
        %v1926 = vpop.f32.mrb[0].mxu0
        %1927 = vmatprep.mubr.f32.mxu0 0.0
        %v1928 = vand.u32 %v1754, 4294901760
        %v1929 = vsub.f32 %v1754, %v1928
        %v1930 = vand.u32 %v1929, 4294901760
        %v1931 = vsub.f32 %v1929, %v1930
        %v1932 = vand.u32 %v1931, 4294901760
        %1933 = vmatmul.mubr.f32.gmra.mrb[0].mxu0 %v1932
        %v1934 = vpop.f32.mrb[0].mxu0
        %v1935 = vadd.f32 %v1785, %v1934
        %v1936 = vpop.f32.mrb[0].mxu0
        %1937 = vmatprep.mubr.f32.mxu0 0.0
        %v1938 = vand.u32 %v1755, 4294901760
        %v1939 = vsub.f32 %v1755, %v1938
        %v1940 = vand.u32 %v1939, 4294901760
        %v1941 = vsub.f32 %v1939, %v1940
        %v1942 = vand.u32 %v1941, 4294901760
        %1943 = vmatmul.mubr.f32.gmra.mrb[0].mxu0 %v1942
        %v1944 = vpop.f32.mrb[0].mxu0
        %v1945 = vadd.f32 %v1785, %v1944
        %v1946 = vpop.f32.mrb[0].mxu0
        %1947 = vmatprep.mubr.f32.mxu0 0.0
        %v1948 = vand.u32 %v1756, 4294901760
        %v1949 = vsub.f32 %v1756, %v1948
        %v1950 = vand.u32 %v1949, 4294901760
        %v1951 = vsub.f32 %v1949, %v1950
        %v1952 = vand.u32 %v1951, 4294901760
        %1953 = vmatmul.mubr.f32.gmra.mrb[0].mxu0 %v1952
        %v1954 = vpop.f32.mrb[0].mxu0
        %v1955 = vadd.f32 %v1785, %v1954
        %v1956 = vpop.f32.mrb[0].mxu0
        %1957 = vmatprep.mubr.f32.mxu0 0.0
        %v1958 = vand.u32 %v1757, 4294901760
        %v1959 = vsub.f32 %v1757, %v1958
        %v1960 = vand.u32 %v1959, 4294901760
        %v1961 = vsub.f32 %v1959, %v1960
        %v1962 = vand.u32 %v1961, 4294901760
        %1963 = vmatmul.mubr.f32.gmra.mrb[0].mxu0 %v1962
        %v1964 = vpop.f32.mrb[0].mxu0
        %v1965 = vadd.f32 %v1785, %v1964
        %v1966 = vpop.f32.mrb[0].mxu0
        %1967 = vmatprep.mubr.f32.mxu0 0.0
        %v1968 = vand.u32 %v1758, 4294901760
        %v1969 = vsub.f32 %v1758, %v1968
        %v1970 = vand.u32 %v1969, 4294901760
        %v1971 = vsub.f32 %v1969, %v1970
        %v1972 = vand.u32 %v1971, 4294901760
        %1973 = vmatmul.mubr.f32.gmra.mrb[0].mxu0 %v1972
        %v1974 = vpop.f32.mrb[0].mxu0
        %v1975 = vadd.f32 %v1785, %v1974
        %v1976 = vpop.f32.mrb[0].mxu0
        %1977 = vmatprep.mubr.f32.mxu0 0.0
        %v1978 = vand.u32 %v1759, 4294901760
        %v1979 = vsub.f32 %v1759, %v1978
        %v1980 = vand.u32 %v1979, 4294901760
        %v1981 = vsub.f32 %v1979, %v1980
        %v1982 = vand.u32 %v1981, 4294901760
        %1983 = vmatmul.mubr.f32.gmra.mrb[0].mxu0 %v1982
        %v1984 = vpop.f32.mrb[0].mxu0
        %v1985 = vadd.f32 %v1785, %v1984
        %v1986 = vpop.f32.mrb[0].mxu0
        %1987 = vmatprep.mubr.f32.mxu0 0.0
        %v1988 = vand.u32 %v1760, 4294901760
        %v1989 = vsub.f32 %v1760, %v1988
        %v1990 = vand.u32 %v1989, 4294901760
        %v1991 = vsub.f32 %v1989, %v1990
        %v1992 = vand.u32 %v1991, 4294901760
        %1993 = vmatmul.mubr.f32.gmra.mrb[0].mxu0 %v1992
        %v1994 = vpop.f32.mrb[0].mxu0
        %v1995 = vadd.f32 %v1785, %v1994
        %v1996 = vpop.f32.mrb[0].mxu0
        %1997 = vmatprep.mubr.f32.mxu0 0.0
        %v1998 = vand.u32 %v1761, 4294901760
        %v1999 = vsub.f32 %v1761, %v1998
        %v2000 = vand.u32 %v1999, 4294901760
        %v2001 = vsub.f32 %v1999, %v2000
        %v2002 = vand.u32 %v2001, 4294901760
        %2003 = vmatmul.mubr.f32.gmra.mrb[0].mxu0 %v2002
        %v2004 = vpop.f32.mrb[0].mxu0
        %v2005 = vadd.f32 %v1785, %v2004
        %v2006 = vpop.f32.mrb[0].mxu0
        %2007 = vmatprep.mubr.f32.mxu0 0.0
        %v2008 = vand.u32 %v1762, 4294901760
        %v2009 = vsub.f32 %v1762, %v2008
        %v2010 = vand.u32 %v2009, 4294901760
        %v2011 = vsub.f32 %v2009, %v2010
        %v2012 = vand.u32 %v2011, 4294901760
        %2013 = vmatmul.mubr.f32.gmra.mrb[0].mxu0 %v2012
        %v2014 = vpop.f32.mrb[0].mxu0
        %v2015 = vadd.f32 %v1785, %v2014
        %v2016 = vpop.f32.mrb[0].mxu0
        %2017 = vmatprep.mubr.f32.mxu0 0.0
        %v2018 = vand.u32 %v1763, 4294901760
        %v2019 = vsub.f32 %v1763, %v2018
        %v2020 = vand.u32 %v2019, 4294901760
        %v2021 = vsub.f32 %v2019, %v2020
        %v2022 = vand.u32 %v2021, 4294901760
        %2023 = vmatmul.mubr.f32.gmra.mrb[0].mxu0 %v2022
        %v2024 = vpop.f32.mrb[0].mxu0
        %v2025 = vadd.f32 %v1785, %v2024
        %v2026 = vpop.f32.mrb[0].mxu0
        %2027 = vdwg.mxu0
        %2028 = vmatprep.subr.mxu0 0.0
        %v2029 = vand.u32 %v1764, 4294901760
        %v2030 = vsub.f32 %v1764, %v2029
        %v2031 = vand.u32 %v2030, 4294901760
        %v2032 = vsub.f32 %v2030, %v2031
        %v2033 = vand.u32 %v2032, 4294901760
        %2034 = vmatpush1.msra.mxu0 %v2033
        %2035 = vmatprep.subr.mxu0 0.0
        %v2036 = vand.u32 %v1765, 4294901760
        %v2037 = vsub.f32 %v1765, %v2036
        %v2038 = vand.u32 %v2037, 4294901760
        %v2039 = vsub.f32 %v2037, %v2038
        %v2040 = vand.u32 %v2039, 4294901760
        %2041 = vmatpush1.msra.mxu0 %v2040
        %2042 = vmatprep.subr.mxu0 0.0
        %v2043 = vand.u32 %v1766, 4294901760
        %v2044 = vsub.f32 %v1766, %v2043
        %v2045 = vand.u32 %v2044, 4294901760
        %v2046 = vsub.f32 %v2044, %v2045
        %v2047 = vand.u32 %v2046, 4294901760
        %2048 = vmatpush1.msra.mxu0 %v2047
        %2049 = vmatprep.subr.mxu0 0.0
        %v2050 = vand.u32 %v1767, 4294901760
        %v2051 = vsub.f32 %v1767, %v2050
        %v2052 = vand.u32 %v2051, 4294901760
        %v2053 = vsub.f32 %v2051, %v2052
        %v2054 = vand.u32 %v2053, 4294901760
        %2055 = vmatpush1.msra.mxu0 %v2054
        %2056 = vmatprep.subr.mxu0 0.0
        %v2057 = vand.u32 %v1768, 4294901760
        %v2058 = vsub.f32 %v1768, %v2057
        %v2059 = vand.u32 %v2058, 4294901760
        %v2060 = vsub.f32 %v2058, %v2059
        %v2061 = vand.u32 %v2060, 4294901760
        %2062 = vmatpush1.msra.mxu0 %v2061
        %2063 = vmatprep.subr.mxu0 0.0
        %v2064 = vand.u32 %v1769, 4294901760
        %v2065 = vsub.f32 %v1769, %v2064
        %v2066 = vand.u32 %v2065, 4294901760
        %v2067 = vsub.f32 %v2065, %v2066
        %v2068 = vand.u32 %v2067, 4294901760
        %2069 = vmatpush1.msra.mxu0 %v2068
        %2070 = vmatprep.subr.mxu0 0.0
        %v2071 = vand.u32 %v1770, 4294901760
        %v2072 = vsub.f32 %v1770, %v2071
        %v2073 = vand.u32 %v2072, 4294901760
        %v2074 = vsub.f32 %v2072, %v2073
        %v2075 = vand.u32 %v2074, 4294901760
        %2076 = vmatpush1.msra.mxu0 %v2075
        %2077 = vmatprep.subr.mxu0 0.0
        %v2078 = vand.u32 %v1771, 4294901760
        %v2079 = vsub.f32 %v1771, %v2078
        %v2080 = vand.u32 %v2079, 4294901760
        %v2081 = vsub.f32 %v2079, %v2080
        %v2082 = vand.u32 %v2081, 4294901760
        %2083 = vmatpush1.msra.mxu0 %v2082
        %2084 = vmatprep.subr.mxu0 0.0
        %v2085 = vand.u32 %v1772, 4294901760
        %v2086 = vsub.f32 %v1772, %v2085
        %v2087 = vand.u32 %v2086, 4294901760
        %v2088 = vsub.f32 %v2086, %v2087
        %v2089 = vand.u32 %v2088, 4294901760
        %2090 = vmatpush1.msra.mxu0 %v2089
        %2091 = vmatprep.subr.mxu0 0.0
        %v2092 = vand.u32 %v1773, 4294901760
        %v2093 = vsub.f32 %v1773, %v2092
        %v2094 = vand.u32 %v2093, 4294901760
        %v2095 = vsub.f32 %v2093, %v2094
        %v2096 = vand.u32 %v2095, 4294901760
        %2097 = vmatpush1.msra.mxu0 %v2096
        %2098 = vmatprep.subr.mxu0 0.0
        %v2099 = vand.u32 %v1774, 4294901760
        %v2100 = vsub.f32 %v1774, %v2099
        %v2101 = vand.u32 %v2100, 4294901760
        %v2102 = vsub.f32 %v2100, %v2101
        %v2103 = vand.u32 %v2102, 4294901760
        %2104 = vmatpush1.msra.mxu0 %v2103
        %2105 = vmatprep.subr.mxu0 0.0
        %v2106 = vand.u32 %v1775, 4294901760
        %v2107 = vsub.f32 %v1775, %v2106
        %v2108 = vand.u32 %v2107, 4294901760
        %v2109 = vsub.f32 %v2107, %v2108
        %v2110 = vand.u32 %v2109, 4294901760
        %2111 = vmatpush1.msra.mxu0 %v2110
        %2112 = vmatprep.subr.mxu0 0.0
        %v2113 = vand.u32 %v1776, 4294901760
        %v2114 = vsub.f32 %v1776, %v2113
        %v2115 = vand.u32 %v2114, 4294901760
        %v2116 = vsub.f32 %v2114, %v2115
        %v2117 = vand.u32 %v2116, 4294901760
        %2118 = vmatpush1.msra.mxu0 %v2117
        %2119 = vmatprep.subr.mxu0 0.0
        %v2120 = vand.u32 %v1777, 4294901760
        %v2121 = vsub.f32 %v1777, %v2120
        %v2122 = vand.u32 %v2121, 4294901760
        %v2123 = vsub.f32 %v2121, %v2122
        %v2124 = vand.u32 %v2123, 4294901760
        %2125 = vmatpush1.msra.mxu0 %v2124
        %2126 = vmatprep.subr.mxu0 0.0
        %v2127 = vand.u32 %v1778, 4294901760
        %v2128 = vsub.f32 %v1778, %v2127
        %v2129 = vand.u32 %v2128, 4294901760
        %v2130 = vsub.f32 %v2128, %v2129
        %v2131 = vand.u32 %v2130, 4294901760
        %2132 = vmatpush1.msra.mxu0 %v2131
        %2133 = vmatprep.subr.mxu0 0.0
        %v2134 = vand.u32 %v1779, 4294901760
        %v2135 = vsub.f32 %v1779, %v2134
        %v2136 = vand.u32 %v2135, 4294901760
        %v2137 = vsub.f32 %v2135, %v2136
        %v2138 = vand.u32 %v2137, 4294901760
        %2139 = vmatpush1.msra.mxu0 %v2138
        %2140 = vmatprep.subr.mxu0 0.0
        %2141 = vmatpush1.msra.mxu0 0.0
        %2142 = vmatprep.subr.mxu0 0.0
        %2143 = vmatpush1.msra.mxu0 0.0
        %2144 = vmatprep.subr.mxu0 0.0
        %2145 = vmatpush1.msra.mxu0 0.0
        %2146 = vmatprep.subr.mxu0 0.0
        %2147 = vmatpush1.msra.mxu0 0.0
        %2148 = vmatprep.subr.mxu0 0.0
        %2149 = vmatpush1.msra.mxu0 0.0
        %2150 = vmatprep.subr.mxu0 0.0
        %2151 = vmatpush1.msra.mxu0 0.0
        %2152 = vmatprep.subr.mxu0 0.0
        %2153 = vmatpush1.msra.mxu0 0.0
        %2154 = vmatprep.subr.mxu0 0.0
        %2155 = vmatpush1.msra.mxu0 0.0
        %2156 = vmatprep.subr.mxu0 0.0
        %2157 = vmatpush1.msra.mxu0 0.0
        %2158 = vmatprep.subr.mxu0 0.0
        %2159 = vmatpush1.msra.mxu0 0.0
        %2160 = vmatprep.subr.mxu0 0.0
        %2161 = vmatpush1.msra.mxu0 0.0
        %2162 = vmatprep.subr.mxu0 0.0
        %2163 = vmatpush1.msra.mxu0 0.0
        %2164 = vmatprep.subr.mxu0 0.0
        %2165 = vmatpush1.msra.mxu0 0.0
        %2166 = vmatprep.subr.mxu0 0.0
        %2167 = vmatpush1.msra.mxu0 0.0
        %2168 = vmatprep.subr.mxu0 0.0
        %2169 = vmatpush1.msra.mxu0 0.0
        %2170 = vmatprep.subr.mxu0 0.0
        %2171 = vmatpush1.msra.mxu0 0.0
        %2172 = vmatprep.mubr.f32.mxu0 0.0
        %v2173 = vand.u32 %v1748, 4294901760
        %2174 = vmatmul.mubr.f32.gmra.mrb[0].mxu0 %v2173
        %v2175 = vpop.f32.mrb[0].mxu0
        %v2176 = vadd.f32 %v1875, %v2175
        %v2177 = vpop.f32.mrb[0].mxu0
        %2178 = vmatprep.mubr.f32.mxu0 0.0
        %v2179 = vand.u32 %v1749, 4294901760
        %2180 = vmatmul.mubr.f32.gmra.mrb[0].mxu0 %v2179
        %v2181 = vpop.f32.mrb[0].mxu0
        %v2182 = vadd.f32 %v1885, %v2181
        %v2183 = vpop.f32.mrb[0].mxu0
        %2184 = vmatprep.mubr.f32.mxu0 0.0
        %v2185 = vand.u32 %v1750, 4294901760
        %2186 = vmatmul.mubr.f32.gmra.mrb[0].mxu0 %v2185
        %v2187 = vpop.f32.mrb[0].mxu0
        %v2188 = vadd.f32 %v1895, %v2187
        %v2189 = vpop.f32.mrb[0].mxu0
        %2190 = vmatprep.mubr.f32.mxu0 0.0
        %v2191 = vand.u32 %v1751, 4294901760
        %2192 = vmatmul.mubr.f32.gmra.mrb[0].mxu0 %v2191
        %v2193 = vpop.f32.mrb[0].mxu0
        %v2194 = vadd.f32 %v1905, %v2193
        %v2195 = vpop.f32.mrb[0].mxu0
        %2196 = vmatprep.mubr.f32.mxu0 0.0
        %v2197 = vand.u32 %v1752, 4294901760
        %2198 = vmatmul.mubr.f32.gmra.mrb[0].mxu0 %v2197
        %v2199 = vpop.f32.mrb[0].mxu0
        %v2200 = vadd.f32 %v1915, %v2199
        %v2201 = vpop.f32.mrb[0].mxu0
        %2202 = vmatprep.mubr.f32.mxu0 0.0
        %v2203 = vand.u32 %v1753, 4294901760
        %2204 = vmatmul.mubr.f32.gmra.mrb[0].mxu0 %v2203
        %v2205 = vpop.f32.mrb[0].mxu0
        %v2206 = vadd.f32 %v1925, %v2205
        %v2207 = vpop.f32.mrb[0].mxu0
        %2208 = vmatprep.mubr.f32.mxu0 0.0
        %v2209 = vand.u32 %v1754, 4294901760
        %2210 = vmatmul.mubr.f32.gmra.mrb[0].mxu0 %v2209
        %v2211 = vpop.f32.mrb[0].mxu0
        %v2212 = vadd.f32 %v1935, %v2211
        %v2213 = vpop.f32.mrb[0].mxu0
        %2214 = vmatprep.mubr.f32.mxu0 0.0
        %v2215 = vand.u32 %v1755, 4294901760
        %2216 = vmatmul.mubr.f32.gmra.mrb[0].mxu0 %v2215
        %v2217 = vpop.f32.mrb[0].mxu0
        %v2218 = vadd.f32 %v1945, %v2217
        %v2219 = vpop.f32.mrb[0].mxu0
        %2220 = vmatprep.mubr.f32.mxu0 0.0
        %v2221 = vand.u32 %v1756, 4294901760
        %2222 = vmatmul.mubr.f32.gmra.mrb[0].mxu0 %v2221
        %v2223 = vpop.f32.mrb[0].mxu0
        %v2224 = vadd.f32 %v1955, %v2223
        %v2225 = vpop.f32.mrb[0].mxu0
        %2226 = vmatprep.mubr.f32.mxu0 0.0
        %v2227 = vand.u32 %v1757, 4294901760
        %2228 = vmatmul.mubr.f32.gmra.mrb[0].mxu0 %v2227
        %v2229 = vpop.f32.mrb[0].mxu0
        %v2230 = vadd.f32 %v1965, %v2229
        %v2231 = vpop.f32.mrb[0].mxu0
        %2232 = vmatprep.mubr.f32.mxu0 0.0
        %v2233 = vand.u32 %v1758, 4294901760
        %2234 = vmatmul.mubr.f32.gmra.mrb[0].mxu0 %v2233
        %v2235 = vpop.f32.mrb[0].mxu0
        %v2236 = vadd.f32 %v1975, %v2235
        %v2237 = vpop.f32.mrb[0].mxu0
        %2238 = vmatprep.mubr.f32.mxu0 0.0
        %v2239 = vand.u32 %v1759, 4294901760
        %2240 = vmatmul.mubr.f32.gmra.mrb[0].mxu0 %v2239
        %v2241 = vpop.f32.mrb[0].mxu0
        %v2242 = vadd.f32 %v1985, %v2241
        %v2243 = vpop.f32.mrb[0].mxu0
        %2244 = vmatprep.mubr.f32.mxu0 0.0
        %v2245 = vand.u32 %v1760, 4294901760
        %2246 = vmatmul.mubr.f32.gmra.mrb[0].mxu0 %v2245
        %v2247 = vpop.f32.mrb[0].mxu0
        %v2248 = vadd.f32 %v1995, %v2247
        %v2249 = vpop.f32.mrb[0].mxu0
        %2250 = vmatprep.mubr.f32.mxu0 0.0
        %v2251 = vand.u32 %v1761, 4294901760
        %2252 = vmatmul.mubr.f32.gmra.mrb[0].mxu0 %v2251
        %v2253 = vpop.f32.mrb[0].mxu0
        %v2254 = vadd.f32 %v2005, %v2253
        %v2255 = vpop.f32.mrb[0].mxu0
        %2256 = vmatprep.mubr.f32.mxu0 0.0
        %v2257 = vand.u32 %v1762, 4294901760
        %2258 = vmatmul.mubr.f32.gmra.mrb[0].mxu0 %v2257
        %v2259 = vpop.f32.mrb[0].mxu0
        %v2260 = vadd.f32 %v2015, %v2259
        %v2261 = vpop.f32.mrb[0].mxu0
        %2262 = vmatprep.mubr.f32.mxu0 0.0
        %v2263 = vand.u32 %v1763, 4294901760
        %2264 = vmatmul.mubr.f32.gmra.mrb[0].mxu0 %v2263
        %v2265 = vpop.f32.mrb[0].mxu0
        %v2266 = vadd.f32 %v2025, %v2265
        %v2267 = vpop.f32.mrb[0].mxu0
        %2268 = vdwg.mxu0
        %2269 = vmatprep.subr.mxu0 0.0
        %v2270 = vand.u32 %v1764, 4294901760
        %v2271 = vsub.f32 %v1764, %v2270
        %2272 = vmatpush1.msra.mxu0 %v2271
        %2273 = vmatprep.subr.mxu0 0.0
        %v2274 = vand.u32 %v1765, 4294901760
        %v2275 = vsub.f32 %v1765, %v2274
        %2276 = vmatpush1.msra.mxu0 %v2275
        %2277 = vmatprep.subr.mxu0 0.0
        %v2278 = vand.u32 %v1766, 4294901760
        %v2279 = vsub.f32 %v1766, %v2278
        %2280 = vmatpush1.msra.mxu0 %v2279
        %2281 = vmatprep.subr.mxu0 0.0
        %v2282 = vand.u32 %v1767, 4294901760
        %v2283 = vsub.f32 %v1767, %v2282
        %2284 = vmatpush1.msra.mxu0 %v2283
        %2285 = vmatprep.subr.mxu0 0.0
        %v2286 = vand.u32 %v1768, 4294901760
        %v2287 = vsub.f32 %v1768, %v2286
        %2288 = vmatpush1.msra.mxu0 %v2287
        %2289 = vmatprep.subr.mxu0 0.0
        %v2290 = vand.u32 %v1769, 4294901760
        %v2291 = vsub.f32 %v1769, %v2290
        %2292 = vmatpush1.msra.mxu0 %v2291
        %2293 = vmatprep.subr.mxu0 0.0
        %v2294 = vand.u32 %v1770, 4294901760
        %v2295 = vsub.f32 %v1770, %v2294
        %2296 = vmatpush1.msra.mxu0 %v2295
        %2297 = vmatprep.subr.mxu0 0.0
        %v2298 = vand.u32 %v1771, 4294901760
        %v2299 = vsub.f32 %v1771, %v2298
        %2300 = vmatpush1.msra.mxu0 %v2299
        %2301 = vmatprep.subr.mxu0 0.0
        %v2302 = vand.u32 %v1772, 4294901760
        %v2303 = vsub.f32 %v1772, %v2302
        %2304 = vmatpush1.msra.mxu0 %v2303
        %2305 = vmatprep.subr.mxu0 0.0
        %v2306 = vand.u32 %v1773, 4294901760
        %v2307 = vsub.f32 %v1773, %v2306
        %2308 = vmatpush1.msra.mxu0 %v2307
        %2309 = vmatprep.subr.mxu0 0.0
        %v2310 = vand.u32 %v1774, 4294901760
        %v2311 = vsub.f32 %v1774, %v2310
        %2312 = vmatpush1.msra.mxu0 %v2311
        %2313 = vmatprep.subr.mxu0 0.0
        %v2314 = vand.u32 %v1775, 4294901760
        %v2315 = vsub.f32 %v1775, %v2314
        %2316 = vmatpush1.msra.mxu0 %v2315
        %2317 = vmatprep.subr.mxu0 0.0
        %v2318 = vand.u32 %v1776, 4294901760
        %v2319 = vsub.f32 %v1776, %v2318
        %2320 = vmatpush1.msra.mxu0 %v2319
        %2321 = vmatprep.subr.mxu0 0.0
        %v2322 = vand.u32 %v1777, 4294901760
        %v2323 = vsub.f32 %v1777, %v2322
        %2324 = vmatpush1.msra.mxu0 %v2323
        %2325 = vmatprep.subr.mxu0 0.0
        %v2326 = vand.u32 %v1778, 4294901760
        %v2327 = vsub.f32 %v1778, %v2326
        %2328 = vmatpush1.msra.mxu0 %v2327
        %2329 = vmatprep.subr.mxu0 0.0
        %v2330 = vand.u32 %v1779, 4294901760
        %v2331 = vsub.f32 %v1779, %v2330
        %2332 = vmatpush1.msra.mxu0 %v2331
        %2333 = vmatprep.subr.mxu0 0.0
        %2334 = vmatpush1.msra.mxu0 0.0
        %2335 = vmatprep.subr.mxu0 0.0
        %2336 = vmatpush1.msra.mxu0 0.0
        %2337 = vmatprep.subr.mxu0 0.0
        %2338 = vmatpush1.msra.mxu0 0.0
        %2339 = vmatprep.subr.mxu0 0.0
        %2340 = vmatpush1.msra.mxu0 0.0
        %2341 = vmatprep.subr.mxu0 0.0
        %2342 = vmatpush1.msra.mxu0 0.0
        %2343 = vmatprep.subr.mxu0 0.0
        %2344 = vmatpush1.msra.mxu0 0.0
        %2345 = vmatprep.subr.mxu0 0.0
        %2346 = vmatpush1.msra.mxu0 0.0
        %2347 = vmatprep.subr.mxu0 0.0
        %2348 = vmatpush1.msra.mxu0 0.0
        %2349 = vmatprep.subr.mxu0 0.0
        %2350 = vmatpush1.msra.mxu0 0.0
        %2351 = vmatprep.subr.mxu0 0.0
        %2352 = vmatpush1.msra.mxu0 0.0
        %2353 = vmatprep.subr.mxu0 0.0
        %2354 = vmatpush1.msra.mxu0 0.0
        %2355 = vmatprep.subr.mxu0 0.0
        %2356 = vmatpush1.msra.mxu0 0.0
        %2357 = vmatprep.subr.mxu0 0.0
        %2358 = vmatpush1.msra.mxu0 0.0
        %2359 = vmatprep.subr.mxu0 0.0
        %2360 = vmatpush1.msra.mxu0 0.0
        %2361 = vmatprep.subr.mxu0 0.0
        %2362 = vmatpush1.msra.mxu0 0.0
        %2363 = vmatprep.subr.mxu0 0.0
        %2364 = vmatpush1.msra.mxu0 0.0
        %2365 = vmatprep.mubr.f32.mxu0 0.0
        %v2366 = vand.u32 %v1748, 4294901760
        %v2367 = vsub.f32 %v1748, %v2366
        %2368 = vmatmul.mubr.f32.gmra.mrb[0].mxu0 %v2367
        %v2369 = vpop.f32.mrb[0].mxu0
        %v2370 = vadd.f32 %v2176, %v2369
        %v2371 = vpop.f32.mrb[0].mxu0
        %2372 = vmatprep.mubr.f32.mxu0 0.0
        %v2373 = vand.u32 %v1749, 4294901760
        %v2374 = vsub.f32 %v1749, %v2373
        %2375 = vmatmul.mubr.f32.gmra.mrb[0].mxu0 %v2374
        %v2376 = vpop.f32.mrb[0].mxu0
        %v2377 = vadd.f32 %v2182, %v2376
        %v2378 = vpop.f32.mrb[0].mxu0
        %2379 = vmatprep.mubr.f32.mxu0 0.0
        %v2380 = vand.u32 %v1750, 4294901760
        %v2381 = vsub.f32 %v1750, %v2380
        %2382 = vmatmul.mubr.f32.gmra.mrb[0].mxu0 %v2381
        %v2383 = vpop.f32.mrb[0].mxu0
        %v2384 = vadd.f32 %v2188, %v2383
        %v2385 = vpop.f32.mrb[0].mxu0
        %2386 = vmatprep.mubr.f32.mxu0 0.0
        %v2387 = vand.u32 %v1751, 4294901760
        %v2388 = vsub.f32 %v1751, %v2387
        %2389 = vmatmul.mubr.f32.gmra.mrb[0].mxu0 %v2388
        %v2390 = vpop.f32.mrb[0].mxu0
        %v2391 = vadd.f32 %v2194, %v2390
        %v2392 = vpop.f32.mrb[0].mxu0
        %2393 = vmatprep.mubr.f32.mxu0 0.0
        %v2394 = vand.u32 %v1752, 4294901760
        %v2395 = vsub.f32 %v1752, %v2394
        %2396 = vmatmul.mubr.f32.gmra.mrb[0].mxu0 %v2395
        %v2397 = vpop.f32.mrb[0].mxu0
        %v2398 = vadd.f32 %v2200, %v2397
        %v2399 = vpop.f32.mrb[0].mxu0
        %2400 = vmatprep.mubr.f32.mxu0 0.0
        %v2401 = vand.u32 %v1753, 4294901760
        %v2402 = vsub.f32 %v1753, %v2401
        %2403 = vmatmul.mubr.f32.gmra.mrb[0].mxu0 %v2402
        %v2404 = vpop.f32.mrb[0].mxu0
        %v2405 = vadd.f32 %v2206, %v2404
        %v2406 = vpop.f32.mrb[0].mxu0
        %2407 = vmatprep.mubr.f32.mxu0 0.0
        %v2408 = vand.u32 %v1754, 4294901760
        %v2409 = vsub.f32 %v1754, %v2408
        %2410 = vmatmul.mubr.f32.gmra.mrb[0].mxu0 %v2409
        %v2411 = vpop.f32.mrb[0].mxu0
        %v2412 = vadd.f32 %v2212, %v2411
        %v2413 = vpop.f32.mrb[0].mxu0
        %2414 = vmatprep.mubr.f32.mxu0 0.0
        %v2415 = vand.u32 %v1755, 4294901760
        %v2416 = vsub.f32 %v1755, %v2415
        %2417 = vmatmul.mubr.f32.gmra.mrb[0].mxu0 %v2416
        %v2418 = vpop.f32.mrb[0].mxu0
        %v2419 = vadd.f32 %v2218, %v2418
        %v2420 = vpop.f32.mrb[0].mxu0
        %2421 = vmatprep.mubr.f32.mxu0 0.0
        %v2422 = vand.u32 %v1756, 4294901760
        %v2423 = vsub.f32 %v1756, %v2422
        %2424 = vmatmul.mubr.f32.gmra.mrb[0].mxu0 %v2423
        %v2425 = vpop.f32.mrb[0].mxu0
        %v2426 = vadd.f32 %v2224, %v2425
        %v2427 = vpop.f32.mrb[0].mxu0
        %2428 = vmatprep.mubr.f32.mxu0 0.0
        %v2429 = vand.u32 %v1757, 4294901760
        %v2430 = vsub.f32 %v1757, %v2429
        %2431 = vmatmul.mubr.f32.gmra.mrb[0].mxu0 %v2430
        %v2432 = vpop.f32.mrb[0].mxu0
        %v2433 = vadd.f32 %v2230, %v2432
        %v2434 = vpop.f32.mrb[0].mxu0
        %2435 = vmatprep.mubr.f32.mxu0 0.0
        %v2436 = vand.u32 %v1758, 4294901760
        %v2437 = vsub.f32 %v1758, %v2436
        %2438 = vmatmul.mubr.f32.gmra.mrb[0].mxu0 %v2437
        %v2439 = vpop.f32.mrb[0].mxu0
        %v2440 = vadd.f32 %v2236, %v2439
        %v2441 = vpop.f32.mrb[0].mxu0
        %2442 = vmatprep.mubr.f32.mxu0 0.0
        %v2443 = vand.u32 %v1759, 4294901760
        %v2444 = vsub.f32 %v1759, %v2443
        %2445 = vmatmul.mubr.f32.gmra.mrb[0].mxu0 %v2444
        %v2446 = vpop.f32.mrb[0].mxu0
        %v2447 = vadd.f32 %v2242, %v2446
        %v2448 = vpop.f32.mrb[0].mxu0
        %2449 = vmatprep.mubr.f32.mxu0 0.0
        %v2450 = vand.u32 %v1760, 4294901760
        %v2451 = vsub.f32 %v1760, %v2450
        %2452 = vmatmul.mubr.f32.gmra.mrb[0].mxu0 %v2451
        %v2453 = vpop.f32.mrb[0].mxu0
        %v2454 = vadd.f32 %v2248, %v2453
        %v2455 = vpop.f32.mrb[0].mxu0
        %2456 = vmatprep.mubr.f32.mxu0 0.0
        %v2457 = vand.u32 %v1761, 4294901760
        %v2458 = vsub.f32 %v1761, %v2457
        %2459 = vmatmul.mubr.f32.gmra.mrb[0].mxu0 %v2458
        %v2460 = vpop.f32.mrb[0].mxu0
        %v2461 = vadd.f32 %v2254, %v2460
        %v2462 = vpop.f32.mrb[0].mxu0
        %2463 = vmatprep.mubr.f32.mxu0 0.0
        %v2464 = vand.u32 %v1762, 4294901760
        %v2465 = vsub.f32 %v1762, %v2464
        %2466 = vmatmul.mubr.f32.gmra.mrb[0].mxu0 %v2465
        %v2467 = vpop.f32.mrb[0].mxu0
        %v2468 = vadd.f32 %v2260, %v2467
        %v2469 = vpop.f32.mrb[0].mxu0
        %2470 = vmatprep.mubr.f32.mxu0 0.0
        %v2471 = vand.u32 %v1763, 4294901760
        %v2472 = vsub.f32 %v1763, %v2471
        %2473 = vmatmul.mubr.f32.gmra.mrb[0].mxu0 %v2472
        %v2474 = vpop.f32.mrb[0].mxu0
        %v2475 = vadd.f32 %v2266, %v2474
        %v2476 = vpop.f32.mrb[0].mxu0
        %2477 = vdwg.mxu0
        %2478 = vmatprep.subr.mxu0 0.0
        %v2479 = vand.u32 %v1764, 4294901760
        %2480 = vmatpush1.msra.mxu0 %v2479
        %2481 = vmatprep.subr.mxu0 0.0
        %v2482 = vand.u32 %v1765, 4294901760
        %2483 = vmatpush1.msra.mxu0 %v2482
        %2484 = vmatprep.subr.mxu0 0.0
        %v2485 = vand.u32 %v1766, 4294901760
        %2486 = vmatpush1.msra.mxu0 %v2485
        %2487 = vmatprep.subr.mxu0 0.0
        %v2488 = vand.u32 %v1767, 4294901760
        %2489 = vmatpush1.msra.mxu0 %v2488
        %2490 = vmatprep.subr.mxu0 0.0
        %v2491 = vand.u32 %v1768, 4294901760
        %2492 = vmatpush1.msra.mxu0 %v2491
        %2493 = vmatprep.subr.mxu0 0.0
        %v2494 = vand.u32 %v1769, 4294901760
        %2495 = vmatpush1.msra.mxu0 %v2494
        %2496 = vmatprep.subr.mxu0 0.0
        %v2497 = vand.u32 %v1770, 4294901760
        %2498 = vmatpush1.msra.mxu0 %v2497
        %2499 = vmatprep.subr.mxu0 0.0
        %v2500 = vand.u32 %v1771, 4294901760
        %2501 = vmatpush1.msra.mxu0 %v2500
        %2502 = vmatprep.subr.mxu0 0.0
        %v2503 = vand.u32 %v1772, 4294901760
        %2504 = vmatpush1.msra.mxu0 %v2503
        %2505 = vmatprep.subr.mxu0 0.0
        %v2506 = vand.u32 %v1773, 4294901760
        %2507 = vmatpush1.msra.mxu0 %v2506
        %2508 = vmatprep.subr.mxu0 0.0
        %v2509 = vand.u32 %v1774, 4294901760
        %2510 = vmatpush1.msra.mxu0 %v2509
        %2511 = vmatprep.subr.mxu0 0.0
        %v2512 = vand.u32 %v1775, 4294901760
        %2513 = vmatpush1.msra.mxu0 %v2512
        %2514 = vmatprep.subr.mxu0 0.0
        %v2515 = vand.u32 %v1776, 4294901760
        %2516 = vmatpush1.msra.mxu0 %v2515
        %2517 = vmatprep.subr.mxu0 0.0
        %v2518 = vand.u32 %v1777, 4294901760
        %2519 = vmatpush1.msra.mxu0 %v2518
        %2520 = vmatprep.subr.mxu0 0.0
        %v2521 = vand.u32 %v1778, 4294901760
        %2522 = vmatpush1.msra.mxu0 %v2521
        %2523 = vmatprep.subr.mxu0 0.0
        %v2524 = vand.u32 %v1779, 4294901760
        %2525 = vmatpush1.msra.mxu0 %v2524
        %2526 = vmatprep.subr.mxu0 0.0
        %2527 = vmatpush1.msra.mxu0 0.0
        %2528 = vmatprep.subr.mxu0 0.0
        %2529 = vmatpush1.msra.mxu0 0.0
        %2530 = vmatprep.subr.mxu0 0.0
        %2531 = vmatpush1.msra.mxu0 0.0
        %2532 = vmatprep.subr.mxu0 0.0
        %2533 = vmatpush1.msra.mxu0 0.0
        %2534 = vmatprep.subr.mxu0 0.0
        %2535 = vmatpush1.msra.mxu0 0.0
        %2536 = vmatprep.subr.mxu0 0.0
        %2537 = vmatpush1.msra.mxu0 0.0
        %2538 = vmatprep.subr.mxu0 0.0
        %2539 = vmatpush1.msra.mxu0 0.0
        %2540 = vmatprep.subr.mxu0 0.0
        %2541 = vmatpush1.msra.mxu0 0.0
        %2542 = vmatprep.subr.mxu0 0.0
        %2543 = vmatpush1.msra.mxu0 0.0
        %2544 = vmatprep.subr.mxu0 0.0
        %2545 = vmatpush1.msra.mxu0 0.0
        %2546 = vmatprep.subr.mxu0 0.0
        %2547 = vmatpush1.msra.mxu0 0.0
        %2548 = vmatprep.subr.mxu0 0.0
        %2549 = vmatpush1.msra.mxu0 0.0
        %2550 = vmatprep.subr.mxu0 0.0
        %2551 = vmatpush1.msra.mxu0 0.0
        %2552 = vmatprep.subr.mxu0 0.0
        %2553 = vmatpush1.msra.mxu0 0.0
        %2554 = vmatprep.subr.mxu0 0.0
        %2555 = vmatpush1.msra.mxu0 0.0
        %2556 = vmatprep.subr.mxu0 0.0
        %2557 = vmatpush1.msra.mxu0 0.0
        %2558 = vmatprep.mubr.f32.mxu0 0.0
        %v2559 = vand.u32 %v1748, 4294901760
        %v2560 = vsub.f32 %v1748, %v2559
        %v2561 = vand.u32 %v2560, 4294901760
        %2562 = vmatmul.mubr.f32.gmra.mrb[0].mxu0 %v2561
        %v2563 = vpop.f32.mrb[0].mxu0
        %v2564 = vadd.f32 %v2370, %v2563
        %v2565 = vpop.f32.mrb[0].mxu0
        %2566 = vmatprep.mubr.f32.mxu0 0.0
        %v2567 = vand.u32 %v1749, 4294901760
        %v2568 = vsub.f32 %v1749, %v2567
        %v2569 = vand.u32 %v2568, 4294901760
        %2570 = vmatmul.mubr.f32.gmra.mrb[0].mxu0 %v2569
        %v2571 = vpop.f32.mrb[0].mxu0
        %v2572 = vadd.f32 %v2377, %v2571
        %v2573 = vpop.f32.mrb[0].mxu0
        %2574 = vmatprep.mubr.f32.mxu0 0.0
        %v2575 = vand.u32 %v1750, 4294901760
        %v2576 = vsub.f32 %v1750, %v2575
        %v2577 = vand.u32 %v2576, 4294901760
        %2578 = vmatmul.mubr.f32.gmra.mrb[0].mxu0 %v2577
        %v2579 = vpop.f32.mrb[0].mxu0
        %v2580 = vadd.f32 %v2384, %v2579
        %v2581 = vpop.f32.mrb[0].mxu0
        %2582 = vmatprep.mubr.f32.mxu0 0.0
        %v2583 = vand.u32 %v1751, 4294901760
        %v2584 = vsub.f32 %v1751, %v2583
        %v2585 = vand.u32 %v2584, 4294901760
        %2586 = vmatmul.mubr.f32.gmra.mrb[0].mxu0 %v2585
        %v2587 = vpop.f32.mrb[0].mxu0
        %v2588 = vadd.f32 %v2391, %v2587
        %v2589 = vpop.f32.mrb[0].mxu0
        %2590 = vmatprep.mubr.f32.mxu0 0.0
        %v2591 = vand.u32 %v1752, 4294901760
        %v2592 = vsub.f32 %v1752, %v2591
        %v2593 = vand.u32 %v2592, 4294901760
        %2594 = vmatmul.mubr.f32.gmra.mrb[0].mxu0 %v2593
        %v2595 = vpop.f32.mrb[0].mxu0
        %v2596 = vadd.f32 %v2398, %v2595
        %v2597 = vpop.f32.mrb[0].mxu0
        %2598 = vmatprep.mubr.f32.mxu0 0.0
        %v2599 = vand.u32 %v1753, 4294901760
        %v2600 = vsub.f32 %v1753, %v2599
        %v2601 = vand.u32 %v2600, 4294901760
        %2602 = vmatmul.mubr.f32.gmra.mrb[0].mxu0 %v2601
        %v2603 = vpop.f32.mrb[0].mxu0
        %v2604 = vadd.f32 %v2405, %v2603
        %v2605 = vpop.f32.mrb[0].mxu0
        %2606 = vmatprep.mubr.f32.mxu0 0.0
        %v2607 = vand.u32 %v1754, 4294901760
        %v2608 = vsub.f32 %v1754, %v2607
        %v2609 = vand.u32 %v2608, 4294901760
        %2610 = vmatmul.mubr.f32.gmra.mrb[0].mxu0 %v2609
        %v2611 = vpop.f32.mrb[0].mxu0
        %v2612 = vadd.f32 %v2412, %v2611
        %v2613 = vpop.f32.mrb[0].mxu0
        %2614 = vmatprep.mubr.f32.mxu0 0.0
        %v2615 = vand.u32 %v1755, 4294901760
        %v2616 = vsub.f32 %v1755, %v2615
        %v2617 = vand.u32 %v2616, 4294901760
        %2618 = vmatmul.mubr.f32.gmra.mrb[0].mxu0 %v2617
        %v2619 = vpop.f32.mrb[0].mxu0
        %v2620 = vadd.f32 %v2419, %v2619
        %v2621 = vpop.f32.mrb[0].mxu0
        %2622 = vmatprep.mubr.f32.mxu0 0.0
        %v2623 = vand.u32 %v1756, 4294901760
        %v2624 = vsub.f32 %v1756, %v2623
        %v2625 = vand.u32 %v2624, 4294901760
        %2626 = vmatmul.mubr.f32.gmra.mrb[0].mxu0 %v2625
        %v2627 = vpop.f32.mrb[0].mxu0
        %v2628 = vadd.f32 %v2426, %v2627
        %v2629 = vpop.f32.mrb[0].mxu0
        %2630 = vmatprep.mubr.f32.mxu0 0.0
        %v2631 = vand.u32 %v1757, 4294901760
        %v2632 = vsub.f32 %v1757, %v2631
        %v2633 = vand.u32 %v2632, 4294901760
        %2634 = vmatmul.mubr.f32.gmra.mrb[0].mxu0 %v2633
        %v2635 = vpop.f32.mrb[0].mxu0
        %v2636 = vadd.f32 %v2433, %v2635
        %v2637 = vpop.f32.mrb[0].mxu0
        %2638 = vmatprep.mubr.f32.mxu0 0.0
        %v2639 = vand.u32 %v1758, 4294901760
        %v2640 = vsub.f32 %v1758, %v2639
        %v2641 = vand.u32 %v2640, 4294901760
        %2642 = vmatmul.mubr.f32.gmra.mrb[0].mxu0 %v2641
        %v2643 = vpop.f32.mrb[0].mxu0
        %v2644 = vadd.f32 %v2440, %v2643
        %v2645 = vpop.f32.mrb[0].mxu0
        %2646 = vmatprep.mubr.f32.mxu0 0.0
        %v2647 = vand.u32 %v1759, 4294901760
        %v2648 = vsub.f32 %v1759, %v2647
        %v2649 = vand.u32 %v2648, 4294901760
        %2650 = vmatmul.mubr.f32.gmra.mrb[0].mxu0 %v2649
        %v2651 = vpop.f32.mrb[0].mxu0
        %v2652 = vadd.f32 %v2447, %v2651
        %v2653 = vpop.f32.mrb[0].mxu0
        %2654 = vmatprep.mubr.f32.mxu0 0.0
        %v2655 = vand.u32 %v1760, 4294901760
        %v2656 = vsub.f32 %v1760, %v2655
        %v2657 = vand.u32 %v2656, 4294901760
        %2658 = vmatmul.mubr.f32.gmra.mrb[0].mxu0 %v2657
        %v2659 = vpop.f32.mrb[0].mxu0
        %v2660 = vadd.f32 %v2454, %v2659
        %v2661 = vpop.f32.mrb[0].mxu0
        %2662 = vmatprep.mubr.f32.mxu0 0.0
        %v2663 = vand.u32 %v1761, 4294901760
        %v2664 = vsub.f32 %v1761, %v2663
        %v2665 = vand.u32 %v2664, 4294901760
        %2666 = vmatmul.mubr.f32.gmra.mrb[0].mxu0 %v2665
        %v2667 = vpop.f32.mrb[0].mxu0
        %v2668 = vadd.f32 %v2461, %v2667
        %v2669 = vpop.f32.mrb[0].mxu0
        %2670 = vmatprep.mubr.f32.mxu0 0.0
        %v2671 = vand.u32 %v1762, 4294901760
        %v2672 = vsub.f32 %v1762, %v2671
        %v2673 = vand.u32 %v2672, 4294901760
        %2674 = vmatmul.mubr.f32.gmra.mrb[0].mxu0 %v2673
        %v2675 = vpop.f32.mrb[0].mxu0
        %v2676 = vadd.f32 %v2468, %v2675
        %v2677 = vpop.f32.mrb[0].mxu0
        %2678 = vmatprep.mubr.f32.mxu0 0.0
        %v2679 = vand.u32 %v1763, 4294901760
        %v2680 = vsub.f32 %v1763, %v2679
        %v2681 = vand.u32 %v2680, 4294901760
        %2682 = vmatmul.mubr.f32.gmra.mrb[0].mxu0 %v2681
        %v2683 = vpop.f32.mrb[0].mxu0
        %v2684 = vadd.f32 %v2475, %v2683
        %v2685 = vpop.f32.mrb[0].mxu0
        %2686 = vdwg.mxu0
        %2687 = vmatprep.subr.mxu0 0.0
        %v2688 = vand.u32 %v1764, 4294901760
        %v2689 = vsub.f32 %v1764, %v2688
        %v2690 = vand.u32 %v2689, 4294901760
        %2691 = vmatpush1.msra.mxu0 %v2690
        %2692 = vmatprep.subr.mxu0 0.0
        %v2693 = vand.u32 %v1765, 4294901760
        %v2694 = vsub.f32 %v1765, %v2693
        %v2695 = vand.u32 %v2694, 4294901760
        %2696 = vmatpush1.msra.mxu0 %v2695
        %2697 = vmatprep.subr.mxu0 0.0
        %v2698 = vand.u32 %v1766, 4294901760
        %v2699 = vsub.f32 %v1766, %v2698
        %v2700 = vand.u32 %v2699, 4294901760
        %2701 = vmatpush1.msra.mxu0 %v2700
        %2702 = vmatprep.subr.mxu0 0.0
        %v2703 = vand.u32 %v1767, 4294901760
        %v2704 = vsub.f32 %v1767, %v2703
        %v2705 = vand.u32 %v2704, 4294901760
        %2706 = vmatpush1.msra.mxu0 %v2705
        %2707 = vmatprep.subr.mxu0 0.0
        %v2708 = vand.u32 %v1768, 4294901760
        %v2709 = vsub.f32 %v1768, %v2708
        %v2710 = vand.u32 %v2709, 4294901760
        %2711 = vmatpush1.msra.mxu0 %v2710
        %2712 = vmatprep.subr.mxu0 0.0
        %v2713 = vand.u32 %v1769, 4294901760
        %v2714 = vsub.f32 %v1769, %v2713
        %v2715 = vand.u32 %v2714, 4294901760
        %2716 = vmatpush1.msra.mxu0 %v2715
        %2717 = vmatprep.subr.mxu0 0.0
        %v2718 = vand.u32 %v1770, 4294901760
        %v2719 = vsub.f32 %v1770, %v2718
        %v2720 = vand.u32 %v2719, 4294901760
        %2721 = vmatpush1.msra.mxu0 %v2720
        %2722 = vmatprep.subr.mxu0 0.0
        %v2723 = vand.u32 %v1771, 4294901760
        %v2724 = vsub.f32 %v1771, %v2723
        %v2725 = vand.u32 %v2724, 4294901760
        %2726 = vmatpush1.msra.mxu0 %v2725
        %2727 = vmatprep.subr.mxu0 0.0
        %v2728 = vand.u32 %v1772, 4294901760
        %v2729 = vsub.f32 %v1772, %v2728
        %v2730 = vand.u32 %v2729, 4294901760
        %2731 = vmatpush1.msra.mxu0 %v2730
        %2732 = vmatprep.subr.mxu0 0.0
        %v2733 = vand.u32 %v1773, 4294901760
        %v2734 = vsub.f32 %v1773, %v2733
        %v2735 = vand.u32 %v2734, 4294901760
        %2736 = vmatpush1.msra.mxu0 %v2735
        %2737 = vmatprep.subr.mxu0 0.0
        %v2738 = vand.u32 %v1774, 4294901760
        %v2739 = vsub.f32 %v1774, %v2738
        %v2740 = vand.u32 %v2739, 4294901760
        %2741 = vmatpush1.msra.mxu0 %v2740
        %2742 = vmatprep.subr.mxu0 0.0
        %v2743 = vand.u32 %v1775, 4294901760
        %v2744 = vsub.f32 %v1775, %v2743
        %v2745 = vand.u32 %v2744, 4294901760
        %2746 = vmatpush1.msra.mxu0 %v2745
        %2747 = vmatprep.subr.mxu0 0.0
        %v2748 = vand.u32 %v1776, 4294901760
        %v2749 = vsub.f32 %v1776, %v2748
        %v2750 = vand.u32 %v2749, 4294901760
        %2751 = vmatpush1.msra.mxu0 %v2750
        %2752 = vmatprep.subr.mxu0 0.0
        %v2753 = vand.u32 %v1777, 4294901760
        %v2754 = vsub.f32 %v1777, %v2753
        %v2755 = vand.u32 %v2754, 4294901760
        %2756 = vmatpush1.msra.mxu0 %v2755
        %2757 = vmatprep.subr.mxu0 0.0
        %v2758 = vand.u32 %v1778, 4294901760
        %v2759 = vsub.f32 %v1778, %v2758
        %v2760 = vand.u32 %v2759, 4294901760
        %2761 = vmatpush1.msra.mxu0 %v2760
        %2762 = vmatprep.subr.mxu0 0.0
        %v2763 = vand.u32 %v1779, 4294901760
        %v2764 = vsub.f32 %v1779, %v2763
        %v2765 = vand.u32 %v2764, 4294901760
        %2766 = vmatpush1.msra.mxu0 %v2765
        %2767 = vmatprep.subr.mxu0 0.0
        %2768 = vmatpush1.msra.mxu0 0.0
        %2769 = vmatprep.subr.mxu0 0.0
        %2770 = vmatpush1.msra.mxu0 0.0
        %2771 = vmatprep.subr.mxu0 0.0
        %2772 = vmatpush1.msra.mxu0 0.0
        %2773 = vmatprep.subr.mxu0 0.0
        %2774 = vmatpush1.msra.mxu0 0.0
        %2775 = vmatprep.subr.mxu0 0.0
        %2776 = vmatpush1.msra.mxu0 0.0
        %2777 = vmatprep.subr.mxu0 0.0
        %2778 = vmatpush1.msra.mxu0 0.0
        %2779 = vmatprep.subr.mxu0 0.0
        %2780 = vmatpush1.msra.mxu0 0.0
        %2781 = vmatprep.subr.mxu0 0.0
        %2782 = vmatpush1.msra.mxu0 0.0
        %2783 = vmatprep.subr.mxu0 0.0
        %2784 = vmatpush1.msra.mxu0 0.0
        %2785 = vmatprep.subr.mxu0 0.0
        %2786 = vmatpush1.msra.mxu0 0.0
        %2787 = vmatprep.subr.mxu0 0.0
        %2788 = vmatpush1.msra.mxu0 0.0
        %2789 = vmatprep.subr.mxu0 0.0
        %2790 = vmatpush1.msra.mxu0 0.0
        %2791 = vmatprep.subr.mxu0 0.0
        %2792 = vmatpush1.msra.mxu0 0.0
        %2793 = vmatprep.subr.mxu0 0.0
        %2794 = vmatpush1.msra.mxu0 0.0
        %2795 = vmatprep.subr.mxu0 0.0
        %2796 = vmatpush1.msra.mxu0 0.0
        %2797 = vmatprep.subr.mxu0 0.0
        %2798 = vmatpush1.msra.mxu0 0.0
        %2799 = vmatprep.mubr.f32.mxu0 0.0
        %v2800 = vand.u32 %v1748, 4294901760
        %2801 = vmatmul.mubr.f32.gmra.mrb[0].mxu0 %v2800
        %v2802 = vpop.f32.mrb[0].mxu0
        %v2803 = vadd.f32 %v2564, %v2802
        %v2804 = vpop.f32.mrb[0].mxu0
        %2805 = vmatprep.mubr.f32.mxu0 0.0
        %v2806 = vand.u32 %v1749, 4294901760
        %2807 = vmatmul.mubr.f32.gmra.mrb[0].mxu0 %v2806
        %v2808 = vpop.f32.mrb[0].mxu0
        %v2809 = vadd.f32 %v2572, %v2808
        %v2810 = vpop.f32.mrb[0].mxu0
        %2811 = vmatprep.mubr.f32.mxu0 0.0
        %v2812 = vand.u32 %v1750, 4294901760
        %2813 = vmatmul.mubr.f32.gmra.mrb[0].mxu0 %v2812
        %v2814 = vpop.f32.mrb[0].mxu0
        %v2815 = vadd.f32 %v2580, %v2814
        %v2816 = vpop.f32.mrb[0].mxu0
        %2817 = vmatprep.mubr.f32.mxu0 0.0
        %v2818 = vand.u32 %v1751, 4294901760
        %2819 = vmatmul.mubr.f32.gmra.mrb[0].mxu0 %v2818
        %v2820 = vpop.f32.mrb[0].mxu0
        %v2821 = vadd.f32 %v2588, %v2820
        %v2822 = vpop.f32.mrb[0].mxu0
        %2823 = vmatprep.mubr.f32.mxu0 0.0
        %v2824 = vand.u32 %v1752, 4294901760
        %2825 = vmatmul.mubr.f32.gmra.mrb[0].mxu0 %v2824
        %v2826 = vpop.f32.mrb[0].mxu0
        %v2827 = vadd.f32 %v2596, %v2826
        %v2828 = vpop.f32.mrb[0].mxu0
        %2829 = vmatprep.mubr.f32.mxu0 0.0
        %v2830 = vand.u32 %v1753, 4294901760
        %2831 = vmatmul.mubr.f32.gmra.mrb[0].mxu0 %v2830
        %v2832 = vpop.f32.mrb[0].mxu0
        %v2833 = vadd.f32 %v2604, %v2832
        %v2834 = vpop.f32.mrb[0].mxu0
        %2835 = vmatprep.mubr.f32.mxu0 0.0
        %v2836 = vand.u32 %v1754, 4294901760
        %2837 = vmatmul.mubr.f32.gmra.mrb[0].mxu0 %v2836
        %v2838 = vpop.f32.mrb[0].mxu0
        %v2839 = vadd.f32 %v2612, %v2838
        %v2840 = vpop.f32.mrb[0].mxu0
        %2841 = vmatprep.mubr.f32.mxu0 0.0
        %v2842 = vand.u32 %v1755, 4294901760
        %2843 = vmatmul.mubr.f32.gmra.mrb[0].mxu0 %v2842
        %v2844 = vpop.f32.mrb[0].mxu0
        %v2845 = vadd.f32 %v2620, %v2844
        %v2846 = vpop.f32.mrb[0].mxu0
        %2847 = vmatprep.mubr.f32.mxu0 0.0
        %v2848 = vand.u32 %v1756, 4294901760
        %2849 = vmatmul.mubr.f32.gmra.mrb[0].mxu0 %v2848
        %v2850 = vpop.f32.mrb[0].mxu0
        %v2851 = vadd.f32 %v2628, %v2850
        %v2852 = vpop.f32.mrb[0].mxu0
        %2853 = vmatprep.mubr.f32.mxu0 0.0
        %v2854 = vand.u32 %v1757, 4294901760
        %2855 = vmatmul.mubr.f32.gmra.mrb[0].mxu0 %v2854
        %v2856 = vpop.f32.mrb[0].mxu0
        %v2857 = vadd.f32 %v2636, %v2856
        %v2858 = vpop.f32.mrb[0].mxu0
        %2859 = vmatprep.mubr.f32.mxu0 0.0
        %v2860 = vand.u32 %v1758, 4294901760
        %2861 = vmatmul.mubr.f32.gmra.mrb[0].mxu0 %v2860
        %v2862 = vpop.f32.mrb[0].mxu0
        %v2863 = vadd.f32 %v2644, %v2862
        %v2864 = vpop.f32.mrb[0].mxu0
        %2865 = vmatprep.mubr.f32.mxu0 0.0
        %v2866 = vand.u32 %v1759, 4294901760
        %2867 = vmatmul.mubr.f32.gmra.mrb[0].mxu0 %v2866
        %v2868 = vpop.f32.mrb[0].mxu0
        %v2869 = vadd.f32 %v2652, %v2868
        %v2870 = vpop.f32.mrb[0].mxu0
        %2871 = vmatprep.mubr.f32.mxu0 0.0
        %v2872 = vand.u32 %v1760, 4294901760
        %2873 = vmatmul.mubr.f32.gmra.mrb[0].mxu0 %v2872
        %v2874 = vpop.f32.mrb[0].mxu0
        %v2875 = vadd.f32 %v2660, %v2874
        %v2876 = vpop.f32.mrb[0].mxu0
        %2877 = vmatprep.mubr.f32.mxu0 0.0
        %v2878 = vand.u32 %v1761, 4294901760
        %2879 = vmatmul.mubr.f32.gmra.mrb[0].mxu0 %v2878
        %v2880 = vpop.f32.mrb[0].mxu0
        %v2881 = vadd.f32 %v2668, %v2880
        %v2882 = vpop.f32.mrb[0].mxu0
        %2883 = vmatprep.mubr.f32.mxu0 0.0
        %v2884 = vand.u32 %v1762, 4294901760
        %2885 = vmatmul.mubr.f32.gmra.mrb[0].mxu0 %v2884
        %v2886 = vpop.f32.mrb[0].mxu0
        %v2887 = vadd.f32 %v2676, %v2886
        %v2888 = vpop.f32.mrb[0].mxu0
        %2889 = vmatprep.mubr.f32.mxu0 0.0
        %v2890 = vand.u32 %v1763, 4294901760
        %2891 = vmatmul.mubr.f32.gmra.mrb[0].mxu0 %v2890
        %v2892 = vpop.f32.mrb[0].mxu0
        %v2893 = vadd.f32 %v2684, %v2892
        %v2894 = vpop.f32.mrb[0].mxu0
        %2895 = vdwg.mxu0
        %2896 = vmatprep.subr.mxu0 0.0
        %v2897 = vand.u32 %v1764, 4294901760
        %2898 = vmatpush1.msra.mxu0 %v2897
        %2899 = vmatprep.subr.mxu0 0.0
        %v2900 = vand.u32 %v1765, 4294901760
        %2901 = vmatpush1.msra.mxu0 %v2900
        %2902 = vmatprep.subr.mxu0 0.0
        %v2903 = vand.u32 %v1766, 4294901760
        %2904 = vmatpush1.msra.mxu0 %v2903
        %2905 = vmatprep.subr.mxu0 0.0
        %v2906 = vand.u32 %v1767, 4294901760
        %2907 = vmatpush1.msra.mxu0 %v2906
        %2908 = vmatprep.subr.mxu0 0.0
        %v2909 = vand.u32 %v1768, 4294901760
        %2910 = vmatpush1.msra.mxu0 %v2909
        %2911 = vmatprep.subr.mxu0 0.0
        %v2912 = vand.u32 %v1769, 4294901760
        %2913 = vmatpush1.msra.mxu0 %v2912
        %2914 = vmatprep.subr.mxu0 0.0
        %v2915 = vand.u32 %v1770, 4294901760
        %2916 = vmatpush1.msra.mxu0 %v2915
        %2917 = vmatprep.subr.mxu0 0.0
        %v2918 = vand.u32 %v1771, 4294901760
        %2919 = vmatpush1.msra.mxu0 %v2918
        %2920 = vmatprep.subr.mxu0 0.0
        %v2921 = vand.u32 %v1772, 4294901760
        %2922 = vmatpush1.msra.mxu0 %v2921
        %2923 = vmatprep.subr.mxu0 0.0
        %v2924 = vand.u32 %v1773, 4294901760
        %2925 = vmatpush1.msra.mxu0 %v2924
        %2926 = vmatprep.subr.mxu0 0.0
        %v2927 = vand.u32 %v1774, 4294901760
        %2928 = vmatpush1.msra.mxu0 %v2927
        %2929 = vmatprep.subr.mxu0 0.0
        %v2930 = vand.u32 %v1775, 4294901760
        %2931 = vmatpush1.msra.mxu0 %v2930
        %2932 = vmatprep.subr.mxu0 0.0
        %v2933 = vand.u32 %v1776, 4294901760
        %2934 = vmatpush1.msra.mxu0 %v2933
        %2935 = vmatprep.subr.mxu0 0.0
        %v2936 = vand.u32 %v1777, 4294901760
        %2937 = vmatpush1.msra.mxu0 %v2936
        %2938 = vmatprep.subr.mxu0 0.0
        %v2939 = vand.u32 %v1778, 4294901760
        %2940 = vmatpush1.msra.mxu0 %v2939
        %2941 = vmatprep.subr.mxu0 0.0
        %v2942 = vand.u32 %v1779, 4294901760
        %2943 = vmatpush1.msra.mxu0 %v2942
        %2944 = vmatprep.subr.mxu0 0.0
        %2945 = vmatpush1.msra.mxu0 0.0
        %2946 = vmatprep.subr.mxu0 0.0
        %2947 = vmatpush1.msra.mxu0 0.0
        %2948 = vmatprep.subr.mxu0 0.0
        %2949 = vmatpush1.msra.mxu0 0.0
        %2950 = vmatprep.subr.mxu0 0.0
        %2951 = vmatpush1.msra.mxu0 0.0
        %2952 = vmatprep.subr.mxu0 0.0
        %2953 = vmatpush1.msra.mxu0 0.0
        %2954 = vmatprep.subr.mxu0 0.0
        %2955 = vmatpush1.msra.mxu0 0.0
        %2956 = vmatprep.subr.mxu0 0.0
        %2957 = vmatpush1.msra.mxu0 0.0
        %2958 = vmatprep.subr.mxu0 0.0
        %2959 = vmatpush1.msra.mxu0 0.0
        %2960 = vmatprep.subr.mxu0 0.0
        %2961 = vmatpush1.msra.mxu0 0.0
        %2962 = vmatprep.subr.mxu0 0.0
        %2963 = vmatpush1.msra.mxu0 0.0
        %2964 = vmatprep.subr.mxu0 0.0
        %2965 = vmatpush1.msra.mxu0 0.0
        %2966 = vmatprep.subr.mxu0 0.0
        %2967 = vmatpush1.msra.mxu0 0.0
        %2968 = vmatprep.subr.mxu0 0.0
        %2969 = vmatpush1.msra.mxu0 0.0
        %2970 = vmatprep.subr.mxu0 0.0
        %2971 = vmatpush1.msra.mxu0 0.0
        %2972 = vmatprep.subr.mxu0 0.0
        %2973 = vmatpush1.msra.mxu0 0.0
        %2974 = vmatprep.subr.mxu0 0.0
        %2975 = vmatpush1.msra.mxu0 0.0
        %2976 = vmatprep.mubr.f32.mxu0 0.0
        %v2977 = vand.u32 %v1748, 4294901760
        %2978 = vmatmul.mubr.f32.gmra.mrb[0].mxu0 %v2977
        %v2979 = vpop.f32.mrb[0].mxu0
        %v2980 = vadd.f32 %v2803, %v2979
        %v2981 = vpop.f32.mrb[0].mxu0
        %2982 = vmatprep.mubr.f32.mxu0 0.0
        %v2983 = vand.u32 %v1749, 4294901760
        %2984 = vmatmul.mubr.f32.gmra.mrb[0].mxu0 %v2983
        %v2985 = vpop.f32.mrb[0].mxu0
        %v2986 = vadd.f32 %v2809, %v2985
        %v2987 = vpop.f32.mrb[0].mxu0
        %2988 = vmatprep.mubr.f32.mxu0 0.0
        %v2989 = vand.u32 %v1750, 4294901760
        %2990 = vmatmul.mubr.f32.gmra.mrb[0].mxu0 %v2989
        %v2991 = vpop.f32.mrb[0].mxu0
        %v2992 = vadd.f32 %v2815, %v2991
        %v2993 = vpop.f32.mrb[0].mxu0
        %2994 = vmatprep.mubr.f32.mxu0 0.0
        %v2995 = vand.u32 %v1751, 4294901760
        %2996 = vmatmul.mubr.f32.gmra.mrb[0].mxu0 %v2995
        %v2997 = vpop.f32.mrb[0].mxu0
        %v2998 = vadd.f32 %v2821, %v2997
        %v2999 = vpop.f32.mrb[0].mxu0
        %3000 = vmatprep.mubr.f32.mxu0 0.0
        %v3001 = vand.u32 %v1752, 4294901760
        %3002 = vmatmul.mubr.f32.gmra.mrb[0].mxu0 %v3001
        %v3003 = vpop.f32.mrb[0].mxu0
        %v3004 = vadd.f32 %v2827, %v3003
        %v3005 = vpop.f32.mrb[0].mxu0
        %3006 = vmatprep.mubr.f32.mxu0 0.0
        %v3007 = vand.u32 %v1753, 4294901760
        %3008 = vmatmul.mubr.f32.gmra.mrb[0].mxu0 %v3007
        %v3009 = vpop.f32.mrb[0].mxu0
        %v3010 = vadd.f32 %v2833, %v3009
        %v3011 = vpop.f32.mrb[0].mxu0
        %3012 = vmatprep.mubr.f32.mxu0 0.0
        %v3013 = vand.u32 %v1754, 4294901760
        %3014 = vmatmul.mubr.f32.gmra.mrb[0].mxu0 %v3013
        %v3015 = vpop.f32.mrb[0].mxu0
        %v3016 = vadd.f32 %v2839, %v3015
        %v3017 = vpop.f32.mrb[0].mxu0
        %3018 = vmatprep.mubr.f32.mxu0 0.0
        %v3019 = vand.u32 %v1755, 4294901760
        %3020 = vmatmul.mubr.f32.gmra.mrb[0].mxu0 %v3019
        %v3021 = vpop.f32.mrb[0].mxu0
        %v3022 = vadd.f32 %v2845, %v3021
        %v3023 = vpop.f32.mrb[0].mxu0
        %3024 = vmatprep.mubr.f32.mxu0 0.0
        %v3025 = vand.u32 %v1756, 4294901760
        %3026 = vmatmul.mubr.f32.gmra.mrb[0].mxu0 %v3025
        %v3027 = vpop.f32.mrb[0].mxu0
        %v3028 = vadd.f32 %v2851, %v3027
        %v3029 = vpop.f32.mrb[0].mxu0
        %3030 = vmatprep.mubr.f32.mxu0 0.0
        %v3031 = vand.u32 %v1757, 4294901760
        %3032 = vmatmul.mubr.f32.gmra.mrb[0].mxu0 %v3031
        %v3033 = vpop.f32.mrb[0].mxu0
        %v3034 = vadd.f32 %v2857, %v3033
        %v3035 = vpop.f32.mrb[0].mxu0
        %3036 = vmatprep.mubr.f32.mxu0 0.0
        %v3037 = vand.u32 %v1758, 4294901760
        %3038 = vmatmul.mubr.f32.gmra.mrb[0].mxu0 %v3037
        %v3039 = vpop.f32.mrb[0].mxu0
        %v3040 = vadd.f32 %v2863, %v3039
        %v3041 = vpop.f32.mrb[0].mxu0
        %3042 = vmatprep.mubr.f32.mxu0 0.0
        %v3043 = vand.u32 %v1759, 4294901760
        %3044 = vmatmul.mubr.f32.gmra.mrb[0].mxu0 %v3043
        %v3045 = vpop.f32.mrb[0].mxu0
        %v3046 = vadd.f32 %v2869, %v3045
        %v3047 = vpop.f32.mrb[0].mxu0
        %3048 = vmatprep.mubr.f32.mxu0 0.0
        %v3049 = vand.u32 %v1760, 4294901760
        %3050 = vmatmul.mubr.f32.gmra.mrb[0].mxu0 %v3049
        %v3051 = vpop.f32.mrb[0].mxu0
        %v3052 = vadd.f32 %v2875, %v3051
        %v3053 = vpop.f32.mrb[0].mxu0
        %3054 = vmatprep.mubr.f32.mxu0 0.0
        %v3055 = vand.u32 %v1761, 4294901760
        %3056 = vmatmul.mubr.f32.gmra.mrb[0].mxu0 %v3055
        %v3057 = vpop.f32.mrb[0].mxu0
        %v3058 = vadd.f32 %v2881, %v3057
        %v3059 = vpop.f32.mrb[0].mxu0
        %3060 = vmatprep.mubr.f32.mxu0 0.0
        %v3061 = vand.u32 %v1762, 4294901760
        %3062 = vmatmul.mubr.f32.gmra.mrb[0].mxu0 %v3061
        %v3063 = vpop.f32.mrb[0].mxu0
        %v3064 = vadd.f32 %v2887, %v3063
        %v3065 = vpop.f32.mrb[0].mxu0
        %3066 = vmatprep.mubr.f32.mxu0 0.0
        %v3067 = vand.u32 %v1763, 4294901760
        %3068 = vmatmul.mubr.f32.gmra.mrb[0].mxu0 %v3067
        %v3069 = vpop.f32.mrb[0].mxu0
        %v3070 = vadd.f32 %v2893, %v3069
        %v3071 = vpop.f32.mrb[0].mxu0
        %3072 = vdwg.mxu0
        %v3073 = vmax.f32 %v2980, 0.0
        %v3074 = vmax.f32 %v2986, 0.0
        %v3075 = vmax.f32 %v2992, 0.0
        %v3076 = vmax.f32 %v2998, 0.0
        %v3077 = vmax.f32 %v3004, 0.0
        %v3078 = vmax.f32 %v3010, 0.0
        %v3079 = vmax.f32 %v3016, 0.0
        %v3080 = vmax.f32 %v3022, 0.0
        %v3081 = vmax.f32 %v3028, 0.0
        %v3082 = vmax.f32 %v3034, 0.0
        %v3083 = vmax.f32 %v3040, 0.0
        %v3084 = vmax.f32 %v3046, 0.0
        %v3085 = vmax.f32 %v3052, 0.0
        %v3086 = vmax.f32 %v3058, 0.0
        %v3087 = vmax.f32 %v3064, 0.0
        %v3088 = vmax.f32 %v3070, 0.0
        %v3089 = vld [vmem:[#allocation2] sm:$0xff]
        %v3090 = vld [vmem:[#allocation2 + $0x8] sm:$0xff]
        %v3091 = vld [vmem:[#allocation2 + $0x10] sm:$0xff]
        %v3092 = vld [vmem:[#allocation2 + $0x18] sm:$0xff]
        %v3093 = vld [vmem:[#allocation2 + $0x20] sm:$0xff]
        %v3094 = vld [vmem:[#allocation2 + $0x28] sm:$0xff]
        %v3095 = vld [vmem:[#allocation2 + $0x30] sm:$0xff]
        %v3096 = vld [vmem:[#allocation2 + $0x38] sm:$0xff]
        %v3097 = vld [vmem:[#allocation2 + $0x40] sm:$0xff]
        %v3098 = vld [vmem:[#allocation2 + $0x48] sm:$0xff]
        %v3099 = vld [vmem:[#allocation2 + $0x50] sm:$0xff]
        %v3100 = vld [vmem:[#allocation2 + $0x58] sm:$0xff]
        %v3101 = vld [vmem:[#allocation2 + $0x60] sm:$0xff]
        %v3102 = vld [vmem:[#allocation2 + $0x68] sm:$0xff]
        %v3103 = vld [vmem:[#allocation2 + $0x70] sm:$0xff]
        %v3104 = vld [vmem:[#allocation2 + $0x78] sm:$0xff]
        %v3105 = vld [vmem:[%s8] sm:$0x1]
        %v3107 = vlaneseq
        %v3108 = vshrl.u32 %v3107, 7
        %v3109 = vsub.s32 0, %v3108
        %v3110 = vrot.slane %v3105, %v3109
        %3112 = vmatprep.subr.mxu0 0.0
        %v3113 = vand.u32 %v3089, 4294901760
        %3114 = vmatpush1.msra.mxu0 %v3113
        %3115 = vmatprep.subr.mxu0 0.0
        %v3116 = vand.u32 %v3090, 4294901760
        %3117 = vmatpush1.msra.mxu0 %v3116
        %3118 = vmatprep.subr.mxu0 0.0
        %v3119 = vand.u32 %v3091, 4294901760
        %3120 = vmatpush1.msra.mxu0 %v3119
        %3121 = vmatprep.subr.mxu0 0.0
        %v3122 = vand.u32 %v3092, 4294901760
        %3123 = vmatpush1.msra.mxu0 %v3122
        %3124 = vmatprep.subr.mxu0 0.0
        %v3125 = vand.u32 %v3093, 4294901760
        %3126 = vmatpush1.msra.mxu0 %v3125
        %3127 = vmatprep.subr.mxu0 0.0
        %v3128 = vand.u32 %v3094, 4294901760
        %3129 = vmatpush1.msra.mxu0 %v3128
        %3130 = vmatprep.subr.mxu0 0.0
        %v3131 = vand.u32 %v3095, 4294901760
        %3132 = vmatpush1.msra.mxu0 %v3131
        %3133 = vmatprep.subr.mxu0 0.0
        %v3134 = vand.u32 %v3096, 4294901760
        %3135 = vmatpush1.msra.mxu0 %v3134
        %3136 = vmatprep.subr.mxu0 0.0
        %v3137 = vand.u32 %v3097, 4294901760
        %3138 = vmatpush1.msra.mxu0 %v3137
        %3139 = vmatprep.subr.mxu0 0.0
        %v3140 = vand.u32 %v3098, 4294901760
        %3141 = vmatpush1.msra.mxu0 %v3140
        %3142 = vmatprep.subr.mxu0 0.0
        %v3143 = vand.u32 %v3099, 4294901760
        %3144 = vmatpush1.msra.mxu0 %v3143
        %3145 = vmatprep.subr.mxu0 0.0
        %v3146 = vand.u32 %v3100, 4294901760
        %3147 = vmatpush1.msra.mxu0 %v3146
        %3148 = vmatprep.subr.mxu0 0.0
        %v3149 = vand.u32 %v3101, 4294901760
        %3150 = vmatpush1.msra.mxu0 %v3149
        %3151 = vmatprep.subr.mxu0 0.0
        %v3152 = vand.u32 %v3102, 4294901760
        %3153 = vmatpush1.msra.mxu0 %v3152
        %3154 = vmatprep.subr.mxu0 0.0
        %v3155 = vand.u32 %v3103, 4294901760
        %3156 = vmatpush1.msra.mxu0 %v3155
        %3157 = vmatprep.subr.mxu0 0.0
        %v3158 = vand.u32 %v3104, 4294901760
        %3159 = vmatpush1.msra.mxu0 %v3158
        %3160 = vmatprep.subr.mxu0 0.0
        %3161 = vmatpush1.msra.mxu0 0.0
        %3162 = vmatprep.subr.mxu0 0.0
        %3163 = vmatpush1.msra.mxu0 0.0
        %3164 = vmatprep.subr.mxu0 0.0
        %3165 = vmatpush1.msra.mxu0 0.0
        %3166 = vmatprep.subr.mxu0 0.0
        %3167 = vmatpush1.msra.mxu0 0.0
        %3168 = vmatprep.subr.mxu0 0.0
        %3169 = vmatpush1.msra.mxu0 0.0
        %3170 = vmatprep.subr.mxu0 0.0
        %3171 = vmatpush1.msra.mxu0 0.0
        %3172 = vmatprep.subr.mxu0 0.0
        %3173 = vmatpush1.msra.mxu0 0.0
        %3174 = vmatprep.subr.mxu0 0.0
        %3175 = vmatpush1.msra.mxu0 0.0
        %3176 = vmatprep.subr.mxu0 0.0
        %3177 = vmatpush1.msra.mxu0 0.0
        %3178 = vmatprep.subr.mxu0 0.0
        %3179 = vmatpush1.msra.mxu0 0.0
        %3180 = vmatprep.subr.mxu0 0.0
        %3181 = vmatpush1.msra.mxu0 0.0
        %3182 = vmatprep.subr.mxu0 0.0
        %3183 = vmatpush1.msra.mxu0 0.0
        %3184 = vmatprep.subr.mxu0 0.0
        %3185 = vmatpush1.msra.mxu0 0.0
        %3186 = vmatprep.subr.mxu0 0.0
        %3187 = vmatpush1.msra.mxu0 0.0
        %3188 = vmatprep.subr.mxu0 0.0
        %3189 = vmatpush1.msra.mxu0 0.0
        %3190 = vmatprep.subr.mxu0 0.0
        %3191 = vmatpush1.msra.mxu0 0.0
        %3192 = vmatprep.mubr.f32.mxu0 0.0
        %v3193 = vand.u32 %v3073, 4294901760
        %v3194 = vsub.f32 %v3073, %v3193
        %v3195 = vand.u32 %v3194, 4294901760
        %v3196 = vsub.f32 %v3194, %v3195
        %v3197 = vand.u32 %v3196, 4294901760
        %3198 = vmatmul.mubr.f32.gmra.mrb[0].mxu0 %v3197
        %v3199 = vpop.f32.mrb[0].mxu0
        %v3200 = vadd.f32 %v3110, %v3199
        %v3201 = vpop.f32.mrb[0].mxu0
        %3202 = vmatprep.mubr.f32.mxu0 0.0
        %v3203 = vand.u32 %v3074, 4294901760
        %v3204 = vsub.f32 %v3074, %v3203
        %v3205 = vand.u32 %v3204, 4294901760
        %v3206 = vsub.f32 %v3204, %v3205
        %v3207 = vand.u32 %v3206, 4294901760
        %3208 = vmatmul.mubr.f32.gmra.mrb[0].mxu0 %v3207
        %v3209 = vpop.f32.mrb[0].mxu0
        %v3210 = vadd.f32 %v3110, %v3209
        %v3211 = vpop.f32.mrb[0].mxu0
        %3212 = vmatprep.mubr.f32.mxu0 0.0
        %v3213 = vand.u32 %v3075, 4294901760
        %v3214 = vsub.f32 %v3075, %v3213
        %v3215 = vand.u32 %v3214, 4294901760
        %v3216 = vsub.f32 %v3214, %v3215
        %v3217 = vand.u32 %v3216, 4294901760
        %3218 = vmatmul.mubr.f32.gmra.mrb[0].mxu0 %v3217
        %v3219 = vpop.f32.mrb[0].mxu0
        %v3220 = vadd.f32 %v3110, %v3219
        %v3221 = vpop.f32.mrb[0].mxu0
        %3222 = vmatprep.mubr.f32.mxu0 0.0
        %v3223 = vand.u32 %v3076, 4294901760
        %v3224 = vsub.f32 %v3076, %v3223
        %v3225 = vand.u32 %v3224, 4294901760
        %v3226 = vsub.f32 %v3224, %v3225
        %v3227 = vand.u32 %v3226, 4294901760
        %3228 = vmatmul.mubr.f32.gmra.mrb[0].mxu0 %v3227
        %v3229 = vpop.f32.mrb[0].mxu0
        %v3230 = vadd.f32 %v3110, %v3229
        %v3231 = vpop.f32.mrb[0].mxu0
        %3232 = vmatprep.mubr.f32.mxu0 0.0
        %v3233 = vand.u32 %v3077, 4294901760
        %v3234 = vsub.f32 %v3077, %v3233
        %v3235 = vand.u32 %v3234, 4294901760
        %v3236 = vsub.f32 %v3234, %v3235
        %v3237 = vand.u32 %v3236, 4294901760
        %3238 = vmatmul.mubr.f32.gmra.mrb[0].mxu0 %v3237
        %v3239 = vpop.f32.mrb[0].mxu0
        %v3240 = vadd.f32 %v3110, %v3239
        %v3241 = vpop.f32.mrb[0].mxu0
        %3242 = vmatprep.mubr.f32.mxu0 0.0
        %v3243 = vand.u32 %v3078, 4294901760
        %v3244 = vsub.f32 %v3078, %v3243
        %v3245 = vand.u32 %v3244, 4294901760
        %v3246 = vsub.f32 %v3244, %v3245
        %v3247 = vand.u32 %v3246, 4294901760
        %3248 = vmatmul.mubr.f32.gmra.mrb[0].mxu0 %v3247
        %v3249 = vpop.f32.mrb[0].mxu0
        %v3250 = vadd.f32 %v3110, %v3249
        %v3251 = vpop.f32.mrb[0].mxu0
        %3252 = vmatprep.mubr.f32.mxu0 0.0
        %v3253 = vand.u32 %v3079, 4294901760
        %v3254 = vsub.f32 %v3079, %v3253
        %v3255 = vand.u32 %v3254, 4294901760
        %v3256 = vsub.f32 %v3254, %v3255
        %v3257 = vand.u32 %v3256, 4294901760
        %3258 = vmatmul.mubr.f32.gmra.mrb[0].mxu0 %v3257
        %v3259 = vpop.f32.mrb[0].mxu0
        %v3260 = vadd.f32 %v3110, %v3259
        %v3261 = vpop.f32.mrb[0].mxu0
        %3262 = vmatprep.mubr.f32.mxu0 0.0
        %v3263 = vand.u32 %v3080, 4294901760
        %v3264 = vsub.f32 %v3080, %v3263
        %v3265 = vand.u32 %v3264, 4294901760
        %v3266 = vsub.f32 %v3264, %v3265
        %v3267 = vand.u32 %v3266, 4294901760
        %3268 = vmatmul.mubr.f32.gmra.mrb[0].mxu0 %v3267
        %v3269 = vpop.f32.mrb[0].mxu0
        %v3270 = vadd.f32 %v3110, %v3269
        %v3271 = vpop.f32.mrb[0].mxu0
        %3272 = vmatprep.mubr.f32.mxu0 0.0
        %v3273 = vand.u32 %v3081, 4294901760
        %v3274 = vsub.f32 %v3081, %v3273
        %v3275 = vand.u32 %v3274, 4294901760
        %v3276 = vsub.f32 %v3274, %v3275
        %v3277 = vand.u32 %v3276, 4294901760
        %3278 = vmatmul.mubr.f32.gmra.mrb[0].mxu0 %v3277
        %v3279 = vpop.f32.mrb[0].mxu0
        %v3280 = vadd.f32 %v3110, %v3279
        %v3281 = vpop.f32.mrb[0].mxu0
        %3282 = vmatprep.mubr.f32.mxu0 0.0
        %v3283 = vand.u32 %v3082, 4294901760
        %v3284 = vsub.f32 %v3082, %v3283
        %v3285 = vand.u32 %v3284, 4294901760
        %v3286 = vsub.f32 %v3284, %v3285
        %v3287 = vand.u32 %v3286, 4294901760
        %3288 = vmatmul.mubr.f32.gmra.mrb[0].mxu0 %v3287
        %v3289 = vpop.f32.mrb[0].mxu0
        %v3290 = vadd.f32 %v3110, %v3289
        %v3291 = vpop.f32.mrb[0].mxu0
        %3292 = vmatprep.mubr.f32.mxu0 0.0
        %v3293 = vand.u32 %v3083, 4294901760
        %v3294 = vsub.f32 %v3083, %v3293
        %v3295 = vand.u32 %v3294, 4294901760
        %v3296 = vsub.f32 %v3294, %v3295
        %v3297 = vand.u32 %v3296, 4294901760
        %3298 = vmatmul.mubr.f32.gmra.mrb[0].mxu0 %v3297
        %v3299 = vpop.f32.mrb[0].mxu0
        %v3300 = vadd.f32 %v3110, %v3299
        %v3301 = vpop.f32.mrb[0].mxu0
        %3302 = vmatprep.mubr.f32.mxu0 0.0
        %v3303 = vand.u32 %v3084, 4294901760
        %v3304 = vsub.f32 %v3084, %v3303
        %v3305 = vand.u32 %v3304, 4294901760
        %v3306 = vsub.f32 %v3304, %v3305
        %v3307 = vand.u32 %v3306, 4294901760
        %3308 = vmatmul.mubr.f32.gmra.mrb[0].mxu0 %v3307
        %v3309 = vpop.f32.mrb[0].mxu0
        %v3310 = vadd.f32 %v3110, %v3309
        %v3311 = vpop.f32.mrb[0].mxu0
        %3312 = vmatprep.mubr.f32.mxu0 0.0
        %v3313 = vand.u32 %v3085, 4294901760
        %v3314 = vsub.f32 %v3085, %v3313
        %v3315 = vand.u32 %v3314, 4294901760
        %v3316 = vsub.f32 %v3314, %v3315
        %v3317 = vand.u32 %v3316, 4294901760
        %3318 = vmatmul.mubr.f32.gmra.mrb[0].mxu0 %v3317
        %v3319 = vpop.f32.mrb[0].mxu0
        %v3320 = vadd.f32 %v3110, %v3319
        %v3321 = vpop.f32.mrb[0].mxu0
        %3322 = vmatprep.mubr.f32.mxu0 0.0
        %v3323 = vand.u32 %v3086, 4294901760
        %v3324 = vsub.f32 %v3086, %v3323
        %v3325 = vand.u32 %v3324, 4294901760
        %v3326 = vsub.f32 %v3324, %v3325
        %v3327 = vand.u32 %v3326, 4294901760
        %3328 = vmatmul.mubr.f32.gmra.mrb[0].mxu0 %v3327
        %v3329 = vpop.f32.mrb[0].mxu0
        %v3330 = vadd.f32 %v3110, %v3329
        %v3331 = vpop.f32.mrb[0].mxu0
        %3332 = vmatprep.mubr.f32.mxu0 0.0
        %v3333 = vand.u32 %v3087, 4294901760
        %v3334 = vsub.f32 %v3087, %v3333
        %v3335 = vand.u32 %v3334, 4294901760
        %v3336 = vsub.f32 %v3334, %v3335
        %v3337 = vand.u32 %v3336, 4294901760
        %3338 = vmatmul.mubr.f32.gmra.mrb[0].mxu0 %v3337
        %v3339 = vpop.f32.mrb[0].mxu0
        %v3340 = vadd.f32 %v3110, %v3339
        %v3341 = vpop.f32.mrb[0].mxu0
        %3342 = vmatprep.mubr.f32.mxu0 0.0
        %v3343 = vand.u32 %v3088, 4294901760
        %v3344 = vsub.f32 %v3088, %v3343
        %v3345 = vand.u32 %v3344, 4294901760
        %v3346 = vsub.f32 %v3344, %v3345
        %v3347 = vand.u32 %v3346, 4294901760
        %3348 = vmatmul.mubr.f32.gmra.mrb[0].mxu0 %v3347
        %v3349 = vpop.f32.mrb[0].mxu0
        %v3350 = vadd.f32 %v3110, %v3349
        %v3351 = vpop.f32.mrb[0].mxu0
        %3352 = vdwg.mxu0
        %3353 = vmatprep.subr.mxu0 0.0
        %v3354 = vand.u32 %v3089, 4294901760
        %v3355 = vsub.f32 %v3089, %v3354
        %v3356 = vand.u32 %v3355, 4294901760
        %v3357 = vsub.f32 %v3355, %v3356
        %v3358 = vand.u32 %v3357, 4294901760
        %3359 = vmatpush1.msra.mxu0 %v3358
        %3360 = vmatprep.subr.mxu0 0.0
        %v3361 = vand.u32 %v3090, 4294901760
        %v3362 = vsub.f32 %v3090, %v3361
        %v3363 = vand.u32 %v3362, 4294901760
        %v3364 = vsub.f32 %v3362, %v3363
        %v3365 = vand.u32 %v3364, 4294901760
        %3366 = vmatpush1.msra.mxu0 %v3365
        %3367 = vmatprep.subr.mxu0 0.0
        %v3368 = vand.u32 %v3091, 4294901760
        %v3369 = vsub.f32 %v3091, %v3368
        %v3370 = vand.u32 %v3369, 4294901760
        %v3371 = vsub.f32 %v3369, %v3370
        %v3372 = vand.u32 %v3371, 4294901760
        %3373 = vmatpush1.msra.mxu0 %v3372
        %3374 = vmatprep.subr.mxu0 0.0
        %v3375 = vand.u32 %v3092, 4294901760
        %v3376 = vsub.f32 %v3092, %v3375
        %v3377 = vand.u32 %v3376, 4294901760
        %v3378 = vsub.f32 %v3376, %v3377
        %v3379 = vand.u32 %v3378, 4294901760
        %3380 = vmatpush1.msra.mxu0 %v3379
        %3381 = vmatprep.subr.mxu0 0.0
        %v3382 = vand.u32 %v3093, 4294901760
        %v3383 = vsub.f32 %v3093, %v3382
        %v3384 = vand.u32 %v3383, 4294901760
        %v3385 = vsub.f32 %v3383, %v3384
        %v3386 = vand.u32 %v3385, 4294901760
        %3387 = vmatpush1.msra.mxu0 %v3386
        %3388 = vmatprep.subr.mxu0 0.0
        %v3389 = vand.u32 %v3094, 4294901760
        %v3390 = vsub.f32 %v3094, %v3389
        %v3391 = vand.u32 %v3390, 4294901760
        %v3392 = vsub.f32 %v3390, %v3391
        %v3393 = vand.u32 %v3392, 4294901760
        %3394 = vmatpush1.msra.mxu0 %v3393
        %3395 = vmatprep.subr.mxu0 0.0
        %v3396 = vand.u32 %v3095, 4294901760
        %v3397 = vsub.f32 %v3095, %v3396
        %v3398 = vand.u32 %v3397, 4294901760
        %v3399 = vsub.f32 %v3397, %v3398
        %v3400 = vand.u32 %v3399, 4294901760
        %3401 = vmatpush1.msra.mxu0 %v3400
        %3402 = vmatprep.subr.mxu0 0.0
        %v3403 = vand.u32 %v3096, 4294901760
        %v3404 = vsub.f32 %v3096, %v3403
        %v3405 = vand.u32 %v3404, 4294901760
        %v3406 = vsub.f32 %v3404, %v3405
        %v3407 = vand.u32 %v3406, 4294901760
        %3408 = vmatpush1.msra.mxu0 %v3407
        %3409 = vmatprep.subr.mxu0 0.0
        %v3410 = vand.u32 %v3097, 4294901760
        %v3411 = vsub.f32 %v3097, %v3410
        %v3412 = vand.u32 %v3411, 4294901760
        %v3413 = vsub.f32 %v3411, %v3412
        %v3414 = vand.u32 %v3413, 4294901760
        %3415 = vmatpush1.msra.mxu0 %v3414
        %3416 = vmatprep.subr.mxu0 0.0
        %v3417 = vand.u32 %v3098, 4294901760
        %v3418 = vsub.f32 %v3098, %v3417
        %v3419 = vand.u32 %v3418, 4294901760
        %v3420 = vsub.f32 %v3418, %v3419
        %v3421 = vand.u32 %v3420, 4294901760
        %3422 = vmatpush1.msra.mxu0 %v3421
        %3423 = vmatprep.subr.mxu0 0.0
        %v3424 = vand.u32 %v3099, 4294901760
        %v3425 = vsub.f32 %v3099, %v3424
        %v3426 = vand.u32 %v3425, 4294901760
        %v3427 = vsub.f32 %v3425, %v3426
        %v3428 = vand.u32 %v3427, 4294901760
        %3429 = vmatpush1.msra.mxu0 %v3428
        %3430 = vmatprep.subr.mxu0 0.0
        %v3431 = vand.u32 %v3100, 4294901760
        %v3432 = vsub.f32 %v3100, %v3431
        %v3433 = vand.u32 %v3432, 4294901760
        %v3434 = vsub.f32 %v3432, %v3433
        %v3435 = vand.u32 %v3434, 4294901760
        %3436 = vmatpush1.msra.mxu0 %v3435
        %3437 = vmatprep.subr.mxu0 0.0
        %v3438 = vand.u32 %v3101, 4294901760
        %v3439 = vsub.f32 %v3101, %v3438
        %v3440 = vand.u32 %v3439, 4294901760
        %v3441 = vsub.f32 %v3439, %v3440
        %v3442 = vand.u32 %v3441, 4294901760
        %3443 = vmatpush1.msra.mxu0 %v3442
        %3444 = vmatprep.subr.mxu0 0.0
        %v3445 = vand.u32 %v3102, 4294901760
        %v3446 = vsub.f32 %v3102, %v3445
        %v3447 = vand.u32 %v3446, 4294901760
        %v3448 = vsub.f32 %v3446, %v3447
        %v3449 = vand.u32 %v3448, 4294901760
        %3450 = vmatpush1.msra.mxu0 %v3449
        %3451 = vmatprep.subr.mxu0 0.0
        %v3452 = vand.u32 %v3103, 4294901760
        %v3453 = vsub.f32 %v3103, %v3452
        %v3454 = vand.u32 %v3453, 4294901760
        %v3455 = vsub.f32 %v3453, %v3454
        %v3456 = vand.u32 %v3455, 4294901760
        %3457 = vmatpush1.msra.mxu0 %v3456
        %3458 = vmatprep.subr.mxu0 0.0
        %v3459 = vand.u32 %v3104, 4294901760
        %v3460 = vsub.f32 %v3104, %v3459
        %v3461 = vand.u32 %v3460, 4294901760
        %v3462 = vsub.f32 %v3460, %v3461
        %v3463 = vand.u32 %v3462, 4294901760
        %3464 = vmatpush1.msra.mxu0 %v3463
        %3465 = vmatprep.subr.mxu0 0.0
        %3466 = vmatpush1.msra.mxu0 0.0
        %3467 = vmatprep.subr.mxu0 0.0
        %3468 = vmatpush1.msra.mxu0 0.0
        %3469 = vmatprep.subr.mxu0 0.0
        %3470 = vmatpush1.msra.mxu0 0.0
        %3471 = vmatprep.subr.mxu0 0.0
        %3472 = vmatpush1.msra.mxu0 0.0
        %3473 = vmatprep.subr.mxu0 0.0
        %3474 = vmatpush1.msra.mxu0 0.0
        %3475 = vmatprep.subr.mxu0 0.0
        %3476 = vmatpush1.msra.mxu0 0.0
        %3477 = vmatprep.subr.mxu0 0.0
        %3478 = vmatpush1.msra.mxu0 0.0
        %3479 = vmatprep.subr.mxu0 0.0
        %3480 = vmatpush1.msra.mxu0 0.0
        %3481 = vmatprep.subr.mxu0 0.0
        %3482 = vmatpush1.msra.mxu0 0.0
        %3483 = vmatprep.subr.mxu0 0.0
        %3484 = vmatpush1.msra.mxu0 0.0
        %3485 = vmatprep.subr.mxu0 0.0
        %3486 = vmatpush1.msra.mxu0 0.0
        %3487 = vmatprep.subr.mxu0 0.0
        %3488 = vmatpush1.msra.mxu0 0.0
        %3489 = vmatprep.subr.mxu0 0.0
        %3490 = vmatpush1.msra.mxu0 0.0
        %3491 = vmatprep.subr.mxu0 0.0
        %3492 = vmatpush1.msra.mxu0 0.0
        %3493 = vmatprep.subr.mxu0 0.0
        %3494 = vmatpush1.msra.mxu0 0.0
        %3495 = vmatprep.subr.mxu0 0.0
        %3496 = vmatpush1.msra.mxu0 0.0
        %3497 = vmatprep.mubr.f32.mxu0 0.0
        %v3498 = vand.u32 %v3073, 4294901760
        %3499 = vmatmul.mubr.f32.gmra.mrb[0].mxu0 %v3498
        %v3500 = vpop.f32.mrb[0].mxu0
        %v3501 = vadd.f32 %v3200, %v3500
        %v3502 = vpop.f32.mrb[0].mxu0
        %3503 = vmatprep.mubr.f32.mxu0 0.0
        %v3504 = vand.u32 %v3074, 4294901760
        %3505 = vmatmul.mubr.f32.gmra.mrb[0].mxu0 %v3504
        %v3506 = vpop.f32.mrb[0].mxu0
        %v3507 = vadd.f32 %v3210, %v3506
        %v3508 = vpop.f32.mrb[0].mxu0
        %3509 = vmatprep.mubr.f32.mxu0 0.0
        %v3510 = vand.u32 %v3075, 4294901760
        %3511 = vmatmul.mubr.f32.gmra.mrb[0].mxu0 %v3510
        %v3512 = vpop.f32.mrb[0].mxu0
        %v3513 = vadd.f32 %v3220, %v3512
        %v3514 = vpop.f32.mrb[0].mxu0
        %3515 = vmatprep.mubr.f32.mxu0 0.0
        %v3516 = vand.u32 %v3076, 4294901760
        %3517 = vmatmul.mubr.f32.gmra.mrb[0].mxu0 %v3516
        %v3518 = vpop.f32.mrb[0].mxu0
        %v3519 = vadd.f32 %v3230, %v3518
        %v3520 = vpop.f32.mrb[0].mxu0
        %3521 = vmatprep.mubr.f32.mxu0 0.0
        %v3522 = vand.u32 %v3077, 4294901760
        %3523 = vmatmul.mubr.f32.gmra.mrb[0].mxu0 %v3522
        %v3524 = vpop.f32.mrb[0].mxu0
        %v3525 = vadd.f32 %v3240, %v3524
        %v3526 = vpop.f32.mrb[0].mxu0
        %3527 = vmatprep.mubr.f32.mxu0 0.0
        %v3528 = vand.u32 %v3078, 4294901760
        %3529 = vmatmul.mubr.f32.gmra.mrb[0].mxu0 %v3528
        %v3530 = vpop.f32.mrb[0].mxu0
        %v3531 = vadd.f32 %v3250, %v3530
        %v3532 = vpop.f32.mrb[0].mxu0
        %3533 = vmatprep.mubr.f32.mxu0 0.0
        %v3534 = vand.u32 %v3079, 4294901760
        %3535 = vmatmul.mubr.f32.gmra.mrb[0].mxu0 %v3534
        %v3536 = vpop.f32.mrb[0].mxu0
        %v3537 = vadd.f32 %v3260, %v3536
        %v3538 = vpop.f32.mrb[0].mxu0
        %3539 = vmatprep.mubr.f32.mxu0 0.0
        %v3540 = vand.u32 %v3080, 4294901760
        %3541 = vmatmul.mubr.f32.gmra.mrb[0].mxu0 %v3540
        %v3542 = vpop.f32.mrb[0].mxu0
        %v3543 = vadd.f32 %v3270, %v3542
        %v3544 = vpop.f32.mrb[0].mxu0
        %3545 = vmatprep.mubr.f32.mxu0 0.0
        %v3546 = vand.u32 %v3081, 4294901760
        %3547 = vmatmul.mubr.f32.gmra.mrb[0].mxu0 %v3546
        %v3548 = vpop.f32.mrb[0].mxu0
        %v3549 = vadd.f32 %v3280, %v3548
        %v3550 = vpop.f32.mrb[0].mxu0
        %3551 = vmatprep.mubr.f32.mxu0 0.0
        %v3552 = vand.u32 %v3082, 4294901760
        %3553 = vmatmul.mubr.f32.gmra.mrb[0].mxu0 %v3552
        %v3554 = vpop.f32.mrb[0].mxu0
        %v3555 = vadd.f32 %v3290, %v3554
        %v3556 = vpop.f32.mrb[0].mxu0
        %3557 = vmatprep.mubr.f32.mxu0 0.0
        %v3558 = vand.u32 %v3083, 4294901760
        %3559 = vmatmul.mubr.f32.gmra.mrb[0].mxu0 %v3558
        %v3560 = vpop.f32.mrb[0].mxu0
        %v3561 = vadd.f32 %v3300, %v3560
        %v3562 = vpop.f32.mrb[0].mxu0
        %3563 = vmatprep.mubr.f32.mxu0 0.0
        %v3564 = vand.u32 %v3084, 4294901760
        %3565 = vmatmul.mubr.f32.gmra.mrb[0].mxu0 %v3564
        %v3566 = vpop.f32.mrb[0].mxu0
        %v3567 = vadd.f32 %v3310, %v3566
        %v3568 = vpop.f32.mrb[0].mxu0
        %3569 = vmatprep.mubr.f32.mxu0 0.0
        %v3570 = vand.u32 %v3085, 4294901760
        %3571 = vmatmul.mubr.f32.gmra.mrb[0].mxu0 %v3570
        %v3572 = vpop.f32.mrb[0].mxu0
        %v3573 = vadd.f32 %v3320, %v3572
        %v3574 = vpop.f32.mrb[0].mxu0
        %3575 = vmatprep.mubr.f32.mxu0 0.0
        %v3576 = vand.u32 %v3086, 4294901760
        %3577 = vmatmul.mubr.f32.gmra.mrb[0].mxu0 %v3576
        %v3578 = vpop.f32.mrb[0].mxu0
        %v3579 = vadd.f32 %v3330, %v3578
        %v3580 = vpop.f32.mrb[0].mxu0
        %3581 = vmatprep.mubr.f32.mxu0 0.0
        %v3582 = vand.u32 %v3087, 4294901760
        %3583 = vmatmul.mubr.f32.gmra.mrb[0].mxu0 %v3582
        %v3584 = vpop.f32.mrb[0].mxu0
        %v3585 = vadd.f32 %v3340, %v3584
        %v3586 = vpop.f32.mrb[0].mxu0
        %3587 = vmatprep.mubr.f32.mxu0 0.0
        %v3588 = vand.u32 %v3088, 4294901760
        %3589 = vmatmul.mubr.f32.gmra.mrb[0].mxu0 %v3588
        %v3590 = vpop.f32.mrb[0].mxu0
        %v3591 = vadd.f32 %v3350, %v3590
        %v3592 = vpop.f32.mrb[0].mxu0
        %3593 = vdwg.mxu0
        %3594 = vmatprep.subr.mxu0 0.0
        %v3595 = vand.u32 %v3089, 4294901760
        %v3596 = vsub.f32 %v3089, %v3595
        %3597 = vmatpush1.msra.mxu0 %v3596
        %3598 = vmatprep.subr.mxu0 0.0
        %v3599 = vand.u32 %v3090, 4294901760
        %v3600 = vsub.f32 %v3090, %v3599
        %3601 = vmatpush1.msra.mxu0 %v3600
        %3602 = vmatprep.subr.mxu0 0.0
        %v3603 = vand.u32 %v3091, 4294901760
        %v3604 = vsub.f32 %v3091, %v3603
        %3605 = vmatpush1.msra.mxu0 %v3604
        %3606 = vmatprep.subr.mxu0 0.0
        %v3607 = vand.u32 %v3092, 4294901760
        %v3608 = vsub.f32 %v3092, %v3607
        %3609 = vmatpush1.msra.mxu0 %v3608
        %3610 = vmatprep.subr.mxu0 0.0
        %v3611 = vand.u32 %v3093, 4294901760
        %v3612 = vsub.f32 %v3093, %v3611
        %3613 = vmatpush1.msra.mxu0 %v3612
        %3614 = vmatprep.subr.mxu0 0.0
        %v3615 = vand.u32 %v3094, 4294901760
        %v3616 = vsub.f32 %v3094, %v3615
        %3617 = vmatpush1.msra.mxu0 %v3616
        %3618 = vmatprep.subr.mxu0 0.0
        %v3619 = vand.u32 %v3095, 4294901760
        %v3620 = vsub.f32 %v3095, %v3619
        %3621 = vmatpush1.msra.mxu0 %v3620
        %3622 = vmatprep.subr.mxu0 0.0
        %v3623 = vand.u32 %v3096, 4294901760
        %v3624 = vsub.f32 %v3096, %v3623
        %3625 = vmatpush1.msra.mxu0 %v3624
        %3626 = vmatprep.subr.mxu0 0.0
        %v3627 = vand.u32 %v3097, 4294901760
        %v3628 = vsub.f32 %v3097, %v3627
        %3629 = vmatpush1.msra.mxu0 %v3628
        %3630 = vmatprep.subr.mxu0 0.0
        %v3631 = vand.u32 %v3098, 4294901760
        %v3632 = vsub.f32 %v3098, %v3631
        %3633 = vmatpush1.msra.mxu0 %v3632
        %3634 = vmatprep.subr.mxu0 0.0
        %v3635 = vand.u32 %v3099, 4294901760
        %v3636 = vsub.f32 %v3099, %v3635
        %3637 = vmatpush1.msra.mxu0 %v3636
        %3638 = vmatprep.subr.mxu0 0.0
        %v3639 = vand.u32 %v3100, 4294901760
        %v3640 = vsub.f32 %v3100, %v3639
        %3641 = vmatpush1.msra.mxu0 %v3640
        %3642 = vmatprep.subr.mxu0 0.0
        %v3643 = vand.u32 %v3101, 4294901760
        %v3644 = vsub.f32 %v3101, %v3643
        %3645 = vmatpush1.msra.mxu0 %v3644
        %3646 = vmatprep.subr.mxu0 0.0
        %v3647 = vand.u32 %v3102, 4294901760
        %v3648 = vsub.f32 %v3102, %v3647
        %3649 = vmatpush1.msra.mxu0 %v3648
        %3650 = vmatprep.subr.mxu0 0.0
        %v3651 = vand.u32 %v3103, 4294901760
        %v3652 = vsub.f32 %v3103, %v3651
        %3653 = vmatpush1.msra.mxu0 %v3652
        %3654 = vmatprep.subr.mxu0 0.0
        %v3655 = vand.u32 %v3104, 4294901760
        %v3656 = vsub.f32 %v3104, %v3655
        %3657 = vmatpush1.msra.mxu0 %v3656
        %3658 = vmatprep.subr.mxu0 0.0
        %3659 = vmatpush1.msra.mxu0 0.0
        %3660 = vmatprep.subr.mxu0 0.0
        %3661 = vmatpush1.msra.mxu0 0.0
        %3662 = vmatprep.subr.mxu0 0.0
        %3663 = vmatpush1.msra.mxu0 0.0
        %3664 = vmatprep.subr.mxu0 0.0
        %3665 = vmatpush1.msra.mxu0 0.0
        %3666 = vmatprep.subr.mxu0 0.0
        %3667 = vmatpush1.msra.mxu0 0.0
        %3668 = vmatprep.subr.mxu0 0.0
        %3669 = vmatpush1.msra.mxu0 0.0
        %3670 = vmatprep.subr.mxu0 0.0
        %3671 = vmatpush1.msra.mxu0 0.0
        %3672 = vmatprep.subr.mxu0 0.0
        %3673 = vmatpush1.msra.mxu0 0.0
        %3674 = vmatprep.subr.mxu0 0.0
        %3675 = vmatpush1.msra.mxu0 0.0
        %3676 = vmatprep.subr.mxu0 0.0
        %3677 = vmatpush1.msra.mxu0 0.0
        %3678 = vmatprep.subr.mxu0 0.0
        %3679 = vmatpush1.msra.mxu0 0.0
        %3680 = vmatprep.subr.mxu0 0.0
        %3681 = vmatpush1.msra.mxu0 0.0
        %3682 = vmatprep.subr.mxu0 0.0
        %3683 = vmatpush1.msra.mxu0 0.0
        %3684 = vmatprep.subr.mxu0 0.0
        %3685 = vmatpush1.msra.mxu0 0.0
        %3686 = vmatprep.subr.mxu0 0.0
        %3687 = vmatpush1.msra.mxu0 0.0
        %3688 = vmatprep.subr.mxu0 0.0
        %3689 = vmatpush1.msra.mxu0 0.0
        %3690 = vmatprep.mubr.f32.mxu0 0.0
        %v3691 = vand.u32 %v3073, 4294901760
        %v3692 = vsub.f32 %v3073, %v3691
        %3693 = vmatmul.mubr.f32.gmra.mrb[0].mxu0 %v3692
        %v3694 = vpop.f32.mrb[0].mxu0
        %v3695 = vadd.f32 %v3501, %v3694
        %v3696 = vpop.f32.mrb[0].mxu0
        %3697 = vmatprep.mubr.f32.mxu0 0.0
        %v3698 = vand.u32 %v3074, 4294901760
        %v3699 = vsub.f32 %v3074, %v3698
        %3700 = vmatmul.mubr.f32.gmra.mrb[0].mxu0 %v3699
        %v3701 = vpop.f32.mrb[0].mxu0
        %v3702 = vadd.f32 %v3507, %v3701
        %v3703 = vpop.f32.mrb[0].mxu0
        %3704 = vmatprep.mubr.f32.mxu0 0.0
        %v3705 = vand.u32 %v3075, 4294901760
        %v3706 = vsub.f32 %v3075, %v3705
        %3707 = vmatmul.mubr.f32.gmra.mrb[0].mxu0 %v3706
        %v3708 = vpop.f32.mrb[0].mxu0
        %v3709 = vadd.f32 %v3513, %v3708
        %v3710 = vpop.f32.mrb[0].mxu0
        %3711 = vmatprep.mubr.f32.mxu0 0.0
        %v3712 = vand.u32 %v3076, 4294901760
        %v3713 = vsub.f32 %v3076, %v3712
        %3714 = vmatmul.mubr.f32.gmra.mrb[0].mxu0 %v3713
        %v3715 = vpop.f32.mrb[0].mxu0
        %v3716 = vadd.f32 %v3519, %v3715
        %v3717 = vpop.f32.mrb[0].mxu0
        %3718 = vmatprep.mubr.f32.mxu0 0.0
        %v3719 = vand.u32 %v3077, 4294901760
        %v3720 = vsub.f32 %v3077, %v3719
        %3721 = vmatmul.mubr.f32.gmra.mrb[0].mxu0 %v3720
        %v3722 = vpop.f32.mrb[0].mxu0
        %v3723 = vadd.f32 %v3525, %v3722
        %v3724 = vpop.f32.mrb[0].mxu0
        %3725 = vmatprep.mubr.f32.mxu0 0.0
        %v3726 = vand.u32 %v3078, 4294901760
        %v3727 = vsub.f32 %v3078, %v3726
        %3728 = vmatmul.mubr.f32.gmra.mrb[0].mxu0 %v3727
        %v3729 = vpop.f32.mrb[0].mxu0
        %v3730 = vadd.f32 %v3531, %v3729
        %v3731 = vpop.f32.mrb[0].mxu0
        %3732 = vmatprep.mubr.f32.mxu0 0.0
        %v3733 = vand.u32 %v3079, 4294901760
        %v3734 = vsub.f32 %v3079, %v3733
        %3735 = vmatmul.mubr.f32.gmra.mrb[0].mxu0 %v3734
        %v3736 = vpop.f32.mrb[0].mxu0
        %v3737 = vadd.f32 %v3537, %v3736
        %v3738 = vpop.f32.mrb[0].mxu0
        %3739 = vmatprep.mubr.f32.mxu0 0.0
        %v3740 = vand.u32 %v3080, 4294901760
        %v3741 = vsub.f32 %v3080, %v3740
        %3742 = vmatmul.mubr.f32.gmra.mrb[0].mxu0 %v3741
        %v3743 = vpop.f32.mrb[0].mxu0
        %v3744 = vadd.f32 %v3543, %v3743
        %v3745 = vpop.f32.mrb[0].mxu0
        %3746 = vmatprep.mubr.f32.mxu0 0.0
        %v3747 = vand.u32 %v3081, 4294901760
        %v3748 = vsub.f32 %v3081, %v3747
        %3749 = vmatmul.mubr.f32.gmra.mrb[0].mxu0 %v3748
        %v3750 = vpop.f32.mrb[0].mxu0
        %v3751 = vadd.f32 %v3549, %v3750
        %v3752 = vpop.f32.mrb[0].mxu0
        %3753 = vmatprep.mubr.f32.mxu0 0.0
        %v3754 = vand.u32 %v3082, 4294901760
        %v3755 = vsub.f32 %v3082, %v3754
        %3756 = vmatmul.mubr.f32.gmra.mrb[0].mxu0 %v3755
        %v3757 = vpop.f32.mrb[0].mxu0
        %v3758 = vadd.f32 %v3555, %v3757
        %v3759 = vpop.f32.mrb[0].mxu0
        %3760 = vmatprep.mubr.f32.mxu0 0.0
        %v3761 = vand.u32 %v3083, 4294901760
        %v3762 = vsub.f32 %v3083, %v3761
        %3763 = vmatmul.mubr.f32.gmra.mrb[0].mxu0 %v3762
        %v3764 = vpop.f32.mrb[0].mxu0
        %v3765 = vadd.f32 %v3561, %v3764
        %v3766 = vpop.f32.mrb[0].mxu0
        %3767 = vmatprep.mubr.f32.mxu0 0.0
        %v3768 = vand.u32 %v3084, 4294901760
        %v3769 = vsub.f32 %v3084, %v3768
        %3770 = vmatmul.mubr.f32.gmra.mrb[0].mxu0 %v3769
        %v3771 = vpop.f32.mrb[0].mxu0
        %v3772 = vadd.f32 %v3567, %v3771
        %v3773 = vpop.f32.mrb[0].mxu0
        %3774 = vmatprep.mubr.f32.mxu0 0.0
        %v3775 = vand.u32 %v3085, 4294901760
        %v3776 = vsub.f32 %v3085, %v3775
        %3777 = vmatmul.mubr.f32.gmra.mrb[0].mxu0 %v3776
        %v3778 = vpop.f32.mrb[0].mxu0
        %v3779 = vadd.f32 %v3573, %v3778
        %v3780 = vpop.f32.mrb[0].mxu0
        %3781 = vmatprep.mubr.f32.mxu0 0.0
        %v3782 = vand.u32 %v3086, 4294901760
        %v3783 = vsub.f32 %v3086, %v3782
        %3784 = vmatmul.mubr.f32.gmra.mrb[0].mxu0 %v3783
        %v3785 = vpop.f32.mrb[0].mxu0
        %v3786 = vadd.f32 %v3579, %v3785
        %v3787 = vpop.f32.mrb[0].mxu0
        %3788 = vmatprep.mubr.f32.mxu0 0.0
        %v3789 = vand.u32 %v3087, 4294901760
        %v3790 = vsub.f32 %v3087, %v3789
        %3791 = vmatmul.mubr.f32.gmra.mrb[0].mxu0 %v3790
        %v3792 = vpop.f32.mrb[0].mxu0
        %v3793 = vadd.f32 %v3585, %v3792
        %v3794 = vpop.f32.mrb[0].mxu0
        %3795 = vmatprep.mubr.f32.mxu0 0.0
        %v3796 = vand.u32 %v3088, 4294901760
        %v3797 = vsub.f32 %v3088, %v3796
        %3798 = vmatmul.mubr.f32.gmra.mrb[0].mxu0 %v3797
        %v3799 = vpop.f32.mrb[0].mxu0
        %v3800 = vadd.f32 %v3591, %v3799
        %v3801 = vpop.f32.mrb[0].mxu0
        %3802 = vdwg.mxu0
        %3803 = vmatprep.subr.mxu0 0.0
        %v3804 = vand.u32 %v3089, 4294901760
        %3805 = vmatpush1.msra.mxu0 %v3804
        %3806 = vmatprep.subr.mxu0 0.0
        %v3807 = vand.u32 %v3090, 4294901760
        %3808 = vmatpush1.msra.mxu0 %v3807
        %3809 = vmatprep.subr.mxu0 0.0
        %v3810 = vand.u32 %v3091, 4294901760
        %3811 = vmatpush1.msra.mxu0 %v3810
        %3812 = vmatprep.subr.mxu0 0.0
        %v3813 = vand.u32 %v3092, 4294901760
        %3814 = vmatpush1.msra.mxu0 %v3813
        %3815 = vmatprep.subr.mxu0 0.0
        %v3816 = vand.u32 %v3093, 4294901760
        %3817 = vmatpush1.msra.mxu0 %v3816
        %3818 = vmatprep.subr.mxu0 0.0
        %v3819 = vand.u32 %v3094, 4294901760
        %3820 = vmatpush1.msra.mxu0 %v3819
        %3821 = vmatprep.subr.mxu0 0.0
        %v3822 = vand.u32 %v3095, 4294901760
        %3823 = vmatpush1.msra.mxu0 %v3822
        %3824 = vmatprep.subr.mxu0 0.0
        %v3825 = vand.u32 %v3096, 4294901760
        %3826 = vmatpush1.msra.mxu0 %v3825
        %3827 = vmatprep.subr.mxu0 0.0
        %v3828 = vand.u32 %v3097, 4294901760
        %3829 = vmatpush1.msra.mxu0 %v3828
        %3830 = vmatprep.subr.mxu0 0.0
        %v3831 = vand.u32 %v3098, 4294901760
        %3832 = vmatpush1.msra.mxu0 %v3831
        %3833 = vmatprep.subr.mxu0 0.0
        %v3834 = vand.u32 %v3099, 4294901760
        %3835 = vmatpush1.msra.mxu0 %v3834
        %3836 = vmatprep.subr.mxu0 0.0
        %v3837 = vand.u32 %v3100, 4294901760
        %3838 = vmatpush1.msra.mxu0 %v3837
        %3839 = vmatprep.subr.mxu0 0.0
        %v3840 = vand.u32 %v3101, 4294901760
        %3841 = vmatpush1.msra.mxu0 %v3840
        %3842 = vmatprep.subr.mxu0 0.0
        %v3843 = vand.u32 %v3102, 4294901760
        %3844 = vmatpush1.msra.mxu0 %v3843
        %3845 = vmatprep.subr.mxu0 0.0
        %v3846 = vand.u32 %v3103, 4294901760
        %3847 = vmatpush1.msra.mxu0 %v3846
        %3848 = vmatprep.subr.mxu0 0.0
        %v3849 = vand.u32 %v3104, 4294901760
        %3850 = vmatpush1.msra.mxu0 %v3849
        %3851 = vmatprep.subr.mxu0 0.0
        %3852 = vmatpush1.msra.mxu0 0.0
        %3853 = vmatprep.subr.mxu0 0.0
        %3854 = vmatpush1.msra.mxu0 0.0
        %3855 = vmatprep.subr.mxu0 0.0
        %3856 = vmatpush1.msra.mxu0 0.0
        %3857 = vmatprep.subr.mxu0 0.0
        %3858 = vmatpush1.msra.mxu0 0.0
        %3859 = vmatprep.subr.mxu0 0.0
        %3860 = vmatpush1.msra.mxu0 0.0
        %3861 = vmatprep.subr.mxu0 0.0
        %3862 = vmatpush1.msra.mxu0 0.0
        %3863 = vmatprep.subr.mxu0 0.0
        %3864 = vmatpush1.msra.mxu0 0.0
        %3865 = vmatprep.subr.mxu0 0.0
        %3866 = vmatpush1.msra.mxu0 0.0
        %3867 = vmatprep.subr.mxu0 0.0
        %3868 = vmatpush1.msra.mxu0 0.0
        %3869 = vmatprep.subr.mxu0 0.0
        %3870 = vmatpush1.msra.mxu0 0.0
        %3871 = vmatprep.subr.mxu0 0.0
        %3872 = vmatpush1.msra.mxu0 0.0
        %3873 = vmatprep.subr.mxu0 0.0
        %3874 = vmatpush1.msra.mxu0 0.0
        %3875 = vmatprep.subr.mxu0 0.0
        %3876 = vmatpush1.msra.mxu0 0.0
        %3877 = vmatprep.subr.mxu0 0.0
        %3878 = vmatpush1.msra.mxu0 0.0
        %3879 = vmatprep.subr.mxu0 0.0
        %3880 = vmatpush1.msra.mxu0 0.0
        %3881 = vmatprep.subr.mxu0 0.0
        %3882 = vmatpush1.msra.mxu0 0.0
        %3883 = vmatprep.mubr.f32.mxu0 0.0
        %v3884 = vand.u32 %v3073, 4294901760
        %v3885 = vsub.f32 %v3073, %v3884
        %v3886 = vand.u32 %v3885, 4294901760
        %3887 = vmatmul.mubr.f32.gmra.mrb[0].mxu0 %v3886
        %v3888 = vpop.f32.mrb[0].mxu0
        %v3889 = vadd.f32 %v3695, %v3888
        %v3890 = vpop.f32.mrb[0].mxu0
        %3891 = vmatprep.mubr.f32.mxu0 0.0
        %v3892 = vand.u32 %v3074, 4294901760
        %v3893 = vsub.f32 %v3074, %v3892
        %v3894 = vand.u32 %v3893, 4294901760
        %3895 = vmatmul.mubr.f32.gmra.mrb[0].mxu0 %v3894
        %v3896 = vpop.f32.mrb[0].mxu0
        %v3897 = vadd.f32 %v3702, %v3896
        %v3898 = vpop.f32.mrb[0].mxu0
        %3899 = vmatprep.mubr.f32.mxu0 0.0
        %v3900 = vand.u32 %v3075, 4294901760
        %v3901 = vsub.f32 %v3075, %v3900
        %v3902 = vand.u32 %v3901, 4294901760
        %3903 = vmatmul.mubr.f32.gmra.mrb[0].mxu0 %v3902
        %v3904 = vpop.f32.mrb[0].mxu0
        %v3905 = vadd.f32 %v3709, %v3904
        %v3906 = vpop.f32.mrb[0].mxu0
        %3907 = vmatprep.mubr.f32.mxu0 0.0
        %v3908 = vand.u32 %v3076, 4294901760
        %v3909 = vsub.f32 %v3076, %v3908
        %v3910 = vand.u32 %v3909, 4294901760
        %3911 = vmatmul.mubr.f32.gmra.mrb[0].mxu0 %v3910
        %v3912 = vpop.f32.mrb[0].mxu0
        %v3913 = vadd.f32 %v3716, %v3912
        %v3914 = vpop.f32.mrb[0].mxu0
        %3915 = vmatprep.mubr.f32.mxu0 0.0
        %v3916 = vand.u32 %v3077, 4294901760
        %v3917 = vsub.f32 %v3077, %v3916
        %v3918 = vand.u32 %v3917, 4294901760
        %3919 = vmatmul.mubr.f32.gmra.mrb[0].mxu0 %v3918
        %v3920 = vpop.f32.mrb[0].mxu0
        %v3921 = vadd.f32 %v3723, %v3920
        %v3922 = vpop.f32.mrb[0].mxu0
        %3923 = vmatprep.mubr.f32.mxu0 0.0
        %v3924 = vand.u32 %v3078, 4294901760
        %v3925 = vsub.f32 %v3078, %v3924
        %v3926 = vand.u32 %v3925, 4294901760
        %3927 = vmatmul.mubr.f32.gmra.mrb[0].mxu0 %v3926
        %v3928 = vpop.f32.mrb[0].mxu0
        %v3929 = vadd.f32 %v3730, %v3928
        %v3930 = vpop.f32.mrb[0].mxu0
        %3931 = vmatprep.mubr.f32.mxu0 0.0
        %v3932 = vand.u32 %v3079, 4294901760
        %v3933 = vsub.f32 %v3079, %v3932
        %v3934 = vand.u32 %v3933, 4294901760
        %3935 = vmatmul.mubr.f32.gmra.mrb[0].mxu0 %v3934
        %v3936 = vpop.f32.mrb[0].mxu0
        %v3937 = vadd.f32 %v3737, %v3936
        %v3938 = vpop.f32.mrb[0].mxu0
        %3939 = vmatprep.mubr.f32.mxu0 0.0
        %v3940 = vand.u32 %v3080, 4294901760
        %v3941 = vsub.f32 %v3080, %v3940
        %v3942 = vand.u32 %v3941, 4294901760
        %3943 = vmatmul.mubr.f32.gmra.mrb[0].mxu0 %v3942
        %v3944 = vpop.f32.mrb[0].mxu0
        %v3945 = vadd.f32 %v3744, %v3944
        %v3946 = vpop.f32.mrb[0].mxu0
        %3947 = vmatprep.mubr.f32.mxu0 0.0
        %v3948 = vand.u32 %v3081, 4294901760
        %v3949 = vsub.f32 %v3081, %v3948
        %v3950 = vand.u32 %v3949, 4294901760
        %3951 = vmatmul.mubr.f32.gmra.mrb[0].mxu0 %v3950
        %v3952 = vpop.f32.mrb[0].mxu0
        %v3953 = vadd.f32 %v3751, %v3952
        %v3954 = vpop.f32.mrb[0].mxu0
        %3955 = vmatprep.mubr.f32.mxu0 0.0
        %v3956 = vand.u32 %v3082, 4294901760
        %v3957 = vsub.f32 %v3082, %v3956
        %v3958 = vand.u32 %v3957, 4294901760
        %3959 = vmatmul.mubr.f32.gmra.mrb[0].mxu0 %v3958
        %v3960 = vpop.f32.mrb[0].mxu0
        %v3961 = vadd.f32 %v3758, %v3960
        %v3962 = vpop.f32.mrb[0].mxu0
        %3963 = vmatprep.mubr.f32.mxu0 0.0
        %v3964 = vand.u32 %v3083, 4294901760
        %v3965 = vsub.f32 %v3083, %v3964
        %v3966 = vand.u32 %v3965, 4294901760
        %3967 = vmatmul.mubr.f32.gmra.mrb[0].mxu0 %v3966
        %v3968 = vpop.f32.mrb[0].mxu0
        %v3969 = vadd.f32 %v3765, %v3968
        %v3970 = vpop.f32.mrb[0].mxu0
        %3971 = vmatprep.mubr.f32.mxu0 0.0
        %v3972 = vand.u32 %v3084, 4294901760
        %v3973 = vsub.f32 %v3084, %v3972
        %v3974 = vand.u32 %v3973, 4294901760
        %3975 = vmatmul.mubr.f32.gmra.mrb[0].mxu0 %v3974
        %v3976 = vpop.f32.mrb[0].mxu0
        %v3977 = vadd.f32 %v3772, %v3976
        %v3978 = vpop.f32.mrb[0].mxu0
        %3979 = vmatprep.mubr.f32.mxu0 0.0
        %v3980 = vand.u32 %v3085, 4294901760
        %v3981 = vsub.f32 %v3085, %v3980
        %v3982 = vand.u32 %v3981, 4294901760
        %3983 = vmatmul.mubr.f32.gmra.mrb[0].mxu0 %v3982
        %v3984 = vpop.f32.mrb[0].mxu0
        %v3985 = vadd.f32 %v3779, %v3984
        %v3986 = vpop.f32.mrb[0].mxu0
        %3987 = vmatprep.mubr.f32.mxu0 0.0
        %v3988 = vand.u32 %v3086, 4294901760
        %v3989 = vsub.f32 %v3086, %v3988
        %v3990 = vand.u32 %v3989, 4294901760
        %3991 = vmatmul.mubr.f32.gmra.mrb[0].mxu0 %v3990
        %v3992 = vpop.f32.mrb[0].mxu0
        %v3993 = vadd.f32 %v3786, %v3992
        %v3994 = vpop.f32.mrb[0].mxu0
        %3995 = vmatprep.mubr.f32.mxu0 0.0
        %v3996 = vand.u32 %v3087, 4294901760
        %v3997 = vsub.f32 %v3087, %v3996
        %v3998 = vand.u32 %v3997, 4294901760
        %3999 = vmatmul.mubr.f32.gmra.mrb[0].mxu0 %v3998
        %v4000 = vpop.f32.mrb[0].mxu0
        %v4001 = vadd.f32 %v3793, %v4000
        %v4002 = vpop.f32.mrb[0].mxu0
        %4003 = vmatprep.mubr.f32.mxu0 0.0
        %v4004 = vand.u32 %v3088, 4294901760
        %v4005 = vsub.f32 %v3088, %v4004
        %v4006 = vand.u32 %v4005, 4294901760
        %4007 = vmatmul.mubr.f32.gmra.mrb[0].mxu0 %v4006
        %v4008 = vpop.f32.mrb[0].mxu0
        %v4009 = vadd.f32 %v3800, %v4008
        %v4010 = vpop.f32.mrb[0].mxu0
        %4011 = vdwg.mxu0
        %4012 = vmatprep.subr.mxu0 0.0
        %v4013 = vand.u32 %v3089, 4294901760
        %v4014 = vsub.f32 %v3089, %v4013
        %v4015 = vand.u32 %v4014, 4294901760
        %4016 = vmatpush1.msra.mxu0 %v4015
        %4017 = vmatprep.subr.mxu0 0.0
        %v4018 = vand.u32 %v3090, 4294901760
        %v4019 = vsub.f32 %v3090, %v4018
        %v4020 = vand.u32 %v4019, 4294901760
        %4021 = vmatpush1.msra.mxu0 %v4020
        %4022 = vmatprep.subr.mxu0 0.0
        %v4023 = vand.u32 %v3091, 4294901760
        %v4024 = vsub.f32 %v3091, %v4023
        %v4025 = vand.u32 %v4024, 4294901760
        %4026 = vmatpush1.msra.mxu0 %v4025
        %4027 = vmatprep.subr.mxu0 0.0
        %v4028 = vand.u32 %v3092, 4294901760
        %v4029 = vsub.f32 %v3092, %v4028
        %v4030 = vand.u32 %v4029, 4294901760
        %4031 = vmatpush1.msra.mxu0 %v4030
        %4032 = vmatprep.subr.mxu0 0.0
        %v4033 = vand.u32 %v3093, 4294901760
        %v4034 = vsub.f32 %v3093, %v4033
        %v4035 = vand.u32 %v4034, 4294901760
        %4036 = vmatpush1.msra.mxu0 %v4035
        %4037 = vmatprep.subr.mxu0 0.0
        %v4038 = vand.u32 %v3094, 4294901760
        %v4039 = vsub.f32 %v3094, %v4038
        %v4040 = vand.u32 %v4039, 4294901760
        %4041 = vmatpush1.msra.mxu0 %v4040
        %4042 = vmatprep.subr.mxu0 0.0
        %v4043 = vand.u32 %v3095, 4294901760
        %v4044 = vsub.f32 %v3095, %v4043
        %v4045 = vand.u32 %v4044, 4294901760
        %4046 = vmatpush1.msra.mxu0 %v4045
        %4047 = vmatprep.subr.mxu0 0.0
        %v4048 = vand.u32 %v3096, 4294901760
        %v4049 = vsub.f32 %v3096, %v4048
        %v4050 = vand.u32 %v4049, 4294901760
        %4051 = vmatpush1.msra.mxu0 %v4050
        %4052 = vmatprep.subr.mxu0 0.0
        %v4053 = vand.u32 %v3097, 4294901760
        %v4054 = vsub.f32 %v3097, %v4053
        %v4055 = vand.u32 %v4054, 4294901760
        %4056 = vmatpush1.msra.mxu0 %v4055
        %4057 = vmatprep.subr.mxu0 0.0
        %v4058 = vand.u32 %v3098, 4294901760
        %v4059 = vsub.f32 %v3098, %v4058
        %v4060 = vand.u32 %v4059, 4294901760
        %4061 = vmatpush1.msra.mxu0 %v4060
        %4062 = vmatprep.subr.mxu0 0.0
        %v4063 = vand.u32 %v3099, 4294901760
        %v4064 = vsub.f32 %v3099, %v4063
        %v4065 = vand.u32 %v4064, 4294901760
        %4066 = vmatpush1.msra.mxu0 %v4065
        %4067 = vmatprep.subr.mxu0 0.0
        %v4068 = vand.u32 %v3100, 4294901760
        %v4069 = vsub.f32 %v3100, %v4068
        %v4070 = vand.u32 %v4069, 4294901760
        %4071 = vmatpush1.msra.mxu0 %v4070
        %4072 = vmatprep.subr.mxu0 0.0
        %v4073 = vand.u32 %v3101, 4294901760
        %v4074 = vsub.f32 %v3101, %v4073
        %v4075 = vand.u32 %v4074, 4294901760
        %4076 = vmatpush1.msra.mxu0 %v4075
        %4077 = vmatprep.subr.mxu0 0.0
        %v4078 = vand.u32 %v3102, 4294901760
        %v4079 = vsub.f32 %v3102, %v4078
        %v4080 = vand.u32 %v4079, 4294901760
        %4081 = vmatpush1.msra.mxu0 %v4080
        %4082 = vmatprep.subr.mxu0 0.0
        %v4083 = vand.u32 %v3103, 4294901760
        %v4084 = vsub.f32 %v3103, %v4083
        %v4085 = vand.u32 %v4084, 4294901760
        %4086 = vmatpush1.msra.mxu0 %v4085
        %4087 = vmatprep.subr.mxu0 0.0
        %v4088 = vand.u32 %v3104, 4294901760
        %v4089 = vsub.f32 %v3104, %v4088
        %v4090 = vand.u32 %v4089, 4294901760
        %4091 = vmatpush1.msra.mxu0 %v4090
        %4092 = vmatprep.subr.mxu0 0.0
        %4093 = vmatpush1.msra.mxu0 0.0
        %4094 = vmatprep.subr.mxu0 0.0
        %4095 = vmatpush1.msra.mxu0 0.0
        %4096 = vmatprep.subr.mxu0 0.0
        %4097 = vmatpush1.msra.mxu0 0.0
        %4098 = vmatprep.subr.mxu0 0.0
        %4099 = vmatpush1.msra.mxu0 0.0
        %4100 = vmatprep.subr.mxu0 0.0
        %4101 = vmatpush1.msra.mxu0 0.0
        %4102 = vmatprep.subr.mxu0 0.0
        %4103 = vmatpush1.msra.mxu0 0.0
        %4104 = vmatprep.subr.mxu0 0.0
        %4105 = vmatpush1.msra.mxu0 0.0
        %4106 = vmatprep.subr.mxu0 0.0
        %4107 = vmatpush1.msra.mxu0 0.0
        %4108 = vmatprep.subr.mxu0 0.0
        %4109 = vmatpush1.msra.mxu0 0.0
        %4110 = vmatprep.subr.mxu0 0.0
        %4111 = vmatpush1.msra.mxu0 0.0
        %4112 = vmatprep.subr.mxu0 0.0
        %4113 = vmatpush1.msra.mxu0 0.0
        %4114 = vmatprep.subr.mxu0 0.0
        %4115 = vmatpush1.msra.mxu0 0.0
        %4116 = vmatprep.subr.mxu0 0.0
        %4117 = vmatpush1.msra.mxu0 0.0
        %4118 = vmatprep.subr.mxu0 0.0
        %4119 = vmatpush1.msra.mxu0 0.0
        %4120 = vmatprep.subr.mxu0 0.0
        %4121 = vmatpush1.msra.mxu0 0.0
        %4122 = vmatprep.subr.mxu0 0.0
        %4123 = vmatpush1.msra.mxu0 0.0
        %4124 = vmatprep.mubr.f32.mxu0 0.0
        %v4125 = vand.u32 %v3073, 4294901760
        %4126 = vmatmul.mubr.f32.gmra.mrb[0].mxu0 %v4125
        %v4127 = vpop.f32.mrb[0].mxu0
        %v4128 = vadd.f32 %v3889, %v4127
        %v4129 = vpop.f32.mrb[0].mxu0
        %4130 = vmatprep.mubr.f32.mxu0 0.0
        %v4131 = vand.u32 %v3074, 4294901760
        %4132 = vmatmul.mubr.f32.gmra.mrb[0].mxu0 %v4131
        %v4133 = vpop.f32.mrb[0].mxu0
        %v4134 = vadd.f32 %v3897, %v4133
        %v4135 = vpop.f32.mrb[0].mxu0
        %4136 = vmatprep.mubr.f32.mxu0 0.0
        %v4137 = vand.u32 %v3075, 4294901760
        %4138 = vmatmul.mubr.f32.gmra.mrb[0].mxu0 %v4137
        %v4139 = vpop.f32.mrb[0].mxu0
        %v4140 = vadd.f32 %v3905, %v4139
        %v4141 = vpop.f32.mrb[0].mxu0
        %4142 = vmatprep.mubr.f32.mxu0 0.0
        %v4143 = vand.u32 %v3076, 4294901760
        %4144 = vmatmul.mubr.f32.gmra.mrb[0].mxu0 %v4143
        %v4145 = vpop.f32.mrb[0].mxu0
        %v4146 = vadd.f32 %v3913, %v4145
        %v4147 = vpop.f32.mrb[0].mxu0
        %4148 = vmatprep.mubr.f32.mxu0 0.0
        %v4149 = vand.u32 %v3077, 4294901760
        %4150 = vmatmul.mubr.f32.gmra.mrb[0].mxu0 %v4149
        %v4151 = vpop.f32.mrb[0].mxu0
        %v4152 = vadd.f32 %v3921, %v4151
        %v4153 = vpop.f32.mrb[0].mxu0
        %4154 = vmatprep.mubr.f32.mxu0 0.0
        %v4155 = vand.u32 %v3078, 4294901760
        %4156 = vmatmul.mubr.f32.gmra.mrb[0].mxu0 %v4155
        %v4157 = vpop.f32.mrb[0].mxu0
        %v4158 = vadd.f32 %v3929, %v4157
        %v4159 = vpop.f32.mrb[0].mxu0
        %4160 = vmatprep.mubr.f32.mxu0 0.0
        %v4161 = vand.u32 %v3079, 4294901760
        %4162 = vmatmul.mubr.f32.gmra.mrb[0].mxu0 %v4161
        %v4163 = vpop.f32.mrb[0].mxu0
        %v4164 = vadd.f32 %v3937, %v4163
        %v4165 = vpop.f32.mrb[0].mxu0
        %4166 = vmatprep.mubr.f32.mxu0 0.0
        %v4167 = vand.u32 %v3080, 4294901760
        %4168 = vmatmul.mubr.f32.gmra.mrb[0].mxu0 %v4167
        %v4169 = vpop.f32.mrb[0].mxu0
        %v4170 = vadd.f32 %v3945, %v4169
        %v4171 = vpop.f32.mrb[0].mxu0
        %4172 = vmatprep.mubr.f32.mxu0 0.0
        %v4173 = vand.u32 %v3081, 4294901760
        %4174 = vmatmul.mubr.f32.gmra.mrb[0].mxu0 %v4173
        %v4175 = vpop.f32.mrb[0].mxu0
        %v4176 = vadd.f32 %v3953, %v4175
        %v4177 = vpop.f32.mrb[0].mxu0
        %4178 = vmatprep.mubr.f32.mxu0 0.0
        %v4179 = vand.u32 %v3082, 4294901760
        %4180 = vmatmul.mubr.f32.gmra.mrb[0].mxu0 %v4179
        %v4181 = vpop.f32.mrb[0].mxu0
        %v4182 = vadd.f32 %v3961, %v4181
        %v4183 = vpop.f32.mrb[0].mxu0
        %4184 = vmatprep.mubr.f32.mxu0 0.0
        %v4185 = vand.u32 %v3083, 4294901760
        %4186 = vmatmul.mubr.f32.gmra.mrb[0].mxu0 %v4185
        %v4187 = vpop.f32.mrb[0].mxu0
        %v4188 = vadd.f32 %v3969, %v4187
        %v4189 = vpop.f32.mrb[0].mxu0
        %4190 = vmatprep.mubr.f32.mxu0 0.0
        %v4191 = vand.u32 %v3084, 4294901760
        %4192 = vmatmul.mubr.f32.gmra.mrb[0].mxu0 %v4191
        %v4193 = vpop.f32.mrb[0].mxu0
        %v4194 = vadd.f32 %v3977, %v4193
        %v4195 = vpop.f32.mrb[0].mxu0
        %4196 = vmatprep.mubr.f32.mxu0 0.0
        %v4197 = vand.u32 %v3085, 4294901760
        %4198 = vmatmul.mubr.f32.gmra.mrb[0].mxu0 %v4197
        %v4199 = vpop.f32.mrb[0].mxu0
        %v4200 = vadd.f32 %v3985, %v4199
        %v4201 = vpop.f32.mrb[0].mxu0
        %4202 = vmatprep.mubr.f32.mxu0 0.0
        %v4203 = vand.u32 %v3086, 4294901760
        %4204 = vmatmul.mubr.f32.gmra.mrb[0].mxu0 %v4203
        %v4205 = vpop.f32.mrb[0].mxu0
        %v4206 = vadd.f32 %v3993, %v4205
        %v4207 = vpop.f32.mrb[0].mxu0
        %4208 = vmatprep.mubr.f32.mxu0 0.0
        %v4209 = vand.u32 %v3087, 4294901760
        %4210 = vmatmul.mubr.f32.gmra.mrb[0].mxu0 %v4209
        %v4211 = vpop.f32.mrb[0].mxu0
        %v4212 = vadd.f32 %v4001, %v4211
        %v4213 = vpop.f32.mrb[0].mxu0
        %4214 = vmatprep.mubr.f32.mxu0 0.0
        %v4215 = vand.u32 %v3088, 4294901760
        %4216 = vmatmul.mubr.f32.gmra.mrb[0].mxu0 %v4215
        %v4217 = vpop.f32.mrb[0].mxu0
        %v4218 = vadd.f32 %v4009, %v4217
        %v4219 = vpop.f32.mrb[0].mxu0
        %4220 = vdwg.mxu0
        %4221 = vmatprep.subr.mxu0 0.0
        %v4222 = vand.u32 %v3089, 4294901760
        %4223 = vmatpush1.msra.mxu0 %v4222
        %4224 = vmatprep.subr.mxu0 0.0
        %v4225 = vand.u32 %v3090, 4294901760
        %4226 = vmatpush1.msra.mxu0 %v4225
        %4227 = vmatprep.subr.mxu0 0.0
        %v4228 = vand.u32 %v3091, 4294901760
        %4229 = vmatpush1.msra.mxu0 %v4228
        %4230 = vmatprep.subr.mxu0 0.0
        %v4231 = vand.u32 %v3092, 4294901760
        %4232 = vmatpush1.msra.mxu0 %v4231
        %4233 = vmatprep.subr.mxu0 0.0
        %v4234 = vand.u32 %v3093, 4294901760
        %4235 = vmatpush1.msra.mxu0 %v4234
        %4236 = vmatprep.subr.mxu0 0.0
        %v4237 = vand.u32 %v3094, 4294901760
        %4238 = vmatpush1.msra.mxu0 %v4237
        %4239 = vmatprep.subr.mxu0 0.0
        %v4240 = vand.u32 %v3095, 4294901760
        %4241 = vmatpush1.msra.mxu0 %v4240
        %4242 = vmatprep.subr.mxu0 0.0
        %v4243 = vand.u32 %v3096, 4294901760
        %4244 = vmatpush1.msra.mxu0 %v4243
        %4245 = vmatprep.subr.mxu0 0.0
        %v4246 = vand.u32 %v3097, 4294901760
        %4247 = vmatpush1.msra.mxu0 %v4246
        %4248 = vmatprep.subr.mxu0 0.0
        %v4249 = vand.u32 %v3098, 4294901760
        %4250 = vmatpush1.msra.mxu0 %v4249
        %4251 = vmatprep.subr.mxu0 0.0
        %v4252 = vand.u32 %v3099, 4294901760
        %4253 = vmatpush1.msra.mxu0 %v4252
        %4254 = vmatprep.subr.mxu0 0.0
        %v4255 = vand.u32 %v3100, 4294901760
        %4256 = vmatpush1.msra.mxu0 %v4255
        %4257 = vmatprep.subr.mxu0 0.0
        %v4258 = vand.u32 %v3101, 4294901760
        %4259 = vmatpush1.msra.mxu0 %v4258
        %4260 = vmatprep.subr.mxu0 0.0
        %v4261 = vand.u32 %v3102, 4294901760
        %4262 = vmatpush1.msra.mxu0 %v4261
        %4263 = vmatprep.subr.mxu0 0.0
        %v4264 = vand.u32 %v3103, 4294901760
        %4265 = vmatpush1.msra.mxu0 %v4264
        %4266 = vmatprep.subr.mxu0 0.0
        %v4267 = vand.u32 %v3104, 4294901760
        %4268 = vmatpush1.msra.mxu0 %v4267
        %4269 = vmatprep.subr.mxu0 0.0
        %4270 = vmatpush1.msra.mxu0 0.0
        %4271 = vmatprep.subr.mxu0 0.0
        %4272 = vmatpush1.msra.mxu0 0.0
        %4273 = vmatprep.subr.mxu0 0.0
        %4274 = vmatpush1.msra.mxu0 0.0
        %4275 = vmatprep.subr.mxu0 0.0
        %4276 = vmatpush1.msra.mxu0 0.0
        %4277 = vmatprep.subr.mxu0 0.0
        %4278 = vmatpush1.msra.mxu0 0.0
        %4279 = vmatprep.subr.mxu0 0.0
        %4280 = vmatpush1.msra.mxu0 0.0
        %4281 = vmatprep.subr.mxu0 0.0
        %4282 = vmatpush1.msra.mxu0 0.0
        %4283 = vmatprep.subr.mxu0 0.0
        %4284 = vmatpush1.msra.mxu0 0.0
        %4285 = vmatprep.subr.mxu0 0.0
        %4286 = vmatpush1.msra.mxu0 0.0
        %4287 = vmatprep.subr.mxu0 0.0
        %4288 = vmatpush1.msra.mxu0 0.0
        %4289 = vmatprep.subr.mxu0 0.0
        %4290 = vmatpush1.msra.mxu0 0.0
        %4291 = vmatprep.subr.mxu0 0.0
        %4292 = vmatpush1.msra.mxu0 0.0
        %4293 = vmatprep.subr.mxu0 0.0
        %4294 = vmatpush1.msra.mxu0 0.0
        %4295 = vmatprep.subr.mxu0 0.0
        %4296 = vmatpush1.msra.mxu0 0.0
        %4297 = vmatprep.subr.mxu0 0.0
        %4298 = vmatpush1.msra.mxu0 0.0
        %4299 = vmatprep.subr.mxu0 0.0
        %4300 = vmatpush1.msra.mxu0 0.0
        %4301 = vmatprep.mubr.f32.mxu0 0.0
        %v4302 = vand.u32 %v3073, 4294901760
        %4303 = vmatmul.mubr.f32.gmra.mrb[0].mxu0 %v4302
        %v4304 = vpop.f32.mrb[0].mxu0
        %v4305 = vadd.f32 %v4128, %v4304
        %v4306 = vpop.f32.mrb[0].mxu0
        %4307 = vmatprep.mubr.f32.mxu0 0.0
        %v4308 = vand.u32 %v3074, 4294901760
        %4309 = vmatmul.mubr.f32.gmra.mrb[0].mxu0 %v4308
        %v4310 = vpop.f32.mrb[0].mxu0
        %v4311 = vadd.f32 %v4134, %v4310
        %v4312 = vpop.f32.mrb[0].mxu0
        %4313 = vmatprep.mubr.f32.mxu0 0.0
        %v4314 = vand.u32 %v3075, 4294901760
        %4315 = vmatmul.mubr.f32.gmra.mrb[0].mxu0 %v4314
        %v4316 = vpop.f32.mrb[0].mxu0
        %v4317 = vadd.f32 %v4140, %v4316
        %v4318 = vpop.f32.mrb[0].mxu0
        %4319 = vmatprep.mubr.f32.mxu0 0.0
        %v4320 = vand.u32 %v3076, 4294901760
        %4321 = vmatmul.mubr.f32.gmra.mrb[0].mxu0 %v4320
        %v4322 = vpop.f32.mrb[0].mxu0
        %v4323 = vadd.f32 %v4146, %v4322
        %v4324 = vpop.f32.mrb[0].mxu0
        %4325 = vmatprep.mubr.f32.mxu0 0.0
        %v4326 = vand.u32 %v3077, 4294901760
        %4327 = vmatmul.mubr.f32.gmra.mrb[0].mxu0 %v4326
        %v4328 = vpop.f32.mrb[0].mxu0
        %v4329 = vadd.f32 %v4152, %v4328
        %v4330 = vpop.f32.mrb[0].mxu0
        %4331 = vmatprep.mubr.f32.mxu0 0.0
        %v4332 = vand.u32 %v3078, 4294901760
        %4333 = vmatmul.mubr.f32.gmra.mrb[0].mxu0 %v4332
        %v4334 = vpop.f32.mrb[0].mxu0
        %v4335 = vadd.f32 %v4158, %v4334
        %v4336 = vpop.f32.mrb[0].mxu0
        %4337 = vmatprep.mubr.f32.mxu0 0.0
        %v4338 = vand.u32 %v3079, 4294901760
        %4339 = vmatmul.mubr.f32.gmra.mrb[0].mxu0 %v4338
        %v4340 = vpop.f32.mrb[0].mxu0
        %v4341 = vadd.f32 %v4164, %v4340
        %v4342 = vpop.f32.mrb[0].mxu0
        %4343 = vmatprep.mubr.f32.mxu0 0.0
        %v4344 = vand.u32 %v3080, 4294901760
        %4345 = vmatmul.mubr.f32.gmra.mrb[0].mxu0 %v4344
        %v4346 = vpop.f32.mrb[0].mxu0
        %v4347 = vadd.f32 %v4170, %v4346
        %v4348 = vpop.f32.mrb[0].mxu0
        %4349 = vmatprep.mubr.f32.mxu0 0.0
        %v4350 = vand.u32 %v3081, 4294901760
        %4351 = vmatmul.mubr.f32.gmra.mrb[0].mxu0 %v4350
        %v4352 = vpop.f32.mrb[0].mxu0
        %v4353 = vadd.f32 %v4176, %v4352
        %v4354 = vpop.f32.mrb[0].mxu0
        %4355 = vmatprep.mubr.f32.mxu0 0.0
        %v4356 = vand.u32 %v3082, 4294901760
        %4357 = vmatmul.mubr.f32.gmra.mrb[0].mxu0 %v4356
        %v4358 = vpop.f32.mrb[0].mxu0
        %v4359 = vadd.f32 %v4182, %v4358
        %v4360 = vpop.f32.mrb[0].mxu0
        %4361 = vmatprep.mubr.f32.mxu0 0.0
        %v4362 = vand.u32 %v3083, 4294901760
        %4363 = vmatmul.mubr.f32.gmra.mrb[0].mxu0 %v4362
        %v4364 = vpop.f32.mrb[0].mxu0
        %v4365 = vadd.f32 %v4188, %v4364
        %v4366 = vpop.f32.mrb[0].mxu0
        %4367 = vmatprep.mubr.f32.mxu0 0.0
        %v4368 = vand.u32 %v3084, 4294901760
        %4369 = vmatmul.mubr.f32.gmra.mrb[0].mxu0 %v4368
        %v4370 = vpop.f32.mrb[0].mxu0
        %v4371 = vadd.f32 %v4194, %v4370
        %v4372 = vpop.f32.mrb[0].mxu0
        %4373 = vmatprep.mubr.f32.mxu0 0.0
        %v4374 = vand.u32 %v3085, 4294901760
        %4375 = vmatmul.mubr.f32.gmra.mrb[0].mxu0 %v4374
        %v4376 = vpop.f32.mrb[0].mxu0
        %v4377 = vadd.f32 %v4200, %v4376
        %v4378 = vpop.f32.mrb[0].mxu0
        %4379 = vmatprep.mubr.f32.mxu0 0.0
        %v4380 = vand.u32 %v3086, 4294901760
        %4381 = vmatmul.mubr.f32.gmra.mrb[0].mxu0 %v4380
        %v4382 = vpop.f32.mrb[0].mxu0
        %v4383 = vadd.f32 %v4206, %v4382
        %v4384 = vpop.f32.mrb[0].mxu0
        %4385 = vmatprep.mubr.f32.mxu0 0.0
        %v4386 = vand.u32 %v3087, 4294901760
        %4387 = vmatmul.mubr.f32.gmra.mrb[0].mxu0 %v4386
        %v4388 = vpop.f32.mrb[0].mxu0
        %v4389 = vadd.f32 %v4212, %v4388
        %v4390 = vpop.f32.mrb[0].mxu0
        %4391 = vmatprep.mubr.f32.mxu0 0.0
        %v4392 = vand.u32 %v3088, 4294901760
        %4393 = vmatmul.mubr.f32.gmra.mrb[0].mxu0 %v4392
        %v4394 = vpop.f32.mrb[0].mxu0
        %v4395 = vadd.f32 %v4218, %v4394
        %v4396 = vpop.f32.mrb[0].mxu0
        %4397 = vdwg.mxu0
        %v4398 = vadd.f32 %v1448, %v4305
        %v4399 = vadd.f32 %v1454, %v4311
        %v4400 = vadd.f32 %v1460, %v4317
        %v4401 = vadd.f32 %v1466, %v4323
        %v4402 = vadd.f32 %v1472, %v4329
        %v4403 = vadd.f32 %v1478, %v4335
        %v4404 = vadd.f32 %v1484, %v4341
        %v4405 = vadd.f32 %v1490, %v4347
        %v4406 = vadd.f32 %v1496, %v4353
        %v4407 = vadd.f32 %v1502, %v4359
        %v4408 = vadd.f32 %v1508, %v4365
        %v4409 = vadd.f32 %v1514, %v4371
        %v4410 = vadd.f32 %v1520, %v4377
        %v4411 = vadd.f32 %v1526, %v4383
        %v4412 = vadd.f32 %v1532, %v4389
        %v4413 = vadd.f32 %v1538, %v4395
        %s4414 = scalar_lea.vmem %s3, 1
        %v4415 = vld [vmem:[%s4414] sm:$0x1]
        %s4416 = scalar_lea.vmem %s4, 1
        %v4417 = vld [vmem:[%s4416] sm:$0x1]
        %4418 = vadd.xlane.f32.xlu0 %v4398
        %v4419 = vpop.xlane.xlu0 %4418
        %4420 = vadd.xlane.f32.xlu0 %v4399
        %v4421 = vpop.xlane.xlu0 %4420
        %4422 = vadd.xlane.f32.xlu0 %v4400
        %v4423 = vpop.xlane.xlu0 %4422
        %4424 = vadd.xlane.f32.xlu0 %v4401
        %v4425 = vpop.xlane.xlu0 %4424
        %4426 = vadd.xlane.f32.xlu0 %v4402
        %v4427 = vpop.xlane.xlu0 %4426
        %4428 = vadd.xlane.f32.xlu0 %v4403
        %v4429 = vpop.xlane.xlu0 %4428
        %4430 = vadd.xlane.f32.xlu0 %v4404
        %v4431 = vpop.xlane.xlu0 %4430
        %4432 = vadd.xlane.f32.xlu0 %v4405
        %v4433 = vpop.xlane.xlu0 %4432
        %4434 = vadd.xlane.f32.xlu0 %v4406
        %v4435 = vpop.xlane.xlu0 %4434
        %4436 = vadd.xlane.f32.xlu0 %v4407
        %v4437 = vpop.xlane.xlu0 %4436
        %4438 = vadd.xlane.f32.xlu0 %v4408
        %v4439 = vpop.xlane.xlu0 %4438
        %4440 = vadd.xlane.f32.xlu0 %v4409
        %v4441 = vpop.xlane.xlu0 %4440
        %4442 = vadd.xlane.f32.xlu0 %v4410
        %v4443 = vpop.xlane.xlu0 %4442
        %4444 = vadd.xlane.f32.xlu0 %v4411
        %v4445 = vpop.xlane.xlu0 %4444
        %4446 = vadd.xlane.f32.xlu0 %v4412
        %v4447 = vpop.xlane.xlu0 %4446
        %4448 = vadd.xlane.f32.xlu0 %v4413
        %v4449 = vpop.xlane.xlu0 %4448
        %v4450 = vmul.f32 %v4419, %v1575
        %v4451 = vmul.f32 %v4421, %v1575
        %v4452 = vmul.f32 %v4423, %v1575
        %v4453 = vmul.f32 %v4425, %v1575
        %v4454 = vmul.f32 %v4427, %v1575
        %v4455 = vmul.f32 %v4429, %v1575
        %v4456 = vmul.f32 %v4431, %v1575
        %v4457 = vmul.f32 %v4433, %v1575
        %v4458 = vmul.f32 %v4435, %v1575
        %v4459 = vmul.f32 %v4437, %v1575
        %v4460 = vmul.f32 %v4439, %v1575
        %v4461 = vmul.f32 %v4441, %v1575
        %v4462 = vmul.f32 %v4443, %v1575
        %v4463 = vmul.f32 %v4445, %v1575
        %v4464 = vmul.f32 %v4447, %v1575
        %v4465 = vmul.f32 %v4449, %v1575
        %v4466 = vsub.f32 %v4398, %v4450
        %v4467 = vsub.f32 %v4399, %v4451
        %v4468 = vsub.f32 %v4400, %v4452
        %v4469 = vsub.f32 %v4401, %v4453
        %v4470 = vsub.f32 %v4402, %v4454
        %v4471 = vsub.f32 %v4403, %v4455
        %v4472 = vsub.f32 %v4404, %v4456
        %v4473 = vsub.f32 %v4405, %v4457
        %v4474 = vsub.f32 %v4406, %v4458
        %v4475 = vsub.f32 %v4407, %v4459
        %v4476 = vsub.f32 %v4408, %v4460
        %v4477 = vsub.f32 %v4409, %v4461
        %v4478 = vsub.f32 %v4410, %v4462
        %v4479 = vsub.f32 %v4411, %v4463
        %v4480 = vsub.f32 %v4412, %v4464
        %v4481 = vsub.f32 %v4413, %v4465
        %v4482 = vmul.f32 %v4466, %v4466
        %v4483 = vmul.f32 %v4467, %v4467
        %v4484 = vmul.f32 %v4468, %v4468
        %v4485 = vmul.f32 %v4469, %v4469
        %v4486 = vmul.f32 %v4470, %v4470
        %v4487 = vmul.f32 %v4471, %v4471
        %v4488 = vmul.f32 %v4472, %v4472
        %v4489 = vmul.f32 %v4473, %v4473
        %v4490 = vmul.f32 %v4474, %v4474
        %v4491 = vmul.f32 %v4475, %v4475
        %v4492 = vmul.f32 %v4476, %v4476
        %v4493 = vmul.f32 %v4477, %v4477
        %v4494 = vmul.f32 %v4478, %v4478
        %v4495 = vmul.f32 %v4479, %v4479
        %v4496 = vmul.f32 %v4480, %v4480
        %v4497 = vmul.f32 %v4481, %v4481
        %4498 = vadd.xlane.f32.xlu0 %v4482
        %v4499 = vpop.xlane.xlu0 %4498
        %4500 = vadd.xlane.f32.xlu0 %v4483
        %v4501 = vpop.xlane.xlu0 %4500
        %4502 = vadd.xlane.f32.xlu0 %v4484
        %v4503 = vpop.xlane.xlu0 %4502
        %4504 = vadd.xlane.f32.xlu0 %v4485
        %v4505 = vpop.xlane.xlu0 %4504
        %4506 = vadd.xlane.f32.xlu0 %v4486
        %v4507 = vpop.xlane.xlu0 %4506
        %4508 = vadd.xlane.f32.xlu0 %v4487
        %v4509 = vpop.xlane.xlu0 %4508
        %4510 = vadd.xlane.f32.xlu0 %v4488
        %v4511 = vpop.xlane.xlu0 %4510
        %4512 = vadd.xlane.f32.xlu0 %v4489
        %v4513 = vpop.xlane.xlu0 %4512
        %4514 = vadd.xlane.f32.xlu0 %v4490
        %v4515 = vpop.xlane.xlu0 %4514
        %4516 = vadd.xlane.f32.xlu0 %v4491
        %v4517 = vpop.xlane.xlu0 %4516
        %4518 = vadd.xlane.f32.xlu0 %v4492
        %v4519 = vpop.xlane.xlu0 %4518
        %4520 = vadd.xlane.f32.xlu0 %v4493
        %v4521 = vpop.xlane.xlu0 %4520
        %4522 = vadd.xlane.f32.xlu0 %v4494
        %v4523 = vpop.xlane.xlu0 %4522
        %4524 = vadd.xlane.f32.xlu0 %v4495
        %v4525 = vpop.xlane.xlu0 %4524
        %4526 = vadd.xlane.f32.xlu0 %v4496
        %v4527 = vpop.xlane.xlu0 %4526
        %4528 = vadd.xlane.f32.xlu0 %v4497
        %v4529 = vpop.xlane.xlu0 %4528
        %v4530 = vmul.f32 %v4499, %v1575
        %v4531 = vmul.f32 %v4501, %v1575
        %v4532 = vmul.f32 %v4503, %v1575
        %v4533 = vmul.f32 %v4505, %v1575
        %v4534 = vmul.f32 %v4507, %v1575
        %v4535 = vmul.f32 %v4509, %v1575
        %v4536 = vmul.f32 %v4511, %v1575
        %v4537 = vmul.f32 %v4513, %v1575
        %v4538 = vmul.f32 %v4515, %v1575
        %v4539 = vmul.f32 %v4517, %v1575
        %v4540 = vmul.f32 %v4519, %v1575
        %v4541 = vmul.f32 %v4521, %v1575
        %v4542 = vmul.f32 %v4523, %v1575
        %v4543 = vmul.f32 %v4525, %v1575
        %v4544 = vmul.f32 %v4527, %v1575
        %v4545 = vmul.f32 %v4529, %v1575
        %v4546 = vadd.f32 %v4530, 1e-05
        %v4547 = vadd.f32 %v4531, 1e-05
        %v4548 = vadd.f32 %v4532, 1e-05
        %v4549 = vadd.f32 %v4533, 1e-05
        %v4550 = vadd.f32 %v4534, 1e-05
        %v4551 = vadd.f32 %v4535, 1e-05
        %v4552 = vadd.f32 %v4536, 1e-05
        %v4553 = vadd.f32 %v4537, 1e-05
        %v4554 = vadd.f32 %v4538, 1e-05
        %v4555 = vadd.f32 %v4539, 1e-05
        %v4556 = vadd.f32 %v4540, 1e-05
        %v4557 = vadd.f32 %v4541, 1e-05
        %v4558 = vadd.f32 %v4542, 1e-05
        %v4559 = vadd.f32 %v4543, 1e-05
        %v4560 = vadd.f32 %v4544, 1e-05
        %v4561 = vadd.f32 %v4545, 1e-05
        %v4562 = vrsqrt.pop %v4546
        %v4563 = vrsqrt.pop %v4547
        %v4564 = vrsqrt.pop %v4548
        %v4565 = vrsqrt.pop %v4549
        %v4566 = vrsqrt.pop %v4550
        %v4567 = vrsqrt.pop %v4551
        %v4568 = vrsqrt.pop %v4552
        %v4569 = vrsqrt.pop %v4553
        %v4570 = vrsqrt.pop %v4554
        %v4571 = vrsqrt.pop %v4555
        %v4572 = vrsqrt.pop %v4556
        %v4573 = vrsqrt.pop %v4557
        %v4574 = vrsqrt.pop %v4558
        %v4575 = vrsqrt.pop %v4559
        %v4576 = vrsqrt.pop %v4560
        %v4577 = vrsqrt.pop %v4561
        %v4578 = vmul.f32 %v4466, %v4562
        %v4579 = vmul.f32 %v4467, %v4563
        %v4580 = vmul.f32 %v4468, %v4564
        %v4581 = vmul.f32 %v4469, %v4565
        %v4582 = vmul.f32 %v4470, %v4566
        %v4583 = vmul.f32 %v4471, %v4567
        %v4584 = vmul.f32 %v4472, %v4568
        %v4585 = vmul.f32 %v4473, %v4569
        %v4586 = vmul.f32 %v4474, %v4570
        %v4587 = vmul.f32 %v4475, %v4571
        %v4588 = vmul.f32 %v4476, %v4572
        %v4589 = vmul.f32 %v4477, %v4573
        %v4590 = vmul.f32 %v4478, %v4574
        %v4591 = vmul.f32 %v4479, %v4575
        %v4592 = vmul.f32 %v4480, %v4576
        %v4593 = vmul.f32 %v4481, %v4577
        %v4595 = vlaneseq
        %v4596 = vshrl.u32 %v4595, 7
        %v4597 = vsub.s32 0, %v4596
        %v4598 = vrot.slane %v4415, %v4597
        %v4600 = vmul.f32 %v4578, %v4598
        %v4601 = vmul.f32 %v4579, %v4598
        %v4602 = vmul.f32 %v4580, %v4598
        %v4603 = vmul.f32 %v4581, %v4598
        %v4604 = vmul.f32 %v4582, %v4598
        %v4605 = vmul.f32 %v4583, %v4598
        %v4606 = vmul.f32 %v4584, %v4598
        %v4607 = vmul.f32 %v4585, %v4598
        %v4608 = vmul.f32 %v4586, %v4598
        %v4609 = vmul.f32 %v4587, %v4598
        %v4610 = vmul.f32 %v4588, %v4598
        %v4611 = vmul.f32 %v4589, %v4598
        %v4612 = vmul.f32 %v4590, %v4598
        %v4613 = vmul.f32 %v4591, %v4598
        %v4614 = vmul.f32 %v4592, %v4598
        %v4615 = vmul.f32 %v4593, %v4598
        %v4617 = vlaneseq
        %v4618 = vshrl.u32 %v4617, 7
        %v4619 = vsub.s32 0, %v4618
        %v4620 = vrot.slane %v4417, %v4619
        %v4622 = vadd.f32 %v4600, %v4620
        %v4623 = vadd.f32 %v4601, %v4620
        %v4624 = vadd.f32 %v4602, %v4620
        %v4625 = vadd.f32 %v4603, %v4620
        %v4626 = vadd.f32 %v4604, %v4620
        %v4627 = vadd.f32 %v4605, %v4620
        %v4628 = vadd.f32 %v4606, %v4620
        %v4629 = vadd.f32 %v4607, %v4620
        %v4630 = vadd.f32 %v4608, %v4620
        %v4631 = vadd.f32 %v4609, %v4620
        %v4632 = vadd.f32 %v4610, %v4620
        %v4633 = vadd.f32 %v4611, %v4620
        %v4634 = vadd.f32 %v4612, %v4620
        %v4635 = vadd.f32 %v4613, %v4620
        %v4636 = vadd.f32 %v4614, %v4620
        %v4637 = vadd.f32 %v4615, %v4620
        %s4638 = scalar_lea.vmem %s5, 128
        %v4639 = vld [vmem:[%s4638] sm:$0xff]
        %v4640 = vld [vmem:[%s4638 + $0x8] sm:$0xff]
        %v4641 = vld [vmem:[%s4638 + $0x10] sm:$0xff]
        %v4642 = vld [vmem:[%s4638 + $0x18] sm:$0xff]
        %v4643 = vld [vmem:[%s4638 + $0x20] sm:$0xff]
        %v4644 = vld [vmem:[%s4638 + $0x28] sm:$0xff]
        %v4645 = vld [vmem:[%s4638 + $0x30] sm:$0xff]
        %v4646 = vld [vmem:[%s4638 + $0x38] sm:$0xff]
        %v4647 = vld [vmem:[%s4638 + $0x40] sm:$0xff]
        %v4648 = vld [vmem:[%s4638 + $0x48] sm:$0xff]
        %v4649 = vld [vmem:[%s4638 + $0x50] sm:$0xff]
        %v4650 = vld [vmem:[%s4638 + $0x58] sm:$0xff]
        %v4651 = vld [vmem:[%s4638 + $0x60] sm:$0xff]
        %v4652 = vld [vmem:[%s4638 + $0x68] sm:$0xff]
        %v4653 = vld [vmem:[%s4638 + $0x70] sm:$0xff]
        %v4654 = vld [vmem:[%s4638 + $0x78] sm:$0xff]
        %s4655 = scalar_lea.vmem %s6, 1
        %v4656 = vld [vmem:[%s4655] sm:$0x1]
        %v4658 = vlaneseq
        %v4659 = vshrl.u32 %v4658, 7
        %v4660 = vsub.s32 0, %v4659
        %v4661 = vrot.slane %v4656, %v4660
        %4663 = vmatprep.subr.mxu0 0.0
        %v4664 = vand.u32 %v4639, 4294901760
        %4665 = vmatpush1.msra.mxu0 %v4664
        %4666 = vmatprep.subr.mxu0 0.0
        %v4667 = vand.u32 %v4640, 4294901760
        %4668 = vmatpush1.msra.mxu0 %v4667
        %4669 = vmatprep.subr.mxu0 0.0
        %v4670 = vand.u32 %v4641, 4294901760
        %4671 = vmatpush1.msra.mxu0 %v4670
        %4672 = vmatprep.subr.mxu0 0.0
        %v4673 = vand.u32 %v4642, 4294901760
        %4674 = vmatpush1.msra.mxu0 %v4673
        %4675 = vmatprep.subr.mxu0 0.0
        %v4676 = vand.u32 %v4643, 4294901760
        %4677 = vmatpush1.msra.mxu0 %v4676
        %4678 = vmatprep.subr.mxu0 0.0
        %v4679 = vand.u32 %v4644, 4294901760
        %4680 = vmatpush1.msra.mxu0 %v4679
        %4681 = vmatprep.subr.mxu0 0.0
        %v4682 = vand.u32 %v4645, 4294901760
        %4683 = vmatpush1.msra.mxu0 %v4682
        %4684 = vmatprep.subr.mxu0 0.0
        %v4685 = vand.u32 %v4646, 4294901760
        %4686 = vmatpush1.msra.mxu0 %v4685
        %4687 = vmatprep.subr.mxu0 0.0
        %v4688 = vand.u32 %v4647, 4294901760
        %4689 = vmatpush1.msra.mxu0 %v4688
        %4690 = vmatprep.subr.mxu0 0.0
        %v4691 = vand.u32 %v4648, 4294901760
        %4692 = vmatpush1.msra.mxu0 %v4691
        %4693 = vmatprep.subr.mxu0 0.0
        %v4694 = vand.u32 %v4649, 4294901760
        %4695 = vmatpush1.msra.mxu0 %v4694
        %4696 = vmatprep.subr.mxu0 0.0
        %v4697 = vand.u32 %v4650, 4294901760
        %4698 = vmatpush1.msra.mxu0 %v4697
        %4699 = vmatprep.subr.mxu0 0.0
        %v4700 = vand.u32 %v4651, 4294901760
        %4701 = vmatpush1.msra.mxu0 %v4700
        %4702 = vmatprep.subr.mxu0 0.0
        %v4703 = vand.u32 %v4652, 4294901760
        %4704 = vmatpush1.msra.mxu0 %v4703
        %4705 = vmatprep.subr.mxu0 0.0
        %v4706 = vand.u32 %v4653, 4294901760
        %4707 = vmatpush1.msra.mxu0 %v4706
        %4708 = vmatprep.subr.mxu0 0.0
        %v4709 = vand.u32 %v4654, 4294901760
        %4710 = vmatpush1.msra.mxu0 %v4709
        %4711 = vmatprep.subr.mxu0 0.0
        %4712 = vmatpush1.msra.mxu0 0.0
        %4713 = vmatprep.subr.mxu0 0.0
        %4714 = vmatpush1.msra.mxu0 0.0
        %4715 = vmatprep.subr.mxu0 0.0
        %4716 = vmatpush1.msra.mxu0 0.0
        %4717 = vmatprep.subr.mxu0 0.0
        %4718 = vmatpush1.msra.mxu0 0.0
        %4719 = vmatprep.subr.mxu0 0.0
        %4720 = vmatpush1.msra.mxu0 0.0
        %4721 = vmatprep.subr.mxu0 0.0
        %4722 = vmatpush1.msra.mxu0 0.0
        %4723 = vmatprep.subr.mxu0 0.0
        %4724 = vmatpush1.msra.mxu0 0.0
        %4725 = vmatprep.subr.mxu0 0.0
        %4726 = vmatpush1.msra.mxu0 0.0
        %4727 = vmatprep.subr.mxu0 0.0
        %4728 = vmatpush1.msra.mxu0 0.0
        %4729 = vmatprep.subr.mxu0 0.0
        %4730 = vmatpush1.msra.mxu0 0.0
        %4731 = vmatprep.subr.mxu0 0.0
        %4732 = vmatpush1.msra.mxu0 0.0
        %4733 = vmatprep.subr.mxu0 0.0
        %4734 = vmatpush1.msra.mxu0 0.0
        %4735 = vmatprep.subr.mxu0 0.0
        %4736 = vmatpush1.msra.mxu0 0.0
        %4737 = vmatprep.subr.mxu0 0.0
        %4738 = vmatpush1.msra.mxu0 0.0
        %4739 = vmatprep.subr.mxu0 0.0
        %4740 = vmatpush1.msra.mxu0 0.0
        %4741 = vmatprep.subr.mxu0 0.0
        %4742 = vmatpush1.msra.mxu0 0.0
        %4743 = vmatprep.mubr.f32.mxu0 0.0
        %v4744 = vand.u32 %v4622, 4294901760
        %v4745 = vsub.f32 %v4622, %v4744
        %v4746 = vand.u32 %v4745, 4294901760
        %v4747 = vsub.f32 %v4745, %v4746
        %v4748 = vand.u32 %v4747, 4294901760
        %4749 = vmatmul.mubr.f32.gmra.mrb[0].mxu0 %v4748
        %v4750 = vpop.f32.mrb[0].mxu0
        %v4751 = vadd.f32 %v4661, %v4750
        %v4752 = vpop.f32.mrb[0].mxu0
        %4753 = vmatprep.mubr.f32.mxu0 0.0
        %v4754 = vand.u32 %v4623, 4294901760
        %v4755 = vsub.f32 %v4623, %v4754
        %v4756 = vand.u32 %v4755, 4294901760
        %v4757 = vsub.f32 %v4755, %v4756
        %v4758 = vand.u32 %v4757, 4294901760
        %4759 = vmatmul.mubr.f32.gmra.mrb[0].mxu0 %v4758
        %v4760 = vpop.f32.mrb[0].mxu0
        %v4761 = vadd.f32 %v4661, %v4760
        %v4762 = vpop.f32.mrb[0].mxu0
        %4763 = vmatprep.mubr.f32.mxu0 0.0
        %v4764 = vand.u32 %v4624, 4294901760
        %v4765 = vsub.f32 %v4624, %v4764
        %v4766 = vand.u32 %v4765, 4294901760
        %v4767 = vsub.f32 %v4765, %v4766
        %v4768 = vand.u32 %v4767, 4294901760
        %4769 = vmatmul.mubr.f32.gmra.mrb[0].mxu0 %v4768
        %v4770 = vpop.f32.mrb[0].mxu0
        %v4771 = vadd.f32 %v4661, %v4770
        %v4772 = vpop.f32.mrb[0].mxu0
        %4773 = vmatprep.mubr.f32.mxu0 0.0
        %v4774 = vand.u32 %v4625, 4294901760
        %v4775 = vsub.f32 %v4625, %v4774
        %v4776 = vand.u32 %v4775, 4294901760
        %v4777 = vsub.f32 %v4775, %v4776
        %v4778 = vand.u32 %v4777, 4294901760
        %4779 = vmatmul.mubr.f32.gmra.mrb[0].mxu0 %v4778
        %v4780 = vpop.f32.mrb[0].mxu0
        %v4781 = vadd.f32 %v4661, %v4780
        %v4782 = vpop.f32.mrb[0].mxu0
        %4783 = vmatprep.mubr.f32.mxu0 0.0
        %v4784 = vand.u32 %v4626, 4294901760
        %v4785 = vsub.f32 %v4626, %v4784
        %v4786 = vand.u32 %v4785, 4294901760
        %v4787 = vsub.f32 %v4785, %v4786
        %v4788 = vand.u32 %v4787, 4294901760
        %4789 = vmatmul.mubr.f32.gmra.mrb[0].mxu0 %v4788
        %v4790 = vpop.f32.mrb[0].mxu0
        %v4791 = vadd.f32 %v4661, %v4790
        %v4792 = vpop.f32.mrb[0].mxu0
        %4793 = vmatprep.mubr.f32.mxu0 0.0
        %v4794 = vand.u32 %v4627, 4294901760
        %v4795 = vsub.f32 %v4627, %v4794
        %v4796 = vand.u32 %v4795, 4294901760
        %v4797 = vsub.f32 %v4795, %v4796
        %v4798 = vand.u32 %v4797, 4294901760
        %4799 = vmatmul.mubr.f32.gmra.mrb[0].mxu0 %v4798
        %v4800 = vpop.f32.mrb[0].mxu0
        %v4801 = vadd.f32 %v4661, %v4800
        %v4802 = vpop.f32.mrb[0].mxu0
        %4803 = vmatprep.mubr.f32.mxu0 0.0
        %v4804 = vand.u32 %v4628, 4294901760
        %v4805 = vsub.f32 %v4628, %v4804
        %v4806 = vand.u32 %v4805, 4294901760
        %v4807 = vsub.f32 %v4805, %v4806
        %v4808 = vand.u32 %v4807, 4294901760
        %4809 = vmatmul.mubr.f32.gmra.mrb[0].mxu0 %v4808
        %v4810 = vpop.f32.mrb[0].mxu0
        %v4811 = vadd.f32 %v4661, %v4810
        %v4812 = vpop.f32.mrb[0].mxu0
        %4813 = vmatprep.mubr.f32.mxu0 0.0
        %v4814 = vand.u32 %v4629, 4294901760
        %v4815 = vsub.f32 %v4629, %v4814
        %v4816 = vand.u32 %v4815, 4294901760
        %v4817 = vsub.f32 %v4815, %v4816
        %v4818 = vand.u32 %v4817, 4294901760
        %4819 = vmatmul.mubr.f32.gmra.mrb[0].mxu0 %v4818
        %v4820 = vpop.f32.mrb[0].mxu0
        %v4821 = vadd.f32 %v4661, %v4820
        %v4822 = vpop.f32.mrb[0].mxu0
        %4823 = vmatprep.mubr.f32.mxu0 0.0
        %v4824 = vand.u32 %v4630, 4294901760
        %v4825 = vsub.f32 %v4630, %v4824
        %v4826 = vand.u32 %v4825, 4294901760
        %v4827 = vsub.f32 %v4825, %v4826
        %v4828 = vand.u32 %v4827, 4294901760
        %4829 = vmatmul.mubr.f32.gmra.mrb[0].mxu0 %v4828
        %v4830 = vpop.f32.mrb[0].mxu0
        %v4831 = vadd.f32 %v4661, %v4830
        %v4832 = vpop.f32.mrb[0].mxu0
        %4833 = vmatprep.mubr.f32.mxu0 0.0
        %v4834 = vand.u32 %v4631, 4294901760
        %v4835 = vsub.f32 %v4631, %v4834
        %v4836 = vand.u32 %v4835, 4294901760
        %v4837 = vsub.f32 %v4835, %v4836
        %v4838 = vand.u32 %v4837, 4294901760
        %4839 = vmatmul.mubr.f32.gmra.mrb[0].mxu0 %v4838
        %v4840 = vpop.f32.mrb[0].mxu0
        %v4841 = vadd.f32 %v4661, %v4840
        %v4842 = vpop.f32.mrb[0].mxu0
        %4843 = vmatprep.mubr.f32.mxu0 0.0
        %v4844 = vand.u32 %v4632, 4294901760
        %v4845 = vsub.f32 %v4632, %v4844
        %v4846 = vand.u32 %v4845, 4294901760
        %v4847 = vsub.f32 %v4845, %v4846
        %v4848 = vand.u32 %v4847, 4294901760
        %4849 = vmatmul.mubr.f32.gmra.mrb[0].mxu0 %v4848
        %v4850 = vpop.f32.mrb[0].mxu0
        %v4851 = vadd.f32 %v4661, %v4850
        %v4852 = vpop.f32.mrb[0].mxu0
        %4853 = vmatprep.mubr.f32.mxu0 0.0
        %v4854 = vand.u32 %v4633, 4294901760
        %v4855 = vsub.f32 %v4633, %v4854
        %v4856 = vand.u32 %v4855, 4294901760
        %v4857 = vsub.f32 %v4855, %v4856
        %v4858 = vand.u32 %v4857, 4294901760
        %4859 = vmatmul.mubr.f32.gmra.mrb[0].mxu0 %v4858
        %v4860 = vpop.f32.mrb[0].mxu0
        %v4861 = vadd.f32 %v4661, %v4860
        %v4862 = vpop.f32.mrb[0].mxu0
        %4863 = vmatprep.mubr.f32.mxu0 0.0
        %v4864 = vand.u32 %v4634, 4294901760
        %v4865 = vsub.f32 %v4634, %v4864
        %v4866 = vand.u32 %v4865, 4294901760
        %v4867 = vsub.f32 %v4865, %v4866
        %v4868 = vand.u32 %v4867, 4294901760
        %4869 = vmatmul.mubr.f32.gmra.mrb[0].mxu0 %v4868
        %v4870 = vpop.f32.mrb[0].mxu0
        %v4871 = vadd.f32 %v4661, %v4870
        %v4872 = vpop.f32.mrb[0].mxu0
        %4873 = vmatprep.mubr.f32.mxu0 0.0
        %v4874 = vand.u32 %v4635, 4294901760
        %v4875 = vsub.f32 %v4635, %v4874
        %v4876 = vand.u32 %v4875, 4294901760
        %v4877 = vsub.f32 %v4875, %v4876
        %v4878 = vand.u32 %v4877, 4294901760
        %4879 = vmatmul.mubr.f32.gmra.mrb[0].mxu0 %v4878
        %v4880 = vpop.f32.mrb[0].mxu0
        %v4881 = vadd.f32 %v4661, %v4880
        %v4882 = vpop.f32.mrb[0].mxu0
        %4883 = vmatprep.mubr.f32.mxu0 0.0
        %v4884 = vand.u32 %v4636, 4294901760
        %v4885 = vsub.f32 %v4636, %v4884
        %v4886 = vand.u32 %v4885, 4294901760
        %v4887 = vsub.f32 %v4885, %v4886
        %v4888 = vand.u32 %v4887, 4294901760
        %4889 = vmatmul.mubr.f32.gmra.mrb[0].mxu0 %v4888
        %v4890 = vpop.f32.mrb[0].mxu0
        %v4891 = vadd.f32 %v4661, %v4890
        %v4892 = vpop.f32.mrb[0].mxu0
        %4893 = vmatprep.mubr.f32.mxu0 0.0
        %v4894 = vand.u32 %v4637, 4294901760
        %v4895 = vsub.f32 %v4637, %v4894
        %v4896 = vand.u32 %v4895, 4294901760
        %v4897 = vsub.f32 %v4895, %v4896
        %v4898 = vand.u32 %v4897, 4294901760
        %4899 = vmatmul.mubr.f32.gmra.mrb[0].mxu0 %v4898
        %v4900 = vpop.f32.mrb[0].mxu0
        %v4901 = vadd.f32 %v4661, %v4900
        %v4902 = vpop.f32.mrb[0].mxu0
        %4903 = vdwg.mxu0
        %4904 = vmatprep.subr.mxu0 0.0
        %v4905 = vand.u32 %v4639, 4294901760
        %v4906 = vsub.f32 %v4639, %v4905
        %v4907 = vand.u32 %v4906, 4294901760
        %v4908 = vsub.f32 %v4906, %v4907
        %v4909 = vand.u32 %v4908, 4294901760
        %4910 = vmatpush1.msra.mxu0 %v4909
        %4911 = vmatprep.subr.mxu0 0.0
        %v4912 = vand.u32 %v4640, 4294901760
        %v4913 = vsub.f32 %v4640, %v4912
        %v4914 = vand.u32 %v4913, 4294901760
        %v4915 = vsub.f32 %v4913, %v4914
        %v4916 = vand.u32 %v4915, 4294901760
        %4917 = vmatpush1.msra.mxu0 %v4916
        %4918 = vmatprep.subr.mxu0 0.0
        %v4919 = vand.u32 %v4641, 4294901760
        %v4920 = vsub.f32 %v4641, %v4919
        %v4921 = vand.u32 %v4920, 4294901760
        %v4922 = vsub.f32 %v4920, %v4921
        %v4923 = vand.u32 %v4922, 4294901760
        %4924 = vmatpush1.msra.mxu0 %v4923
        %4925 = vmatprep.subr.mxu0 0.0
        %v4926 = vand.u32 %v4642, 4294901760
        %v4927 = vsub.f32 %v4642, %v4926
        %v4928 = vand.u32 %v4927, 4294901760
        %v4929 = vsub.f32 %v4927, %v4928
        %v4930 = vand.u32 %v4929, 4294901760
        %4931 = vmatpush1.msra.mxu0 %v4930
        %4932 = vmatprep.subr.mxu0 0.0
        %v4933 = vand.u32 %v4643, 4294901760
        %v4934 = vsub.f32 %v4643, %v4933
        %v4935 = vand.u32 %v4934, 4294901760
        %v4936 = vsub.f32 %v4934, %v4935
        %v4937 = vand.u32 %v4936, 4294901760
        %4938 = vmatpush1.msra.mxu0 %v4937
        %4939 = vmatprep.subr.mxu0 0.0
        %v4940 = vand.u32 %v4644, 4294901760
        %v4941 = vsub.f32 %v4644, %v4940
        %v4942 = vand.u32 %v4941, 4294901760
        %v4943 = vsub.f32 %v4941, %v4942
        %v4944 = vand.u32 %v4943, 4294901760
        %4945 = vmatpush1.msra.mxu0 %v4944
        %4946 = vmatprep.subr.mxu0 0.0
        %v4947 = vand.u32 %v4645, 4294901760
        %v4948 = vsub.f32 %v4645, %v4947
        %v4949 = vand.u32 %v4948, 4294901760
        %v4950 = vsub.f32 %v4948, %v4949
        %v4951 = vand.u32 %v4950, 4294901760
        %4952 = vmatpush1.msra.mxu0 %v4951
        %4953 = vmatprep.subr.mxu0 0.0
        %v4954 = vand.u32 %v4646, 4294901760
        %v4955 = vsub.f32 %v4646, %v4954
        %v4956 = vand.u32 %v4955, 4294901760
        %v4957 = vsub.f32 %v4955, %v4956
        %v4958 = vand.u32 %v4957, 4294901760
        %4959 = vmatpush1.msra.mxu0 %v4958
        %4960 = vmatprep.subr.mxu0 0.0
        %v4961 = vand.u32 %v4647, 4294901760
        %v4962 = vsub.f32 %v4647, %v4961
        %v4963 = vand.u32 %v4962, 4294901760
        %v4964 = vsub.f32 %v4962, %v4963
        %v4965 = vand.u32 %v4964, 4294901760
        %4966 = vmatpush1.msra.mxu0 %v4965
        %4967 = vmatprep.subr.mxu0 0.0
        %v4968 = vand.u32 %v4648, 4294901760
        %v4969 = vsub.f32 %v4648, %v4968
        %v4970 = vand.u32 %v4969, 4294901760
        %v4971 = vsub.f32 %v4969, %v4970
        %v4972 = vand.u32 %v4971, 4294901760
        %4973 = vmatpush1.msra.mxu0 %v4972
        %4974 = vmatprep.subr.mxu0 0.0
        %v4975 = vand.u32 %v4649, 4294901760
        %v4976 = vsub.f32 %v4649, %v4975
        %v4977 = vand.u32 %v4976, 4294901760
        %v4978 = vsub.f32 %v4976, %v4977
        %v4979 = vand.u32 %v4978, 4294901760
        %4980 = vmatpush1.msra.mxu0 %v4979
        %4981 = vmatprep.subr.mxu0 0.0
        %v4982 = vand.u32 %v4650, 4294901760
        %v4983 = vsub.f32 %v4650, %v4982
        %v4984 = vand.u32 %v4983, 4294901760
        %v4985 = vsub.f32 %v4983, %v4984
        %v4986 = vand.u32 %v4985, 4294901760
        %4987 = vmatpush1.msra.mxu0 %v4986
        %4988 = vmatprep.subr.mxu0 0.0
        %v4989 = vand.u32 %v4651, 4294901760
        %v4990 = vsub.f32 %v4651, %v4989
        %v4991 = vand.u32 %v4990, 4294901760
        %v4992 = vsub.f32 %v4990, %v4991
        %v4993 = vand.u32 %v4992, 4294901760
        %4994 = vmatpush1.msra.mxu0 %v4993
        %4995 = vmatprep.subr.mxu0 0.0
        %v4996 = vand.u32 %v4652, 4294901760
        %v4997 = vsub.f32 %v4652, %v4996
        %v4998 = vand.u32 %v4997, 4294901760
        %v4999 = vsub.f32 %v4997, %v4998
        %v5000 = vand.u32 %v4999, 4294901760
        %5001 = vmatpush1.msra.mxu0 %v5000
        %5002 = vmatprep.subr.mxu0 0.0
        %v5003 = vand.u32 %v4653, 4294901760
        %v5004 = vsub.f32 %v4653, %v5003
        %v5005 = vand.u32 %v5004, 4294901760
        %v5006 = vsub.f32 %v5004, %v5005
        %v5007 = vand.u32 %v5006, 4294901760
        %5008 = vmatpush1.msra.mxu0 %v5007
        %5009 = vmatprep.subr.mxu0 0.0
        %v5010 = vand.u32 %v4654, 4294901760
        %v5011 = vsub.f32 %v4654, %v5010
        %v5012 = vand.u32 %v5011, 4294901760
        %v5013 = vsub.f32 %v5011, %v5012
        %v5014 = vand.u32 %v5013, 4294901760
        %5015 = vmatpush1.msra.mxu0 %v5014
        %5016 = vmatprep.subr.mxu0 0.0
        %5017 = vmatpush1.msra.mxu0 0.0
        %5018 = vmatprep.subr.mxu0 0.0
        %5019 = vmatpush1.msra.mxu0 0.0
        %5020 = vmatprep.subr.mxu0 0.0
        %5021 = vmatpush1.msra.mxu0 0.0
        %5022 = vmatprep.subr.mxu0 0.0
        %5023 = vmatpush1.msra.mxu0 0.0
        %5024 = vmatprep.subr.mxu0 0.0
        %5025 = vmatpush1.msra.mxu0 0.0
        %5026 = vmatprep.subr.mxu0 0.0
        %5027 = vmatpush1.msra.mxu0 0.0
        %5028 = vmatprep.subr.mxu0 0.0
        %5029 = vmatpush1.msra.mxu0 0.0
        %5030 = vmatprep.subr.mxu0 0.0
        %5031 = vmatpush1.msra.mxu0 0.0
        %5032 = vmatprep.subr.mxu0 0.0
        %5033 = vmatpush1.msra.mxu0 0.0
        %5034 = vmatprep.subr.mxu0 0.0
        %5035 = vmatpush1.msra.mxu0 0.0
        %5036 = vmatprep.subr.mxu0 0.0
        %5037 = vmatpush1.msra.mxu0 0.0
        %5038 = vmatprep.subr.mxu0 0.0
        %5039 = vmatpush1.msra.mxu0 0.0
        %5040 = vmatprep.subr.mxu0 0.0
        %5041 = vmatpush1.msra.mxu0 0.0
        %5042 = vmatprep.subr.mxu0 0.0
        %5043 = vmatpush1.msra.mxu0 0.0
        %5044 = vmatprep.subr.mxu0 0.0
        %5045 = vmatpush1.msra.mxu0 0.0
        %5046 = vmatprep.subr.mxu0 0.0
        %5047 = vmatpush1.msra.mxu0 0.0
        %5048 = vmatprep.mubr.f32.mxu0 0.0
        %v5049 = vand.u32 %v4622, 4294901760
        %5050 = vmatmul.mubr.f32.gmra.mrb[0].mxu0 %v5049
        %v5051 = vpop.f32.mrb[0].mxu0
        %v5052 = vadd.f32 %v4751, %v5051
        %v5053 = vpop.f32.mrb[0].mxu0
        %5054 = vmatprep.mubr.f32.mxu0 0.0
        %v5055 = vand.u32 %v4623, 4294901760
        %5056 = vmatmul.mubr.f32.gmra.mrb[0].mxu0 %v5055
        %v5057 = vpop.f32.mrb[0].mxu0
        %v5058 = vadd.f32 %v4761, %v5057
        %v5059 = vpop.f32.mrb[0].mxu0
        %5060 = vmatprep.mubr.f32.mxu0 0.0
        %v5061 = vand.u32 %v4624, 4294901760
        %5062 = vmatmul.mubr.f32.gmra.mrb[0].mxu0 %v5061
        %v5063 = vpop.f32.mrb[0].mxu0
        %v5064 = vadd.f32 %v4771, %v5063
        %v5065 = vpop.f32.mrb[0].mxu0
        %5066 = vmatprep.mubr.f32.mxu0 0.0
        %v5067 = vand.u32 %v4625, 4294901760
        %5068 = vmatmul.mubr.f32.gmra.mrb[0].mxu0 %v5067
        %v5069 = vpop.f32.mrb[0].mxu0
        %v5070 = vadd.f32 %v4781, %v5069
        %v5071 = vpop.f32.mrb[0].mxu0
        %5072 = vmatprep.mubr.f32.mxu0 0.0
        %v5073 = vand.u32 %v4626, 4294901760
        %5074 = vmatmul.mubr.f32.gmra.mrb[0].mxu0 %v5073
        %v5075 = vpop.f32.mrb[0].mxu0
        %v5076 = vadd.f32 %v4791, %v5075
        %v5077 = vpop.f32.mrb[0].mxu0
        %5078 = vmatprep.mubr.f32.mxu0 0.0
        %v5079 = vand.u32 %v4627, 4294901760
        %5080 = vmatmul.mubr.f32.gmra.mrb[0].mxu0 %v5079
        %v5081 = vpop.f32.mrb[0].mxu0
        %v5082 = vadd.f32 %v4801, %v5081
        %v5083 = vpop.f32.mrb[0].mxu0
        %5084 = vmatprep.mubr.f32.mxu0 0.0
        %v5085 = vand.u32 %v4628, 4294901760
        %5086 = vmatmul.mubr.f32.gmra.mrb[0].mxu0 %v5085
        %v5087 = vpop.f32.mrb[0].mxu0
        %v5088 = vadd.f32 %v4811, %v5087
        %v5089 = vpop.f32.mrb[0].mxu0
        %5090 = vmatprep.mubr.f32.mxu0 0.0
        %v5091 = vand.u32 %v4629, 4294901760
        %5092 = vmatmul.mubr.f32.gmra.mrb[0].mxu0 %v5091
        %v5093 = vpop.f32.mrb[0].mxu0
        %v5094 = vadd.f32 %v4821, %v5093
        %v5095 = vpop.f32.mrb[0].mxu0
        %5096 = vmatprep.mubr.f32.mxu0 0.0
        %v5097 = vand.u32 %v4630, 4294901760
        %5098 = vmatmul.mubr.f32.gmra.mrb[0].mxu0 %v5097
        %v5099 = vpop.f32.mrb[0].mxu0
        %v5100 = vadd.f32 %v4831, %v5099
        %v5101 = vpop.f32.mrb[0].mxu0
        %5102 = vmatprep.mubr.f32.mxu0 0.0
        %v5103 = vand.u32 %v4631, 4294901760
        %5104 = vmatmul.mubr.f32.gmra.mrb[0].mxu0 %v5103
        %v5105 = vpop.f32.mrb[0].mxu0
        %v5106 = vadd.f32 %v4841, %v5105
        %v5107 = vpop.f32.mrb[0].mxu0
        %5108 = vmatprep.mubr.f32.mxu0 0.0
        %v5109 = vand.u32 %v4632, 4294901760
        %5110 = vmatmul.mubr.f32.gmra.mrb[0].mxu0 %v5109
        %v5111 = vpop.f32.mrb[0].mxu0
        %v5112 = vadd.f32 %v4851, %v5111
        %v5113 = vpop.f32.mrb[0].mxu0
        %5114 = vmatprep.mubr.f32.mxu0 0.0
        %v5115 = vand.u32 %v4633, 4294901760
        %5116 = vmatmul.mubr.f32.gmra.mrb[0].mxu0 %v5115
        %v5117 = vpop.f32.mrb[0].mxu0
        %v5118 = vadd.f32 %v4861, %v5117
        %v5119 = vpop.f32.mrb[0].mxu0
        %5120 = vmatprep.mubr.f32.mxu0 0.0
        %v5121 = vand.u32 %v4634, 4294901760
        %5122 = vmatmul.mubr.f32.gmra.mrb[0].mxu0 %v5121
        %v5123 = vpop.f32.mrb[0].mxu0
        %v5124 = vadd.f32 %v4871, %v5123
        %v5125 = vpop.f32.mrb[0].mxu0
        %5126 = vmatprep.mubr.f32.mxu0 0.0
        %v5127 = vand.u32 %v4635, 4294901760
        %5128 = vmatmul.mubr.f32.gmra.mrb[0].mxu0 %v5127
        %v5129 = vpop.f32.mrb[0].mxu0
        %v5130 = vadd.f32 %v4881, %v5129
        %v5131 = vpop.f32.mrb[0].mxu0
        %5132 = vmatprep.mubr.f32.mxu0 0.0
        %v5133 = vand.u32 %v4636, 4294901760
        %5134 = vmatmul.mubr.f32.gmra.mrb[0].mxu0 %v5133
        %v5135 = vpop.f32.mrb[0].mxu0
        %v5136 = vadd.f32 %v4891, %v5135
        %v5137 = vpop.f32.mrb[0].mxu0
        %5138 = vmatprep.mubr.f32.mxu0 0.0
        %v5139 = vand.u32 %v4637, 4294901760
        %5140 = vmatmul.mubr.f32.gmra.mrb[0].mxu0 %v5139
        %v5141 = vpop.f32.mrb[0].mxu0
        %v5142 = vadd.f32 %v4901, %v5141
        %v5143 = vpop.f32.mrb[0].mxu0
        %5144 = vdwg.mxu0
        %5145 = vmatprep.subr.mxu0 0.0
        %v5146 = vand.u32 %v4639, 4294901760
        %v5147 = vsub.f32 %v4639, %v5146
        %5148 = vmatpush1.msra.mxu0 %v5147
        %5149 = vmatprep.subr.mxu0 0.0
        %v5150 = vand.u32 %v4640, 4294901760
        %v5151 = vsub.f32 %v4640, %v5150
        %5152 = vmatpush1.msra.mxu0 %v5151
        %5153 = vmatprep.subr.mxu0 0.0
        %v5154 = vand.u32 %v4641, 4294901760
        %v5155 = vsub.f32 %v4641, %v5154
        %5156 = vmatpush1.msra.mxu0 %v5155
        %5157 = vmatprep.subr.mxu0 0.0
        %v5158 = vand.u32 %v4642, 4294901760
        %v5159 = vsub.f32 %v4642, %v5158
        %5160 = vmatpush1.msra.mxu0 %v5159
        %5161 = vmatprep.subr.mxu0 0.0
        %v5162 = vand.u32 %v4643, 4294901760
        %v5163 = vsub.f32 %v4643, %v5162
        %5164 = vmatpush1.msra.mxu0 %v5163
        %5165 = vmatprep.subr.mxu0 0.0
        %v5166 = vand.u32 %v4644, 4294901760
        %v5167 = vsub.f32 %v4644, %v5166
        %5168 = vmatpush1.msra.mxu0 %v5167
        %5169 = vmatprep.subr.mxu0 0.0
        %v5170 = vand.u32 %v4645, 4294901760
        %v5171 = vsub.f32 %v4645, %v5170
        %5172 = vmatpush1.msra.mxu0 %v5171
        %5173 = vmatprep.subr.mxu0 0.0
        %v5174 = vand.u32 %v4646, 4294901760
        %v5175 = vsub.f32 %v4646, %v5174
        %5176 = vmatpush1.msra.mxu0 %v5175
        %5177 = vmatprep.subr.mxu0 0.0
        %v5178 = vand.u32 %v4647, 4294901760
        %v5179 = vsub.f32 %v4647, %v5178
        %5180 = vmatpush1.msra.mxu0 %v5179
        %5181 = vmatprep.subr.mxu0 0.0
        %v5182 = vand.u32 %v4648, 4294901760
        %v5183 = vsub.f32 %v4648, %v5182
        %5184 = vmatpush1.msra.mxu0 %v5183
        %5185 = vmatprep.subr.mxu0 0.0
        %v5186 = vand.u32 %v4649, 4294901760
        %v5187 = vsub.f32 %v4649, %v5186
        %5188 = vmatpush1.msra.mxu0 %v5187
        %5189 = vmatprep.subr.mxu0 0.0
        %v5190 = vand.u32 %v4650, 4294901760
        %v5191 = vsub.f32 %v4650, %v5190
        %5192 = vmatpush1.msra.mxu0 %v5191
        %5193 = vmatprep.subr.mxu0 0.0
        %v5194 = vand.u32 %v4651, 4294901760
        %v5195 = vsub.f32 %v4651, %v5194
        %5196 = vmatpush1.msra.mxu0 %v5195
        %5197 = vmatprep.subr.mxu0 0.0
        %v5198 = vand.u32 %v4652, 4294901760
        %v5199 = vsub.f32 %v4652, %v5198
        %5200 = vmatpush1.msra.mxu0 %v5199
        %5201 = vmatprep.subr.mxu0 0.0
        %v5202 = vand.u32 %v4653, 4294901760
        %v5203 = vsub.f32 %v4653, %v5202
        %5204 = vmatpush1.msra.mxu0 %v5203
        %5205 = vmatprep.subr.mxu0 0.0
        %v5206 = vand.u32 %v4654, 4294901760
        %v5207 = vsub.f32 %v4654, %v5206
        %5208 = vmatpush1.msra.mxu0 %v5207
        %5209 = vmatprep.subr.mxu0 0.0
        %5210 = vmatpush1.msra.mxu0 0.0
        %5211 = vmatprep.subr.mxu0 0.0
        %5212 = vmatpush1.msra.mxu0 0.0
        %5213 = vmatprep.subr.mxu0 0.0
        %5214 = vmatpush1.msra.mxu0 0.0
        %5215 = vmatprep.subr.mxu0 0.0
        %5216 = vmatpush1.msra.mxu0 0.0
        %5217 = vmatprep.subr.mxu0 0.0
        %5218 = vmatpush1.msra.mxu0 0.0
        %5219 = vmatprep.subr.mxu0 0.0
        %5220 = vmatpush1.msra.mxu0 0.0
        %5221 = vmatprep.subr.mxu0 0.0
        %5222 = vmatpush1.msra.mxu0 0.0
        %5223 = vmatprep.subr.mxu0 0.0
        %5224 = vmatpush1.msra.mxu0 0.0
        %5225 = vmatprep.subr.mxu0 0.0
        %5226 = vmatpush1.msra.mxu0 0.0
        %5227 = vmatprep.subr.mxu0 0.0
        %5228 = vmatpush1.msra.mxu0 0.0
        %5229 = vmatprep.subr.mxu0 0.0
        %5230 = vmatpush1.msra.mxu0 0.0
        %5231 = vmatprep.subr.mxu0 0.0
        %5232 = vmatpush1.msra.mxu0 0.0
        %5233 = vmatprep.subr.mxu0 0.0
        %5234 = vmatpush1.msra.mxu0 0.0
        %5235 = vmatprep.subr.mxu0 0.0
        %5236 = vmatpush1.msra.mxu0 0.0
        %5237 = vmatprep.subr.mxu0 0.0
        %5238 = vmatpush1.msra.mxu0 0.0
        %5239 = vmatprep.subr.mxu0 0.0
        %5240 = vmatpush1.msra.mxu0 0.0
        %5241 = vmatprep.mubr.f32.mxu0 0.0
        %v5242 = vand.u32 %v4622, 4294901760
        %v5243 = vsub.f32 %v4622, %v5242
        %5244 = vmatmul.mubr.f32.gmra.mrb[0].mxu0 %v5243
        %v5245 = vpop.f32.mrb[0].mxu0
        %v5246 = vadd.f32 %v5052, %v5245
        %v5247 = vpop.f32.mrb[0].mxu0
        %5248 = vmatprep.mubr.f32.mxu0 0.0
        %v5249 = vand.u32 %v4623, 4294901760
        %v5250 = vsub.f32 %v4623, %v5249
        %5251 = vmatmul.mubr.f32.gmra.mrb[0].mxu0 %v5250
        %v5252 = vpop.f32.mrb[0].mxu0
        %v5253 = vadd.f32 %v5058, %v5252
        %v5254 = vpop.f32.mrb[0].mxu0
        %5255 = vmatprep.mubr.f32.mxu0 0.0
        %v5256 = vand.u32 %v4624, 4294901760
        %v5257 = vsub.f32 %v4624, %v5256
        %5258 = vmatmul.mubr.f32.gmra.mrb[0].mxu0 %v5257
        %v5259 = vpop.f32.mrb[0].mxu0
        %v5260 = vadd.f32 %v5064, %v5259
        %v5261 = vpop.f32.mrb[0].mxu0
        %5262 = vmatprep.mubr.f32.mxu0 0.0
        %v5263 = vand.u32 %v4625, 4294901760
        %v5264 = vsub.f32 %v4625, %v5263
        %5265 = vmatmul.mubr.f32.gmra.mrb[0].mxu0 %v5264
        %v5266 = vpop.f32.mrb[0].mxu0
        %v5267 = vadd.f32 %v5070, %v5266
        %v5268 = vpop.f32.mrb[0].mxu0
        %5269 = vmatprep.mubr.f32.mxu0 0.0
        %v5270 = vand.u32 %v4626, 4294901760
        %v5271 = vsub.f32 %v4626, %v5270
        %5272 = vmatmul.mubr.f32.gmra.mrb[0].mxu0 %v5271
        %v5273 = vpop.f32.mrb[0].mxu0
        %v5274 = vadd.f32 %v5076, %v5273
        %v5275 = vpop.f32.mrb[0].mxu0
        %5276 = vmatprep.mubr.f32.mxu0 0.0
        %v5277 = vand.u32 %v4627, 4294901760
        %v5278 = vsub.f32 %v4627, %v5277
        %5279 = vmatmul.mubr.f32.gmra.mrb[0].mxu0 %v5278
        %v5280 = vpop.f32.mrb[0].mxu0
        %v5281 = vadd.f32 %v5082, %v5280
        %v5282 = vpop.f32.mrb[0].mxu0
        %5283 = vmatprep.mubr.f32.mxu0 0.0
        %v5284 = vand.u32 %v4628, 4294901760
        %v5285 = vsub.f32 %v4628, %v5284
        %5286 = vmatmul.mubr.f32.gmra.mrb[0].mxu0 %v5285
        %v5287 = vpop.f32.mrb[0].mxu0
        %v5288 = vadd.f32 %v5088, %v5287
        %v5289 = vpop.f32.mrb[0].mxu0
        %5290 = vmatprep.mubr.f32.mxu0 0.0
        %v5291 = vand.u32 %v4629, 4294901760
        %v5292 = vsub.f32 %v4629, %v5291
        %5293 = vmatmul.mubr.f32.gmra.mrb[0].mxu0 %v5292
        %v5294 = vpop.f32.mrb[0].mxu0
        %v5295 = vadd.f32 %v5094, %v5294
        %v5296 = vpop.f32.mrb[0].mxu0
        %5297 = vmatprep.mubr.f32.mxu0 0.0
        %v5298 = vand.u32 %v4630, 4294901760
        %v5299 = vsub.f32 %v4630, %v5298
        %5300 = vmatmul.mubr.f32.gmra.mrb[0].mxu0 %v5299
        %v5301 = vpop.f32.mrb[0].mxu0
        %v5302 = vadd.f32 %v5100, %v5301
        %v5303 = vpop.f32.mrb[0].mxu0
        %5304 = vmatprep.mubr.f32.mxu0 0.0
        %v5305 = vand.u32 %v4631, 4294901760
        %v5306 = vsub.f32 %v4631, %v5305
        %5307 = vmatmul.mubr.f32.gmra.mrb[0].mxu0 %v5306
        %v5308 = vpop.f32.mrb[0].mxu0
        %v5309 = vadd.f32 %v5106, %v5308
        %v5310 = vpop.f32.mrb[0].mxu0
        %5311 = vmatprep.mubr.f32.mxu0 0.0
        %v5312 = vand.u32 %v4632, 4294901760
        %v5313 = vsub.f32 %v4632, %v5312
        %5314 = vmatmul.mubr.f32.gmra.mrb[0].mxu0 %v5313
        %v5315 = vpop.f32.mrb[0].mxu0
        %v5316 = vadd.f32 %v5112, %v5315
        %v5317 = vpop.f32.mrb[0].mxu0
        %5318 = vmatprep.mubr.f32.mxu0 0.0
        %v5319 = vand.u32 %v4633, 4294901760
        %v5320 = vsub.f32 %v4633, %v5319
        %5321 = vmatmul.mubr.f32.gmra.mrb[0].mxu0 %v5320
        %v5322 = vpop.f32.mrb[0].mxu0
        %v5323 = vadd.f32 %v5118, %v5322
        %v5324 = vpop.f32.mrb[0].mxu0
        %5325 = vmatprep.mubr.f32.mxu0 0.0
        %v5326 = vand.u32 %v4634, 4294901760
        %v5327 = vsub.f32 %v4634, %v5326
        %5328 = vmatmul.mubr.f32.gmra.mrb[0].mxu0 %v5327
        %v5329 = vpop.f32.mrb[0].mxu0
        %v5330 = vadd.f32 %v5124, %v5329
        %v5331 = vpop.f32.mrb[0].mxu0
        %5332 = vmatprep.mubr.f32.mxu0 0.0
        %v5333 = vand.u32 %v4635, 4294901760
        %v5334 = vsub.f32 %v4635, %v5333
        %5335 = vmatmul.mubr.f32.gmra.mrb[0].mxu0 %v5334
        %v5336 = vpop.f32.mrb[0].mxu0
        %v5337 = vadd.f32 %v5130, %v5336
        %v5338 = vpop.f32.mrb[0].mxu0
        %5339 = vmatprep.mubr.f32.mxu0 0.0
        %v5340 = vand.u32 %v4636, 4294901760
        %v5341 = vsub.f32 %v4636, %v5340
        %5342 = vmatmul.mubr.f32.gmra.mrb[0].mxu0 %v5341
        %v5343 = vpop.f32.mrb[0].mxu0
        %v5344 = vadd.f32 %v5136, %v5343
        %v5345 = vpop.f32.mrb[0].mxu0
        %5346 = vmatprep.mubr.f32.mxu0 0.0
        %v5347 = vand.u32 %v4637, 4294901760
        %v5348 = vsub.f32 %v4637, %v5347
        %5349 = vmatmul.mubr.f32.gmra.mrb[0].mxu0 %v5348
        %v5350 = vpop.f32.mrb[0].mxu0
        %v5351 = vadd.f32 %v5142, %v5350
        %v5352 = vpop.f32.mrb[0].mxu0
        %5353 = vdwg.mxu0
        %5354 = vmatprep.subr.mxu0 0.0
        %v5355 = vand.u32 %v4639, 4294901760
        %5356 = vmatpush1.msra.mxu0 %v5355
        %5357 = vmatprep.subr.mxu0 0.0
        %v5358 = vand.u32 %v4640, 4294901760
        %5359 = vmatpush1.msra.mxu0 %v5358
        %5360 = vmatprep.subr.mxu0 0.0
        %v5361 = vand.u32 %v4641, 4294901760
        %5362 = vmatpush1.msra.mxu0 %v5361
        %5363 = vmatprep.subr.mxu0 0.0
        %v5364 = vand.u32 %v4642, 4294901760
        %5365 = vmatpush1.msra.mxu0 %v5364
        %5366 = vmatprep.subr.mxu0 0.0
        %v5367 = vand.u32 %v4643, 4294901760
        %5368 = vmatpush1.msra.mxu0 %v5367
        %5369 = vmatprep.subr.mxu0 0.0
        %v5370 = vand.u32 %v4644, 4294901760
        %5371 = vmatpush1.msra.mxu0 %v5370
        %5372 = vmatprep.subr.mxu0 0.0
        %v5373 = vand.u32 %v4645, 4294901760
        %5374 = vmatpush1.msra.mxu0 %v5373
        %5375 = vmatprep.subr.mxu0 0.0
        %v5376 = vand.u32 %v4646, 4294901760
        %5377 = vmatpush1.msra.mxu0 %v5376
        %5378 = vmatprep.subr.mxu0 0.0
        %v5379 = vand.u32 %v4647, 4294901760
        %5380 = vmatpush1.msra.mxu0 %v5379
        %5381 = vmatprep.subr.mxu0 0.0
        %v5382 = vand.u32 %v4648, 4294901760
        %5383 = vmatpush1.msra.mxu0 %v5382
        %5384 = vmatprep.subr.mxu0 0.0
        %v5385 = vand.u32 %v4649, 4294901760
        %5386 = vmatpush1.msra.mxu0 %v5385
        %5387 = vmatprep.subr.mxu0 0.0
        %v5388 = vand.u32 %v4650, 4294901760
        %5389 = vmatpush1.msra.mxu0 %v5388
        %5390 = vmatprep.subr.mxu0 0.0
        %v5391 = vand.u32 %v4651, 4294901760
        %5392 = vmatpush1.msra.mxu0 %v5391
        %5393 = vmatprep.subr.mxu0 0.0
        %v5394 = vand.u32 %v4652, 4294901760
        %5395 = vmatpush1.msra.mxu0 %v5394
        %5396 = vmatprep.subr.mxu0 0.0
        %v5397 = vand.u32 %v4653, 4294901760
        %5398 = vmatpush1.msra.mxu0 %v5397
        %5399 = vmatprep.subr.mxu0 0.0
        %v5400 = vand.u32 %v4654, 4294901760
        %5401 = vmatpush1.msra.mxu0 %v5400
        %5402 = vmatprep.subr.mxu0 0.0
        %5403 = vmatpush1.msra.mxu0 0.0
        %5404 = vmatprep.subr.mxu0 0.0
        %5405 = vmatpush1.msra.mxu0 0.0
        %5406 = vmatprep.subr.mxu0 0.0
        %5407 = vmatpush1.msra.mxu0 0.0
        %5408 = vmatprep.subr.mxu0 0.0
        %5409 = vmatpush1.msra.mxu0 0.0
        %5410 = vmatprep.subr.mxu0 0.0
        %5411 = vmatpush1.msra.mxu0 0.0
        %5412 = vmatprep.subr.mxu0 0.0
        %5413 = vmatpush1.msra.mxu0 0.0
        %5414 = vmatprep.subr.mxu0 0.0
        %5415 = vmatpush1.msra.mxu0 0.0
        %5416 = vmatprep.subr.mxu0 0.0
        %5417 = vmatpush1.msra.mxu0 0.0
        %5418 = vmatprep.subr.mxu0 0.0
        %5419 = vmatpush1.msra.mxu0 0.0
        %5420 = vmatprep.subr.mxu0 0.0
        %5421 = vmatpush1.msra.mxu0 0.0
        %5422 = vmatprep.subr.mxu0 0.0
        %5423 = vmatpush1.msra.mxu0 0.0
        %5424 = vmatprep.subr.mxu0 0.0
        %5425 = vmatpush1.msra.mxu0 0.0
        %5426 = vmatprep.subr.mxu0 0.0
        %5427 = vmatpush1.msra.mxu0 0.0
        %5428 = vmatprep.subr.mxu0 0.0
        %5429 = vmatpush1.msra.mxu0 0.0
        %5430 = vmatprep.subr.mxu0 0.0
        %5431 = vmatpush1.msra.mxu0 0.0
        %5432 = vmatprep.subr.mxu0 0.0
        %5433 = vmatpush1.msra.mxu0 0.0
        %5434 = vmatprep.mubr.f32.mxu0 0.0
        %v5435 = vand.u32 %v4622, 4294901760
        %v5436 = vsub.f32 %v4622, %v5435
        %v5437 = vand.u32 %v5436, 4294901760
        %5438 = vmatmul.mubr.f32.gmra.mrb[0].mxu0 %v5437
        %v5439 = vpop.f32.mrb[0].mxu0
        %v5440 = vadd.f32 %v5246, %v5439
        %v5441 = vpop.f32.mrb[0].mxu0
        %5442 = vmatprep.mubr.f32.mxu0 0.0
        %v5443 = vand.u32 %v4623, 4294901760
        %v5444 = vsub.f32 %v4623, %v5443
        %v5445 = vand.u32 %v5444, 4294901760
        %5446 = vmatmul.mubr.f32.gmra.mrb[0].mxu0 %v5445
        %v5447 = vpop.f32.mrb[0].mxu0
        %v5448 = vadd.f32 %v5253, %v5447
        %v5449 = vpop.f32.mrb[0].mxu0
        %5450 = vmatprep.mubr.f32.mxu0 0.0
        %v5451 = vand.u32 %v4624, 4294901760
        %v5452 = vsub.f32 %v4624, %v5451
        %v5453 = vand.u32 %v5452, 4294901760
        %5454 = vmatmul.mubr.f32.gmra.mrb[0].mxu0 %v5453
        %v5455 = vpop.f32.mrb[0].mxu0
        %v5456 = vadd.f32 %v5260, %v5455
        %v5457 = vpop.f32.mrb[0].mxu0
        %5458 = vmatprep.mubr.f32.mxu0 0.0
        %v5459 = vand.u32 %v4625, 4294901760
        %v5460 = vsub.f32 %v4625, %v5459
        %v5461 = vand.u32 %v5460, 4294901760
        %5462 = vmatmul.mubr.f32.gmra.mrb[0].mxu0 %v5461
        %v5463 = vpop.f32.mrb[0].mxu0
        %v5464 = vadd.f32 %v5267, %v5463
        %v5465 = vpop.f32.mrb[0].mxu0
        %5466 = vmatprep.mubr.f32.mxu0 0.0
        %v5467 = vand.u32 %v4626, 4294901760
        %v5468 = vsub.f32 %v4626, %v5467
        %v5469 = vand.u32 %v5468, 4294901760
        %5470 = vmatmul.mubr.f32.gmra.mrb[0].mxu0 %v5469
        %v5471 = vpop.f32.mrb[0].mxu0
        %v5472 = vadd.f32 %v5274, %v5471
        %v5473 = vpop.f32.mrb[0].mxu0
        %5474 = vmatprep.mubr.f32.mxu0 0.0
        %v5475 = vand.u32 %v4627, 4294901760
        %v5476 = vsub.f32 %v4627, %v5475
        %v5477 = vand.u32 %v5476, 4294901760
        %5478 = vmatmul.mubr.f32.gmra.mrb[0].mxu0 %v5477
        %v5479 = vpop.f32.mrb[0].mxu0
        %v5480 = vadd.f32 %v5281, %v5479
        %v5481 = vpop.f32.mrb[0].mxu0
        %5482 = vmatprep.mubr.f32.mxu0 0.0
        %v5483 = vand.u32 %v4628, 4294901760
        %v5484 = vsub.f32 %v4628, %v5483
        %v5485 = vand.u32 %v5484, 4294901760
        %5486 = vmatmul.mubr.f32.gmra.mrb[0].mxu0 %v5485
        %v5487 = vpop.f32.mrb[0].mxu0
        %v5488 = vadd.f32 %v5288, %v5487
        %v5489 = vpop.f32.mrb[0].mxu0
        %5490 = vmatprep.mubr.f32.mxu0 0.0
        %v5491 = vand.u32 %v4629, 4294901760
        %v5492 = vsub.f32 %v4629, %v5491
        %v5493 = vand.u32 %v5492, 4294901760
        %5494 = vmatmul.mubr.f32.gmra.mrb[0].mxu0 %v5493
        %v5495 = vpop.f32.mrb[0].mxu0
        %v5496 = vadd.f32 %v5295, %v5495
        %v5497 = vpop.f32.mrb[0].mxu0
        %5498 = vmatprep.mubr.f32.mxu0 0.0
        %v5499 = vand.u32 %v4630, 4294901760
        %v5500 = vsub.f32 %v4630, %v5499
        %v5501 = vand.u32 %v5500, 4294901760
        %5502 = vmatmul.mubr.f32.gmra.mrb[0].mxu0 %v5501
        %v5503 = vpop.f32.mrb[0].mxu0
        %v5504 = vadd.f32 %v5302, %v5503
        %v5505 = vpop.f32.mrb[0].mxu0
        %5506 = vmatprep.mubr.f32.mxu0 0.0
        %v5507 = vand.u32 %v4631, 4294901760
        %v5508 = vsub.f32 %v4631, %v5507
        %v5509 = vand.u32 %v5508, 4294901760
        %5510 = vmatmul.mubr.f32.gmra.mrb[0].mxu0 %v5509
        %v5511 = vpop.f32.mrb[0].mxu0
        %v5512 = vadd.f32 %v5309, %v5511
        %v5513 = vpop.f32.mrb[0].mxu0
        %5514 = vmatprep.mubr.f32.mxu0 0.0
        %v5515 = vand.u32 %v4632, 4294901760
        %v5516 = vsub.f32 %v4632, %v5515
        %v5517 = vand.u32 %v5516, 4294901760
        %5518 = vmatmul.mubr.f32.gmra.mrb[0].mxu0 %v5517
        %v5519 = vpop.f32.mrb[0].mxu0
        %v5520 = vadd.f32 %v5316, %v5519
        %v5521 = vpop.f32.mrb[0].mxu0
        %5522 = vmatprep.mubr.f32.mxu0 0.0
        %v5523 = vand.u32 %v4633, 4294901760
        %v5524 = vsub.f32 %v4633, %v5523
        %v5525 = vand.u32 %v5524, 4294901760
        %5526 = vmatmul.mubr.f32.gmra.mrb[0].mxu0 %v5525
        %v5527 = vpop.f32.mrb[0].mxu0
        %v5528 = vadd.f32 %v5323, %v5527
        %v5529 = vpop.f32.mrb[0].mxu0
        %5530 = vmatprep.mubr.f32.mxu0 0.0
        %v5531 = vand.u32 %v4634, 4294901760
        %v5532 = vsub.f32 %v4634, %v5531
        %v5533 = vand.u32 %v5532, 4294901760
        %5534 = vmatmul.mubr.f32.gmra.mrb[0].mxu0 %v5533
        %v5535 = vpop.f32.mrb[0].mxu0
        %v5536 = vadd.f32 %v5330, %v5535
        %v5537 = vpop.f32.mrb[0].mxu0
        %5538 = vmatprep.mubr.f32.mxu0 0.0
        %v5539 = vand.u32 %v4635, 4294901760
        %v5540 = vsub.f32 %v4635, %v5539
        %v5541 = vand.u32 %v5540, 4294901760
        %5542 = vmatmul.mubr.f32.gmra.mrb[0].mxu0 %v5541
        %v5543 = vpop.f32.mrb[0].mxu0
        %v5544 = vadd.f32 %v5337, %v5543
        %v5545 = vpop.f32.mrb[0].mxu0
        %5546 = vmatprep.mubr.f32.mxu0 0.0
        %v5547 = vand.u32 %v4636, 4294901760
        %v5548 = vsub.f32 %v4636, %v5547
        %v5549 = vand.u32 %v5548, 4294901760
        %5550 = vmatmul.mubr.f32.gmra.mrb[0].mxu0 %v5549
        %v5551 = vpop.f32.mrb[0].mxu0
        %v5552 = vadd.f32 %v5344, %v5551
        %v5553 = vpop.f32.mrb[0].mxu0
        %5554 = vmatprep.mubr.f32.mxu0 0.0
        %v5555 = vand.u32 %v4637, 4294901760
        %v5556 = vsub.f32 %v4637, %v5555
        %v5557 = vand.u32 %v5556, 4294901760
        %5558 = vmatmul.mubr.f32.gmra.mrb[0].mxu0 %v5557
        %v5559 = vpop.f32.mrb[0].mxu0
        %v5560 = vadd.f32 %v5351, %v5559
        %v5561 = vpop.f32.mrb[0].mxu0
        %5562 = vdwg.mxu0
        %5563 = vmatprep.subr.mxu0 0.0
        %v5564 = vand.u32 %v4639, 4294901760
        %v5565 = vsub.f32 %v4639, %v5564
        %v5566 = vand.u32 %v5565, 4294901760
        %5567 = vmatpush1.msra.mxu0 %v5566
        %5568 = vmatprep.subr.mxu0 0.0
        %v5569 = vand.u32 %v4640, 4294901760
        %v5570 = vsub.f32 %v4640, %v5569
        %v5571 = vand.u32 %v5570, 4294901760
        %5572 = vmatpush1.msra.mxu0 %v5571
        %5573 = vmatprep.subr.mxu0 0.0
        %v5574 = vand.u32 %v4641, 4294901760
        %v5575 = vsub.f32 %v4641, %v5574
        %v5576 = vand.u32 %v5575, 4294901760
        %5577 = vmatpush1.msra.mxu0 %v5576
        %5578 = vmatprep.subr.mxu0 0.0
        %v5579 = vand.u32 %v4642, 4294901760
        %v5580 = vsub.f32 %v4642, %v5579
        %v5581 = vand.u32 %v5580, 4294901760
        %5582 = vmatpush1.msra.mxu0 %v5581
        %5583 = vmatprep.subr.mxu0 0.0
        %v5584 = vand.u32 %v4643, 4294901760
        %v5585 = vsub.f32 %v4643, %v5584
        %v5586 = vand.u32 %v5585, 4294901760
        %5587 = vmatpush1.msra.mxu0 %v5586
        %5588 = vmatprep.subr.mxu0 0.0
        %v5589 = vand.u32 %v4644, 4294901760
        %v5590 = vsub.f32 %v4644, %v5589
        %v5591 = vand.u32 %v5590, 4294901760
        %5592 = vmatpush1.msra.mxu0 %v5591
        %5593 = vmatprep.subr.mxu0 0.0
        %v5594 = vand.u32 %v4645, 4294901760
        %v5595 = vsub.f32 %v4645, %v5594
        %v5596 = vand.u32 %v5595, 4294901760
        %5597 = vmatpush1.msra.mxu0 %v5596
        %5598 = vmatprep.subr.mxu0 0.0
        %v5599 = vand.u32 %v4646, 4294901760
        %v5600 = vsub.f32 %v4646, %v5599
        %v5601 = vand.u32 %v5600, 4294901760
        %5602 = vmatpush1.msra.mxu0 %v5601
        %5603 = vmatprep.subr.mxu0 0.0
        %v5604 = vand.u32 %v4647, 4294901760
        %v5605 = vsub.f32 %v4647, %v5604
        %v5606 = vand.u32 %v5605, 4294901760
        %5607 = vmatpush1.msra.mxu0 %v5606
        %5608 = vmatprep.subr.mxu0 0.0
        %v5609 = vand.u32 %v4648, 4294901760
        %v5610 = vsub.f32 %v4648, %v5609
        %v5611 = vand.u32 %v5610, 4294901760
        %5612 = vmatpush1.msra.mxu0 %v5611
        %5613 = vmatprep.subr.mxu0 0.0
        %v5614 = vand.u32 %v4649, 4294901760
        %v5615 = vsub.f32 %v4649, %v5614
        %v5616 = vand.u32 %v5615, 4294901760
        %5617 = vmatpush1.msra.mxu0 %v5616
        %5618 = vmatprep.subr.mxu0 0.0
        %v5619 = vand.u32 %v4650, 4294901760
        %v5620 = vsub.f32 %v4650, %v5619
        %v5621 = vand.u32 %v5620, 4294901760
        %5622 = vmatpush1.msra.mxu0 %v5621
        %5623 = vmatprep.subr.mxu0 0.0
        %v5624 = vand.u32 %v4651, 4294901760
        %v5625 = vsub.f32 %v4651, %v5624
        %v5626 = vand.u32 %v5625, 4294901760
        %5627 = vmatpush1.msra.mxu0 %v5626
        %5628 = vmatprep.subr.mxu0 0.0
        %v5629 = vand.u32 %v4652, 4294901760
        %v5630 = vsub.f32 %v4652, %v5629
        %v5631 = vand.u32 %v5630, 4294901760
        %5632 = vmatpush1.msra.mxu0 %v5631
        %5633 = vmatprep.subr.mxu0 0.0
        %v5634 = vand.u32 %v4653, 4294901760
        %v5635 = vsub.f32 %v4653, %v5634
        %v5636 = vand.u32 %v5635, 4294901760
        %5637 = vmatpush1.msra.mxu0 %v5636
        %5638 = vmatprep.subr.mxu0 0.0
        %v5639 = vand.u32 %v4654, 4294901760
        %v5640 = vsub.f32 %v4654, %v5639
        %v5641 = vand.u32 %v5640, 4294901760
        %5642 = vmatpush1.msra.mxu0 %v5641
        %5643 = vmatprep.subr.mxu0 0.0
        %5644 = vmatpush1.msra.mxu0 0.0
        %5645 = vmatprep.subr.mxu0 0.0
        %5646 = vmatpush1.msra.mxu0 0.0
        %5647 = vmatprep.subr.mxu0 0.0
        %5648 = vmatpush1.msra.mxu0 0.0
        %5649 = vmatprep.subr.mxu0 0.0
        %5650 = vmatpush1.msra.mxu0 0.0
        %5651 = vmatprep.subr.mxu0 0.0
        %5652 = vmatpush1.msra.mxu0 0.0
        %5653 = vmatprep.subr.mxu0 0.0
        %5654 = vmatpush1.msra.mxu0 0.0
        %5655 = vmatprep.subr.mxu0 0.0
        %5656 = vmatpush1.msra.mxu0 0.0
        %5657 = vmatprep.subr.mxu0 0.0
        %5658 = vmatpush1.msra.mxu0 0.0
        %5659 = vmatprep.subr.mxu0 0.0
        %5660 = vmatpush1.msra.mxu0 0.0
        %5661 = vmatprep.subr.mxu0 0.0
        %5662 = vmatpush1.msra.mxu0 0.0
        %5663 = vmatprep.subr.mxu0 0.0
        %5664 = vmatpush1.msra.mxu0 0.0
        %5665 = vmatprep.subr.mxu0 0.0
        %5666 = vmatpush1.msra.mxu0 0.0
        %5667 = vmatprep.subr.mxu0 0.0
        %5668 = vmatpush1.msra.mxu0 0.0
        %5669 = vmatprep.subr.mxu0 0.0
        %5670 = vmatpush1.msra.mxu0 0.0
        %5671 = vmatprep.subr.mxu0 0.0
        %5672 = vmatpush1.msra.mxu0 0.0
        %5673 = vmatprep.subr.mxu0 0.0
        %5674 = vmatpush1.msra.mxu0 0.0
        %5675 = vmatprep.mubr.f32.mxu0 0.0
        %v5676 = vand.u32 %v4622, 4294901760
        %5677 = vmatmul.mubr.f32.gmra.mrb[0].mxu0 %v5676
        %v5678 = vpop.f32.mrb[0].mxu0
        %v5679 = vadd.f32 %v5440, %v5678
        %v5680 = vpop.f32.mrb[0].mxu0
        %5681 = vmatprep.mubr.f32.mxu0 0.0
        %v5682 = vand.u32 %v4623, 4294901760
        %5683 = vmatmul.mubr.f32.gmra.mrb[0].mxu0 %v5682
        %v5684 = vpop.f32.mrb[0].mxu0
        %v5685 = vadd.f32 %v5448, %v5684
        %v5686 = vpop.f32.mrb[0].mxu0
        %5687 = vmatprep.mubr.f32.mxu0 0.0
        %v5688 = vand.u32 %v4624, 4294901760
        %5689 = vmatmul.mubr.f32.gmra.mrb[0].mxu0 %v5688
        %v5690 = vpop.f32.mrb[0].mxu0
        %v5691 = vadd.f32 %v5456, %v5690
        %v5692 = vpop.f32.mrb[0].mxu0
        %5693 = vmatprep.mubr.f32.mxu0 0.0
        %v5694 = vand.u32 %v4625, 4294901760
        %5695 = vmatmul.mubr.f32.gmra.mrb[0].mxu0 %v5694
        %v5696 = vpop.f32.mrb[0].mxu0
        %v5697 = vadd.f32 %v5464, %v5696
        %v5698 = vpop.f32.mrb[0].mxu0
        %5699 = vmatprep.mubr.f32.mxu0 0.0
        %v5700 = vand.u32 %v4626, 4294901760
        %5701 = vmatmul.mubr.f32.gmra.mrb[0].mxu0 %v5700
        %v5702 = vpop.f32.mrb[0].mxu0
        %v5703 = vadd.f32 %v5472, %v5702
        %v5704 = vpop.f32.mrb[0].mxu0
        %5705 = vmatprep.mubr.f32.mxu0 0.0
        %v5706 = vand.u32 %v4627, 4294901760
        %5707 = vmatmul.mubr.f32.gmra.mrb[0].mxu0 %v5706
        %v5708 = vpop.f32.mrb[0].mxu0
        %v5709 = vadd.f32 %v5480, %v5708
        %v5710 = vpop.f32.mrb[0].mxu0
        %5711 = vmatprep.mubr.f32.mxu0 0.0
        %v5712 = vand.u32 %v4628, 4294901760
        %5713 = vmatmul.mubr.f32.gmra.mrb[0].mxu0 %v5712
        %v5714 = vpop.f32.mrb[0].mxu0
        %v5715 = vadd.f32 %v5488, %v5714
        %v5716 = vpop.f32.mrb[0].mxu0
        %5717 = vmatprep.mubr.f32.mxu0 0.0
        %v5718 = vand.u32 %v4629, 4294901760
        %5719 = vmatmul.mubr.f32.gmra.mrb[0].mxu0 %v5718
        %v5720 = vpop.f32.mrb[0].mxu0
        %v5721 = vadd.f32 %v5496, %v5720
        %v5722 = vpop.f32.mrb[0].mxu0
        %5723 = vmatprep.mubr.f32.mxu0 0.0
        %v5724 = vand.u32 %v4630, 4294901760
        %5725 = vmatmul.mubr.f32.gmra.mrb[0].mxu0 %v5724
        %v5726 = vpop.f32.mrb[0].mxu0
        %v5727 = vadd.f32 %v5504, %v5726
        %v5728 = vpop.f32.mrb[0].mxu0
        %5729 = vmatprep.mubr.f32.mxu0 0.0
        %v5730 = vand.u32 %v4631, 4294901760
        %5731 = vmatmul.mubr.f32.gmra.mrb[0].mxu0 %v5730
        %v5732 = vpop.f32.mrb[0].mxu0
        %v5733 = vadd.f32 %v5512, %v5732
        %v5734 = vpop.f32.mrb[0].mxu0
        %5735 = vmatprep.mubr.f32.mxu0 0.0
        %v5736 = vand.u32 %v4632, 4294901760
        %5737 = vmatmul.mubr.f32.gmra.mrb[0].mxu0 %v5736
        %v5738 = vpop.f32.mrb[0].mxu0
        %v5739 = vadd.f32 %v5520, %v5738
        %v5740 = vpop.f32.mrb[0].mxu0
        %5741 = vmatprep.mubr.f32.mxu0 0.0
        %v5742 = vand.u32 %v4633, 4294901760
        %5743 = vmatmul.mubr.f32.gmra.mrb[0].mxu0 %v5742
        %v5744 = vpop.f32.mrb[0].mxu0
        %v5745 = vadd.f32 %v5528, %v5744
        %v5746 = vpop.f32.mrb[0].mxu0
        %5747 = vmatprep.mubr.f32.mxu0 0.0
        %v5748 = vand.u32 %v4634, 4294901760
        %5749 = vmatmul.mubr.f32.gmra.mrb[0].mxu0 %v5748
        %v5750 = vpop.f32.mrb[0].mxu0
        %v5751 = vadd.f32 %v5536, %v5750
        %v5752 = vpop.f32.mrb[0].mxu0
        %5753 = vmatprep.mubr.f32.mxu0 0.0
        %v5754 = vand.u32 %v4635, 4294901760
        %5755 = vmatmul.mubr.f32.gmra.mrb[0].mxu0 %v5754
        %v5756 = vpop.f32.mrb[0].mxu0
        %v5757 = vadd.f32 %v5544, %v5756
        %v5758 = vpop.f32.mrb[0].mxu0
        %5759 = vmatprep.mubr.f32.mxu0 0.0
        %v5760 = vand.u32 %v4636, 4294901760
        %5761 = vmatmul.mubr.f32.gmra.mrb[0].mxu0 %v5760
        %v5762 = vpop.f32.mrb[0].mxu0
        %v5763 = vadd.f32 %v5552, %v5762
        %v5764 = vpop.f32.mrb[0].mxu0
        %5765 = vmatprep.mubr.f32.mxu0 0.0
        %v5766 = vand.u32 %v4637, 4294901760
        %5767 = vmatmul.mubr.f32.gmra.mrb[0].mxu0 %v5766
        %v5768 = vpop.f32.mrb[0].mxu0
        %v5769 = vadd.f32 %v5560, %v5768
        %v5770 = vpop.f32.mrb[0].mxu0
        %5771 = vdwg.mxu0
        %5772 = vmatprep.subr.mxu0 0.0
        %v5773 = vand.u32 %v4639, 4294901760
        %5774 = vmatpush1.msra.mxu0 %v5773
        %5775 = vmatprep.subr.mxu0 0.0
        %v5776 = vand.u32 %v4640, 4294901760
        %5777 = vmatpush1.msra.mxu0 %v5776
        %5778 = vmatprep.subr.mxu0 0.0
        %v5779 = vand.u32 %v4641, 4294901760
        %5780 = vmatpush1.msra.mxu0 %v5779
        %5781 = vmatprep.subr.mxu0 0.0
        %v5782 = vand.u32 %v4642, 4294901760
        %5783 = vmatpush1.msra.mxu0 %v5782
        %5784 = vmatprep.subr.mxu0 0.0
        %v5785 = vand.u32 %v4643, 4294901760
        %5786 = vmatpush1.msra.mxu0 %v5785
        %5787 = vmatprep.subr.mxu0 0.0
        %v5788 = vand.u32 %v4644, 4294901760
        %5789 = vmatpush1.msra.mxu0 %v5788
        %5790 = vmatprep.subr.mxu0 0.0
        %v5791 = vand.u32 %v4645, 4294901760
        %5792 = vmatpush1.msra.mxu0 %v5791
        %5793 = vmatprep.subr.mxu0 0.0
        %v5794 = vand.u32 %v4646, 4294901760
        %5795 = vmatpush1.msra.mxu0 %v5794
        %5796 = vmatprep.subr.mxu0 0.0
        %v5797 = vand.u32 %v4647, 4294901760
        %5798 = vmatpush1.msra.mxu0 %v5797
        %5799 = vmatprep.subr.mxu0 0.0
        %v5800 = vand.u32 %v4648, 4294901760
        %5801 = vmatpush1.msra.mxu0 %v5800
        %5802 = vmatprep.subr.mxu0 0.0
        %v5803 = vand.u32 %v4649, 4294901760
        %5804 = vmatpush1.msra.mxu0 %v5803
        %5805 = vmatprep.subr.mxu0 0.0
        %v5806 = vand.u32 %v4650, 4294901760
        %5807 = vmatpush1.msra.mxu0 %v5806
        %5808 = vmatprep.subr.mxu0 0.0
        %v5809 = vand.u32 %v4651, 4294901760
        %5810 = vmatpush1.msra.mxu0 %v5809
        %5811 = vmatprep.subr.mxu0 0.0
        %v5812 = vand.u32 %v4652, 4294901760
        %5813 = vmatpush1.msra.mxu0 %v5812
        %5814 = vmatprep.subr.mxu0 0.0
        %v5815 = vand.u32 %v4653, 4294901760
        %5816 = vmatpush1.msra.mxu0 %v5815
        %5817 = vmatprep.subr.mxu0 0.0
        %v5818 = vand.u32 %v4654, 4294901760
        %5819 = vmatpush1.msra.mxu0 %v5818
        %5820 = vmatprep.subr.mxu0 0.0
        %5821 = vmatpush1.msra.mxu0 0.0
        %5822 = vmatprep.subr.mxu0 0.0
        %5823 = vmatpush1.msra.mxu0 0.0
        %5824 = vmatprep.subr.mxu0 0.0
        %5825 = vmatpush1.msra.mxu0 0.0
        %5826 = vmatprep.subr.mxu0 0.0
        %5827 = vmatpush1.msra.mxu0 0.0
        %5828 = vmatprep.subr.mxu0 0.0
        %5829 = vmatpush1.msra.mxu0 0.0
        %5830 = vmatprep.subr.mxu0 0.0
        %5831 = vmatpush1.msra.mxu0 0.0
        %5832 = vmatprep.subr.mxu0 0.0
        %5833 = vmatpush1.msra.mxu0 0.0
        %5834 = vmatprep.subr.mxu0 0.0
        %5835 = vmatpush1.msra.mxu0 0.0
        %5836 = vmatprep.subr.mxu0 0.0
        %5837 = vmatpush1.msra.mxu0 0.0
        %5838 = vmatprep.subr.mxu0 0.0
        %5839 = vmatpush1.msra.mxu0 0.0
        %5840 = vmatprep.subr.mxu0 0.0
        %5841 = vmatpush1.msra.mxu0 0.0
        %5842 = vmatprep.subr.mxu0 0.0
        %5843 = vmatpush1.msra.mxu0 0.0
        %5844 = vmatprep.subr.mxu0 0.0
        %5845 = vmatpush1.msra.mxu0 0.0
        %5846 = vmatprep.subr.mxu0 0.0
        %5847 = vmatpush1.msra.mxu0 0.0
        %5848 = vmatprep.subr.mxu0 0.0
        %5849 = vmatpush1.msra.mxu0 0.0
        %5850 = vmatprep.subr.mxu0 0.0
        %5851 = vmatpush1.msra.mxu0 0.0
        %5852 = vmatprep.mubr.f32.mxu0 0.0
        %v5853 = vand.u32 %v4622, 4294901760
        %5854 = vmatmul.mubr.f32.gmra.mrb[0].mxu0 %v5853
        %v5855 = vpop.f32.mrb[0].mxu0
        %v5856 = vadd.f32 %v5679, %v5855
        %v5857 = vpop.f32.mrb[0].mxu0
        %5858 = vmatprep.mubr.f32.mxu0 0.0
        %v5859 = vand.u32 %v4623, 4294901760
        %5860 = vmatmul.mubr.f32.gmra.mrb[0].mxu0 %v5859
        %v5861 = vpop.f32.mrb[0].mxu0
        %v5862 = vadd.f32 %v5685, %v5861
        %v5863 = vpop.f32.mrb[0].mxu0
        %5864 = vmatprep.mubr.f32.mxu0 0.0
        %v5865 = vand.u32 %v4624, 4294901760
        %5866 = vmatmul.mubr.f32.gmra.mrb[0].mxu0 %v5865
        %v5867 = vpop.f32.mrb[0].mxu0
        %v5868 = vadd.f32 %v5691, %v5867
        %v5869 = vpop.f32.mrb[0].mxu0
        %5870 = vmatprep.mubr.f32.mxu0 0.0
        %v5871 = vand.u32 %v4625, 4294901760
        %5872 = vmatmul.mubr.f32.gmra.mrb[0].mxu0 %v5871
        %v5873 = vpop.f32.mrb[0].mxu0
        %v5874 = vadd.f32 %v5697, %v5873
        %v5875 = vpop.f32.mrb[0].mxu0
        %5876 = vmatprep.mubr.f32.mxu0 0.0
        %v5877 = vand.u32 %v4626, 4294901760
        %5878 = vmatmul.mubr.f32.gmra.mrb[0].mxu0 %v5877
        %v5879 = vpop.f32.mrb[0].mxu0
        %v5880 = vadd.f32 %v5703, %v5879
        %v5881 = vpop.f32.mrb[0].mxu0
        %5882 = vmatprep.mubr.f32.mxu0 0.0
        %v5883 = vand.u32 %v4627, 4294901760
        %5884 = vmatmul.mubr.f32.gmra.mrb[0].mxu0 %v5883
        %v5885 = vpop.f32.mrb[0].mxu0
        %v5886 = vadd.f32 %v5709, %v5885
        %v5887 = vpop.f32.mrb[0].mxu0
        %5888 = vmatprep.mubr.f32.mxu0 0.0
        %v5889 = vand.u32 %v4628, 4294901760
        %5890 = vmatmul.mubr.f32.gmra.mrb[0].mxu0 %v5889
        %v5891 = vpop.f32.mrb[0].mxu0
        %v5892 = vadd.f32 %v5715, %v5891
        %v5893 = vpop.f32.mrb[0].mxu0
        %5894 = vmatprep.mubr.f32.mxu0 0.0
        %v5895 = vand.u32 %v4629, 4294901760
        %5896 = vmatmul.mubr.f32.gmra.mrb[0].mxu0 %v5895
        %v5897 = vpop.f32.mrb[0].mxu0
        %v5898 = vadd.f32 %v5721, %v5897
        %v5899 = vpop.f32.mrb[0].mxu0
        %5900 = vmatprep.mubr.f32.mxu0 0.0
        %v5901 = vand.u32 %v4630, 4294901760
        %5902 = vmatmul.mubr.f32.gmra.mrb[0].mxu0 %v5901
        %v5903 = vpop.f32.mrb[0].mxu0
        %v5904 = vadd.f32 %v5727, %v5903
        %v5905 = vpop.f32.mrb[0].mxu0
        %5906 = vmatprep.mubr.f32.mxu0 0.0
        %v5907 = vand.u32 %v4631, 4294901760
        %5908 = vmatmul.mubr.f32.gmra.mrb[0].mxu0 %v5907
        %v5909 = vpop.f32.mrb[0].mxu0
        %v5910 = vadd.f32 %v5733, %v5909
        %v5911 = vpop.f32.mrb[0].mxu0
        %5912 = vmatprep.mubr.f32.mxu0 0.0
        %v5913 = vand.u32 %v4632, 4294901760
        %5914 = vmatmul.mubr.f32.gmra.mrb[0].mxu0 %v5913
        %v5915 = vpop.f32.mrb[0].mxu0
        %v5916 = vadd.f32 %v5739, %v5915
        %v5917 = vpop.f32.mrb[0].mxu0
        %5918 = vmatprep.mubr.f32.mxu0 0.0
        %v5919 = vand.u32 %v4633, 4294901760
        %5920 = vmatmul.mubr.f32.gmra.mrb[0].mxu0 %v5919
        %v5921 = vpop.f32.mrb[0].mxu0
        %v5922 = vadd.f32 %v5745, %v5921
        %v5923 = vpop.f32.mrb[0].mxu0
        %5924 = vmatprep.mubr.f32.mxu0 0.0
        %v5925 = vand.u32 %v4634, 4294901760
        %5926 = vmatmul.mubr.f32.gmra.mrb[0].mxu0 %v5925
        %v5927 = vpop.f32.mrb[0].mxu0
        %v5928 = vadd.f32 %v5751, %v5927
        %v5929 = vpop.f32.mrb[0].mxu0
        %5930 = vmatprep.mubr.f32.mxu0 0.0
        %v5931 = vand.u32 %v4635, 4294901760
        %5932 = vmatmul.mubr.f32.gmra.mrb[0].mxu0 %v5931
        %v5933 = vpop.f32.mrb[0].mxu0
        %v5934 = vadd.f32 %v5757, %v5933
        %v5935 = vpop.f32.mrb[0].mxu0
        %5936 = vmatprep.mubr.f32.mxu0 0.0
        %v5937 = vand.u32 %v4636, 4294901760
        %5938 = vmatmul.mubr.f32.gmra.mrb[0].mxu0 %v5937
        %v5939 = vpop.f32.mrb[0].mxu0
        %v5940 = vadd.f32 %v5763, %v5939
        %v5941 = vpop.f32.mrb[0].mxu0
        %5942 = vmatprep.mubr.f32.mxu0 0.0
        %v5943 = vand.u32 %v4637, 4294901760
        %5944 = vmatmul.mubr.f32.gmra.mrb[0].mxu0 %v5943
        %v5945 = vpop.f32.mrb[0].mxu0
        %v5946 = vadd.f32 %v5769, %v5945
        %v5947 = vpop.f32.mrb[0].mxu0
        %5948 = vdwg.mxu0
        %v5949 = vmax.f32 %v5856, 0.0
        %v5950 = vmax.f32 %v5862, 0.0
        %v5951 = vmax.f32 %v5868, 0.0
        %v5952 = vmax.f32 %v5874, 0.0
        %v5953 = vmax.f32 %v5880, 0.0
        %v5954 = vmax.f32 %v5886, 0.0
        %v5955 = vmax.f32 %v5892, 0.0
        %v5956 = vmax.f32 %v5898, 0.0
        %v5957 = vmax.f32 %v5904, 0.0
        %v5958 = vmax.f32 %v5910, 0.0
        %v5959 = vmax.f32 %v5916, 0.0
        %v5960 = vmax.f32 %v5922, 0.0
        %v5961 = vmax.f32 %v5928, 0.0
        %v5962 = vmax.f32 %v5934, 0.0
        %v5963 = vmax.f32 %v5940, 0.0
        %v5964 = vmax.f32 %v5946, 0.0
        %s5965 = scalar_lea.vmem [#allocation2], 128
        %v5966 = vld [vmem:[%s5965] sm:$0xff]
        %v5967 = vld [vmem:[%s5965 + $0x8] sm:$0xff]
        %v5968 = vld [vmem:[%s5965 + $0x10] sm:$0xff]
        %v5969 = vld [vmem:[%s5965 + $0x18] sm:$0xff]
        %v5970 = vld [vmem:[%s5965 + $0x20] sm:$0xff]
        %v5971 = vld [vmem:[%s5965 + $0x28] sm:$0xff]
        %v5972 = vld [vmem:[%s5965 + $0x30] sm:$0xff]
        %v5973 = vld [vmem:[%s5965 + $0x38] sm:$0xff]
        %v5974 = vld [vmem:[%s5965 + $0x40] sm:$0xff]
        %v5975 = vld [vmem:[%s5965 + $0x48] sm:$0xff]
        %v5976 = vld [vmem:[%s5965 + $0x50] sm:$0xff]
        %v5977 = vld [vmem:[%s5965 + $0x58] sm:$0xff]
        %v5978 = vld [vmem:[%s5965 + $0x60] sm:$0xff]
        %v5979 = vld [vmem:[%s5965 + $0x68] sm:$0xff]
        %v5980 = vld [vmem:[%s5965 + $0x70] sm:$0xff]
        %v5981 = vld [vmem:[%s5965 + $0x78] sm:$0xff]
        %s5982 = scalar_lea.vmem %s8, 1
        %v5983 = vld [vmem:[%s5982] sm:$0x1]
        %v5985 = vlaneseq
        %v5986 = vshrl.u32 %v5985, 7
        %v5987 = vsub.s32 0, %v5986
        %v5988 = vrot.slane %v5983, %v5987
        %5990 = vmatprep.subr.mxu0 0.0
        %v5991 = vand.u32 %v5966, 4294901760
        %5992 = vmatpush1.msra.mxu0 %v5991
        %5993 = vmatprep.subr.mxu0 0.0
        %v5994 = vand.u32 %v5967, 4294901760
        %5995 = vmatpush1.msra.mxu0 %v5994
        %5996 = vmatprep.subr.mxu0 0.0
        %v5997 = vand.u32 %v5968, 4294901760
        %5998 = vmatpush1.msra.mxu0 %v5997
        %5999 = vmatprep.subr.mxu0 0.0
        %v6000 = vand.u32 %v5969, 4294901760
        %6001 = vmatpush1.msra.mxu0 %v6000
        %6002 = vmatprep.subr.mxu0 0.0
        %v6003 = vand.u32 %v5970, 4294901760
        %6004 = vmatpush1.msra.mxu0 %v6003
        %6005 = vmatprep.subr.mxu0 0.0
        %v6006 = vand.u32 %v5971, 4294901760
        %6007 = vmatpush1.msra.mxu0 %v6006
        %6008 = vmatprep.subr.mxu0 0.0
        %v6009 = vand.u32 %v5972, 4294901760
        %6010 = vmatpush1.msra.mxu0 %v6009
        %6011 = vmatprep.subr.mxu0 0.0
        %v6012 = vand.u32 %v5973, 4294901760
        %6013 = vmatpush1.msra.mxu0 %v6012
        %6014 = vmatprep.subr.mxu0 0.0
        %v6015 = vand.u32 %v5974, 4294901760
        %6016 = vmatpush1.msra.mxu0 %v6015
        %6017 = vmatprep.subr.mxu0 0.0
        %v6018 = vand.u32 %v5975, 4294901760
        %6019 = vmatpush1.msra.mxu0 %v6018
        %6020 = vmatprep.subr.mxu0 0.0
        %v6021 = vand.u32 %v5976, 4294901760
        %6022 = vmatpush1.msra.mxu0 %v6021
        %6023 = vmatprep.subr.mxu0 0.0
        %v6024 = vand.u32 %v5977, 4294901760
        %6025 = vmatpush1.msra.mxu0 %v6024
        %6026 = vmatprep.subr.mxu0 0.0
        %v6027 = vand.u32 %v5978, 4294901760
        %6028 = vmatpush1.msra.mxu0 %v6027
        %6029 = vmatprep.subr.mxu0 0.0
        %v6030 = vand.u32 %v5979, 4294901760
        %6031 = vmatpush1.msra.mxu0 %v6030
        %6032 = vmatprep.subr.mxu0 0.0
        %v6033 = vand.u32 %v5980, 4294901760
        %6034 = vmatpush1.msra.mxu0 %v6033
        %6035 = vmatprep.subr.mxu0 0.0
        %v6036 = vand.u32 %v5981, 4294901760
        %6037 = vmatpush1.msra.mxu0 %v6036
        %6038 = vmatprep.subr.mxu0 0.0
        %6039 = vmatpush1.msra.mxu0 0.0
        %6040 = vmatprep.subr.mxu0 0.0
        %6041 = vmatpush1.msra.mxu0 0.0
        %6042 = vmatprep.subr.mxu0 0.0
        %6043 = vmatpush1.msra.mxu0 0.0
        %6044 = vmatprep.subr.mxu0 0.0
        %6045 = vmatpush1.msra.mxu0 0.0
        %6046 = vmatprep.subr.mxu0 0.0
        %6047 = vmatpush1.msra.mxu0 0.0
        %6048 = vmatprep.subr.mxu0 0.0
        %6049 = vmatpush1.msra.mxu0 0.0
        %6050 = vmatprep.subr.mxu0 0.0
        %6051 = vmatpush1.msra.mxu0 0.0
        %6052 = vmatprep.subr.mxu0 0.0
        %6053 = vmatpush1.msra.mxu0 0.0
        %6054 = vmatprep.subr.mxu0 0.0
        %6055 = vmatpush1.msra.mxu0 0.0
        %6056 = vmatprep.subr.mxu0 0.0
        %6057 = vmatpush1.msra.mxu0 0.0
        %6058 = vmatprep.subr.mxu0 0.0
        %6059 = vmatpush1.msra.mxu0 0.0
        %6060 = vmatprep.subr.mxu0 0.0
        %6061 = vmatpush1.msra.mxu0 0.0
        %6062 = vmatprep.subr.mxu0 0.0
        %6063 = vmatpush1.msra.mxu0 0.0
        %6064 = vmatprep.subr.mxu0 0.0
        %6065 = vmatpush1.msra.mxu0 0.0
        %6066 = vmatprep.subr.mxu0 0.0
        %6067 = vmatpush1.msra.mxu0 0.0
        %6068 = vmatprep.subr.mxu0 0.0
        %6069 = vmatpush1.msra.mxu0 0.0
        %6070 = vmatprep.mubr.f32.mxu0 0.0
        %v6071 = vand.u32 %v5949, 4294901760
        %v6072 = vsub.f32 %v5949, %v6071
        %v6073 = vand.u32 %v6072, 4294901760
        %v6074 = vsub.f32 %v6072, %v6073
        %v6075 = vand.u32 %v6074, 4294901760
        %6076 = vmatmul.mubr.f32.gmra.mrb[0].mxu0 %v6075
        %v6077 = vpop.f32.mrb[0].mxu0
        %v6078 = vadd.f32 %v5988, %v6077
        %v6079 = vpop.f32.mrb[0].mxu0
        %6080 = vmatprep.mubr.f32.mxu0 0.0
        %v6081 = vand.u32 %v5950, 4294901760
        %v6082 = vsub.f32 %v5950, %v6081
        %v6083 = vand.u32 %v6082, 4294901760
        %v6084 = vsub.f32 %v6082, %v6083
        %v6085 = vand.u32 %v6084, 4294901760
        %6086 = vmatmul.mubr.f32.gmra.mrb[0].mxu0 %v6085
        %v6087 = vpop.f32.mrb[0].mxu0
        %v6088 = vadd.f32 %v5988, %v6087
        %v6089 = vpop.f32.mrb[0].mxu0
        %6090 = vmatprep.mubr.f32.mxu0 0.0
        %v6091 = vand.u32 %v5951, 4294901760
        %v6092 = vsub.f32 %v5951, %v6091
        %v6093 = vand.u32 %v6092, 4294901760
        %v6094 = vsub.f32 %v6092, %v6093
        %v6095 = vand.u32 %v6094, 4294901760
        %6096 = vmatmul.mubr.f32.gmra.mrb[0].mxu0 %v6095
        %v6097 = vpop.f32.mrb[0].mxu0
        %v6098 = vadd.f32 %v5988, %v6097
        %v6099 = vpop.f32.mrb[0].mxu0
        %6100 = vmatprep.mubr.f32.mxu0 0.0
        %v6101 = vand.u32 %v5952, 4294901760
        %v6102 = vsub.f32 %v5952, %v6101
        %v6103 = vand.u32 %v6102, 4294901760
        %v6104 = vsub.f32 %v6102, %v6103
        %v6105 = vand.u32 %v6104, 4294901760
        %6106 = vmatmul.mubr.f32.gmra.mrb[0].mxu0 %v6105
        %v6107 = vpop.f32.mrb[0].mxu0
        %v6108 = vadd.f32 %v5988, %v6107
        %v6109 = vpop.f32.mrb[0].mxu0
        %6110 = vmatprep.mubr.f32.mxu0 0.0
        %v6111 = vand.u32 %v5953, 4294901760
        %v6112 = vsub.f32 %v5953, %v6111
        %v6113 = vand.u32 %v6112, 4294901760
        %v6114 = vsub.f32 %v6112, %v6113
        %v6115 = vand.u32 %v6114, 4294901760
        %6116 = vmatmul.mubr.f32.gmra.mrb[0].mxu0 %v6115
        %v6117 = vpop.f32.mrb[0].mxu0
        %v6118 = vadd.f32 %v5988, %v6117
        %v6119 = vpop.f32.mrb[0].mxu0
        %6120 = vmatprep.mubr.f32.mxu0 0.0
        %v6121 = vand.u32 %v5954, 4294901760
        %v6122 = vsub.f32 %v5954, %v6121
        %v6123 = vand.u32 %v6122, 4294901760
        %v6124 = vsub.f32 %v6122, %v6123
        %v6125 = vand.u32 %v6124, 4294901760
        %6126 = vmatmul.mubr.f32.gmra.mrb[0].mxu0 %v6125
        %v6127 = vpop.f32.mrb[0].mxu0
        %v6128 = vadd.f32 %v5988, %v6127
        %v6129 = vpop.f32.mrb[0].mxu0
        %6130 = vmatprep.mubr.f32.mxu0 0.0
        %v6131 = vand.u32 %v5955, 4294901760
        %v6132 = vsub.f32 %v5955, %v6131
        %v6133 = vand.u32 %v6132, 4294901760
        %v6134 = vsub.f32 %v6132, %v6133
        %v6135 = vand.u32 %v6134, 4294901760
        %6136 = vmatmul.mubr.f32.gmra.mrb[0].mxu0 %v6135
        %v6137 = vpop.f32.mrb[0].mxu0
        %v6138 = vadd.f32 %v5988, %v6137
        %v6139 = vpop.f32.mrb[0].mxu0
        %6140 = vmatprep.mubr.f32.mxu0 0.0
        %v6141 = vand.u32 %v5956, 4294901760
        %v6142 = vsub.f32 %v5956, %v6141
        %v6143 = vand.u32 %v6142, 4294901760
        %v6144 = vsub.f32 %v6142, %v6143
        %v6145 = vand.u32 %v6144, 4294901760
        %6146 = vmatmul.mubr.f32.gmra.mrb[0].mxu0 %v6145
        %v6147 = vpop.f32.mrb[0].mxu0
        %v6148 = vadd.f32 %v5988, %v6147
        %v6149 = vpop.f32.mrb[0].mxu0
        %6150 = vmatprep.mubr.f32.mxu0 0.0
        %v6151 = vand.u32 %v5957, 4294901760
        %v6152 = vsub.f32 %v5957, %v6151
        %v6153 = vand.u32 %v6152, 4294901760
        %v6154 = vsub.f32 %v6152, %v6153
        %v6155 = vand.u32 %v6154, 4294901760
        %6156 = vmatmul.mubr.f32.gmra.mrb[0].mxu0 %v6155
        %v6157 = vpop.f32.mrb[0].mxu0
        %v6158 = vadd.f32 %v5988, %v6157
        %v6159 = vpop.f32.mrb[0].mxu0
        %6160 = vmatprep.mubr.f32.mxu0 0.0
        %v6161 = vand.u32 %v5958, 4294901760
        %v6162 = vsub.f32 %v5958, %v6161
        %v6163 = vand.u32 %v6162, 4294901760
        %v6164 = vsub.f32 %v6162, %v6163
        %v6165 = vand.u32 %v6164, 4294901760
        %6166 = vmatmul.mubr.f32.gmra.mrb[0].mxu0 %v6165
        %v6167 = vpop.f32.mrb[0].mxu0
        %v6168 = vadd.f32 %v5988, %v6167
        %v6169 = vpop.f32.mrb[0].mxu0
        %6170 = vmatprep.mubr.f32.mxu0 0.0
        %v6171 = vand.u32 %v5959, 4294901760
        %v6172 = vsub.f32 %v5959, %v6171
        %v6173 = vand.u32 %v6172, 4294901760
        %v6174 = vsub.f32 %v6172, %v6173
        %v6175 = vand.u32 %v6174, 4294901760
        %6176 = vmatmul.mubr.f32.gmra.mrb[0].mxu0 %v6175
        %v6177 = vpop.f32.mrb[0].mxu0
        %v6178 = vadd.f32 %v5988, %v6177
        %v6179 = vpop.f32.mrb[0].mxu0
        %6180 = vmatprep.mubr.f32.mxu0 0.0
        %v6181 = vand.u32 %v5960, 4294901760
        %v6182 = vsub.f32 %v5960, %v6181
        %v6183 = vand.u32 %v6182, 4294901760
        %v6184 = vsub.f32 %v6182, %v6183
        %v6185 = vand.u32 %v6184, 4294901760
        %6186 = vmatmul.mubr.f32.gmra.mrb[0].mxu0 %v6185
        %v6187 = vpop.f32.mrb[0].mxu0
        %v6188 = vadd.f32 %v5988, %v6187
        %v6189 = vpop.f32.mrb[0].mxu0
        %6190 = vmatprep.mubr.f32.mxu0 0.0
        %v6191 = vand.u32 %v5961, 4294901760
        %v6192 = vsub.f32 %v5961, %v6191
        %v6193 = vand.u32 %v6192, 4294901760
        %v6194 = vsub.f32 %v6192, %v6193
        %v6195 = vand.u32 %v6194, 4294901760
        %6196 = vmatmul.mubr.f32.gmra.mrb[0].mxu0 %v6195
        %v6197 = vpop.f32.mrb[0].mxu0
        %v6198 = vadd.f32 %v5988, %v6197
        %v6199 = vpop.f32.mrb[0].mxu0
        %6200 = vmatprep.mubr.f32.mxu0 0.0
        %v6201 = vand.u32 %v5962, 4294901760
        %v6202 = vsub.f32 %v5962, %v6201
        %v6203 = vand.u32 %v6202, 4294901760
        %v6204 = vsub.f32 %v6202, %v6203
        %v6205 = vand.u32 %v6204, 4294901760
        %6206 = vmatmul.mubr.f32.gmra.mrb[0].mxu0 %v6205
        %v6207 = vpop.f32.mrb[0].mxu0
        %v6208 = vadd.f32 %v5988, %v6207
        %v6209 = vpop.f32.mrb[0].mxu0
        %6210 = vmatprep.mubr.f32.mxu0 0.0
        %v6211 = vand.u32 %v5963, 4294901760
        %v6212 = vsub.f32 %v5963, %v6211
        %v6213 = vand.u32 %v6212, 4294901760
        %v6214 = vsub.f32 %v6212, %v6213
        %v6215 = vand.u32 %v6214, 4294901760
        %6216 = vmatmul.mubr.f32.gmra.mrb[0].mxu0 %v6215
        %v6217 = vpop.f32.mrb[0].mxu0
        %v6218 = vadd.f32 %v5988, %v6217
        %v6219 = vpop.f32.mrb[0].mxu0
        %6220 = vmatprep.mubr.f32.mxu0 0.0
        %v6221 = vand.u32 %v5964, 4294901760
        %v6222 = vsub.f32 %v5964, %v6221
        %v6223 = vand.u32 %v6222, 4294901760
        %v6224 = vsub.f32 %v6222, %v6223
        %v6225 = vand.u32 %v6224, 4294901760
        %6226 = vmatmul.mubr.f32.gmra.mrb[0].mxu0 %v6225
        %v6227 = vpop.f32.mrb[0].mxu0
        %v6228 = vadd.f32 %v5988, %v6227
        %v6229 = vpop.f32.mrb[0].mxu0
        %6230 = vdwg.mxu0
        %6231 = vmatprep.subr.mxu0 0.0
        %v6232 = vand.u32 %v5966, 4294901760
        %v6233 = vsub.f32 %v5966, %v6232
        %v6234 = vand.u32 %v6233, 4294901760
        %v6235 = vsub.f32 %v6233, %v6234
        %v6236 = vand.u32 %v6235, 4294901760
        %6237 = vmatpush1.msra.mxu0 %v6236
        %6238 = vmatprep.subr.mxu0 0.0
        %v6239 = vand.u32 %v5967, 4294901760
        %v6240 = vsub.f32 %v5967, %v6239
        %v6241 = vand.u32 %v6240, 4294901760
        %v6242 = vsub.f32 %v6240, %v6241
        %v6243 = vand.u32 %v6242, 4294901760
        %6244 = vmatpush1.msra.mxu0 %v6243
        %6245 = vmatprep.subr.mxu0 0.0
        %v6246 = vand.u32 %v5968, 4294901760
        %v6247 = vsub.f32 %v5968, %v6246
        %v6248 = vand.u32 %v6247, 4294901760
        %v6249 = vsub.f32 %v6247, %v6248
        %v6250 = vand.u32 %v6249, 4294901760
        %6251 = vmatpush1.msra.mxu0 %v6250
        %6252 = vmatprep.subr.mxu0 0.0
        %v6253 = vand.u32 %v5969, 4294901760
        %v6254 = vsub.f32 %v5969, %v6253
        %v6255 = vand.u32 %v6254, 4294901760
        %v6256 = vsub.f32 %v6254, %v6255
        %v6257 = vand.u32 %v6256, 4294901760
        %6258 = vmatpush1.msra.mxu0 %v6257
        %6259 = vmatprep.subr.mxu0 0.0
        %v6260 = vand.u32 %v5970, 4294901760
        %v6261 = vsub.f32 %v5970, %v6260
        %v6262 = vand.u32 %v6261, 4294901760
        %v6263 = vsub.f32 %v6261, %v6262
        %v6264 = vand.u32 %v6263, 4294901760
        %6265 = vmatpush1.msra.mxu0 %v6264
        %6266 = vmatprep.subr.mxu0 0.0
        %v6267 = vand.u32 %v5971, 4294901760
        %v6268 = vsub.f32 %v5971, %v6267
        %v6269 = vand.u32 %v6268, 4294901760
        %v6270 = vsub.f32 %v6268, %v6269
        %v6271 = vand.u32 %v6270, 4294901760
        %6272 = vmatpush1.msra.mxu0 %v6271
        %6273 = vmatprep.subr.mxu0 0.0
        %v6274 = vand.u32 %v5972, 4294901760
        %v6275 = vsub.f32 %v5972, %v6274
        %v6276 = vand.u32 %v6275, 4294901760
        %v6277 = vsub.f32 %v6275, %v6276
        %v6278 = vand.u32 %v6277, 4294901760
        %6279 = vmatpush1.msra.mxu0 %v6278
        %6280 = vmatprep.subr.mxu0 0.0
        %v6281 = vand.u32 %v5973, 4294901760
        %v6282 = vsub.f32 %v5973, %v6281
        %v6283 = vand.u32 %v6282, 4294901760
        %v6284 = vsub.f32 %v6282, %v6283
        %v6285 = vand.u32 %v6284, 4294901760
        %6286 = vmatpush1.msra.mxu0 %v6285
        %6287 = vmatprep.subr.mxu0 0.0
        %v6288 = vand.u32 %v5974, 4294901760
        %v6289 = vsub.f32 %v5974, %v6288
        %v6290 = vand.u32 %v6289, 4294901760
        %v6291 = vsub.f32 %v6289, %v6290
        %v6292 = vand.u32 %v6291, 4294901760
        %6293 = vmatpush1.msra.mxu0 %v6292
        %6294 = vmatprep.subr.mxu0 0.0
        %v6295 = vand.u32 %v5975, 4294901760
        %v6296 = vsub.f32 %v5975, %v6295
        %v6297 = vand.u32 %v6296, 4294901760
        %v6298 = vsub.f32 %v6296, %v6297
        %v6299 = vand.u32 %v6298, 4294901760
        %6300 = vmatpush1.msra.mxu0 %v6299
        %6301 = vmatprep.subr.mxu0 0.0
        %v6302 = vand.u32 %v5976, 4294901760
        %v6303 = vsub.f32 %v5976, %v6302
        %v6304 = vand.u32 %v6303, 4294901760
        %v6305 = vsub.f32 %v6303, %v6304
        %v6306 = vand.u32 %v6305, 4294901760
        %6307 = vmatpush1.msra.mxu0 %v6306
        %6308 = vmatprep.subr.mxu0 0.0
        %v6309 = vand.u32 %v5977, 4294901760
        %v6310 = vsub.f32 %v5977, %v6309
        %v6311 = vand.u32 %v6310, 4294901760
        %v6312 = vsub.f32 %v6310, %v6311
        %v6313 = vand.u32 %v6312, 4294901760
        %6314 = vmatpush1.msra.mxu0 %v6313
        %6315 = vmatprep.subr.mxu0 0.0
        %v6316 = vand.u32 %v5978, 4294901760
        %v6317 = vsub.f32 %v5978, %v6316
        %v6318 = vand.u32 %v6317, 4294901760
        %v6319 = vsub.f32 %v6317, %v6318
        %v6320 = vand.u32 %v6319, 4294901760
        %6321 = vmatpush1.msra.mxu0 %v6320
        %6322 = vmatprep.subr.mxu0 0.0
        %v6323 = vand.u32 %v5979, 4294901760
        %v6324 = vsub.f32 %v5979, %v6323
        %v6325 = vand.u32 %v6324, 4294901760
        %v6326 = vsub.f32 %v6324, %v6325
        %v6327 = vand.u32 %v6326, 4294901760
        %6328 = vmatpush1.msra.mxu0 %v6327
        %6329 = vmatprep.subr.mxu0 0.0
        %v6330 = vand.u32 %v5980, 4294901760
        %v6331 = vsub.f32 %v5980, %v6330
        %v6332 = vand.u32 %v6331, 4294901760
        %v6333 = vsub.f32 %v6331, %v6332
        %v6334 = vand.u32 %v6333, 4294901760
        %6335 = vmatpush1.msra.mxu0 %v6334
        %6336 = vmatprep.subr.mxu0 0.0
        %v6337 = vand.u32 %v5981, 4294901760
        %v6338 = vsub.f32 %v5981, %v6337
        %v6339 = vand.u32 %v6338, 4294901760
        %v6340 = vsub.f32 %v6338, %v6339
        %v6341 = vand.u32 %v6340, 4294901760
        %6342 = vmatpush1.msra.mxu0 %v6341
        %6343 = vmatprep.subr.mxu0 0.0
        %6344 = vmatpush1.msra.mxu0 0.0
        %6345 = vmatprep.subr.mxu0 0.0
        %6346 = vmatpush1.msra.mxu0 0.0
        %6347 = vmatprep.subr.mxu0 0.0
        %6348 = vmatpush1.msra.mxu0 0.0
        %6349 = vmatprep.subr.mxu0 0.0
        %6350 = vmatpush1.msra.mxu0 0.0
        %6351 = vmatprep.subr.mxu0 0.0
        %6352 = vmatpush1.msra.mxu0 0.0
        %6353 = vmatprep.subr.mxu0 0.0
        %6354 = vmatpush1.msra.mxu0 0.0
        %6355 = vmatprep.subr.mxu0 0.0
        %6356 = vmatpush1.msra.mxu0 0.0
        %6357 = vmatprep.subr.mxu0 0.0
        %6358 = vmatpush1.msra.mxu0 0.0
        %6359 = vmatprep.subr.mxu0 0.0
        %6360 = vmatpush1.msra.mxu0 0.0
        %6361 = vmatprep.subr.mxu0 0.0
        %6362 = vmatpush1.msra.mxu0 0.0
        %6363 = vmatprep.subr.mxu0 0.0
        %6364 = vmatpush1.msra.mxu0 0.0
        %6365 = vmatprep.subr.mxu0 0.0
        %6366 = vmatpush1.msra.mxu0 0.0
        %6367 = vmatprep.subr.mxu0 0.0
        %6368 = vmatpush1.msra.mxu0 0.0
        %6369 = vmatprep.subr.mxu0 0.0
        %6370 = vmatpush1.msra.mxu0 0.0
        %6371 = vmatprep.subr.mxu0 0.0
        %6372 = vmatpush1.msra.mxu0 0.0
        %6373 = vmatprep.subr.mxu0 0.0
        %6374 = vmatpush1.msra.mxu0 0.0
        %6375 = vmatprep.mubr.f32.mxu0 0.0
        %v6376 = vand.u32 %v5949, 4294901760
        %6377 = vmatmul.mubr.f32.gmra.mrb[0].mxu0 %v6376
        %v6378 = vpop.f32.mrb[0].mxu0
        %v6379 = vadd.f32 %v6078, %v6378
        %v6380 = vpop.f32.mrb[0].mxu0
        %6381 = vmatprep.mubr.f32.mxu0 0.0
        %v6382 = vand.u32 %v5950, 4294901760
        %6383 = vmatmul.mubr.f32.gmra.mrb[0].mxu0 %v6382
        %v6384 = vpop.f32.mrb[0].mxu0
        %v6385 = vadd.f32 %v6088, %v6384
        %v6386 = vpop.f32.mrb[0].mxu0
        %6387 = vmatprep.mubr.f32.mxu0 0.0
        %v6388 = vand.u32 %v5951, 4294901760
        %6389 = vmatmul.mubr.f32.gmra.mrb[0].mxu0 %v6388
        %v6390 = vpop.f32.mrb[0].mxu0
        %v6391 = vadd.f32 %v6098, %v6390
        %v6392 = vpop.f32.mrb[0].mxu0
        %6393 = vmatprep.mubr.f32.mxu0 0.0
        %v6394 = vand.u32 %v5952, 4294901760
        %6395 = vmatmul.mubr.f32.gmra.mrb[0].mxu0 %v6394
        %v6396 = vpop.f32.mrb[0].mxu0
        %v6397 = vadd.f32 %v6108, %v6396
        %v6398 = vpop.f32.mrb[0].mxu0
        %6399 = vmatprep.mubr.f32.mxu0 0.0
        %v6400 = vand.u32 %v5953, 4294901760
        %6401 = vmatmul.mubr.f32.gmra.mrb[0].mxu0 %v6400
        %v6402 = vpop.f32.mrb[0].mxu0
        %v6403 = vadd.f32 %v6118, %v6402
        %v6404 = vpop.f32.mrb[0].mxu0
        %6405 = vmatprep.mubr.f32.mxu0 0.0
        %v6406 = vand.u32 %v5954, 4294901760
        %6407 = vmatmul.mubr.f32.gmra.mrb[0].mxu0 %v6406
        %v6408 = vpop.f32.mrb[0].mxu0
        %v6409 = vadd.f32 %v6128, %v6408
        %v6410 = vpop.f32.mrb[0].mxu0
        %6411 = vmatprep.mubr.f32.mxu0 0.0
        %v6412 = vand.u32 %v5955, 4294901760
        %6413 = vmatmul.mubr.f32.gmra.mrb[0].mxu0 %v6412
        %v6414 = vpop.f32.mrb[0].mxu0
        %v6415 = vadd.f32 %v6138, %v6414
        %v6416 = vpop.f32.mrb[0].mxu0
        %6417 = vmatprep.mubr.f32.mxu0 0.0
        %v6418 = vand.u32 %v5956, 4294901760
        %6419 = vmatmul.mubr.f32.gmra.mrb[0].mxu0 %v6418
        %v6420 = vpop.f32.mrb[0].mxu0
        %v6421 = vadd.f32 %v6148, %v6420
        %v6422 = vpop.f32.mrb[0].mxu0
        %6423 = vmatprep.mubr.f32.mxu0 0.0
        %v6424 = vand.u32 %v5957, 4294901760
        %6425 = vmatmul.mubr.f32.gmra.mrb[0].mxu0 %v6424
        %v6426 = vpop.f32.mrb[0].mxu0
        %v6427 = vadd.f32 %v6158, %v6426
        %v6428 = vpop.f32.mrb[0].mxu0
        %6429 = vmatprep.mubr.f32.mxu0 0.0
        %v6430 = vand.u32 %v5958, 4294901760
        %6431 = vmatmul.mubr.f32.gmra.mrb[0].mxu0 %v6430
        %v6432 = vpop.f32.mrb[0].mxu0
        %v6433 = vadd.f32 %v6168, %v6432
        %v6434 = vpop.f32.mrb[0].mxu0
        %6435 = vmatprep.mubr.f32.mxu0 0.0
        %v6436 = vand.u32 %v5959, 4294901760
        %6437 = vmatmul.mubr.f32.gmra.mrb[0].mxu0 %v6436
        %v6438 = vpop.f32.mrb[0].mxu0
        %v6439 = vadd.f32 %v6178, %v6438
        %v6440 = vpop.f32.mrb[0].mxu0
        %6441 = vmatprep.mubr.f32.mxu0 0.0
        %v6442 = vand.u32 %v5960, 4294901760
        %6443 = vmatmul.mubr.f32.gmra.mrb[0].mxu0 %v6442
        %v6444 = vpop.f32.mrb[0].mxu0
        %v6445 = vadd.f32 %v6188, %v6444
        %v6446 = vpop.f32.mrb[0].mxu0
        %6447 = vmatprep.mubr.f32.mxu0 0.0
        %v6448 = vand.u32 %v5961, 4294901760
        %6449 = vmatmul.mubr.f32.gmra.mrb[0].mxu0 %v6448
        %v6450 = vpop.f32.mrb[0].mxu0
        %v6451 = vadd.f32 %v6198, %v6450
        %v6452 = vpop.f32.mrb[0].mxu0
        %6453 = vmatprep.mubr.f32.mxu0 0.0
        %v6454 = vand.u32 %v5962, 4294901760
        %6455 = vmatmul.mubr.f32.gmra.mrb[0].mxu0 %v6454
        %v6456 = vpop.f32.mrb[0].mxu0
        %v6457 = vadd.f32 %v6208, %v6456
        %v6458 = vpop.f32.mrb[0].mxu0
        %6459 = vmatprep.mubr.f32.mxu0 0.0
        %v6460 = vand.u32 %v5963, 4294901760
        %6461 = vmatmul.mubr.f32.gmra.mrb[0].mxu0 %v6460
        %v6462 = vpop.f32.mrb[0].mxu0
        %v6463 = vadd.f32 %v6218, %v6462
        %v6464 = vpop.f32.mrb[0].mxu0
        %6465 = vmatprep.mubr.f32.mxu0 0.0
        %v6466 = vand.u32 %v5964, 4294901760
        %6467 = vmatmul.mubr.f32.gmra.mrb[0].mxu0 %v6466
        %v6468 = vpop.f32.mrb[0].mxu0
        %v6469 = vadd.f32 %v6228, %v6468
        %v6470 = vpop.f32.mrb[0].mxu0
        %6471 = vdwg.mxu0
        %6472 = vmatprep.subr.mxu0 0.0
        %v6473 = vand.u32 %v5966, 4294901760
        %v6474 = vsub.f32 %v5966, %v6473
        %6475 = vmatpush1.msra.mxu0 %v6474
        %6476 = vmatprep.subr.mxu0 0.0
        %v6477 = vand.u32 %v5967, 4294901760
        %v6478 = vsub.f32 %v5967, %v6477
        %6479 = vmatpush1.msra.mxu0 %v6478
        %6480 = vmatprep.subr.mxu0 0.0
        %v6481 = vand.u32 %v5968, 4294901760
        %v6482 = vsub.f32 %v5968, %v6481
        %6483 = vmatpush1.msra.mxu0 %v6482
        %6484 = vmatprep.subr.mxu0 0.0
        %v6485 = vand.u32 %v5969, 4294901760
        %v6486 = vsub.f32 %v5969, %v6485
        %6487 = vmatpush1.msra.mxu0 %v6486
        %6488 = vmatprep.subr.mxu0 0.0
        %v6489 = vand.u32 %v5970, 4294901760
        %v6490 = vsub.f32 %v5970, %v6489
        %6491 = vmatpush1.msra.mxu0 %v6490
        %6492 = vmatprep.subr.mxu0 0.0
        %v6493 = vand.u32 %v5971, 4294901760
        %v6494 = vsub.f32 %v5971, %v6493
        %6495 = vmatpush1.msra.mxu0 %v6494
        %6496 = vmatprep.subr.mxu0 0.0
        %v6497 = vand.u32 %v5972, 4294901760
        %v6498 = vsub.f32 %v5972, %v6497
        %6499 = vmatpush1.msra.mxu0 %v6498
        %6500 = vmatprep.subr.mxu0 0.0
        %v6501 = vand.u32 %v5973, 4294901760
        %v6502 = vsub.f32 %v5973, %v6501
        %6503 = vmatpush1.msra.mxu0 %v6502
        %6504 = vmatprep.subr.mxu0 0.0
        %v6505 = vand.u32 %v5974, 4294901760
        %v6506 = vsub.f32 %v5974, %v6505
        %6507 = vmatpush1.msra.mxu0 %v6506
        %6508 = vmatprep.subr.mxu0 0.0
        %v6509 = vand.u32 %v5975, 4294901760
        %v6510 = vsub.f32 %v5975, %v6509
        %6511 = vmatpush1.msra.mxu0 %v6510
        %6512 = vmatprep.subr.mxu0 0.0
        %v6513 = vand.u32 %v5976, 4294901760
        %v6514 = vsub.f32 %v5976, %v6513
        %6515 = vmatpush1.msra.mxu0 %v6514
        %6516 = vmatprep.subr.mxu0 0.0
        %v6517 = vand.u32 %v5977, 4294901760
        %v6518 = vsub.f32 %v5977, %v6517
        %6519 = vmatpush1.msra.mxu0 %v6518
        %6520 = vmatprep.subr.mxu0 0.0
        %v6521 = vand.u32 %v5978, 4294901760
        %v6522 = vsub.f32 %v5978, %v6521
        %6523 = vmatpush1.msra.mxu0 %v6522
        %6524 = vmatprep.subr.mxu0 0.0
        %v6525 = vand.u32 %v5979, 4294901760
        %v6526 = vsub.f32 %v5979, %v6525
        %6527 = vmatpush1.msra.mxu0 %v6526
        %6528 = vmatprep.subr.mxu0 0.0
        %v6529 = vand.u32 %v5980, 4294901760
        %v6530 = vsub.f32 %v5980, %v6529
        %6531 = vmatpush1.msra.mxu0 %v6530
        %6532 = vmatprep.subr.mxu0 0.0
        %v6533 = vand.u32 %v5981, 4294901760
        %v6534 = vsub.f32 %v5981, %v6533
        %6535 = vmatpush1.msra.mxu0 %v6534
        %6536 = vmatprep.subr.mxu0 0.0
        %6537 = vmatpush1.msra.mxu0 0.0
        %6538 = vmatprep.subr.mxu0 0.0
        %6539 = vmatpush1.msra.mxu0 0.0
        %6540 = vmatprep.subr.mxu0 0.0
        %6541 = vmatpush1.msra.mxu0 0.0
        %6542 = vmatprep.subr.mxu0 0.0
        %6543 = vmatpush1.msra.mxu0 0.0
        %6544 = vmatprep.subr.mxu0 0.0
        %6545 = vmatpush1.msra.mxu0 0.0
        %6546 = vmatprep.subr.mxu0 0.0
        %6547 = vmatpush1.msra.mxu0 0.0
        %6548 = vmatprep.subr.mxu0 0.0
        %6549 = vmatpush1.msra.mxu0 0.0
        %6550 = vmatprep.subr.mxu0 0.0
        %6551 = vmatpush1.msra.mxu0 0.0
        %6552 = vmatprep.subr.mxu0 0.0
        %6553 = vmatpush1.msra.mxu0 0.0
        %6554 = vmatprep.subr.mxu0 0.0
        %6555 = vmatpush1.msra.mxu0 0.0
        %6556 = vmatprep.subr.mxu0 0.0
        %6557 = vmatpush1.msra.mxu0 0.0
        %6558 = vmatprep.subr.mxu0 0.0
        %6559 = vmatpush1.msra.mxu0 0.0
        %6560 = vmatprep.subr.mxu0 0.0
        %6561 = vmatpush1.msra.mxu0 0.0
        %6562 = vmatprep.subr.mxu0 0.0
        %6563 = vmatpush1.msra.mxu0 0.0
        %6564 = vmatprep.subr.mxu0 0.0
        %6565 = vmatpush1.msra.mxu0 0.0
        %6566 = vmatprep.subr.mxu0 0.0
        %6567 = vmatpush1.msra.mxu0 0.0
        %6568 = vmatprep.mubr.f32.mxu0 0.0
        %v6569 = vand.u32 %v5949, 4294901760
        %v6570 = vsub.f32 %v5949, %v6569
        %6571 = vmatmul.mubr.f32.gmra.mrb[0].mxu0 %v6570
        %v6572 = vpop.f32.mrb[0].mxu0
        %v6573 = vadd.f32 %v6379, %v6572
        %v6574 = vpop.f32.mrb[0].mxu0
        %6575 = vmatprep.mubr.f32.mxu0 0.0
        %v6576 = vand.u32 %v5950, 4294901760
        %v6577 = vsub.f32 %v5950, %v6576
        %6578 = vmatmul.mubr.f32.gmra.mrb[0].mxu0 %v6577
        %v6579 = vpop.f32.mrb[0].mxu0
        %v6580 = vadd.f32 %v6385, %v6579
        %v6581 = vpop.f32.mrb[0].mxu0
        %6582 = vmatprep.mubr.f32.mxu0 0.0
        %v6583 = vand.u32 %v5951, 4294901760
        %v6584 = vsub.f32 %v5951, %v6583
        %6585 = vmatmul.mubr.f32.gmra.mrb[0].mxu0 %v6584
        %v6586 = vpop.f32.mrb[0].mxu0
        %v6587 = vadd.f32 %v6391, %v6586
        %v6588 = vpop.f32.mrb[0].mxu0
        %6589 = vmatprep.mubr.f32.mxu0 0.0
        %v6590 = vand.u32 %v5952, 4294901760
        %v6591 = vsub.f32 %v5952, %v6590
        %6592 = vmatmul.mubr.f32.gmra.mrb[0].mxu0 %v6591
        %v6593 = vpop.f32.mrb[0].mxu0
        %v6594 = vadd.f32 %v6397, %v6593
        %v6595 = vpop.f32.mrb[0].mxu0
        %6596 = vmatprep.mubr.f32.mxu0 0.0
        %v6597 = vand.u32 %v5953, 4294901760
        %v6598 = vsub.f32 %v5953, %v6597
        %6599 = vmatmul.mubr.f32.gmra.mrb[0].mxu0 %v6598
        %v6600 = vpop.f32.mrb[0].mxu0
        %v6601 = vadd.f32 %v6403, %v6600
        %v6602 = vpop.f32.mrb[0].mxu0
        %6603 = vmatprep.mubr.f32.mxu0 0.0
        %v6604 = vand.u32 %v5954, 4294901760
        %v6605 = vsub.f32 %v5954, %v6604
        %6606 = vmatmul.mubr.f32.gmra.mrb[0].mxu0 %v6605
        %v6607 = vpop.f32.mrb[0].mxu0
        %v6608 = vadd.f32 %v6409, %v6607
        %v6609 = vpop.f32.mrb[0].mxu0
        %6610 = vmatprep.mubr.f32.mxu0 0.0
        %v6611 = vand.u32 %v5955, 4294901760
        %v6612 = vsub.f32 %v5955, %v6611
        %6613 = vmatmul.mubr.f32.gmra.mrb[0].mxu0 %v6612
        %v6614 = vpop.f32.mrb[0].mxu0
        %v6615 = vadd.f32 %v6415, %v6614
        %v6616 = vpop.f32.mrb[0].mxu0
        %6617 = vmatprep.mubr.f32.mxu0 0.0
        %v6618 = vand.u32 %v5956, 4294901760
        %v6619 = vsub.f32 %v5956, %v6618
        %6620 = vmatmul.mubr.f32.gmra.mrb[0].mxu0 %v6619
        %v6621 = vpop.f32.mrb[0].mxu0
        %v6622 = vadd.f32 %v6421, %v6621
        %v6623 = vpop.f32.mrb[0].mxu0
        %6624 = vmatprep.mubr.f32.mxu0 0.0
        %v6625 = vand.u32 %v5957, 4294901760
        %v6626 = vsub.f32 %v5957, %v6625
        %6627 = vmatmul.mubr.f32.gmra.mrb[0].mxu0 %v6626
        %v6628 = vpop.f32.mrb[0].mxu0
        %v6629 = vadd.f32 %v6427, %v6628
        %v6630 = vpop.f32.mrb[0].mxu0
        %6631 = vmatprep.mubr.f32.mxu0 0.0
        %v6632 = vand.u32 %v5958, 4294901760
        %v6633 = vsub.f32 %v5958, %v6632
        %6634 = vmatmul.mubr.f32.gmra.mrb[0].mxu0 %v6633
        %v6635 = vpop.f32.mrb[0].mxu0
        %v6636 = vadd.f32 %v6433, %v6635
        %v6637 = vpop.f32.mrb[0].mxu0
        %6638 = vmatprep.mubr.f32.mxu0 0.0
        %v6639 = vand.u32 %v5959, 4294901760
        %v6640 = vsub.f32 %v5959, %v6639
        %6641 = vmatmul.mubr.f32.gmra.mrb[0].mxu0 %v6640
        %v6642 = vpop.f32.mrb[0].mxu0
        %v6643 = vadd.f32 %v6439, %v6642
        %v6644 = vpop.f32.mrb[0].mxu0
        %6645 = vmatprep.mubr.f32.mxu0 0.0
        %v6646 = vand.u32 %v5960, 4294901760
        %v6647 = vsub.f32 %v5960, %v6646
        %6648 = vmatmul.mubr.f32.gmra.mrb[0].mxu0 %v6647
        %v6649 = vpop.f32.mrb[0].mxu0
        %v6650 = vadd.f32 %v6445, %v6649
        %v6651 = vpop.f32.mrb[0].mxu0
        %6652 = vmatprep.mubr.f32.mxu0 0.0
        %v6653 = vand.u32 %v5961, 4294901760
        %v6654 = vsub.f32 %v5961, %v6653
        %6655 = vmatmul.mubr.f32.gmra.mrb[0].mxu0 %v6654
        %v6656 = vpop.f32.mrb[0].mxu0
        %v6657 = vadd.f32 %v6451, %v6656
        %v6658 = vpop.f32.mrb[0].mxu0
        %6659 = vmatprep.mubr.f32.mxu0 0.0
        %v6660 = vand.u32 %v5962, 4294901760
        %v6661 = vsub.f32 %v5962, %v6660
        %6662 = vmatmul.mubr.f32.gmra.mrb[0].mxu0 %v6661
        %v6663 = vpop.f32.mrb[0].mxu0
        %v6664 = vadd.f32 %v6457, %v6663
        %v6665 = vpop.f32.mrb[0].mxu0
        %6666 = vmatprep.mubr.f32.mxu0 0.0
        %v6667 = vand.u32 %v5963, 4294901760
        %v6668 = vsub.f32 %v5963, %v6667
        %6669 = vmatmul.mubr.f32.gmra.mrb[0].mxu0 %v6668
        %v6670 = vpop.f32.mrb[0].mxu0
        %v6671 = vadd.f32 %v6463, %v6670
        %v6672 = vpop.f32.mrb[0].mxu0
        %6673 = vmatprep.mubr.f32.mxu0 0.0
        %v6674 = vand.u32 %v5964, 4294901760
        %v6675 = vsub.f32 %v5964, %v6674
        %6676 = vmatmul.mubr.f32.gmra.mrb[0].mxu0 %v6675
        %v6677 = vpop.f32.mrb[0].mxu0
        %v6678 = vadd.f32 %v6469, %v6677
        %v6679 = vpop.f32.mrb[0].mxu0
        %6680 = vdwg.mxu0
        %6681 = vmatprep.subr.mxu0 0.0
        %v6682 = vand.u32 %v5966, 4294901760
        %6683 = vmatpush1.msra.mxu0 %v6682
        %6684 = vmatprep.subr.mxu0 0.0
        %v6685 = vand.u32 %v5967, 4294901760
        %6686 = vmatpush1.msra.mxu0 %v6685
        %6687 = vmatprep.subr.mxu0 0.0
        %v6688 = vand.u32 %v5968, 4294901760
        %6689 = vmatpush1.msra.mxu0 %v6688
        %6690 = vmatprep.subr.mxu0 0.0
        %v6691 = vand.u32 %v5969, 4294901760
        %6692 = vmatpush1.msra.mxu0 %v6691
        %6693 = vmatprep.subr.mxu0 0.0
        %v6694 = vand.u32 %v5970, 4294901760
        %6695 = vmatpush1.msra.mxu0 %v6694
        %6696 = vmatprep.subr.mxu0 0.0
        %v6697 = vand.u32 %v5971, 4294901760
        %6698 = vmatpush1.msra.mxu0 %v6697
        %6699 = vmatprep.subr.mxu0 0.0
        %v6700 = vand.u32 %v5972, 4294901760
        %6701 = vmatpush1.msra.mxu0 %v6700
        %6702 = vmatprep.subr.mxu0 0.0
        %v6703 = vand.u32 %v5973, 4294901760
        %6704 = vmatpush1.msra.mxu0 %v6703
        %6705 = vmatprep.subr.mxu0 0.0
        %v6706 = vand.u32 %v5974, 4294901760
        %6707 = vmatpush1.msra.mxu0 %v6706
        %6708 = vmatprep.subr.mxu0 0.0
        %v6709 = vand.u32 %v5975, 4294901760
        %6710 = vmatpush1.msra.mxu0 %v6709
        %6711 = vmatprep.subr.mxu0 0.0
        %v6712 = vand.u32 %v5976, 4294901760
        %6713 = vmatpush1.msra.mxu0 %v6712
        %6714 = vmatprep.subr.mxu0 0.0
        %v6715 = vand.u32 %v5977, 4294901760
        %6716 = vmatpush1.msra.mxu0 %v6715
        %6717 = vmatprep.subr.mxu0 0.0
        %v6718 = vand.u32 %v5978, 4294901760
        %6719 = vmatpush1.msra.mxu0 %v6718
        %6720 = vmatprep.subr.mxu0 0.0
        %v6721 = vand.u32 %v5979, 4294901760
        %6722 = vmatpush1.msra.mxu0 %v6721
        %6723 = vmatprep.subr.mxu0 0.0
        %v6724 = vand.u32 %v5980, 4294901760
        %6725 = vmatpush1.msra.mxu0 %v6724
        %6726 = vmatprep.subr.mxu0 0.0
        %v6727 = vand.u32 %v5981, 4294901760
        %6728 = vmatpush1.msra.mxu0 %v6727
        %6729 = vmatprep.subr.mxu0 0.0
        %6730 = vmatpush1.msra.mxu0 0.0
        %6731 = vmatprep.subr.mxu0 0.0
        %6732 = vmatpush1.msra.mxu0 0.0
        %6733 = vmatprep.subr.mxu0 0.0
        %6734 = vmatpush1.msra.mxu0 0.0
        %6735 = vmatprep.subr.mxu0 0.0
        %6736 = vmatpush1.msra.mxu0 0.0
        %6737 = vmatprep.subr.mxu0 0.0
        %6738 = vmatpush1.msra.mxu0 0.0
        %6739 = vmatprep.subr.mxu0 0.0
        %6740 = vmatpush1.msra.mxu0 0.0
        %6741 = vmatprep.subr.mxu0 0.0
        %6742 = vmatpush1.msra.mxu0 0.0
        %6743 = vmatprep.subr.mxu0 0.0
        %6744 = vmatpush1.msra.mxu0 0.0
        %6745 = vmatprep.subr.mxu0 0.0
        %6746 = vmatpush1.msra.mxu0 0.0
        %6747 = vmatprep.subr.mxu0 0.0
        %6748 = vmatpush1.msra.mxu0 0.0
        %6749 = vmatprep.subr.mxu0 0.0
        %6750 = vmatpush1.msra.mxu0 0.0
        %6751 = vmatprep.subr.mxu0 0.0
        %6752 = vmatpush1.msra.mxu0 0.0
        %6753 = vmatprep.subr.mxu0 0.0
        %6754 = vmatpush1.msra.mxu0 0.0
        %6755 = vmatprep.subr.mxu0 0.0
        %6756 = vmatpush1.msra.mxu0 0.0
        %6757 = vmatprep.subr.mxu0 0.0
        %6758 = vmatpush1.msra.mxu0 0.0
        %6759 = vmatprep.subr.mxu0 0.0
        %6760 = vmatpush1.msra.mxu0 0.0
        %6761 = vmatprep.mubr.f32.mxu0 0.0
        %v6762 = vand.u32 %v5949, 4294901760
        %v6763 = vsub.f32 %v5949, %v6762
        %v6764 = vand.u32 %v6763, 4294901760
        %6765 = vmatmul.mubr.f32.gmra.mrb[0].mxu0 %v6764
        %v6766 = vpop.f32.mrb[0].mxu0
        %v6767 = vadd.f32 %v6573, %v6766
        %v6768 = vpop.f32.mrb[0].mxu0
        %6769 = vmatprep.mubr.f32.mxu0 0.0
        %v6770 = vand.u32 %v5950, 4294901760
        %v6771 = vsub.f32 %v5950, %v6770
        %v6772 = vand.u32 %v6771, 4294901760
        %6773 = vmatmul.mubr.f32.gmra.mrb[0].mxu0 %v6772
        %v6774 = vpop.f32.mrb[0].mxu0
        %v6775 = vadd.f32 %v6580, %v6774
        %v6776 = vpop.f32.mrb[0].mxu0
        %6777 = vmatprep.mubr.f32.mxu0 0.0
        %v6778 = vand.u32 %v5951, 4294901760
        %v6779 = vsub.f32 %v5951, %v6778
        %v6780 = vand.u32 %v6779, 4294901760
        %6781 = vmatmul.mubr.f32.gmra.mrb[0].mxu0 %v6780
        %v6782 = vpop.f32.mrb[0].mxu0
        %v6783 = vadd.f32 %v6587, %v6782
        %v6784 = vpop.f32.mrb[0].mxu0
        %6785 = vmatprep.mubr.f32.mxu0 0.0
        %v6786 = vand.u32 %v5952, 4294901760
        %v6787 = vsub.f32 %v5952, %v6786
        %v6788 = vand.u32 %v6787, 4294901760
        %6789 = vmatmul.mubr.f32.gmra.mrb[0].mxu0 %v6788
        %v6790 = vpop.f32.mrb[0].mxu0
        %v6791 = vadd.f32 %v6594, %v6790
        %v6792 = vpop.f32.mrb[0].mxu0
        %6793 = vmatprep.mubr.f32.mxu0 0.0
        %v6794 = vand.u32 %v5953, 4294901760
        %v6795 = vsub.f32 %v5953, %v6794
        %v6796 = vand.u32 %v6795, 4294901760
        %6797 = vmatmul.mubr.f32.gmra.mrb[0].mxu0 %v6796
        %v6798 = vpop.f32.mrb[0].mxu0
        %v6799 = vadd.f32 %v6601, %v6798
        %v6800 = vpop.f32.mrb[0].mxu0
        %6801 = vmatprep.mubr.f32.mxu0 0.0
        %v6802 = vand.u32 %v5954, 4294901760
        %v6803 = vsub.f32 %v5954, %v6802
        %v6804 = vand.u32 %v6803, 4294901760
        %6805 = vmatmul.mubr.f32.gmra.mrb[0].mxu0 %v6804
        %v6806 = vpop.f32.mrb[0].mxu0
        %v6807 = vadd.f32 %v6608, %v6806
        %v6808 = vpop.f32.mrb[0].mxu0
        %6809 = vmatprep.mubr.f32.mxu0 0.0
        %v6810 = vand.u32 %v5955, 4294901760
        %v6811 = vsub.f32 %v5955, %v6810
        %v6812 = vand.u32 %v6811, 4294901760
        %6813 = vmatmul.mubr.f32.gmra.mrb[0].mxu0 %v6812
        %v6814 = vpop.f32.mrb[0].mxu0
        %v6815 = vadd.f32 %v6615, %v6814
        %v6816 = vpop.f32.mrb[0].mxu0
        %6817 = vmatprep.mubr.f32.mxu0 0.0
        %v6818 = vand.u32 %v5956, 4294901760
        %v6819 = vsub.f32 %v5956, %v6818
        %v6820 = vand.u32 %v6819, 4294901760
        %6821 = vmatmul.mubr.f32.gmra.mrb[0].mxu0 %v6820
        %v6822 = vpop.f32.mrb[0].mxu0
        %v6823 = vadd.f32 %v6622, %v6822
        %v6824 = vpop.f32.mrb[0].mxu0
        %6825 = vmatprep.mubr.f32.mxu0 0.0
        %v6826 = vand.u32 %v5957, 4294901760
        %v6827 = vsub.f32 %v5957, %v6826
        %v6828 = vand.u32 %v6827, 4294901760
        %6829 = vmatmul.mubr.f32.gmra.mrb[0].mxu0 %v6828
        %v6830 = vpop.f32.mrb[0].mxu0
        %v6831 = vadd.f32 %v6629, %v6830
        %v6832 = vpop.f32.mrb[0].mxu0
        %6833 = vmatprep.mubr.f32.mxu0 0.0
        %v6834 = vand.u32 %v5958, 4294901760
        %v6835 = vsub.f32 %v5958, %v6834
        %v6836 = vand.u32 %v6835, 4294901760
        %6837 = vmatmul.mubr.f32.gmra.mrb[0].mxu0 %v6836
        %v6838 = vpop.f32.mrb[0].mxu0
        %v6839 = vadd.f32 %v6636, %v6838
        %v6840 = vpop.f32.mrb[0].mxu0
        %6841 = vmatprep.mubr.f32.mxu0 0.0
        %v6842 = vand.u32 %v5959, 4294901760
        %v6843 = vsub.f32 %v5959, %v6842
        %v6844 = vand.u32 %v6843, 4294901760
        %6845 = vmatmul.mubr.f32.gmra.mrb[0].mxu0 %v6844
        %v6846 = vpop.f32.mrb[0].mxu0
        %v6847 = vadd.f32 %v6643, %v6846
        %v6848 = vpop.f32.mrb[0].mxu0
        %6849 = vmatprep.mubr.f32.mxu0 0.0
        %v6850 = vand.u32 %v5960, 4294901760
        %v6851 = vsub.f32 %v5960, %v6850
        %v6852 = vand.u32 %v6851, 4294901760
        %6853 = vmatmul.mubr.f32.gmra.mrb[0].mxu0 %v6852
        %v6854 = vpop.f32.mrb[0].mxu0
        %v6855 = vadd.f32 %v6650, %v6854
        %v6856 = vpop.f32.mrb[0].mxu0
        %6857 = vmatprep.mubr.f32.mxu0 0.0
        %v6858 = vand.u32 %v5961, 4294901760
        %v6859 = vsub.f32 %v5961, %v6858
        %v6860 = vand.u32 %v6859, 4294901760
        %6861 = vmatmul.mubr.f32.gmra.mrb[0].mxu0 %v6860
        %v6862 = vpop.f32.mrb[0].mxu0
        %v6863 = vadd.f32 %v6657, %v6862
        %v6864 = vpop.f32.mrb[0].mxu0
        %6865 = vmatprep.mubr.f32.mxu0 0.0
        %v6866 = vand.u32 %v5962, 4294901760
        %v6867 = vsub.f32 %v5962, %v6866
        %v6868 = vand.u32 %v6867, 4294901760
        %6869 = vmatmul.mubr.f32.gmra.mrb[0].mxu0 %v6868
        %v6870 = vpop.f32.mrb[0].mxu0
        %v6871 = vadd.f32 %v6664, %v6870
        %v6872 = vpop.f32.mrb[0].mxu0
        %6873 = vmatprep.mubr.f32.mxu0 0.0
        %v6874 = vand.u32 %v5963, 4294901760
        %v6875 = vsub.f32 %v5963, %v6874
        %v6876 = vand.u32 %v6875, 4294901760
        %6877 = vmatmul.mubr.f32.gmra.mrb[0].mxu0 %v6876
        %v6878 = vpop.f32.mrb[0].mxu0
        %v6879 = vadd.f32 %v6671, %v6878
        %v6880 = vpop.f32.mrb[0].mxu0
        %6881 = vmatprep.mubr.f32.mxu0 0.0
        %v6882 = vand.u32 %v5964, 4294901760
        %v6883 = vsub.f32 %v5964, %v6882
        %v6884 = vand.u32 %v6883, 4294901760
        %6885 = vmatmul.mubr.f32.gmra.mrb[0].mxu0 %v6884
        %v6886 = vpop.f32.mrb[0].mxu0
        %v6887 = vadd.f32 %v6678, %v6886
        %v6888 = vpop.f32.mrb[0].mxu0
        %6889 = vdwg.mxu0
        %6890 = vmatprep.subr.mxu0 0.0
        %v6891 = vand.u32 %v5966, 4294901760
        %v6892 = vsub.f32 %v5966, %v6891
        %v6893 = vand.u32 %v6892, 4294901760
        %6894 = vmatpush1.msra.mxu0 %v6893
        %6895 = vmatprep.subr.mxu0 0.0
        %v6896 = vand.u32 %v5967, 4294901760
        %v6897 = vsub.f32 %v5967, %v6896
        %v6898 = vand.u32 %v6897, 4294901760
        %6899 = vmatpush1.msra.mxu0 %v6898
        %6900 = vmatprep.subr.mxu0 0.0
        %v6901 = vand.u32 %v5968, 4294901760
        %v6902 = vsub.f32 %v5968, %v6901
        %v6903 = vand.u32 %v6902, 4294901760
        %6904 = vmatpush1.msra.mxu0 %v6903
        %6905 = vmatprep.subr.mxu0 0.0
        %v6906 = vand.u32 %v5969, 4294901760
        %v6907 = vsub.f32 %v5969, %v6906
        %v6908 = vand.u32 %v6907, 4294901760
        %6909 = vmatpush1.msra.mxu0 %v6908
        %6910 = vmatprep.subr.mxu0 0.0
        %v6911 = vand.u32 %v5970, 4294901760
        %v6912 = vsub.f32 %v5970, %v6911
        %v6913 = vand.u32 %v6912, 4294901760
        %6914 = vmatpush1.msra.mxu0 %v6913
        %6915 = vmatprep.subr.mxu0 0.0
        %v6916 = vand.u32 %v5971, 4294901760
        %v6917 = vsub.f32 %v5971, %v6916
        %v6918 = vand.u32 %v6917, 4294901760
        %6919 = vmatpush1.msra.mxu0 %v6918
        %6920 = vmatprep.subr.mxu0 0.0
        %v6921 = vand.u32 %v5972, 4294901760
        %v6922 = vsub.f32 %v5972, %v6921
        %v6923 = vand.u32 %v6922, 4294901760
        %6924 = vmatpush1.msra.mxu0 %v6923
        %6925 = vmatprep.subr.mxu0 0.0
        %v6926 = vand.u32 %v5973, 4294901760
        %v6927 = vsub.f32 %v5973, %v6926
        %v6928 = vand.u32 %v6927, 4294901760
        %6929 = vmatpush1.msra.mxu0 %v6928
        %6930 = vmatprep.subr.mxu0 0.0
        %v6931 = vand.u32 %v5974, 4294901760
        %v6932 = vsub.f32 %v5974, %v6931
        %v6933 = vand.u32 %v6932, 4294901760
        %6934 = vmatpush1.msra.mxu0 %v6933
        %6935 = vmatprep.subr.mxu0 0.0
        %v6936 = vand.u32 %v5975, 4294901760
        %v6937 = vsub.f32 %v5975, %v6936
        %v6938 = vand.u32 %v6937, 4294901760
        %6939 = vmatpush1.msra.mxu0 %v6938
        %6940 = vmatprep.subr.mxu0 0.0
        %v6941 = vand.u32 %v5976, 4294901760
        %v6942 = vsub.f32 %v5976, %v6941
        %v6943 = vand.u32 %v6942, 4294901760
        %6944 = vmatpush1.msra.mxu0 %v6943
        %6945 = vmatprep.subr.mxu0 0.0
        %v6946 = vand.u32 %v5977, 4294901760
        %v6947 = vsub.f32 %v5977, %v6946
        %v6948 = vand.u32 %v6947, 4294901760
        %6949 = vmatpush1.msra.mxu0 %v6948
        %6950 = vmatprep.subr.mxu0 0.0
        %v6951 = vand.u32 %v5978, 4294901760
        %v6952 = vsub.f32 %v5978, %v6951
        %v6953 = vand.u32 %v6952, 4294901760
        %6954 = vmatpush1.msra.mxu0 %v6953
        %6955 = vmatprep.subr.mxu0 0.0
        %v6956 = vand.u32 %v5979, 4294901760
        %v6957 = vsub.f32 %v5979, %v6956
        %v6958 = vand.u32 %v6957, 4294901760
        %6959 = vmatpush1.msra.mxu0 %v6958
        %6960 = vmatprep.subr.mxu0 0.0
        %v6961 = vand.u32 %v5980, 4294901760
        %v6962 = vsub.f32 %v5980, %v6961
        %v6963 = vand.u32 %v6962, 4294901760
        %6964 = vmatpush1.msra.mxu0 %v6963
        %6965 = vmatprep.subr.mxu0 0.0
        %v6966 = vand.u32 %v5981, 4294901760
        %v6967 = vsub.f32 %v5981, %v6966
        %v6968 = vand.u32 %v6967, 4294901760
        %6969 = vmatpush1.msra.mxu0 %v6968
        %6970 = vmatprep.subr.mxu0 0.0
        %6971 = vmatpush1.msra.mxu0 0.0
        %6972 = vmatprep.subr.mxu0 0.0
        %6973 = vmatpush1.msra.mxu0 0.0
        %6974 = vmatprep.subr.mxu0 0.0
        %6975 = vmatpush1.msra.mxu0 0.0
        %6976 = vmatprep.subr.mxu0 0.0
        %6977 = vmatpush1.msra.mxu0 0.0
        %6978 = vmatprep.subr.mxu0 0.0
        %6979 = vmatpush1.msra.mxu0 0.0
        %6980 = vmatprep.subr.mxu0 0.0
        %6981 = vmatpush1.msra.mxu0 0.0
        %6982 = vmatprep.subr.mxu0 0.0
        %6983 = vmatpush1.msra.mxu0 0.0
        %6984 = vmatprep.subr.mxu0 0.0
        %6985 = vmatpush1.msra.mxu0 0.0
        %6986 = vmatprep.subr.mxu0 0.0
        %6987 = vmatpush1.msra.mxu0 0.0
        %6988 = vmatprep.subr.mxu0 0.0
        %6989 = vmatpush1.msra.mxu0 0.0
        %6990 = vmatprep.subr.mxu0 0.0
        %6991 = vmatpush1.msra.mxu0 0.0
        %6992 = vmatprep.subr.mxu0 0.0
        %6993 = vmatpush1.msra.mxu0 0.0
        %6994 = vmatprep.subr.mxu0 0.0
        %6995 = vmatpush1.msra.mxu0 0.0
        %6996 = vmatprep.subr.mxu0 0.0
        %6997 = vmatpush1.msra.mxu0 0.0
        %6998 = vmatprep.subr.mxu0 0.0
        %6999 = vmatpush1.msra.mxu0 0.0
        %7000 = vmatprep.subr.mxu0 0.0
        %7001 = vmatpush1.msra.mxu0 0.0
        %7002 = vmatprep.mubr.f32.mxu0 0.0
        %v7003 = vand.u32 %v5949, 4294901760
        %7004 = vmatmul.mubr.f32.gmra.mrb[0].mxu0 %v7003
        %v7005 = vpop.f32.mrb[0].mxu0
        %v7006 = vadd.f32 %v6767, %v7005
        %v7007 = vpop.f32.mrb[0].mxu0
        %7008 = vmatprep.mubr.f32.mxu0 0.0
        %v7009 = vand.u32 %v5950, 4294901760
        %7010 = vmatmul.mubr.f32.gmra.mrb[0].mxu0 %v7009
        %v7011 = vpop.f32.mrb[0].mxu0
        %v7012 = vadd.f32 %v6775, %v7011
        %v7013 = vpop.f32.mrb[0].mxu0
        %7014 = vmatprep.mubr.f32.mxu0 0.0
        %v7015 = vand.u32 %v5951, 4294901760
        %7016 = vmatmul.mubr.f32.gmra.mrb[0].mxu0 %v7015
        %v7017 = vpop.f32.mrb[0].mxu0
        %v7018 = vadd.f32 %v6783, %v7017
        %v7019 = vpop.f32.mrb[0].mxu0
        %7020 = vmatprep.mubr.f32.mxu0 0.0
        %v7021 = vand.u32 %v5952, 4294901760
        %7022 = vmatmul.mubr.f32.gmra.mrb[0].mxu0 %v7021
        %v7023 = vpop.f32.mrb[0].mxu0
        %v7024 = vadd.f32 %v6791, %v7023
        %v7025 = vpop.f32.mrb[0].mxu0
        %7026 = vmatprep.mubr.f32.mxu0 0.0
        %v7027 = vand.u32 %v5953, 4294901760
        %7028 = vmatmul.mubr.f32.gmra.mrb[0].mxu0 %v7027
        %v7029 = vpop.f32.mrb[0].mxu0
        %v7030 = vadd.f32 %v6799, %v7029
        %v7031 = vpop.f32.mrb[0].mxu0
        %7032 = vmatprep.mubr.f32.mxu0 0.0
        %v7033 = vand.u32 %v5954, 4294901760
        %7034 = vmatmul.mubr.f32.gmra.mrb[0].mxu0 %v7033
        %v7035 = vpop.f32.mrb[0].mxu0
        %v7036 = vadd.f32 %v6807, %v7035
        %v7037 = vpop.f32.mrb[0].mxu0
        %7038 = vmatprep.mubr.f32.mxu0 0.0
        %v7039 = vand.u32 %v5955, 4294901760
        %7040 = vmatmul.mubr.f32.gmra.mrb[0].mxu0 %v7039
        %v7041 = vpop.f32.mrb[0].mxu0
        %v7042 = vadd.f32 %v6815, %v7041
        %v7043 = vpop.f32.mrb[0].mxu0
        %7044 = vmatprep.mubr.f32.mxu0 0.0
        %v7045 = vand.u32 %v5956, 4294901760
        %7046 = vmatmul.mubr.f32.gmra.mrb[0].mxu0 %v7045
        %v7047 = vpop.f32.mrb[0].mxu0
        %v7048 = vadd.f32 %v6823, %v7047
        %v7049 = vpop.f32.mrb[0].mxu0
        %7050 = vmatprep.mubr.f32.mxu0 0.0
        %v7051 = vand.u32 %v5957, 4294901760
        %7052 = vmatmul.mubr.f32.gmra.mrb[0].mxu0 %v7051
        %v7053 = vpop.f32.mrb[0].mxu0
        %v7054 = vadd.f32 %v6831, %v7053
        %v7055 = vpop.f32.mrb[0].mxu0
        %7056 = vmatprep.mubr.f32.mxu0 0.0
        %v7057 = vand.u32 %v5958, 4294901760
        %7058 = vmatmul.mubr.f32.gmra.mrb[0].mxu0 %v7057
        %v7059 = vpop.f32.mrb[0].mxu0
        %v7060 = vadd.f32 %v6839, %v7059
        %v7061 = vpop.f32.mrb[0].mxu0
        %7062 = vmatprep.mubr.f32.mxu0 0.0
        %v7063 = vand.u32 %v5959, 4294901760
        %7064 = vmatmul.mubr.f32.gmra.mrb[0].mxu0 %v7063
        %v7065 = vpop.f32.mrb[0].mxu0
        %v7066 = vadd.f32 %v6847, %v7065
        %v7067 = vpop.f32.mrb[0].mxu0
        %7068 = vmatprep.mubr.f32.mxu0 0.0
        %v7069 = vand.u32 %v5960, 4294901760
        %7070 = vmatmul.mubr.f32.gmra.mrb[0].mxu0 %v7069
        %v7071 = vpop.f32.mrb[0].mxu0
        %v7072 = vadd.f32 %v6855, %v7071
        %v7073 = vpop.f32.mrb[0].mxu0
        %7074 = vmatprep.mubr.f32.mxu0 0.0
        %v7075 = vand.u32 %v5961, 4294901760
        %7076 = vmatmul.mubr.f32.gmra.mrb[0].mxu0 %v7075
        %v7077 = vpop.f32.mrb[0].mxu0
        %v7078 = vadd.f32 %v6863, %v7077
        %v7079 = vpop.f32.mrb[0].mxu0
        %7080 = vmatprep.mubr.f32.mxu0 0.0
        %v7081 = vand.u32 %v5962, 4294901760
        %7082 = vmatmul.mubr.f32.gmra.mrb[0].mxu0 %v7081
        %v7083 = vpop.f32.mrb[0].mxu0
        %v7084 = vadd.f32 %v6871, %v7083
        %v7085 = vpop.f32.mrb[0].mxu0
        %7086 = vmatprep.mubr.f32.mxu0 0.0
        %v7087 = vand.u32 %v5963, 4294901760
        %7088 = vmatmul.mubr.f32.gmra.mrb[0].mxu0 %v7087
        %v7089 = vpop.f32.mrb[0].mxu0
        %v7090 = vadd.f32 %v6879, %v7089
        %v7091 = vpop.f32.mrb[0].mxu0
        %7092 = vmatprep.mubr.f32.mxu0 0.0
        %v7093 = vand.u32 %v5964, 4294901760
        %7094 = vmatmul.mubr.f32.gmra.mrb[0].mxu0 %v7093
        %v7095 = vpop.f32.mrb[0].mxu0
        %v7096 = vadd.f32 %v6887, %v7095
        %v7097 = vpop.f32.mrb[0].mxu0
        %7098 = vdwg.mxu0
        %7099 = vmatprep.subr.mxu0 0.0
        %v7100 = vand.u32 %v5966, 4294901760
        %7101 = vmatpush1.msra.mxu0 %v7100
        %7102 = vmatprep.subr.mxu0 0.0
        %v7103 = vand.u32 %v5967, 4294901760
        %7104 = vmatpush1.msra.mxu0 %v7103
        %7105 = vmatprep.subr.mxu0 0.0
        %v7106 = vand.u32 %v5968, 4294901760
        %7107 = vmatpush1.msra.mxu0 %v7106
        %7108 = vmatprep.subr.mxu0 0.0
        %v7109 = vand.u32 %v5969, 4294901760
        %7110 = vmatpush1.msra.mxu0 %v7109
        %7111 = vmatprep.subr.mxu0 0.0
        %v7112 = vand.u32 %v5970, 4294901760
        %7113 = vmatpush1.msra.mxu0 %v7112
        %7114 = vmatprep.subr.mxu0 0.0
        %v7115 = vand.u32 %v5971, 4294901760
        %7116 = vmatpush1.msra.mxu0 %v7115
        %7117 = vmatprep.subr.mxu0 0.0
        %v7118 = vand.u32 %v5972, 4294901760
        %7119 = vmatpush1.msra.mxu0 %v7118
        %7120 = vmatprep.subr.mxu0 0.0
        %v7121 = vand.u32 %v5973, 4294901760
        %7122 = vmatpush1.msra.mxu0 %v7121
        %7123 = vmatprep.subr.mxu0 0.0
        %v7124 = vand.u32 %v5974, 4294901760
        %7125 = vmatpush1.msra.mxu0 %v7124
        %7126 = vmatprep.subr.mxu0 0.0
        %v7127 = vand.u32 %v5975, 4294901760
        %7128 = vmatpush1.msra.mxu0 %v7127
        %7129 = vmatprep.subr.mxu0 0.0
        %v7130 = vand.u32 %v5976, 4294901760
        %7131 = vmatpush1.msra.mxu0 %v7130
        %7132 = vmatprep.subr.mxu0 0.0
        %v7133 = vand.u32 %v5977, 4294901760
        %7134 = vmatpush1.msra.mxu0 %v7133
        %7135 = vmatprep.subr.mxu0 0.0
        %v7136 = vand.u32 %v5978, 4294901760
        %7137 = vmatpush1.msra.mxu0 %v7136
        %7138 = vmatprep.subr.mxu0 0.0
        %v7139 = vand.u32 %v5979, 4294901760
        %7140 = vmatpush1.msra.mxu0 %v7139
        %7141 = vmatprep.subr.mxu0 0.0
        %v7142 = vand.u32 %v5980, 4294901760
        %7143 = vmatpush1.msra.mxu0 %v7142
        %7144 = vmatprep.subr.mxu0 0.0
        %v7145 = vand.u32 %v5981, 4294901760
        %7146 = vmatpush1.msra.mxu0 %v7145
        %7147 = vmatprep.subr.mxu0 0.0
        %7148 = vmatpush1.msra.mxu0 0.0
        %7149 = vmatprep.subr.mxu0 0.0
        %7150 = vmatpush1.msra.mxu0 0.0
        %7151 = vmatprep.subr.mxu0 0.0
        %7152 = vmatpush1.msra.mxu0 0.0
        %7153 = vmatprep.subr.mxu0 0.0
        %7154 = vmatpush1.msra.mxu0 0.0
        %7155 = vmatprep.subr.mxu0 0.0
        %7156 = vmatpush1.msra.mxu0 0.0
        %7157 = vmatprep.subr.mxu0 0.0
        %7158 = vmatpush1.msra.mxu0 0.0
        %7159 = vmatprep.subr.mxu0 0.0
        %7160 = vmatpush1.msra.mxu0 0.0
        %7161 = vmatprep.subr.mxu0 0.0
        %7162 = vmatpush1.msra.mxu0 0.0
        %7163 = vmatprep.subr.mxu0 0.0
        %7164 = vmatpush1.msra.mxu0 0.0
        %7165 = vmatprep.subr.mxu0 0.0
        %7166 = vmatpush1.msra.mxu0 0.0
        %7167 = vmatprep.subr.mxu0 0.0
        %7168 = vmatpush1.msra.mxu0 0.0
        %7169 = vmatprep.subr.mxu0 0.0
        %7170 = vmatpush1.msra.mxu0 0.0
        %7171 = vmatprep.subr.mxu0 0.0
        %7172 = vmatpush1.msra.mxu0 0.0
        %7173 = vmatprep.subr.mxu0 0.0
        %7174 = vmatpush1.msra.mxu0 0.0
        %7175 = vmatprep.subr.mxu0 0.0
        %7176 = vmatpush1.msra.mxu0 0.0
        %7177 = vmatprep.subr.mxu0 0.0
        %7178 = vmatpush1.msra.mxu0 0.0
        %7179 = vmatprep.mubr.f32.mxu0 0.0
        %v7180 = vand.u32 %v5949, 4294901760
        %7181 = vmatmul.mubr.f32.gmra.mrb[0].mxu0 %v7180
        %v7182 = vpop.f32.mrb[0].mxu0
        %v7183 = vadd.f32 %v7006, %v7182
        %v7184 = vpop.f32.mrb[0].mxu0
        %7185 = vmatprep.mubr.f32.mxu0 0.0
        %v7186 = vand.u32 %v5950, 4294901760
        %7187 = vmatmul.mubr.f32.gmra.mrb[0].mxu0 %v7186
        %v7188 = vpop.f32.mrb[0].mxu0
        %v7189 = vadd.f32 %v7012, %v7188
        %v7190 = vpop.f32.mrb[0].mxu0
        %7191 = vmatprep.mubr.f32.mxu0 0.0
        %v7192 = vand.u32 %v5951, 4294901760
        %7193 = vmatmul.mubr.f32.gmra.mrb[0].mxu0 %v7192
        %v7194 = vpop.f32.mrb[0].mxu0
        %v7195 = vadd.f32 %v7018, %v7194
        %v7196 = vpop.f32.mrb[0].mxu0
        %7197 = vmatprep.mubr.f32.mxu0 0.0
        %v7198 = vand.u32 %v5952, 4294901760
        %7199 = vmatmul.mubr.f32.gmra.mrb[0].mxu0 %v7198
        %v7200 = vpop.f32.mrb[0].mxu0
        %v7201 = vadd.f32 %v7024, %v7200
        %v7202 = vpop.f32.mrb[0].mxu0
        %7203 = vmatprep.mubr.f32.mxu0 0.0
        %v7204 = vand.u32 %v5953, 4294901760
        %7205 = vmatmul.mubr.f32.gmra.mrb[0].mxu0 %v7204
        %v7206 = vpop.f32.mrb[0].mxu0
        %v7207 = vadd.f32 %v7030, %v7206
        %v7208 = vpop.f32.mrb[0].mxu0
        %7209 = vmatprep.mubr.f32.mxu0 0.0
        %v7210 = vand.u32 %v5954, 4294901760
        %7211 = vmatmul.mubr.f32.gmra.mrb[0].mxu0 %v7210
        %v7212 = vpop.f32.mrb[0].mxu0
        %v7213 = vadd.f32 %v7036, %v7212
        %v7214 = vpop.f32.mrb[0].mxu0
        %7215 = vmatprep.mubr.f32.mxu0 0.0
        %v7216 = vand.u32 %v5955, 4294901760
        %7217 = vmatmul.mubr.f32.gmra.mrb[0].mxu0 %v7216
        %v7218 = vpop.f32.mrb[0].mxu0
        %v7219 = vadd.f32 %v7042, %v7218
        %v7220 = vpop.f32.mrb[0].mxu0
        %7221 = vmatprep.mubr.f32.mxu0 0.0
        %v7222 = vand.u32 %v5956, 4294901760
        %7223 = vmatmul.mubr.f32.gmra.mrb[0].mxu0 %v7222
        %v7224 = vpop.f32.mrb[0].mxu0
        %v7225 = vadd.f32 %v7048, %v7224
        %v7226 = vpop.f32.mrb[0].mxu0
        %7227 = vmatprep.mubr.f32.mxu0 0.0
        %v7228 = vand.u32 %v5957, 4294901760
        %7229 = vmatmul.mubr.f32.gmra.mrb[0].mxu0 %v7228
        %v7230 = vpop.f32.mrb[0].mxu0
        %v7231 = vadd.f32 %v7054, %v7230
        %v7232 = vpop.f32.mrb[0].mxu0
        %7233 = vmatprep.mubr.f32.mxu0 0.0
        %v7234 = vand.u32 %v5958, 4294901760
        %7235 = vmatmul.mubr.f32.gmra.mrb[0].mxu0 %v7234
        %v7236 = vpop.f32.mrb[0].mxu0
        %v7237 = vadd.f32 %v7060, %v7236
        %v7238 = vpop.f32.mrb[0].mxu0
        %7239 = vmatprep.mubr.f32.mxu0 0.0
        %v7240 = vand.u32 %v5959, 4294901760
        %7241 = vmatmul.mubr.f32.gmra.mrb[0].mxu0 %v7240
        %v7242 = vpop.f32.mrb[0].mxu0
        %v7243 = vadd.f32 %v7066, %v7242
        %v7244 = vpop.f32.mrb[0].mxu0
        %7245 = vmatprep.mubr.f32.mxu0 0.0
        %v7246 = vand.u32 %v5960, 4294901760
        %7247 = vmatmul.mubr.f32.gmra.mrb[0].mxu0 %v7246
        %v7248 = vpop.f32.mrb[0].mxu0
        %v7249 = vadd.f32 %v7072, %v7248
        %v7250 = vpop.f32.mrb[0].mxu0
        %7251 = vmatprep.mubr.f32.mxu0 0.0
        %v7252 = vand.u32 %v5961, 4294901760
        %7253 = vmatmul.mubr.f32.gmra.mrb[0].mxu0 %v7252
        %v7254 = vpop.f32.mrb[0].mxu0
        %v7255 = vadd.f32 %v7078, %v7254
        %v7256 = vpop.f32.mrb[0].mxu0
        %7257 = vmatprep.mubr.f32.mxu0 0.0
        %v7258 = vand.u32 %v5962, 4294901760
        %7259 = vmatmul.mubr.f32.gmra.mrb[0].mxu0 %v7258
        %v7260 = vpop.f32.mrb[0].mxu0
        %v7261 = vadd.f32 %v7084, %v7260
        %v7262 = vpop.f32.mrb[0].mxu0
        %7263 = vmatprep.mubr.f32.mxu0 0.0
        %v7264 = vand.u32 %v5963, 4294901760
        %7265 = vmatmul.mubr.f32.gmra.mrb[0].mxu0 %v7264
        %v7266 = vpop.f32.mrb[0].mxu0
        %v7267 = vadd.f32 %v7090, %v7266
        %v7268 = vpop.f32.mrb[0].mxu0
        %7269 = vmatprep.mubr.f32.mxu0 0.0
        %v7270 = vand.u32 %v5964, 4294901760
        %7271 = vmatmul.mubr.f32.gmra.mrb[0].mxu0 %v7270
        %v7272 = vpop.f32.mrb[0].mxu0
        %v7273 = vadd.f32 %v7096, %v7272
        %v7274 = vpop.f32.mrb[0].mxu0
        %7275 = vdwg.mxu0
        %v7276 = vadd.f32 %v4398, %v7183
        %v7277 = vadd.f32 %v4399, %v7189
        %v7278 = vadd.f32 %v4400, %v7195
        %v7279 = vadd.f32 %v4401, %v7201
        %v7280 = vadd.f32 %v4402, %v7207
        %v7281 = vadd.f32 %v4403, %v7213
        %v7282 = vadd.f32 %v4404, %v7219
        %v7283 = vadd.f32 %v4405, %v7225
        %v7284 = vadd.f32 %v4406, %v7231
        %v7285 = vadd.f32 %v4407, %v7237
        %v7286 = vadd.f32 %v4408, %v7243
        %v7287 = vadd.f32 %v4409, %v7249
        %v7288 = vadd.f32 %v4410, %v7255
        %v7289 = vadd.f32 %v4411, %v7261
        %v7290 = vadd.f32 %v4412, %v7267
        %v7291 = vadd.f32 %v4413, %v7273
        %7292 = vst [vmem:[%s341] sm:$0xff] %v7276
        %7293 = vst [vmem:[%s341 + $0x8] sm:$0xff] %v7277
        %7294 = vst [vmem:[%s341 + $0x10] sm:$0xff] %v7278
        %7295 = vst [vmem:[%s341 + $0x18] sm:$0xff] %v7279
        %7296 = vst [vmem:[%s341 + $0x20] sm:$0xff] %v7280
        %7297 = vst [vmem:[%s341 + $0x28] sm:$0xff] %v7281
        %7298 = vst [vmem:[%s341 + $0x30] sm:$0xff] %v7282
        %7299 = vst [vmem:[%s341 + $0x38] sm:$0xff] %v7283
        %7300 = vst [vmem:[%s341 + $0x40] sm:$0xff] %v7284
        %7301 = vst [vmem:[%s341 + $0x48] sm:$0xff] %v7285
        %7302 = vst [vmem:[%s341 + $0x50] sm:$0xff] %v7286
        %7303 = vst [vmem:[%s341 + $0x58] sm:$0xff] %v7287
        %7304 = vst [vmem:[%s341 + $0x60] sm:$0xff] %v7288
        %7305 = vst [vmem:[%s341 + $0x68] sm:$0xff] %v7289
        %7306 = vst [vmem:[%s341 + $0x70] sm:$0xff] %v7290
        %7307 = vst [vmem:[%s341 + $0x78] sm:$0xff] %v7291
        %s7308 = sand.u32 %s226, 1
        %s7309 = scalar_lea.sflag [#allocation4], %s7308
        %s7310 = sand.u32 %s226, 1
        %s7311 = smul.addr %s7310, 128
        %s7312 = scalar_lea.vmem [#allocation5], %s7311
        // Predicated region
        $region61: #{tpu_custom_call.1} parent=55 // pred_check
          %p7313 = pneg %p236
        $region62: #{tpu_custom_call.1} parent=55 // pred_check_branch
          %7315 = sbr.rel (%p7313) target = $region64
        $region63: #{tpu_custom_call.1} parent=55 // pred_region
          %s7316 = smul.u32 16, %s24
          %s7318 = ssub.s32 2048, 2048
          %7319 = vsyncadd %s7309, %s7318
          %s7320 = smul.addr %s7316, 128
          %s7321 = scalar_lea.hbm %s9, %s7320
          %s7322 = sshll.u32 %s7312, 4
          %s7323 = int_to_ptr.vmem [resolvable:$true] %s7322
          %7328 = dma.vmem_to_hbm [thread:$0]  %s7323, 2048, %s7321, %s7309, 128, 128, 8
        $region64: #{tpu_custom_call.1} parent=55 // pred_fallthru
          _
      $region56: #{tpu_custom_call.1} parent=5 // pred_fallthru
        _
      %p7329 = scmp.le.s32.totalorder 2, %s19
      // Predicated region
      $region65: #{tpu_custom_call.1} parent=5 // pred_check
        %p7330 = pneg %p7329
      $region66: #{tpu_custom_call.1} parent=5 // pred_check_branch
        %7332 = sbr.rel (%p7330) target = $region68
      $region67: #{tpu_custom_call.1} parent=5 // pred_region
        %s7333 = ssub.s32 %s19, 2
        // Predicated region
        $region69: #{tpu_custom_call.1} parent=67 // pred_check
          %p7334 = pneg %p242
        $region70: #{tpu_custom_call.1} parent=67 // pred_check_branch
          %7336 = sbr.rel (%p7334) target = $region72
        $region71: #{tpu_custom_call.1} parent=67 // pred_region
          %s7337 = sand.u32 %s227, 1
          %s7338 = scalar_lea.sflag [#allocation4], %s7337
          %s7339 = sand.u32 %s227, 1
          %s7340 = smul.addr %s7339, 128
          %s7341 = scalar_lea.vmem [#allocation5], %s7340
          %7342 = dma.done %s7338, 2048
        $region72: #{tpu_custom_call.1} parent=67 // pred_fallthru
          _
      $region68: #{tpu_custom_call.1} parent=5 // pred_fallthru
        _
    $region6: #{tpu_custom_call.1} parent=1 // loop_footer
      %s23 = sadd.s32 1, %s19
    $region7: #{tpu_custom_call.1} parent=1 // loop_footer_branch
      %18 = sbr.rel target = $region3
    $region8: #{tpu_custom_call.1} parent=1 // loop_exit
      _
    %7343 = vsyncpa [#allocation3], 1
    %s7344 = scalar_lea.sflag [#allocation3], 1
    %7345 = vsyncpa %s7344, 1
    %7346 = vsyncpa [#allocation4], 1
    %s7347 = scalar_lea.sflag [#allocation4], 1
    %7348 = vsyncpa %s7347, 1

</llo_original>
